<compile_context>
chip_gen: v5e
topology: v5e:2x2
jax: 0.10.0
libtpu: 0.0.40
codegen_flags: <defaults>
</compile_context>

<pallas_src>
import numpy as np
import jax
import jax.numpy as jnp
from jax.experimental import pallas as pl
from jax.experimental.pallas import tpu as pltpu

LANES = 128    # all inter-kernel activations are (rows, 128) lane-dense slabs
K_PAD = 32     # conv1 im2col contraction dim (3*9=27) padded to 32


def _vmem_spec():
    return pl.BlockSpec(memory_space=pltpu.MemorySpace.VMEM)


# --------------------------------------------------------------------------
# Pallas kernels (each one is a single fused, fully VMEM-resident kernel)
# --------------------------------------------------------------------------

def _conv1_pool_kernel(patch_ref, w_ref, b_ref, p_ref, off_ref, o_ref):
    """conv1 3x3/s2 (im2col matmul, BN scale folded) + ReLU + 3x3/s2 maxpool."""
    h = jnp.dot(patch_ref[...], w_ref[...], preferred_element_type=jnp.float32)
    h = jnp.maximum(h + b_ref[...], 0.0)
    # maxpool: tap k gathered with a constant 0/1 row-selection matrix;
    # off_ref[k] is 0 for valid taps and -1e30 where the window hits padding.
    m = jnp.dot(p_ref[0], h, preferred_element_type=jnp.float32) + off_ref[0]
    for k in range(1, 9):
        t = jnp.dot(p_ref[k], h, preferred_element_type=jnp.float32) + off_ref[k]
        m = jnp.maximum(m, t)
    o_ref[...] = m


def _dw3x3_bn(p_ref, y, w_ref, b_ref):
    """Depthwise 3x3 + folded BN on a (rows, 128) slab.

    p_ref[k][r_out, r_in] = 1 iff output pixel r_out's k-th tap reads input
    pixel r_in (out-of-bounds taps are all-zero rows == zero padding; the
    stride-2 spatial subsampling is folded into the same matrix).  w_ref[k]
    holds the per-channel tap weights (BN scale folded), b_ref the BN bias.
    """
    acc = jnp.dot(p_ref[0], y, preferred_element_type=jnp.float32) * w_ref[0]
    for k in range(1, 9):
        acc = acc + jnp.dot(p_ref[k], y,
                            preferred_element_type=jnp.float32) * w_ref[k]
    return acc + b_ref[...]


def _block_s1_kernel(x_ref, p_ref, s1_ref,
                     w21_ref, b21_ref, wdw_ref, bdw_ref, w22_ref, b22_ref,
                     o_ref):
    """Whole stride-1 InvertedResidual block (split, branch2, concat, shuffle)."""
    x = x_ref[...]
    # branch2 pw1 (+BN+ReLU): W21's nonzero rows select the x2 channel half.
    y = jnp.dot(x.astype(jnp.bfloat16), w21_ref[...],
                preferred_element_type=jnp.float32)
    y = jnp.maximum(y + b21_ref[...], 0.0)
    z = _dw3x3_bn(p_ref, y, wdw_ref, bdw_ref)           # branch2 dw3x3 (+BN)
    # branch2 pw2 (+BN+ReLU); channel-shuffle scatter folded into W22 columns.
    b2 = jnp.dot(z.astype(jnp.bfloat16), w22_ref[...],
                 preferred_element_type=jnp.float32)
    b2 = jnp.maximum(b2 + b22_ref[...], 0.0)
    # branch1 = x1 passthrough scattered to its shuffled lanes (f32 selection).
    b1 = jnp.dot(x, s1_ref[...], preferred_element_type=jnp.float32)
    o_ref[...] = b1 + b2                                # concat + shuffle


def _block_s2_kernel(x_ref, p_ref,
                     wdw1_ref, bdw1_ref, w1b_ref, b1b_ref,
                     w21_ref, b21_ref, wdw2_ref, bdw2_ref, w22_ref, b22_ref,
                     o_ref):
    """Whole stride-2 InvertedResidual block (both branches, concat, shuffle)."""
    x = x_ref[...]
    # branch2: pw1 (+BN+ReLU) -> dw3x3/s2 (+BN) -> pw2 (+BN+ReLU, shuffled cols)
    y = jnp.dot(x.astype(jnp.bfloat16), w21_ref[...],
                preferred_element_type=jnp.float32)
    y = jnp.maximum(y + b21_ref[...], 0.0)
    z2 = _dw3x3_bn(p_ref, y, wdw2_ref, bdw2_ref)
    b2 = jnp.dot(z2.astype(jnp.bfloat16), w22_ref[...],
                 preferred_element_type=jnp.float32)
    b2 = jnp.maximum(b2 + b22_ref[...], 0.0)
    # branch1: dw3x3/s2 (+BN) -> pw 1x1 (+BN+ReLU, shuffled cols)
    z1 = _dw3x3_bn(p_ref, x, wdw1_ref, bdw1_ref)
    b1 = jnp.dot(z1.astype(jnp.bfloat16), w1b_ref[...],
                 preferred_element_type=jnp.float32)
    b1 = jnp.maximum(b1 + b1b_ref[...], 0.0)
    o_ref[...] = b1 + b2


# --------------------------------------------------------------------------
# pallas_call wrapper (no grid: whole-array VMEM operands, no pipeline)
# --------------------------------------------------------------------------

def _call_fused(kernel, inputs, out_rows, flops):
    bytes_accessed = sum(int(np.prod(a.shape)) * a.dtype.itemsize for a in inputs)
    bytes_accessed += out_rows * LANES * 4
    return pl.pallas_call(
        kernel,
        out_shape=jax.ShapeDtypeStruct((out_rows, LANES), jnp.float32),
        in_specs=[_vmem_spec() for _ in inputs],
        out_specs=_vmem_spec(),
        cost_estimate=pl.CostEstimate(flops=int(flops), transcendentals=0,
                                      bytes_accessed=int(bytes_accessed)),
    )(*inputs)


def _stem_flops(m1, m2):
    return 2 * m1 * K_PAD * LANES + 2 * 9 * m2 * m1 * LANES


def _block_flops(stride, r_in, r_out):
    pw = 2 * LANES * LANES
    dw = 2 * 9 * r_out * r_in * LANES
    if stride == 1:
        return 3 * r_in * pw + dw
    return r_in * pw + 2 * r_out * pw + 2 * dw


# --------------------------------------------------------------------------
# Host-side constant construction (tap selectors, BN folding, lane packing)
# --------------------------------------------------------------------------

def _build_tap_selectors(n, h, w, stride):
    """0/1 row-selection matrices for a 3x3 window, pad=1, given stride."""
    ho = (h + 2 - 3) // stride + 1
    wo = (w + 2 - 3) // stride + 1
    mi, mo = n * h * w, n * ho * wo
    sel = np.zeros((9, mo, mi), np.float32)
    valid = np.zeros((9, mo, 1), np.float32)
    for k in range(9):
        dy, dx = divmod(k, 3)
        for nn in range(n):
            for oy in range(ho):
                for ox in range(wo):
                    iy = stride * oy + dy - 1
                    ix = stride * ox + dx - 1
                    r = (nn * ho + oy) * wo + ox
                    if 0 <= iy < h and 0 <= ix < w:
                        sel[k, r, (nn * h + iy) * w + ix] = 1.0
                        valid[k, r, 0] = 1.0
    return sel, valid, ho, wo


def _pad2d(a, rows, cols, row_off=0, col_off=0):
    out = np.zeros((rows, cols), np.float32)
    a = np.asarray(a, np.float32)
    out[row_off:row_off + a.shape[0], col_off:col_off + a.shape[1]] = a
    return out


def _scatter_cols(w, col_idx):
    out = np.zeros((LANES, LANES), np.float32)
    w = np.asarray(w, np.float32)
    out[:w.shape[0], np.asarray(col_idx)] = w
    return out


def _scatter_bias(b, col_idx):
    out = np.zeros((1, LANES), np.float32)
    out[0, np.asarray(col_idx)] = np.asarray(b, np.float32)
    return out


def _pad_bias(b):
    out = np.zeros((1, LANES), np.float32)
    b = np.asarray(b, np.float32)
    out[0, :b.shape[0]] = b
    return out


def _pack_dw(w_dw, scale):
    """(C,3,3) depthwise weights * BN scale -> (9, 1, 128) per-tap lane vectors."""
    c = np.asarray(w_dw).shape[0]
    wk = np.asarray(w_dw, np.float32).reshape(c, 9) * np.asarray(scale, np.float32)[:, None]
    out = np.zeros((9, 1, LANES), np.float32)
    out[:, 0, :c] = wk.T
    return out


def _plan_stem(params, n, h, w):
    c0 = int(np.asarray(params['conv1_w']).shape[0])
    h1, w1 = (h + 2 - 3) // 2 + 1, (w + 2 - 3) // 2 + 1      # conv1 output
    wm = np.asarray(params['conv1_w'], np.float32).reshape(c0, -1).T   # (27, c0)
    wm = wm * np.asarray(params['conv1_s'], np.float32)[None, :]       # fold BN
    wpad = np.zeros((K_PAD, LANES), np.float32)
    wpad[:wm.shape[0], :c0] = wm
    bias = _pad_bias(params['conv1_b'])
    sel, valid, h2, w2 = _build_tap_selectors(n, h1, w1, 2)            # maxpool
    off = (valid - 1.0) * 1e30
    return {'w': jnp.asarray(wpad, jnp.bfloat16), 'b': jnp.asarray(bias),
            'P': jnp.asarray(sel), 'off': jnp.asarray(off),
            'c0': c0, 'h1': h1, 'w1': w1, 'h2': h2, 'w2': w2,
            'rows_out': n * h2 * w2}


def _plan_block(blk, c_out, n, h, w):
    bf = c_out // 2
    stride = blk['stride']
    sel, _, ho, wo = _build_tap_selectors(n, h, w, stride)
    even = 2 * np.arange(bf)
    odd = even + 1

    def fold(wmat, scale):
        return np.asarray(wmat, np.float32) * np.asarray(scale, np.float32)[None, :]

    plan = {
        'stride': stride, 'ho': ho, 'wo': wo, 'c_out': c_out,
        'rows_in': n * h * w, 'rows_out': n * ho * wo,
        'P': jnp.asarray(sel),
        'Wdw2': jnp.asarray(_pack_dw(blk['b2_dw_w'], blk['b2_dw_s'])),
        'bdw2': jnp.asarray(_pad_bias(blk['b2_dw_b'])),
        'W22': jnp.asarray(_scatter_cols(fold(blk['b2_pw2_w'], blk['b2_pw2_s']), odd),
                           jnp.bfloat16),
        'b22': jnp.asarray(_scatter_bias(blk['b2_pw2_b'], odd)),
        'b21': jnp.asarray(_pad_bias(blk['b2_pw1_b'])),
    }
    w21 = fold(blk['b2_pw1_w'], blk['b2_pw1_s'])
    if stride == 1:
        # branch2 consumes x2 = channel half [bf, 2bf): shift W21 rows by bf.
        plan['W21'] = jnp.asarray(_pad2d(w21, LANES, LANES, row_off=bf), jnp.bfloat16)
        s1 = np.zeros((LANES, LANES), np.float32)       # x1 passthrough scatter
        s1[np.arange(bf), even] = 1.0
        plan['S1'] = jnp.asarray(s1)
    else:
        plan['W21'] = jnp.asarray(_pad2d(w21, LANES, LANES), jnp.bfloat16)
        plan['Wdw1'] = jnp.asarray(_pack_dw(blk['b1_dw_w'], blk['b1_dw_s']))
        plan['bdw1'] = jnp.asarray(_pad_bias(blk['b1_dw_b']))
        plan['W1b'] = jnp.asarray(_scatter_cols(fold(blk['b1_pw_w'], blk['b1_pw_s']), even),
                                  jnp.bfloat16)
        plan['b1b'] = jnp.asarray(_scatter_bias(blk['b1_pw_b'], even))
    return plan


# --------------------------------------------------------------------------
# JAX glue: im2col for conv1 (tiny, one-time) and the full forward pass
# --------------------------------------------------------------------------

def _im2col_3x3_s2(x):
    """x: (N,H,W,C) -> (N*Ho*Wo, C*9) patches, (c, dy, dx) with dx fastest."""
    n, h, w, c = x.shape
    ho, wo = (h + 2 - 3) // 2 + 1, (w + 2 - 3) // 2 + 1
    xp = jnp.pad(x, ((0, 0), (1, 1), (1, 1), (0, 0)))
    taps = [xp[:, dy:dy + 2 * (ho - 1) + 1:2, dx:dx + 2 * (wo - 1) + 1:2, :]
            for dy in range(3) for dx in range(3)]
    pat = jnp.stack(taps, axis=-1)                       # (N,Ho,Wo,C,9)
    return pat.reshape(n * ho * wo, c * 9)


def make_forward(params, input_shape):
    n, _, h_in, w_in = input_shape
    stem = _plan_stem(params, n, h_in, w_in)

    stage_plans, stage_shapes = [], []
    cur_c, cur_h, cur_w = stem['c0'], stem['h2'], stem['w2']
    for stage in params['stages']:
        plans = []
        for blk in stage:
            bf = int(np.asarray(blk['b2_pw2_w']).shape[1])
            c_out = 2 * bf
            bp = _plan_block(blk, c_out, n, cur_h, cur_w)
            plans.append(bp)
            cur_c, cur_h, cur_w = c_out, bp['ho'], bp['wo']
        stage_plans.append(plans)
        stage_shapes.append((cur_c, cur_h, cur_w))

    m1 = n * stem['h1'] * stem['w1']
    m2 = stem['rows_out']

    def forward(x_nchw):
        x = jnp.transpose(x_nchw, (0, 2, 3, 1))          # NCHW -> NHWC
        pat = _im2col_3x3_s2(x)
        pat = jnp.pad(pat, ((0, 0), (0, K_PAD - pat.shape[1]))).astype(jnp.bfloat16)
        slab = _call_fused(_conv1_pool_kernel,
                           [pat, stem['w'], stem['b'], stem['P'], stem['off']],
                           m2, _stem_flops(m1, m2))
        feats = []
        for plans, (c, hh, ww) in zip(stage_plans, stage_shapes):
            for bp in plans:
                if bp['stride'] == 1:
                    ins = [slab, bp['P'], bp['S1'],
                           bp['W21'], bp['b21'], bp['Wdw2'], bp['bdw2'],
                           bp['W22'], bp['b22']]
                    slab = _call_fused(_block_s1_kernel, ins, bp['rows_out'],
                                       _block_flops(1, bp['rows_in'], bp['rows_out']))
                else:
                    ins = [slab, bp['P'],
                           bp['Wdw1'], bp['bdw1'], bp['W1b'], bp['b1b'],
                           bp['W21'], bp['b21'], bp['Wdw2'], bp['bdw2'],
                           bp['W22'], bp['b22']]
                    slab = _call_fused(_block_s2_kernel, ins, bp['rows_out'],
                                       _block_flops(2, bp['rows_in'], bp['rows_out']))
            feat = slab.reshape(n, hh, ww, LANES)[..., :c]
            feats.append(jnp.transpose(feat, (0, 3, 1, 2)))   # NHWC -> NCHW
        stage3, stage4, stage5 = feats
        return stage5, stage4, stage3

    return jax.jit(forward)


# --------------------------------------------------------------------------
# Deterministic synthetic parameters (same construction as before)
# --------------------------------------------------------------------------

class ParamGen:
    def __init__(self, key):
        self._key = key
        self._count = 0

    def normal(self, shape, scale):
        k = jax.random.fold_in(self._key, self._count)
        self._count += 1
        return jax.random.normal(k, shape, jnp.float32) * scale

    def bn(self, c):
        # eval-mode BatchNorm folded into per-channel scale / bias
        s = 1.0 + 0.1 * self.normal((c,), 1.0)
        b = 0.05 * self.normal((c,), 1.0)
        return s, b


def make_shufflenetv2_params(key, stages_repeats, stages_out_channels):
    assert len(stages_repeats) == 3 and len(stages_out_channels) == 5
    pg = ParamGen(key)
    params = {}
    c0 = stages_out_channels[0]
    params['conv1_w'] = pg.normal((c0, 3, 3, 3), (3 * 9) ** -0.5)
    params['conv1_s'], params['conv1_b'] = pg.bn(c0)

    inp = c0
    stages = []
    for rep, oup in zip(stages_repeats, stages_out_channels[1:4]):
        bf = oup // 2
        blocks = []
        for i in range(rep):
            stride = 2 if i == 0 else 1
            blk = {'stride': stride}
            if stride == 2:
                blk['b1_dw_w'] = pg.normal((inp, 3, 3), 9 ** -0.5)
                blk['b1_dw_s'], blk['b1_dw_b'] = pg.bn(inp)
                blk['b1_pw_w'] = pg.normal((inp, bf), inp ** -0.5)
                blk['b1_pw_s'], blk['b1_pw_b'] = pg.bn(bf)
                cin2 = inp
            else:
                cin2 = bf
            blk['b2_pw1_w'] = pg.normal((cin2, bf), cin2 ** -0.5)
            blk['b2_pw1_s'], blk['b2_pw1_b'] = pg.bn(bf)
            blk['b2_dw_w'] = pg.normal((bf, 3, 3), 9 ** -0.5)
            blk['b2_dw_s'], blk['b2_dw_b'] = pg.bn(bf)
            blk['b2_pw2_w'] = pg.normal((bf, bf), bf ** -0.5)
            blk['b2_pw2_s'], blk['b2_pw2_b'] = pg.bn(bf)
            blocks.append(blk)
            inp = oup
        stages.append(blocks)
    params['stages'] = stages
    return params


# --------------------------------------------------------------------------

if __name__ == "__main__":
    key = jax.random.PRNGKey(0)
    pkey, xkey = jax.random.split(key)

    stages_repeats = [2, 2, 2]
    stages_out_channels = [8, 16, 32, 64, 128]   # last entry unused in forward
    params = make_shufflenetv2_params(pkey, stages_repeats, stages_out_channels)

    x = jax.random.normal(xkey, (2, 3, 32, 32), jnp.float32)  # NCHW like PyTorch
    fwd = make_forward(params, x.shape)
    stage5, stage4, stage3 = fwd(x)
    (stage5, stage4, stage3) = jax.block_until_ready((stage5, stage4, stage3))

    assert stage3.shape == (2, 16, 4, 4)
    assert stage4.shape == (2, 32, 2, 2)
    assert stage5.shape == (2, 64, 1, 1)
    assert all(bool(jnp.all(jnp.isfinite(t))) for t in (stage3, stage4, stage5))
    print("KERNEL_OK")
</pallas_src>

<mosaic_0001>
module attributes {stable_mosaic.version = 11 : i64} {
  func.func @_conv1_pool_kernel(%arg0: memref<512x32xbf16, #tpu.memory_space<vmem>>, %arg1: memref<32x128xbf16, #tpu.memory_space<vmem>>, %arg2: memref<1x128xf32, #tpu.memory_space<vmem>>, %arg3: memref<9x128x512xf32, #tpu.memory_space<vmem>>, %arg4: memref<9x128x1xf32, #tpu.memory_space<vmem>>, %arg5: memref<128x128xf32, #tpu.memory_space<vmem>>) attributes {dimension_semantics = [], scalar_prefetch = 0 : i64, scratch_operands = 0 : i64, tpu.core_type = #tpu.core_type<tc>} {
    %c0 = arith.constant 0 : index
    %c0_0 = arith.constant 0 : index
    %0 = vector.load %arg0[%c0, %c0_0] : memref<512x32xbf16, #tpu.memory_space<vmem>>, vector<512x32xbf16>
    %c0_1 = arith.constant 0 : index
    %c0_2 = arith.constant 0 : index
    %1 = vector.load %arg1[%c0_1, %c0_2] : memref<32x128xbf16, #tpu.memory_space<vmem>>, vector<32x128xbf16>
    %cst = arith.constant dense<0.000000e+00> : vector<512x128xf32>
    %2 = tpu.matmul %0, %1, %cst {dimension_numbers = #tpu.dot_dimension_numbers<[1], [0], [0], [1], [0, 0, 1, 1], [], []>} : vector<512x32xbf16>, vector<32x128xbf16>, vector<512x128xf32> -> vector<512x128xf32>
    %c0_3 = arith.constant 0 : index
    %c0_4 = arith.constant 0 : index
    %3 = vector.load %arg2[%c0_3, %c0_4] : memref<1x128xf32, #tpu.memory_space<vmem>>, vector<1x128xf32>
    %4 = vector.broadcast %3 : vector<1x128xf32> to vector<512x128xf32>
    %5 = arith.addf %2, %4 : vector<512x128xf32>
    %cst_5 = arith.constant 0.000000e+00 : f32
    %6 = vector.broadcast %cst_5 : f32 to vector<512x128xf32>
    %7 = arith.maximumf %5, %6 : vector<512x128xf32>
    %c0_6 = arith.constant 0 : index
    %c0_7 = arith.constant 0 : index
    %c0_8 = arith.constant 0 : index
    %8 = vector.load %arg3[%c0_6, %c0_7, %c0_8] : memref<9x128x512xf32, #tpu.memory_space<vmem>>, vector<1x128x512xf32>
    %9 = vector.shape_cast %8 : vector<1x128x512xf32> to vector<128x512xf32>
    %cst_9 = arith.constant dense<0.000000e+00> : vector<128x128xf32>
    %10 = tpu.matmul %9, %7, %cst_9 {dimension_numbers = #tpu.dot_dimension_numbers<[1], [0], [0], [1], [0, 0, 1, 1], [], []>} : vector<128x512xf32>, vector<512x128xf32>, vector<128x128xf32> -> vector<128x128xf32>
    %c0_10 = arith.constant 0 : index
    %c0_11 = arith.constant 0 : index
    %c0_12 = arith.constant 0 : index
    %11 = vector.load %arg4[%c0_10, %c0_11, %c0_12] : memref<9x128x1xf32, #tpu.memory_space<vmem>>, vector<1x128x1xf32>
    %12 = vector.shape_cast %11 : vector<1x128x1xf32> to vector<128x1xf32>
    %13 = vector.broadcast %12 : vector<128x1xf32> to vector<128x128xf32>
    %14 = arith.addf %10, %13 : vector<128x128xf32>
    %c1 = arith.constant 1 : index
    %c0_13 = arith.constant 0 : index
    %c0_14 = arith.constant 0 : index
    %15 = vector.load %arg3[%c1, %c0_13, %c0_14] : memref<9x128x512xf32, #tpu.memory_space<vmem>>, vector<1x128x512xf32>
    %16 = vector.shape_cast %15 : vector<1x128x512xf32> to vector<128x512xf32>
    %cst_15 = arith.constant dense<0.000000e+00> : vector<128x128xf32>
    %17 = tpu.matmul %16, %7, %cst_15 {dimension_numbers = #tpu.dot_dimension_numbers<[1], [0], [0], [1], [0, 0, 1, 1], [], []>} : vector<128x512xf32>, vector<512x128xf32>, vector<128x128xf32> -> vector<128x128xf32>
    %c1_16 = arith.constant 1 : index
    %c0_17 = arith.constant 0 : index
    %c0_18 = arith.constant 0 : index
    %18 = vector.load %arg4[%c1_16, %c0_17, %c0_18] : memref<9x128x1xf32, #tpu.memory_space<vmem>>, vector<1x128x1xf32>
    %19 = vector.shape_cast %18 : vector<1x128x1xf32> to vector<128x1xf32>
    %20 = vector.broadcast %19 : vector<128x1xf32> to vector<128x128xf32>
    %21 = arith.addf %17, %20 : vector<128x128xf32>
    %22 = arith.maximumf %14, %21 : vector<128x128xf32>
    %c2 = arith.constant 2 : index
    %c0_19 = arith.constant 0 : index
    %c0_20 = arith.constant 0 : index
    %23 = vector.load %arg3[%c2, %c0_19, %c0_20] : memref<9x128x512xf32, #tpu.memory_space<vmem>>, vector<1x128x512xf32>
    %24 = vector.shape_cast %23 : vector<1x128x512xf32> to vector<128x512xf32>
    %cst_21 = arith.constant dense<0.000000e+00> : vector<128x128xf32>
    %25 = tpu.matmul %24, %7, %cst_21 {dimension_numbers = #tpu.dot_dimension_numbers<[1], [0], [0], [1], [0, 0, 1, 1], [], []>} : vector<128x512xf32>, vector<512x128xf32>, vector<128x128xf32> -> vector<128x128xf32>
    %c2_22 = arith.constant 2 : index
    %c0_23 = arith.constant 0 : index
    %c0_24 = arith.constant 0 : index
    %26 = vector.load %arg4[%c2_22, %c0_23, %c0_24] : memref<9x128x1xf32, #tpu.memory_space<vmem>>, vector<1x128x1xf32>
    %27 = vector.shape_cast %26 : vector<1x128x1xf32> to vector<128x1xf32>
    %28 = vector.broadcast %27 : vector<128x1xf32> to vector<128x128xf32>
    %29 = arith.addf %25, %28 : vector<128x128xf32>
    %30 = arith.maximumf %22, %29 : vector<128x128xf32>
    %c3 = arith.constant 3 : index
    %c0_25 = arith.constant 0 : index
    %c0_26 = arith.constant 0 : index
    %31 = vector.load %arg3[%c3, %c0_25, %c0_26] : memref<9x128x512xf32, #tpu.memory_space<vmem>>, vector<1x128x512xf32>
    %32 = vector.shape_cast %31 : vector<1x128x512xf32> to vector<128x512xf32>
    %cst_27 = arith.constant dense<0.000000e+00> : vector<128x128xf32>
    %33 = tpu.matmul %32, %7, %cst_27 {dimension_numbers = #tpu.dot_dimension_numbers<[1], [0], [0], [1], [0, 0, 1, 1], [], []>} : vector<128x512xf32>, vector<512x128xf32>, vector<128x128xf32> -> vector<128x128xf32>
    %c3_28 = arith.constant 3 : index
    %c0_29 = arith.constant 0 : index
    %c0_30 = arith.constant 0 : index
    %34 = vector.load %arg4[%c3_28, %c0_29, %c0_30] : memref<9x128x1xf32, #tpu.memory_space<vmem>>, vector<1x128x1xf32>
    %35 = vector.shape_cast %34 : vector<1x128x1xf32> to vector<128x1xf32>
    %36 = vector.broadcast %35 : vector<128x1xf32> to vector<128x128xf32>
    %37 = arith.addf %33, %36 : vector<128x128xf32>
    %38 = arith.maximumf %30, %37 : vector<128x128xf32>
    %c4 = arith.constant 4 : index
    %c0_31 = arith.constant 0 : index
    %c0_32 = arith.constant 0 : index
    %39 = vector.load %arg3[%c4, %c0_31, %c0_32] : memref<9x128x512xf32, #tpu.memory_space<vmem>>, vector<1x128x512xf32>
    %40 = vector.shape_cast %39 : vector<1x128x512xf32> to vector<128x512xf32>
    %cst_33 = arith.constant dense<0.000000e+00> : vector<128x128xf32>
    %41 = tpu.matmul %40, %7, %cst_33 {dimension_numbers = #tpu.dot_dimension_numbers<[1], [0], [0], [1], [0, 0, 1, 1], [], []>} : vector<128x512xf32>, vector<512x128xf32>, vector<128x128xf32> -> vector<128x128xf32>
    %c4_34 = arith.constant 4 : index
    %c0_35 = arith.constant 0 : index
    %c0_36 = arith.constant 0 : index
    %42 = vector.load %arg4[%c4_34, %c0_35, %c0_36] : memref<9x128x1xf32, #tpu.memory_space<vmem>>, vector<1x128x1xf32>
    %43 = vector.shape_cast %42 : vector<1x128x1xf32> to vector<128x1xf32>
    %44 = vector.broadcast %43 : vector<128x1xf32> to vector<128x128xf32>
    %45 = arith.addf %41, %44 : vector<128x128xf32>
    %46 = arith.maximumf %38, %45 : vector<128x128xf32>
    %c5 = arith.constant 5 : index
    %c0_37 = arith.constant 0 : index
    %c0_38 = arith.constant 0 : index
    %47 = vector.load %arg3[%c5, %c0_37, %c0_38] : memref<9x128x512xf32, #tpu.memory_space<vmem>>, vector<1x128x512xf32>
    %48 = vector.shape_cast %47 : vector<1x128x512xf32> to vector<128x512xf32>
    %cst_39 = arith.constant dense<0.000000e+00> : vector<128x128xf32>
    %49 = tpu.matmul %48, %7, %cst_39 {dimension_numbers = #tpu.dot_dimension_numbers<[1], [0], [0], [1], [0, 0, 1, 1], [], []>} : vector<128x512xf32>, vector<512x128xf32>, vector<128x128xf32> -> vector<128x128xf32>
    %c5_40 = arith.constant 5 : index
    %c0_41 = arith.constant 0 : index
    %c0_42 = arith.constant 0 : index
    %50 = vector.load %arg4[%c5_40, %c0_41, %c0_42] : memref<9x128x1xf32, #tpu.memory_space<vmem>>, vector<1x128x1xf32>
    %51 = vector.shape_cast %50 : vector<1x128x1xf32> to vector<128x1xf32>
    %52 = vector.broadcast %51 : vector<128x1xf32> to vector<128x128xf32>
    %53 = arith.addf %49, %52 : vector<128x128xf32>
    %54 = arith.maximumf %46, %53 : vector<128x128xf32>
    %c6 = arith.constant 6 : index
    %c0_43 = arith.constant 0 : index
    %c0_44 = arith.constant 0 : index
    %55 = vector.load %arg3[%c6, %c0_43, %c0_44] : memref<9x128x512xf32, #tpu.memory_space<vmem>>, vector<1x128x512xf32>
    %56 = vector.shape_cast %55 : vector<1x128x512xf32> to vector<128x512xf32>
    %cst_45 = arith.constant dense<0.000000e+00> : vector<128x128xf32>
    %57 = tpu.matmul %56, %7, %cst_45 {dimension_numbers = #tpu.dot_dimension_numbers<[1], [0], [0], [1], [0, 0, 1, 1], [], []>} : vector<128x512xf32>, vector<512x128xf32>, vector<128x128xf32> -> vector<128x128xf32>
    %c6_46 = arith.constant 6 : index
    %c0_47 = arith.constant 0 : index
    %c0_48 = arith.constant 0 : index
    %58 = vector.load %arg4[%c6_46, %c0_47, %c0_48] : memref<9x128x1xf32, #tpu.memory_space<vmem>>, vector<1x128x1xf32>
    %59 = vector.shape_cast %58 : vector<1x128x1xf32> to vector<128x1xf32>
    %60 = vector.broadcast %59 : vector<128x1xf32> to vector<128x128xf32>
    %61 = arith.addf %57, %60 : vector<128x128xf32>
    %62 = arith.maximumf %54, %61 : vector<128x128xf32>
    %c7 = arith.constant 7 : index
    %c0_49 = arith.constant 0 : index
    %c0_50 = arith.constant 0 : index
    %63 = vector.load %arg3[%c7, %c0_49, %c0_50] : memref<9x128x512xf32, #tpu.memory_space<vmem>>, vector<1x128x512xf32>
    %64 = vector.shape_cast %63 : vector<1x128x512xf32> to vector<128x512xf32>
    %cst_51 = arith.constant dense<0.000000e+00> : vector<128x128xf32>
    %65 = tpu.matmul %64, %7, %cst_51 {dimension_numbers = #tpu.dot_dimension_numbers<[1], [0], [0], [1], [0, 0, 1, 1], [], []>} : vector<128x512xf32>, vector<512x128xf32>, vector<128x128xf32> -> vector<128x128xf32>
    %c7_52 = arith.constant 7 : index
    %c0_53 = arith.constant 0 : index
    %c0_54 = arith.constant 0 : index
    %66 = vector.load %arg4[%c7_52, %c0_53, %c0_54] : memref<9x128x1xf32, #tpu.memory_space<vmem>>, vector<1x128x1xf32>
    %67 = vector.shape_cast %66 : vector<1x128x1xf32> to vector<128x1xf32>
    %68 = vector.broadcast %67 : vector<128x1xf32> to vector<128x128xf32>
    %69 = arith.addf %65, %68 : vector<128x128xf32>
    %70 = arith.maximumf %62, %69 : vector<128x128xf32>
    %c8 = arith.constant 8 : index
    %c0_55 = arith.constant 0 : index
    %c0_56 = arith.constant 0 : index
    %71 = vector.load %arg3[%c8, %c0_55, %c0_56] : memref<9x128x512xf32, #tpu.memory_space<vmem>>, vector<1x128x512xf32>
    %72 = vector.shape_cast %71 : vector<1x128x512xf32> to vector<128x512xf32>
    %cst_57 = arith.constant dense<0.000000e+00> : vector<128x128xf32>
    %73 = tpu.matmul %72, %7, %cst_57 {dimension_numbers = #tpu.dot_dimension_numbers<[1], [0], [0], [1], [0, 0, 1, 1], [], []>} : vector<128x512xf32>, vector<512x128xf32>, vector<128x128xf32> -> vector<128x128xf32>
    %c8_58 = arith.constant 8 : index
    %c0_59 = arith.constant 0 : index
    %c0_60 = arith.constant 0 : index
    %74 = vector.load %arg4[%c8_58, %c0_59, %c0_60] : memref<9x128x1xf32, #tpu.memory_space<vmem>>, vector<1x128x1xf32>
    %75 = vector.shape_cast %74 : vector<1x128x1xf32> to vector<128x1xf32>
    %76 = vector.broadcast %75 : vector<128x1xf32> to vector<128x128xf32>
    %77 = arith.addf %73, %76 : vector<128x128xf32>
    %78 = arith.maximumf %70, %77 : vector<128x128xf32>
    %c0_61 = arith.constant 0 : index
    %c0_62 = arith.constant 0 : index
    %79 = vector.load %arg5[%c0_61, %c0_62] : memref<128x128xf32, #tpu.memory_space<vmem>>, vector<128x128xf32>
    tpu.vector_store %arg5[%c0_61, %c0_62], %78 {strides = array<i32>} : memref<128x128xf32, #tpu.memory_space<vmem>>, vector<128x128xf32>,
    return
  }
}

module attributes {stable_mosaic.version = 11 : i64} {
  func.func @_block_s1_kernel(%arg0: memref<32x128xf32, #tpu.memory_space<vmem>>, %arg1: memref<9x32x32xf32, #tpu.memory_space<vmem>>, %arg2: memref<128x128xf32, #tpu.memory_space<vmem>>, %arg3: memref<128x128xbf16, #tpu.memory_space<vmem>>, %arg4: memref<1x128xf32, #tpu.memory_space<vmem>>, %arg5: memref<9x1x128xf32, #tpu.memory_space<vmem>>, %arg6: memref<1x128xf32, #tpu.memory_space<vmem>>, %arg7: memref<128x128xbf16, #tpu.memory_space<vmem>>, %arg8: memref<1x128xf32, #tpu.memory_space<vmem>>, %arg9: memref<32x128xf32, #tpu.memory_space<vmem>>) attributes {dimension_semantics = [], scalar_prefetch = 0 : i64, scratch_operands = 0 : i64, tpu.core_type = #tpu.core_type<tc>} {
    %c0 = arith.constant 0 : index
    %c0_0 = arith.constant 0 : index
    %0 = vector.load %arg0[%c0, %c0_0] : memref<32x128xf32, #tpu.memory_space<vmem>>, vector<32x128xf32>
    %1 = arith.truncf %0 : vector<32x128xf32> to vector<32x128xbf16>
    %c0_1 = arith.constant 0 : index
    %c0_2 = arith.constant 0 : index
    %2 = vector.load %arg3[%c0_1, %c0_2] : memref<128x128xbf16, #tpu.memory_space<vmem>>, vector<128x128xbf16>
    %cst = arith.constant dense<0.000000e+00> : vector<32x128xf32>
    %3 = tpu.matmul %1, %2, %cst {dimension_numbers = #tpu.dot_dimension_numbers<[1], [0], [0], [1], [0, 0, 1, 1], [], []>} : vector<32x128xbf16>, vector<128x128xbf16>, vector<32x128xf32> -> vector<32x128xf32>
    %c0_3 = arith.constant 0 : index
    %c0_4 = arith.constant 0 : index
    %4 = vector.load %arg4[%c0_3, %c0_4] : memref<1x128xf32, #tpu.memory_space<vmem>>, vector<1x128xf32>
    %5 = vector.broadcast %4 : vector<1x128xf32> to vector<32x128xf32>
    %6 = arith.addf %3, %5 : vector<32x128xf32>
    %cst_5 = arith.constant 0.000000e+00 : f32
    %7 = vector.broadcast %cst_5 : f32 to vector<32x128xf32>
    %8 = arith.maximumf %6, %7 : vector<32x128xf32>
    %c0_6 = arith.constant 0 : index
    %c0_7 = arith.constant 0 : index
    %c0_8 = arith.constant 0 : index
    %9 = vector.load %arg1[%c0_6, %c0_7, %c0_8] : memref<9x32x32xf32, #tpu.memory_space<vmem>>, vector<1x32x32xf32>
    %10 = vector.shape_cast %9 : vector<1x32x32xf32> to vector<32x32xf32>
    %cst_9 = arith.constant dense<0.000000e+00> : vector<32x128xf32>
    %11 = tpu.matmul %10, %8, %cst_9 {dimension_numbers = #tpu.dot_dimension_numbers<[1], [0], [0], [1], [0, 0, 1, 1], [], []>} : vector<32x32xf32>, vector<32x128xf32>, vector<32x128xf32> -> vector<32x128xf32>
    %c0_10 = arith.constant 0 : index
    %c0_11 = arith.constant 0 : index
    %c0_12 = arith.constant 0 : index
    %12 = vector.load %arg5[%c0_10, %c0_11, %c0_12] : memref<9x1x128xf32, #tpu.memory_space<vmem>>, vector<1x1x128xf32>
    %13 = vector.shape_cast %12 : vector<1x1x128xf32> to vector<1x128xf32>
    %14 = vector.broadcast %13 : vector<1x128xf32> to vector<32x128xf32>
    %15 = arith.mulf %11, %14 : vector<32x128xf32>
    %c1 = arith.constant 1 : index
    %c0_13 = arith.constant 0 : index
    %c0_14 = arith.constant 0 : index
    %16 = vector.load %arg1[%c1, %c0_13, %c0_14] : memref<9x32x32xf32, #tpu.memory_space<vmem>>, vector<1x32x32xf32>
    %17 = vector.shape_cast %16 : vector<1x32x32xf32> to vector<32x32xf32>
    %cst_15 = arith.constant dense<0.000000e+00> : vector<32x128xf32>
    %18 = tpu.matmul %17, %8, %cst_15 {dimension_numbers = #tpu.dot_dimension_numbers<[1], [0], [0], [1], [0, 0, 1, 1], [], []>} : vector<32x32xf32>, vector<32x128xf32>, vector<32x128xf32> -> vector<32x128xf32>
    %c1_16 = arith.constant 1 : index
    %c0_17 = arith.constant 0 : index
    %c0_18 = arith.constant 0 : index
    %19 = vector.load %arg5[%c1_16, %c0_17, %c0_18] : memref<9x1x128xf32, #tpu.memory_space<vmem>>, vector<1x1x128xf32>
    %20 = vector.shape_cast %19 : vector<1x1x128xf32> to vector<1x128xf32>
    %21 = vector.broadcast %20 : vector<1x128xf32> to vector<32x128xf32>
    %22 = arith.mulf %18, %21 : vector<32x128xf32>
    %23 = arith.addf %15, %22 : vector<32x128xf32>
    %c2 = arith.constant 2 : index
    %c0_19 = arith.constant 0 : index
    %c0_20 = arith.constant 0 : index
    %24 = vector.load %arg1[%c2, %c0_19, %c0_20] : memref<9x32x32xf32, #tpu.memory_space<vmem>>, vector<1x32x32xf32>
    %25 = vector.shape_cast %24 : vector<1x32x32xf32> to vector<32x32xf32>
    %cst_21 = arith.constant dense<0.000000e+00> : vector<32x128xf32>
    %26 = tpu.matmul %25, %8, %cst_21 {dimension_numbers = #tpu.dot_dimension_numbers<[1], [0], [0], [1], [0, 0, 1, 1], [], []>} : vector<32x32xf32>, vector<32x128xf32>, vector<32x128xf32> -> vector<32x128xf32>
    %c2_22 = arith.constant 2 : index
    %c0_23 = arith.constant 0 : index
    %c0_24 = arith.constant 0 : index
    %27 = vector.load %arg5[%c2_22, %c0_23, %c0_24] : memref<9x1x128xf32, #tpu.memory_space<vmem>>, vector<1x1x128xf32>
    %28 = vector.shape_cast %27 : vector<1x1x128xf32> to vector<1x128xf32>
    %29 = vector.broadcast %28 : vector<1x128xf32> to vector<32x128xf32>
    %30 = arith.mulf %26, %29 : vector<32x128xf32>
    %31 = arith.addf %23, %30 : vector<32x128xf32>
    %c3 = arith.constant 3 : index
    %c0_25 = arith.constant 0 : index
    %c0_26 = arith.constant 0 : index
    %32 = vector.load %arg1[%c3, %c0_25, %c0_26] : memref<9x32x32xf32, #tpu.memory_space<vmem>>, vector<1x32x32xf32>
    %33 = vector.shape_cast %32 : vector<1x32x32xf32> to vector<32x32xf32>
    %cst_27 = arith.constant dense<0.000000e+00> : vector<32x128xf32>
    %34 = tpu.matmul %33, %8, %cst_27 {dimension_numbers = #tpu.dot_dimension_numbers<[1], [0], [0], [1], [0, 0, 1, 1], [], []>} : vector<32x32xf32>, vector<32x128xf32>, vector<32x128xf32> -> vector<32x128xf32>
    %c3_28 = arith.constant 3 : index
    %c0_29 = arith.constant 0 : index
    %c0_30 = arith.constant 0 : index
    %35 = vector.load %arg5[%c3_28, %c0_29, %c0_30] : memref<9x1x128xf32, #tpu.memory_space<vmem>>, vector<1x1x128xf32>
    %36 = vector.shape_cast %35 : vector<1x1x128xf32> to vector<1x128xf32>
    %37 = vector.broadcast %36 : vector<1x128xf32> to vector<32x128xf32>
    %38 = arith.mulf %34, %37 : vector<32x128xf32>
    %39 = arith.addf %31, %38 : vector<32x128xf32>
    %c4 = arith.constant 4 : index
    %c0_31 = arith.constant 0 : index
    %c0_32 = arith.constant 0 : index
    %40 = vector.load %arg1[%c4, %c0_31, %c0_32] : memref<9x32x32xf32, #tpu.memory_space<vmem>>, vector<1x32x32xf32>
    %41 = vector.shape_cast %40 : vector<1x32x32xf32> to vector<32x32xf32>
    %cst_33 = arith.constant dense<0.000000e+00> : vector<32x128xf32>
    %42 = tpu.matmul %41, %8, %cst_33 {dimension_numbers = #tpu.dot_dimension_numbers<[1], [0], [0], [1], [0, 0, 1, 1], [], []>} : vector<32x32xf32>, vector<32x128xf32>, vector<32x128xf32> -> vector<32x128xf32>
    %c4_34 = arith.constant 4 : index
    %c0_35 = arith.constant 0 : index
    %c0_36 = arith.constant 0 : index
    %43 = vector.load %arg5[%c4_34, %c0_35, %c0_36] : memref<9x1x128xf32, #tpu.memory_space<vmem>>, vector<1x1x128xf32>
    %44 = vector.shape_cast %43 : vector<1x1x128xf32> to vector<1x128xf32>
    %45 = vector.broadcast %44 : vector<1x128xf32> to vector<32x128xf32>
    %46 = arith.mulf %42, %45 : vector<32x128xf32>
    %47 = arith.addf %39, %46 : vector<32x128xf32>
    %c5 = arith.constant 5 : index
    %c0_37 = arith.constant 0 : index
    %c0_38 = arith.constant 0 : index
    %48 = vector.load %arg1[%c5, %c0_37, %c0_38] : memref<9x32x32xf32, #tpu.memory_space<vmem>>, vector<1x32x32xf32>
    %49 = vector.shape_cast %48 : vector<1x32x32xf32> to vector<32x32xf32>
    %cst_39 = arith.constant dense<0.000000e+00> : vector<32x128xf32>
    %50 = tpu.matmul %49, %8, %cst_39 {dimension_numbers = #tpu.dot_dimension_numbers<[1], [0], [0], [1], [0, 0, 1, 1], [], []>} : vector<32x32xf32>, vector<32x128xf32>, vector<32x128xf32> -> vector<32x128xf32>
    %c5_40 = arith.constant 5 : index
    %c0_41 = arith.constant 0 : index
    %c0_42 = arith.constant 0 : index
    %51 = vector.load %arg5[%c5_40, %c0_41, %c0_42] : memref<9x1x128xf32, #tpu.memory_space<vmem>>, vector<1x1x128xf32>
    %52 = vector.shape_cast %51 : vector<1x1x128xf32> to vector<1x128xf32>
    %53 = vector.broadcast %52 : vector<1x128xf32> to vector<32x128xf32>
    %54 = arith.mulf %50, %53 : vector<32x128xf32>
    %55 = arith.addf %47, %54 : vector<32x128xf32>
    %c6 = arith.constant 6 : index
    %c0_43 = arith.constant 0 : index
    %c0_44 = arith.constant 0 : index
    %56 = vector.load %arg1[%c6, %c0_43, %c0_44] : memref<9x32x32xf32, #tpu.memory_space<vmem>>, vector<1x32x32xf32>
    %57 = vector.shape_cast %56 : vector<1x32x32xf32> to vector<32x32xf32>
    %cst_45 = arith.constant dense<0.000000e+00> : vector<32x128xf32>
    %58 = tpu.matmul %57, %8, %cst_45 {dimension_numbers = #tpu.dot_dimension_numbers<[1], [0], [0], [1], [0, 0, 1, 1], [], []>} : vector<32x32xf32>, vector<32x128xf32>, vector<32x128xf32> -> vector<32x128xf32>
    %c6_46 = arith.constant 6 : index
    %c0_47 = arith.constant 0 : index
    %c0_48 = arith.constant 0 : index
    %59 = vector.load %arg5[%c6_46, %c0_47, %c0_48] : memref<9x1x128xf32, #tpu.memory_space<vmem>>, vector<1x1x128xf32>
    %60 = vector.shape_cast %59 : vector<1x1x128xf32> to vector<1x128xf32>
    %61 = vector.broadcast %60 : vector<1x128xf32> to vector<32x128xf32>
    %62 = arith.mulf %58, %61 : vector<32x128xf32>
    %63 = arith.addf %55, %62 : vector<32x128xf32>
    %c7 = arith.constant 7 : index
    %c0_49 = arith.constant 0 : index
    %c0_50 = arith.constant 0 : index
    %64 = vector.load %arg1[%c7, %c0_49, %c0_50] : memref<9x32x32xf32, #tpu.memory_space<vmem>>, vector<1x32x32xf32>
    %65 = vector.shape_cast %64 : vector<1x32x32xf32> to vector<32x32xf32>
    %cst_51 = arith.constant dense<0.000000e+00> : vector<32x128xf32>
    %66 = tpu.matmul %65, %8, %cst_51 {dimension_numbers = #tpu.dot_dimension_numbers<[1], [0], [0], [1], [0, 0, 1, 1], [], []>} : vector<32x32xf32>, vector<32x128xf32>, vector<32x128xf32> -> vector<32x128xf32>
    %c7_52 = arith.constant 7 : index
    %c0_53 = arith.constant 0 : index
    %c0_54 = arith.constant 0 : index
    %67 = vector.load %arg5[%c7_52, %c0_53, %c0_54] : memref<9x1x128xf32, #tpu.memory_space<vmem>>, vector<1x1x128xf32>
    %68 = vector.shape_cast %67 : vector<1x1x128xf32> to vector<1x128xf32>
    %69 = vector.broadcast %68 : vector<1x128xf32> to vector<32x128xf32>
    %70 = arith.mulf %66, %69 : vector<32x128xf32>
    %71 = arith.addf %63, %70 : vector<32x128xf32>
    %c8 = arith.constant 8 : index
    %c0_55 = arith.constant 0 : index
    %c0_56 = arith.constant 0 : index
    %72 = vector.load %arg1[%c8, %c0_55, %c0_56] : memref<9x32x32xf32, #tpu.memory_space<vmem>>, vector<1x32x32xf32>
    %73 = vector.shape_cast %72 : vector<1x32x32xf32> to vector<32x32xf32>
    %cst_57 = arith.constant dense<0.000000e+00> : vector<32x128xf32>
    %74 = tpu.matmul %73, %8, %cst_57 {dimension_numbers = #tpu.dot_dimension_numbers<[1], [0], [0], [1], [0, 0, 1, 1], [], []>} : vector<32x32xf32>, vector<32x128xf32>, vector<32x128xf32> -> vector<32x128xf32>
    %c8_58 = arith.constant 8 : index
    %c0_59 = arith.constant 0 : index
    %c0_60 = arith.constant 0 : index
    %75 = vector.load %arg5[%c8_58, %c0_59, %c0_60] : memref<9x1x128xf32, #tpu.memory_space<vmem>>, vector<1x1x128xf32>
    %76 = vector.shape_cast %75 : vector<1x1x128xf32> to vector<1x128xf32>
    %77 = vector.broadcast %76 : vector<1x128xf32> to vector<32x128xf32>
    %78 = arith.mulf %74, %77 : vector<32x128xf32>
    %79 = arith.addf %71, %78 : vector<32x128xf32>
    %c0_61 = arith.constant 0 : index
    %c0_62 = arith.constant 0 : index
    %80 = vector.load %arg6[%c0_61, %c0_62] : memref<1x128xf32, #tpu.memory_space<vmem>>, vector<1x128xf32>
    %81 = vector.broadcast %80 : vector<1x128xf32> to vector<32x128xf32>
    %82 = arith.addf %79, %81 : vector<32x128xf32>
    %83 = arith.truncf %82 : vector<32x128xf32> to vector<32x128xbf16>
    %c0_63 = arith.constant 0 : index
    %c0_64 = arith.constant 0 : index
    %84 = vector.load %arg7[%c0_63, %c0_64] : memref<128x128xbf16, #tpu.memory_space<vmem>>, vector<128x128xbf16>
    %cst_65 = arith.constant dense<0.000000e+00> : vector<32x128xf32>
    %85 = tpu.matmul %83, %84, %cst_65 {dimension_numbers = #tpu.dot_dimension_numbers<[1], [0], [0], [1], [0, 0, 1, 1], [], []>} : vector<32x128xbf16>, vector<128x128xbf16>, vector<32x128xf32> -> vector<32x128xf32>
    %c0_66 = arith.constant 0 : index
    %c0_67 = arith.constant 0 : index
    %86 = vector.load %arg8[%c0_66, %c0_67] : memref<1x128xf32, #tpu.memory_space<vmem>>, vector<1x128xf32>
    %87 = vector.broadcast %86 : vector<1x128xf32> to vector<32x128xf32>
    %88 = arith.addf %85, %87 : vector<32x128xf32>
    %cst_68 = arith.constant 0.000000e+00 : f32
    %89 = vector.broadcast %cst_68 : f32 to vector<32x128xf32>
    %90 = arith.maximumf %88, %89 : vector<32x128xf32>
    %c0_69 = arith.constant 0 : index
    %c0_70 = arith.constant 0 : index
    %91 = vector.load %arg2[%c0_69, %c0_70] : memref<128x128xf32, #tpu.memory_space<vmem>>, vector<128x128xf32>
    %cst_71 = arith.constant dense<0.000000e+00> : vector<32x128xf32>
    %92 = tpu.matmul %0, %91, %cst_71 {dimension_numbers = #tpu.dot_dimension_numbers<[1], [0], [0], [1], [0, 0, 1, 1], [], []>} : vector<32x128xf32>, vector<128x128xf32>, vector<32x128xf32> -> vector<32x128xf32>
    %93 = arith.addf %92, %90 : vector<32x128xf32>
    %c0_72 = arith.constant 0 : index
    %c0_73 = arith.constant 0 : index
    %94 = vector.load %arg9[%c0_72, %c0_73] : memref<32x128xf32, #tpu.memory_space<vmem>>, vector<32x128xf32>
    tpu.vector_store %arg9[%c0_72, %c0_73], %93 {strides = array<i32>} : memref<32x128xf32, #tpu.memory_space<vmem>>, vector<32x128xf32>,
    return
  }
}

module attributes {stable_mosaic.version = 11 : i64} {
  func.func @_block_s2_kernel(%arg0: memref<128x128xf32, #tpu.memory_space<vmem>>, %arg1: memref<9x32x128xf32, #tpu.memory_space<vmem>>, %arg2: memref<9x1x128xf32, #tpu.memory_space<vmem>>, %arg3: memref<1x128xf32, #tpu.memory_space<vmem>>, %arg4: memref<128x128xbf16, #tpu.memory_space<vmem>>, %arg5: memref<1x128xf32, #tpu.memory_space<vmem>>, %arg6: memref<128x128xbf16, #tpu.memory_space<vmem>>, %arg7: memref<1x128xf32, #tpu.memory_space<vmem>>, %arg8: memref<9x1x128xf32, #tpu.memory_space<vmem>>, %arg9: memref<1x128xf32, #tpu.memory_space<vmem>>, %arg10: memref<128x128xbf16, #tpu.memory_space<vmem>>, %arg11: memref<1x128xf32, #tpu.memory_space<vmem>>, %arg12: memref<32x128xf32, #tpu.memory_space<vmem>>) attributes {dimension_semantics = [], scalar_prefetch = 0 : i64, scratch_operands = 0 : i64, tpu.core_type = #tpu.core_type<tc>} {
    %c0 = arith.constant 0 : index
    %c0_0 = arith.constant 0 : index
    %0 = vector.load %arg0[%c0, %c0_0] : memref<128x128xf32, #tpu.memory_space<vmem>>, vector<128x128xf32>
    %1 = arith.truncf %0 : vector<128x128xf32> to vector<128x128xbf16>
    %c0_1 = arith.constant 0 : index
    %c0_2 = arith.constant 0 : index
    %2 = vector.load %arg6[%c0_1, %c0_2] : memref<128x128xbf16, #tpu.memory_space<vmem>>, vector<128x128xbf16>
    %cst = arith.constant dense<0.000000e+00> : vector<128x128xf32>
    %3 = tpu.matmul %1, %2, %cst {dimension_numbers = #tpu.dot_dimension_numbers<[1], [0], [0], [1], [0, 0, 1, 1], [], []>} : vector<128x128xbf16>, vector<128x128xbf16>, vector<128x128xf32> -> vector<128x128xf32>
    %c0_3 = arith.constant 0 : index
    %c0_4 = arith.constant 0 : index
    %4 = vector.load %arg7[%c0_3, %c0_4] : memref<1x128xf32, #tpu.memory_space<vmem>>, vector<1x128xf32>
    %5 = vector.broadcast %4 : vector<1x128xf32> to vector<128x128xf32>
    %6 = arith.addf %3, %5 : vector<128x128xf32>
    %cst_5 = arith.constant 0.000000e+00 : f32
    %7 = vector.broadcast %cst_5 : f32 to vector<128x128xf32>
    %8 = arith.maximumf %6, %7 : vector<128x128xf32>
    %c0_6 = arith.constant 0 : index
    %c0_7 = arith.constant 0 : index
    %c0_8 = arith.constant 0 : index
    %9 = vector.load %arg1[%c0_6, %c0_7, %c0_8] : memref<9x32x128xf32, #tpu.memory_space<vmem>>, vector<1x32x128xf32>
    %10 = vector.shape_cast %9 : vector<1x32x128xf32> to vector<32x128xf32>
    %cst_9 = arith.constant dense<0.000000e+00> : vector<32x128xf32>
    %11 = tpu.matmul %10, %8, %cst_9 {dimension_numbers = #tpu.dot_dimension_numbers<[1], [0], [0], [1], [0, 0, 1, 1], [], []>} : vector<32x128xf32>, vector<128x128xf32>, vector<32x128xf32> -> vector<32x128xf32>
    %c0_10 = arith.constant 0 : index
    %c0_11 = arith.constant 0 : index
    %c0_12 = arith.constant 0 : index
    %12 = vector.load %arg8[%c0_10, %c0_11, %c0_12] : memref<9x1x128xf32, #tpu.memory_space<vmem>>, vector<1x1x128xf32>
    %13 = vector.shape_cast %12 : vector<1x1x128xf32> to vector<1x128xf32>
    %14 = vector.broadcast %13 : vector<1x128xf32> to vector<32x128xf32>
    %15 = arith.mulf %11, %14 : vector<32x128xf32>
    %c1 = arith.constant 1 : index
    %c0_13 = arith.constant 0 : index
    %c0_14 = arith.constant 0 : index
    %16 = vector.load %arg1[%c1, %c0_13, %c0_14] : memref<9x32x128xf32, #tpu.memory_space<vmem>>, vector<1x32x128xf32>
    %17 = vector.shape_cast %16 : vector<1x32x128xf32> to vector<32x128xf32>
    %cst_15 = arith.constant dense<0.000000e+00> : vector<32x128xf32>
    %18 = tpu.matmul %17, %8, %cst_15 {dimension_numbers = #tpu.dot_dimension_numbers<[1], [0], [0], [1], [0, 0, 1, 1], [], []>} : vector<32x128xf32>, vector<128x128xf32>, vector<32x128xf32> -> vector<32x128xf32>
    %c1_16 = arith.constant 1 : index
    %c0_17 = arith.constant 0 : index
    %c0_18 = arith.constant 0 : index
    %19 = vector.load %arg8[%c1_16, %c0_17, %c0_18] : memref<9x1x128xf32, #tpu.memory_space<vmem>>, vector<1x1x128xf32>
    %20 = vector.shape_cast %19 : vector<1x1x128xf32> to vector<1x128xf32>
    %21 = vector.broadcast %20 : vector<1x128xf32> to vector<32x128xf32>
    %22 = arith.mulf %18, %21 : vector<32x128xf32>
    %23 = arith.addf %15, %22 : vector<32x128xf32>
    %c2 = arith.constant 2 : index
    %c0_19 = arith.constant 0 : index
    %c0_20 = arith.constant 0 : index
    %24 = vector.load %arg1[%c2, %c0_19, %c0_20] : memref<9x32x128xf32, #tpu.memory_space<vmem>>, vector<1x32x128xf32>
    %25 = vector.shape_cast %24 : vector<1x32x128xf32> to vector<32x128xf32>
    %cst_21 = arith.constant dense<0.000000e+00> : vector<32x128xf32>
    %26 = tpu.matmul %25, %8, %cst_21 {dimension_numbers = #tpu.dot_dimension_numbers<[1], [0], [0], [1], [0, 0, 1, 1], [], []>} : vector<32x128xf32>, vector<128x128xf32>, vector<32x128xf32> -> vector<32x128xf32>
    %c2_22 = arith.constant 2 : index
    %c0_23 = arith.constant 0 : index
    %c0_24 = arith.constant 0 : index
    %27 = vector.load %arg8[%c2_22, %c0_23, %c0_24] : memref<9x1x128xf32, #tpu.memory_space<vmem>>, vector<1x1x128xf32>
    %28 = vector.shape_cast %27 : vector<1x1x128xf32> to vector<1x128xf32>
    %29 = vector.broadcast %28 : vector<1x128xf32> to vector<32x128xf32>
    %30 = arith.mulf %26, %29 : vector<32x128xf32>
    %31 = arith.addf %23, %30 : vector<32x128xf32>
    %c3 = arith.constant 3 : index
    %c0_25 = arith.constant 0 : index
    %c0_26 = arith.constant 0 : index
    %32 = vector.load %arg1[%c3, %c0_25, %c0_26] : memref<9x32x128xf32, #tpu.memory_space<vmem>>, vector<1x32x128xf32>
    %33 = vector.shape_cast %32 : vector<1x32x128xf32> to vector<32x128xf32>
    %cst_27 = arith.constant dense<0.000000e+00> : vector<32x128xf32>
    %34 = tpu.matmul %33, %8, %cst_27 {dimension_numbers = #tpu.dot_dimension_numbers<[1], [0], [0], [1], [0, 0, 1, 1], [], []>} : vector<32x128xf32>, vector<128x128xf32>, vector<32x128xf32> -> vector<32x128xf32>
    %c3_28 = arith.constant 3 : index
    %c0_29 = arith.constant 0 : index
    %c0_30 = arith.constant 0 : index
    %35 = vector.load %arg8[%c3_28, %c0_29, %c0_30] : memref<9x1x128xf32, #tpu.memory_space<vmem>>, vector<1x1x128xf32>
    %36 = vector.shape_cast %35 : vector<1x1x128xf32> to vector<1x128xf32>
    %37 = vector.broadcast %36 : vector<1x128xf32> to vector<32x128xf32>
    %38 = arith.mulf %34, %37 : vector<32x128xf32>
    %39 = arith.addf %31, %38 : vector<32x128xf32>
    %c4 = arith.constant 4 : index
    %c0_31 = arith.constant 0 : index
    %c0_32 = arith.constant 0 : index
    %40 = vector.load %arg1[%c4, %c0_31, %c0_32] : memref<9x32x128xf32, #tpu.memory_space<vmem>>, vector<1x32x128xf32>
    %41 = vector.shape_cast %40 : vector<1x32x128xf32> to vector<32x128xf32>
    %cst_33 = arith.constant dense<0.000000e+00> : vector<32x128xf32>
    %42 = tpu.matmul %41, %8, %cst_33 {dimension_numbers = #tpu.dot_dimension_numbers<[1], [0], [0], [1], [0, 0, 1, 1], [], []>} : vector<32x128xf32>, vector<128x128xf32>, vector<32x128xf32> -> vector<32x128xf32>
    %c4_34 = arith.constant 4 : index
    %c0_35 = arith.constant 0 : index
    %c0_36 = arith.constant 0 : index
    %43 = vector.load %arg8[%c4_34, %c0_35, %c0_36] : memref<9x1x128xf32, #tpu.memory_space<vmem>>, vector<1x1x128xf32>
    %44 = vector.shape_cast %43 : vector<1x1x128xf32> to vector<1x128xf32>
    %45 = vector.broadcast %44 : vector<1x128xf32> to vector<32x128xf32>
    %46 = arith.mulf %42, %45 : vector<32x128xf32>
    %47 = arith.addf %39, %46 : vector<32x128xf32>
    %c5 = arith.constant 5 : index
    %c0_37 = arith.constant 0 : index
    %c0_38 = arith.constant 0 : index
    %48 = vector.load %arg1[%c5, %c0_37, %c0_38] : memref<9x32x128xf32, #tpu.memory_space<vmem>>, vector<1x32x128xf32>
    %49 = vector.shape_cast %48 : vector<1x32x128xf32> to vector<32x128xf32>
    %cst_39 = arith.constant dense<0.000000e+00> : vector<32x128xf32>
    %50 = tpu.matmul %49, %8, %cst_39 {dimension_numbers = #tpu.dot_dimension_numbers<[1], [0], [0], [1], [0, 0, 1, 1], [], []>} : vector<32x128xf32>, vector<128x128xf32>, vector<32x128xf32> -> vector<32x128xf32>
    %c5_40 = arith.constant 5 : index
    %c0_41 = arith.constant 0 : index
    %c0_42 = arith.constant 0 : index
    %51 = vector.load %arg8[%c5_40, %c0_41, %c0_42] : memref<9x1x128xf32, #tpu.memory_space<vmem>>, vector<1x1x128xf32>
    %52 = vector.shape_cast %51 : vector<1x1x128xf32> to vector<1x128xf32>
    %53 = vector.broadcast %52 : vector<1x128xf32> to vector<32x128xf32>
    %54 = arith.mulf %50, %53 : vector<32x128xf32>
    %55 = arith.addf %47, %54 : vector<32x128xf32>
    %c6 = arith.constant 6 : index
    %c0_43 = arith.constant 0 : index
    %c0_44 = arith.constant 0 : index
    %56 = vector.load %arg1[%c6, %c0_43, %c0_44] : memref<9x32x128xf32, #tpu.memory_space<vmem>>, vector<1x32x128xf32>
    %57 = vector.shape_cast %56 : vector<1x32x128xf32> to vector<32x128xf32>
    %cst_45 = arith.constant dense<0.000000e+00> : vector<32x128xf32>
    %58 = tpu.matmul %57, %8, %cst_45 {dimension_numbers = #tpu.dot_dimension_numbers<[1], [0], [0], [1], [0, 0, 1, 1], [], []>} : vector<32x128xf32>, vector<128x128xf32>, vector<32x128xf32> -> vector<32x128xf32>
    %c6_46 = arith.constant 6 : index
    %c0_47 = arith.constant 0 : index
    %c0_48 = arith.constant 0 : index
    %59 = vector.load %arg8[%c6_46, %c0_47, %c0_48] : memref<9x1x128xf32, #tpu.memory_space<vmem>>, vector<1x1x128xf32>
    %60 = vector.shape_cast %59 : vector<1x1x128xf32> to vector<1x128xf32>
    %61 = vector.broadcast %60 : vector<1x128xf32> to vector<32x128xf32>
    %62 = arith.mulf %58, %61 : vector<32x128xf32>
    %63 = arith.addf %55, %62 : vector<32x128xf32>
    %c7 = arith.constant 7 : index
    %c0_49 = arith.constant 0 : index
    %c0_50 = arith.constant 0 : index
    %64 = vector.load %arg1[%c7, %c0_49, %c0_50] : memref<9x32x128xf32, #tpu.memory_space<vmem>>, vector<1x32x128xf32>
    %65 = vector.shape_cast %64 : vector<1x32x128xf32> to vector<32x128xf32>
    %cst_51 = arith.constant dense<0.000000e+00> : vector<32x128xf32>
    %66 = tpu.matmul %65, %8, %cst_51 {dimension_numbers = #tpu.dot_dimension_numbers<[1], [0], [0], [1], [0, 0, 1, 1], [], []>} : vector<32x128xf32>, vector<128x128xf32>, vector<32x128xf32> -> vector<32x128xf32>
    %c7_52 = arith.constant 7 : index
    %c0_53 = arith.constant 0 : index
    %c0_54 = arith.constant 0 : index
    %67 = vector.load %arg8[%c7_52, %c0_53, %c0_54] : memref<9x1x128xf32, #tpu.memory_space<vmem>>, vector<1x1x128xf32>
    %68 = vector.shape_cast %67 : vector<1x1x128xf32> to vector<1x128xf32>
    %69 = vector.broadcast %68 : vector<1x128xf32> to vector<32x128xf32>
    %70 = arith.mulf %66, %69 : vector<32x128xf32>
    %71 = arith.addf %63, %70 : vector<32x128xf32>
    %c8 = arith.constant 8 : index
    %c0_55 = arith.constant 0 : index
    %c0_56 = arith.constant 0 : index
    %72 = vector.load %arg1[%c8, %c0_55, %c0_56] : memref<9x32x128xf32, #tpu.memory_space<vmem>>, vector<1x32x128xf32>
    %73 = vector.shape_cast %72 : vector<1x32x128xf32> to vector<32x128xf32>
    %cst_57 = arith.constant dense<0.000000e+00> : vector<32x128xf32>
    %74 = tpu.matmul %73, %8, %cst_57 {dimension_numbers = #tpu.dot_dimension_numbers<[1], [0], [0], [1], [0, 0, 1, 1], [], []>} : vector<32x128xf32>, vector<128x128xf32>, vector<32x128xf32> -> vector<32x128xf32>
    %c8_58 = arith.constant 8 : index
    %c0_59 = arith.constant 0 : index
    %c0_60 = arith.constant 0 : index
    %75 = vector.load %arg8[%c8_58, %c0_59, %c0_60] : memref<9x1x128xf32, #tpu.memory_space<vmem>>, vector<1x1x128xf32>
    %76 = vector.shape_cast %75 : vector<1x1x128xf32> to vector<1x128xf32>
    %77 = vector.broadcast %76 : vector<1x128xf32> to vector<32x128xf32>
    %78 = arith.mulf %74, %77 : vector<32x128xf32>
    %79 = arith.addf %71, %78 : vector<32x128xf32>
    %c0_61 = arith.constant 0 : index
    %c0_62 = arith.constant 0 : index
    %80 = vector.load %arg9[%c0_61, %c0_62] : memref<1x128xf32, #tpu.memory_space<vmem>>, vector<1x128xf32>
    %81 = vector.broadcast %80 : vector<1x128xf32> to vector<32x128xf32>
    %82 = arith.addf %79, %81 : vector<32x128xf32>
    %83 = arith.truncf %82 : vector<32x128xf32> to vector<32x128xbf16>
    %c0_63 = arith.constant 0 : index
    %c0_64 = arith.constant 0 : index
    %84 = vector.load %arg10[%c0_63, %c0_64] : memref<128x128xbf16, #tpu.memory_space<vmem>>, vector<128x128xbf16>
    %cst_65 = arith.constant dense<0.000000e+00> : vector<32x128xf32>
    %85 = tpu.matmul %83, %84, %cst_65 {dimension_numbers = #tpu.dot_dimension_numbers<[1], [0], [0], [1], [0, 0, 1, 1], [], []>} : vector<32x128xbf16>, vector<128x128xbf16>, vector<32x128xf32> -> vector<32x128xf32>
    %c0_66 = arith.constant 0 : index
    %c0_67 = arith.constant 0 : index
    %86 = vector.load %arg11[%c0_66, %c0_67] : memref<1x128xf32, #tpu.memory_space<vmem>>, vector<1x128xf32>
    %87 = vector.broadcast %86 : vector<1x128xf32> to vector<32x128xf32>
    %88 = arith.addf %85, %87 : vector<32x128xf32>
    %cst_68 = arith.constant 0.000000e+00 : f32
    %89 = vector.broadcast %cst_68 : f32 to vector<32x128xf32>
    %90 = arith.maximumf %88, %89 : vector<32x128xf32>
    %c0_69 = arith.constant 0 : index
    %c0_70 = arith.constant 0 : index
    %c0_71 = arith.constant 0 : index
    %91 = vector.load %arg1[%c0_69, %c0_70, %c0_71] : memref<9x32x128xf32, #tpu.memory_space<vmem>>, vector<1x32x128xf32>
    %92 = vector.shape_cast %91 : vector<1x32x128xf32> to vector<32x128xf32>
    %cst_72 = arith.constant dense<0.000000e+00> : vector<32x128xf32>
    %93 = tpu.matmul %92, %0, %cst_72 {dimension_numbers = #tpu.dot_dimension_numbers<[1], [0], [0], [1], [0, 0, 1, 1], [], []>} : vector<32x128xf32>, vector<128x128xf32>, vector<32x128xf32> -> vector<32x128xf32>
    %c0_73 = arith.constant 0 : index
    %c0_74 = arith.constant 0 : index
    %c0_75 = arith.constant 0 : index
    %94 = vector.load %arg2[%c0_73, %c0_74, %c0_75] : memref<9x1x128xf32, #tpu.memory_space<vmem>>, vector<1x1x128xf32>
    %95 = vector.shape_cast %94 : vector<1x1x128xf32> to vector<1x128xf32>
    %96 = vector.broadcast %95 : vector<1x128xf32> to vector<32x128xf32>
    %97 = arith.mulf %93, %96 : vector<32x128xf32>
    %c1_76 = arith.constant 1 : index
    %c0_77 = arith.constant 0 : index
    %c0_78 = arith.constant 0 : index
    %98 = vector.load %arg1[%c1_76, %c0_77, %c0_78] : memref<9x32x128xf32, #tpu.memory_space<vmem>>, vector<1x32x128xf32>
    %99 = vector.shape_cast %98 : vector<1x32x128xf32> to vector<32x128xf32>
    %cst_79 = arith.constant dense<0.000000e+00> : vector<32x128xf32>
    %100 = tpu.matmul %99, %0, %cst_79 {dimension_numbers = #tpu.dot_dimension_numbers<[1], [0], [0], [1], [0, 0, 1, 1], [], []>} : vector<32x128xf32>, vector<128x128xf32>, vector<32x128xf32> -> vector<32x128xf32>
    %c1_80 = arith.constant 1 : index
    %c0_81 = arith.constant 0 : index
    %c0_82 = arith.constant 0 : index
    %101 = vector.load %arg2[%c1_80, %c0_81, %c0_82] : memref<9x1x128xf32, #tpu.memory_space<vmem>>, vector<1x1x128xf32>
    %102 = vector.shape_cast %101 : vector<1x1x128xf32> to vector<1x128xf32>
    %103 = vector.broadcast %102 : vector<1x128xf32> to vector<32x128xf32>
    %104 = arith.mulf %100, %103 : vector<32x128xf32>
    %105 = arith.addf %97, %104 : vector<32x128xf32>
    %c2_83 = arith.constant 2 : index
    %c0_84 = arith.constant 0 : index
    %c0_85 = arith.constant 0 : index
    %106 = vector.load %arg1[%c2_83, %c0_84, %c0_85] : memref<9x32x128xf32, #tpu.memory_space<vmem>>, vector<1x32x128xf32>
    %107 = vector.shape_cast %106 : vector<1x32x128xf32> to vector<32x128xf32>
    %cst_86 = arith.constant dense<0.000000e+00> : vector<32x128xf32>
    %108 = tpu.matmul %107, %0, %cst_86 {dimension_numbers = #tpu.dot_dimension_numbers<[1], [0], [0], [1], [0, 0, 1, 1], [], []>} : vector<32x128xf32>, vector<128x128xf32>, vector<32x128xf32> -> vector<32x128xf32>
    %c2_87 = arith.constant 2 : index
    %c0_88 = arith.constant 0 : index
    %c0_89 = arith.constant 0 : index
    %109 = vector.load %arg2[%c2_87, %c0_88, %c0_89] : memref<9x1x128xf32, #tpu.memory_space<vmem>>, vector<1x1x128xf32>
    %110 = vector.shape_cast %109 : vector<1x1x128xf32> to vector<1x128xf32>
    %111 = vector.broadcast %110 : vector<1x128xf32> to vector<32x128xf32>
    %112 = arith.mulf %108, %111 : vector<32x128xf32>
    %113 = arith.addf %105, %112 : vector<32x128xf32>
    %c3_90 = arith.constant 3 : index
    %c0_91 = arith.constant 0 : index
    %c0_92 = arith.constant 0 : index
    %114 = vector.load %arg1[%c3_90, %c0_91, %c0_92] : memref<9x32x128xf32, #tpu.memory_space<vmem>>, vector<1x32x128xf32>
    %115 = vector.shape_cast %114 : vector<1x32x128xf32> to vector<32x128xf32>
    %cst_93 = arith.constant dense<0.000000e+00> : vector<32x128xf32>
    %116 = tpu.matmul %115, %0, %cst_93 {dimension_numbers = #tpu.dot_dimension_numbers<[1], [0], [0], [1], [0, 0, 1, 1], [], []>} : vector<32x128xf32>, vector<128x128xf32>, vector<32x128xf32> -> vector<32x128xf32>
    %c3_94 = arith.constant 3 : index
    %c0_95 = arith.constant 0 : index
    %c0_96 = arith.constant 0 : index
    %117 = vector.load %arg2[%c3_94, %c0_95, %c0_96] : memref<9x1x128xf32, #tpu.memory_space<vmem>>, vector<1x1x128xf32>
    %118 = vector.shape_cast %117 : vector<1x1x128xf32> to vector<1x128xf32>
    %119 = vector.broadcast %118 : vector<1x128xf32> to vector<32x128xf32>
    %120 = arith.mulf %116, %119 : vector<32x128xf32>
    %121 = arith.addf %113, %120 : vector<32x128xf32>
    %c4_97 = arith.constant 4 : index
    %c0_98 = arith.constant 0 : index
    %c0_99 = arith.constant 0 : index
    %122 = vector.load %arg1[%c4_97, %c0_98, %c0_99] : memref<9x32x128xf32, #tpu.memory_space<vmem>>, vector<1x32x128xf32>
    %123 = vector.shape_cast %122 : vector<1x32x128xf32> to vector<32x128xf32>
    %cst_100 = arith.constant dense<0.000000e+00> : vector<32x128xf32>
    %124 = tpu.matmul %123, %0, %cst_100 {dimension_numbers = #tpu.dot_dimension_numbers<[1], [0], [0], [1], [0, 0, 1, 1], [], []>} : vector<32x128xf32>, vector<128x128xf32>, vector<32x128xf32> -> vector<32x128xf32>
    %c4_101 = arith.constant 4 : index
    %c0_102 = arith.constant 0 : index
    %c0_103 = arith.constant 0 : index
    %125 = vector.load %arg2[%c4_101, %c0_102, %c0_103] : memref<9x1x128xf32, #tpu.memory_space<vmem>>, vector<1x1x128xf32>
    %126 = vector.shape_cast %125 : vector<1x1x128xf32> to vector<1x128xf32>
    %127 = vector.broadcast %126 : vector<1x128xf32> to vector<32x128xf32>
    %128 = arith.mulf %124, %127 : vector<32x128xf32>
    %129 = arith.addf %121, %128 : vector<32x128xf32>
    %c5_104 = arith.constant 5 : index
    %c0_105 = arith.constant 0 : index
    %c0_106 = arith.constant 0 : index
    %130 = vector.load %arg1[%c5_104, %c0_105, %c0_106] : memref<9x32x128xf32, #tpu.memory_space<vmem>>, vector<1x32x128xf32>
    %131 = vector.shape_cast %130 : vector<1x32x128xf32> to vector<32x128xf32>
    %cst_107 = arith.constant dense<0.000000e+00> : vector<32x128xf32>
    %132 = tpu.matmul %131, %0, %cst_107 {dimension_numbers = #tpu.dot_dimension_numbers<[1], [0], [0], [1], [0, 0, 1, 1], [], []>} : vector<32x128xf32>, vector<128x128xf32>, vector<32x128xf32> -> vector<32x128xf32>
    %c5_108 = arith.constant 5 : index
    %c0_109 = arith.constant 0 : index
    %c0_110 = arith.constant 0 : index
    %133 = vector.load %arg2[%c5_108, %c0_109, %c0_110] : memref<9x1x128xf32, #tpu.memory_space<vmem>>, vector<1x1x128xf32>
    %134 = vector.shape_cast %133 : vector<1x1x128xf32> to vector<1x128xf32>
    %135 = vector.broadcast %134 : vector<1x128xf32> to vector<32x128xf32>
    %136 = arith.mulf %132, %135 : vector<32x128xf32>
    %137 = arith.addf %129, %136 : vector<32x128xf32>
    %c6_111 = arith.constant 6 : index
    %c0_112 = arith.constant 0 : index
    %c0_113 = arith.constant 0 : index
    %138 = vector.load %arg1[%c6_111, %c0_112, %c0_113] : memref<9x32x128xf32, #tpu.memory_space<vmem>>, vector<1x32x128xf32>
    %139 = vector.shape_cast %138 : vector<1x32x128xf32> to vector<32x128xf32>
    %cst_114 = arith.constant dense<0.000000e+00> : vector<32x128xf32>
    %140 = tpu.matmul %139, %0, %cst_114 {dimension_numbers = #tpu.dot_dimension_numbers<[1], [0], [0], [1], [0, 0, 1, 1], [], []>} : vector<32x128xf32>, vector<128x128xf32>, vector<32x128xf32> -> vector<32x128xf32>
    %c6_115 = arith.constant 6 : index
    %c0_116 = arith.constant 0 : index
    %c0_117 = arith.constant 0 : index
    %141 = vector.load %arg2[%c6_115, %c0_116, %c0_117] : memref<9x1x128xf32, #tpu.memory_space<vmem>>, vector<1x1x128xf32>
    %142 = vector.shape_cast %141 : vector<1x1x128xf32> to vector<1x128xf32>
    %143 = vector.broadcast %142 : vector<1x128xf32> to vector<32x128xf32>
    %144 = arith.mulf %140, %143 : vector<32x128xf32>
    %145 = arith.addf %137, %144 : vector<32x128xf32>
    %c7_118 = arith.constant 7 : index
    %c0_119 = arith.constant 0 : index
    %c0_120 = arith.constant 0 : index
    %146 = vector.load %arg1[%c7_118, %c0_119, %c0_120] : memref<9x32x128xf32, #tpu.memory_space<vmem>>, vector<1x32x128xf32>
    %147 = vector.shape_cast %146 : vector<1x32x128xf32> to vector<32x128xf32>
    %cst_121 = arith.constant dense<0.000000e+00> : vector<32x128xf32>
    %148 = tpu.matmul %147, %0, %cst_121 {dimension_numbers = #tpu.dot_dimension_numbers<[1], [0], [0], [1], [0, 0, 1, 1], [], []>} : vector<32x128xf32>, vector<128x128xf32>, vector<32x128xf32> -> vector<32x128xf32>
    %c7_122 = arith.constant 7 : index
    %c0_123 = arith.constant 0 : index
    %c0_124 = arith.constant 0 : index
    %149 = vector.load %arg2[%c7_122, %c0_123, %c0_124] : memref<9x1x128xf32, #tpu.memory_space<vmem>>, vector<1x1x128xf32>
    %150 = vector.shape_cast %149 : vector<1x1x128xf32> to vector<1x128xf32>
    %151 = vector.broadcast %150 : vector<1x128xf32> to vector<32x128xf32>
    %152 = arith.mulf %148, %151 : vector<32x128xf32>
    %153 = arith.addf %145, %152 : vector<32x128xf32>
    %c8_125 = arith.constant 8 : index
    %c0_126 = arith.constant 0 : index
    %c0_127 = arith.constant 0 : index
    %154 = vector.load %arg1[%c8_125, %c0_126, %c0_127] : memref<9x32x128xf32, #tpu.memory_space<vmem>>, vector<1x32x128xf32>
    %155 = vector.shape_cast %154 : vector<1x32x128xf32> to vector<32x128xf32>
    %cst_128 = arith.constant dense<0.000000e+00> : vector<32x128xf32>
    %156 = tpu.matmul %155, %0, %cst_128 {dimension_numbers = #tpu.dot_dimension_numbers<[1], [0], [0], [1], [0, 0, 1, 1], [], []>} : vector<32x128xf32>, vector<128x128xf32>, vector<32x128xf32> -> vector<32x128xf32>
    %c8_129 = arith.constant 8 : index
    %c0_130 = arith.constant 0 : index
    %c0_131 = arith.constant 0 : index
    %157 = vector.load %arg2[%c8_129, %c0_130, %c0_131] : memref<9x1x128xf32, #tpu.memory_space<vmem>>, vector<1x1x128xf32>
    %158 = vector.shape_cast %157 : vector<1x1x128xf32> to vector<1x128xf32>
    %159 = vector.broadcast %158 : vector<1x128xf32> to vector<32x128xf32>
    %160 = arith.mulf %156, %159 : vector<32x128xf32>
    %161 = arith.addf %153, %160 : vector<32x128xf32>
    %c0_132 = arith.constant 0 : index
    %c0_133 = arith.constant 0 : index
    %162 = vector.load %arg3[%c0_132, %c0_133] : memref<1x128xf32, #tpu.memory_space<vmem>>, vector<1x128xf32>
    %163 = vector.broadcast %162 : vector<1x128xf32> to vector<32x128xf32>
    %164 = arith.addf %161, %163 : vector<32x128xf32>
    %165 = arith.truncf %164 : vector<32x128xf32> to vector<32x128xbf16>
    %c0_134 = arith.constant 0 : index
    %c0_135 = arith.constant 0 : index
    %166 = vector.load %arg4[%c0_134, %c0_135] : memref<128x128xbf16, #tpu.memory_space<vmem>>, vector<128x128xbf16>
    %cst_136 = arith.constant dense<0.000000e+00> : vector<32x128xf32>
    %167 = tpu.matmul %165, %166, %cst_136 {dimension_numbers = #tpu.dot_dimension_numbers<[1], [0], [0], [1], [0, 0, 1, 1], [], []>} : vector<32x128xbf16>, vector<128x128xbf16>, vector<32x128xf32> -> vector<32x128xf32>
    %c0_137 = arith.constant 0 : index
    %c0_138 = arith.constant 0 : index
    %168 = vector.load %arg5[%c0_137, %c0_138] : memref<1x128xf32, #tpu.memory_space<vmem>>, vector<1x128xf32>
    %169 = vector.broadcast %168 : vector<1x128xf32> to vector<32x128xf32>
    %170 = arith.addf %167, %169 : vector<32x128xf32>
    %cst_139 = arith.constant 0.000000e+00 : f32
    %171 = vector.broadcast %cst_139 : f32 to vector<32x128xf32>
    %172 = arith.maximumf %170, %171 : vector<32x128xf32>
    %173 = arith.addf %172, %90 : vector<32x128xf32>
    %c0_140 = arith.constant 0 : index
    %c0_141 = arith.constant 0 : index
    %174 = vector.load %arg12[%c0_140, %c0_141] : memref<32x128xf32, #tpu.memory_space<vmem>>, vector<32x128xf32>
    tpu.vector_store %arg12[%c0_140, %c0_141], %173 {strides = array<i32>} : memref<32x128xf32, #tpu.memory_space<vmem>>, vector<32x128xf32>,
    return
  }
}

module attributes {stable_mosaic.version = 11 : i64} {
  func.func @_block_s1_kernel(%arg0: memref<8x128xf32, #tpu.memory_space<vmem>>, %arg1: memref<9x8x8xf32, #tpu.memory_space<vmem>>, %arg2: memref<128x128xf32, #tpu.memory_space<vmem>>, %arg3: memref<128x128xbf16, #tpu.memory_space<vmem>>, %arg4: memref<1x128xf32, #tpu.memory_space<vmem>>, %arg5: memref<9x1x128xf32, #tpu.memory_space<vmem>>, %arg6: memref<1x128xf32, #tpu.memory_space<vmem>>, %arg7: memref<128x128xbf16, #tpu.memory_space<vmem>>, %arg8: memref<1x128xf32, #tpu.memory_space<vmem>>, %arg9: memref<8x128xf32, #tpu.memory_space<vmem>>) attributes {dimension_semantics = [], scalar_prefetch = 0 : i64, scratch_operands = 0 : i64, tpu.core_type = #tpu.core_type<tc>} {
    %c0 = arith.constant 0 : index
    %c0_0 = arith.constant 0 : index
    %0 = vector.load %arg0[%c0, %c0_0] : memref<8x128xf32, #tpu.memory_space<vmem>>, vector<8x128xf32>
    %1 = arith.truncf %0 : vector<8x128xf32> to vector<8x128xbf16>
    %c0_1 = arith.constant 0 : index
    %c0_2 = arith.constant 0 : index
    %2 = vector.load %arg3[%c0_1, %c0_2] : memref<128x128xbf16, #tpu.memory_space<vmem>>, vector<128x128xbf16>
    %cst = arith.constant dense<0.000000e+00> : vector<8x128xf32>
    %3 = tpu.matmul %1, %2, %cst {dimension_numbers = #tpu.dot_dimension_numbers<[1], [0], [0], [1], [0, 0, 1, 1], [], []>} : vector<8x128xbf16>, vector<128x128xbf16>, vector<8x128xf32> -> vector<8x128xf32>
    %c0_3 = arith.constant 0 : index
    %c0_4 = arith.constant 0 : index
    %4 = vector.load %arg4[%c0_3, %c0_4] : memref<1x128xf32, #tpu.memory_space<vmem>>, vector<1x128xf32>
    %5 = vector.broadcast %4 : vector<1x128xf32> to vector<8x128xf32>
    %6 = arith.addf %3, %5 : vector<8x128xf32>
    %cst_5 = arith.constant 0.000000e+00 : f32
    %7 = vector.broadcast %cst_5 : f32 to vector<8x128xf32>
    %8 = arith.maximumf %6, %7 : vector<8x128xf32>
    %c0_6 = arith.constant 0 : index
    %c0_7 = arith.constant 0 : index
    %c0_8 = arith.constant 0 : index
    %9 = vector.load %arg1[%c0_6, %c0_7, %c0_8] : memref<9x8x8xf32, #tpu.memory_space<vmem>>, vector<1x8x8xf32>
    %10 = vector.shape_cast %9 : vector<1x8x8xf32> to vector<8x8xf32>
    %cst_9 = arith.constant dense<0.000000e+00> : vector<8x128xf32>
    %11 = tpu.matmul %10, %8, %cst_9 {dimension_numbers = #tpu.dot_dimension_numbers<[1], [0], [0], [1], [0, 0, 1, 1], [], []>} : vector<8x8xf32>, vector<8x128xf32>, vector<8x128xf32> -> vector<8x128xf32>
    %c0_10 = arith.constant 0 : index
    %c0_11 = arith.constant 0 : index
    %c0_12 = arith.constant 0 : index
    %12 = vector.load %arg5[%c0_10, %c0_11, %c0_12] : memref<9x1x128xf32, #tpu.memory_space<vmem>>, vector<1x1x128xf32>
    %13 = vector.shape_cast %12 : vector<1x1x128xf32> to vector<1x128xf32>
    %14 = vector.broadcast %13 : vector<1x128xf32> to vector<8x128xf32>
    %15 = arith.mulf %11, %14 : vector<8x128xf32>
    %c1 = arith.constant 1 : index
    %c0_13 = arith.constant 0 : index
    %c0_14 = arith.constant 0 : index
    %16 = vector.load %arg1[%c1, %c0_13, %c0_14] : memref<9x8x8xf32, #tpu.memory_space<vmem>>, vector<1x8x8xf32>
    %17 = vector.shape_cast %16 : vector<1x8x8xf32> to vector<8x8xf32>
    %cst_15 = arith.constant dense<0.000000e+00> : vector<8x128xf32>
    %18 = tpu.matmul %17, %8, %cst_15 {dimension_numbers = #tpu.dot_dimension_numbers<[1], [0], [0], [1], [0, 0, 1, 1], [], []>} : vector<8x8xf32>, vector<8x128xf32>, vector<8x128xf32> -> vector<8x128xf32>
    %c1_16 = arith.constant 1 : index
    %c0_17 = arith.constant 0 : index
    %c0_18 = arith.constant 0 : index
    %19 = vector.load %arg5[%c1_16, %c0_17, %c0_18] : memref<9x1x128xf32, #tpu.memory_space<vmem>>, vector<1x1x128xf32>
    %20 = vector.shape_cast %19 : vector<1x1x128xf32> to vector<1x128xf32>
    %21 = vector.broadcast %20 : vector<1x128xf32> to vector<8x128xf32>
    %22 = arith.mulf %18, %21 : vector<8x128xf32>
    %23 = arith.addf %15, %22 : vector<8x128xf32>
    %c2 = arith.constant 2 : index
    %c0_19 = arith.constant 0 : index
    %c0_20 = arith.constant 0 : index
    %24 = vector.load %arg1[%c2, %c0_19, %c0_20] : memref<9x8x8xf32, #tpu.memory_space<vmem>>, vector<1x8x8xf32>
    %25 = vector.shape_cast %24 : vector<1x8x8xf32> to vector<8x8xf32>
    %cst_21 = arith.constant dense<0.000000e+00> : vector<8x128xf32>
    %26 = tpu.matmul %25, %8, %cst_21 {dimension_numbers = #tpu.dot_dimension_numbers<[1], [0], [0], [1], [0, 0, 1, 1], [], []>} : vector<8x8xf32>, vector<8x128xf32>, vector<8x128xf32> -> vector<8x128xf32>
    %c2_22 = arith.constant 2 : index
    %c0_23 = arith.constant 0 : index
    %c0_24 = arith.constant 0 : index
    %27 = vector.load %arg5[%c2_22, %c0_23, %c0_24] : memref<9x1x128xf32, #tpu.memory_space<vmem>>, vector<1x1x128xf32>
    %28 = vector.shape_cast %27 : vector<1x1x128xf32> to vector<1x128xf32>
    %29 = vector.broadcast %28 : vector<1x128xf32> to vector<8x128xf32>
    %30 = arith.mulf %26, %29 : vector<8x128xf32>
    %31 = arith.addf %23, %30 : vector<8x128xf32>
    %c3 = arith.constant 3 : index
    %c0_25 = arith.constant 0 : index
    %c0_26 = arith.constant 0 : index
    %32 = vector.load %arg1[%c3, %c0_25, %c0_26] : memref<9x8x8xf32, #tpu.memory_space<vmem>>, vector<1x8x8xf32>
    %33 = vector.shape_cast %32 : vector<1x8x8xf32> to vector<8x8xf32>
    %cst_27 = arith.constant dense<0.000000e+00> : vector<8x128xf32>
    %34 = tpu.matmul %33, %8, %cst_27 {dimension_numbers = #tpu.dot_dimension_numbers<[1], [0], [0], [1], [0, 0, 1, 1], [], []>} : vector<8x8xf32>, vector<8x128xf32>, vector<8x128xf32> -> vector<8x128xf32>
    %c3_28 = arith.constant 3 : index
    %c0_29 = arith.constant 0 : index
    %c0_30 = arith.constant 0 : index
    %35 = vector.load %arg5[%c3_28, %c0_29, %c0_30] : memref<9x1x128xf32, #tpu.memory_space<vmem>>, vector<1x1x128xf32>
    %36 = vector.shape_cast %35 : vector<1x1x128xf32> to vector<1x128xf32>
    %37 = vector.broadcast %36 : vector<1x128xf32> to vector<8x128xf32>
    %38 = arith.mulf %34, %37 : vector<8x128xf32>
    %39 = arith.addf %31, %38 : vector<8x128xf32>
    %c4 = arith.constant 4 : index
    %c0_31 = arith.constant 0 : index
    %c0_32 = arith.constant 0 : index
    %40 = vector.load %arg1[%c4, %c0_31, %c0_32] : memref<9x8x8xf32, #tpu.memory_space<vmem>>, vector<1x8x8xf32>
    %41 = vector.shape_cast %40 : vector<1x8x8xf32> to vector<8x8xf32>
    %cst_33 = arith.constant dense<0.000000e+00> : vector<8x128xf32>
    %42 = tpu.matmul %41, %8, %cst_33 {dimension_numbers = #tpu.dot_dimension_numbers<[1], [0], [0], [1], [0, 0, 1, 1], [], []>} : vector<8x8xf32>, vector<8x128xf32>, vector<8x128xf32> -> vector<8x128xf32>
    %c4_34 = arith.constant 4 : index
    %c0_35 = arith.constant 0 : index
    %c0_36 = arith.constant 0 : index
    %43 = vector.load %arg5[%c4_34, %c0_35, %c0_36] : memref<9x1x128xf32, #tpu.memory_space<vmem>>, vector<1x1x128xf32>
    %44 = vector.shape_cast %43 : vector<1x1x128xf32> to vector<1x128xf32>
    %45 = vector.broadcast %44 : vector<1x128xf32> to vector<8x128xf32>
    %46 = arith.mulf %42, %45 : vector<8x128xf32>
    %47 = arith.addf %39, %46 : vector<8x128xf32>
    %c5 = arith.constant 5 : index
    %c0_37 = arith.constant 0 : index
    %c0_38 = arith.constant 0 : index
    %48 = vector.load %arg1[%c5, %c0_37, %c0_38] : memref<9x8x8xf32, #tpu.memory_space<vmem>>, vector<1x8x8xf32>
    %49 = vector.shape_cast %48 : vector<1x8x8xf32> to vector<8x8xf32>
    %cst_39 = arith.constant dense<0.000000e+00> : vector<8x128xf32>
    %50 = tpu.matmul %49, %8, %cst_39 {dimension_numbers = #tpu.dot_dimension_numbers<[1], [0], [0], [1], [0, 0, 1, 1], [], []>} : vector<8x8xf32>, vector<8x128xf32>, vector<8x128xf32> -> vector<8x128xf32>
    %c5_40 = arith.constant 5 : index
    %c0_41 = arith.constant 0 : index
    %c0_42 = arith.constant 0 : index
    %51 = vector.load %arg5[%c5_40, %c0_41, %c0_42] : memref<9x1x128xf32, #tpu.memory_space<vmem>>, vector<1x1x128xf32>
    %52 = vector.shape_cast %51 : vector<1x1x128xf32> to vector<1x128xf32>
    %53 = vector.broadcast %52 : vector<1x128xf32> to vector<8x128xf32>
    %54 = arith.mulf %50, %53 : vector<8x128xf32>
    %55 = arith.addf %47, %54 : vector<8x128xf32>
    %c6 = arith.constant 6 : index
    %c0_43 = arith.constant 0 : index
    %c0_44 = arith.constant 0 : index
    %56 = vector.load %arg1[%c6, %c0_43, %c0_44] : memref<9x8x8xf32, #tpu.memory_space<vmem>>, vector<1x8x8xf32>
    %57 = vector.shape_cast %56 : vector<1x8x8xf32> to vector<8x8xf32>
    %cst_45 = arith.constant dense<0.000000e+00> : vector<8x128xf32>
    %58 = tpu.matmul %57, %8, %cst_45 {dimension_numbers = #tpu.dot_dimension_numbers<[1], [0], [0], [1], [0, 0, 1, 1], [], []>} : vector<8x8xf32>, vector<8x128xf32>, vector<8x128xf32> -> vector<8x128xf32>
    %c6_46 = arith.constant 6 : index
    %c0_47 = arith.constant 0 : index
    %c0_48 = arith.constant 0 : index
    %59 = vector.load %arg5[%c6_46, %c0_47, %c0_48] : memref<9x1x128xf32, #tpu.memory_space<vmem>>, vector<1x1x128xf32>
    %60 = vector.shape_cast %59 : vector<1x1x128xf32> to vector<1x128xf32>
    %61 = vector.broadcast %60 : vector<1x128xf32> to vector<8x128xf32>
    %62 = arith.mulf %58, %61 : vector<8x128xf32>
    %63 = arith.addf %55, %62 : vector<8x128xf32>
    %c7 = arith.constant 7 : index
    %c0_49 = arith.constant 0 : index
    %c0_50 = arith.constant 0 : index
    %64 = vector.load %arg1[%c7, %c0_49, %c0_50] : memref<9x8x8xf32, #tpu.memory_space<vmem>>, vector<1x8x8xf32>
    %65 = vector.shape_cast %64 : vector<1x8x8xf32> to vector<8x8xf32>
    %cst_51 = arith.constant dense<0.000000e+00> : vector<8x128xf32>
    %66 = tpu.matmul %65, %8, %cst_51 {dimension_numbers = #tpu.dot_dimension_numbers<[1], [0], [0], [1], [0, 0, 1, 1], [], []>} : vector<8x8xf32>, vector<8x128xf32>, vector<8x128xf32> -> vector<8x128xf32>
    %c7_52 = arith.constant 7 : index
    %c0_53 = arith.constant 0 : index
    %c0_54 = arith.constant 0 : index
    %67 = vector.load %arg5[%c7_52, %c0_53, %c0_54] : memref<9x1x128xf32, #tpu.memory_space<vmem>>, vector<1x1x128xf32>
    %68 = vector.shape_cast %67 : vector<1x1x128xf32> to vector<1x128xf32>
    %69 = vector.broadcast %68 : vector<1x128xf32> to vector<8x128xf32>
    %70 = arith.mulf %66, %69 : vector<8x128xf32>
    %71 = arith.addf %63, %70 : vector<8x128xf32>
    %c8 = arith.constant 8 : index
    %c0_55 = arith.constant 0 : index
    %c0_56 = arith.constant 0 : index
    %72 = vector.load %arg1[%c8, %c0_55, %c0_56] : memref<9x8x8xf32, #tpu.memory_space<vmem>>, vector<1x8x8xf32>
    %73 = vector.shape_cast %72 : vector<1x8x8xf32> to vector<8x8xf32>
    %cst_57 = arith.constant dense<0.000000e+00> : vector<8x128xf32>
    %74 = tpu.matmul %73, %8, %cst_57 {dimension_numbers = #tpu.dot_dimension_numbers<[1], [0], [0], [1], [0, 0, 1, 1], [], []>} : vector<8x8xf32>, vector<8x128xf32>, vector<8x128xf32> -> vector<8x128xf32>
    %c8_58 = arith.constant 8 : index
    %c0_59 = arith.constant 0 : index
    %c0_60 = arith.constant 0 : index
    %75 = vector.load %arg5[%c8_58, %c0_59, %c0_60] : memref<9x1x128xf32, #tpu.memory_space<vmem>>, vector<1x1x128xf32>
    %76 = vector.shape_cast %75 : vector<1x1x128xf32> to vector<1x128xf32>
    %77 = vector.broadcast %76 : vector<1x128xf32> to vector<8x128xf32>
    %78 = arith.mulf %74, %77 : vector<8x128xf32>
    %79 = arith.addf %71, %78 : vector<8x128xf32>
    %c0_61 = arith.constant 0 : index
    %c0_62 = arith.constant 0 : index
    %80 = vector.load %arg6[%c0_61, %c0_62] : memref<1x128xf32, #tpu.memory_space<vmem>>, vector<1x128xf32>
    %81 = vector.broadcast %80 : vector<1x128xf32> to vector<8x128xf32>
    %82 = arith.addf %79, %81 : vector<8x128xf32>
    %83 = arith.truncf %82 : vector<8x128xf32> to vector<8x128xbf16>
    %c0_63 = arith.constant 0 : index
    %c0_64 = arith.constant 0 : index
    %84 = vector.load %arg7[%c0_63, %c0_64] : memref<128x128xbf16, #tpu.memory_space<vmem>>, vector<128x128xbf16>
    %cst_65 = arith.constant dense<0.000000e+00> : vector<8x128xf32>
    %85 = tpu.matmul %83, %84, %cst_65 {dimension_numbers = #tpu.dot_dimension_numbers<[1], [0], [0], [1], [0, 0, 1, 1], [], []>} : vector<8x128xbf16>, vector<128x128xbf16>, vector<8x128xf32> -> vector<8x128xf32>
    %c0_66 = arith.constant 0 : index
    %c0_67 = arith.constant 0 : index
    %86 = vector.load %arg8[%c0_66, %c0_67] : memref<1x128xf32, #tpu.memory_space<vmem>>, vector<1x128xf32>
    %87 = vector.broadcast %86 : vector<1x128xf32> to vector<8x128xf32>
    %88 = arith.addf %85, %87 : vector<8x128xf32>
    %cst_68 = arith.constant 0.000000e+00 : f32
    %89 = vector.broadcast %cst_68 : f32 to vector<8x128xf32>
    %90 = arith.maximumf %88, %89 : vector<8x128xf32>
    %c0_69 = arith.constant 0 : index
    %c0_70 = arith.constant 0 : index
    %91 = vector.load %arg2[%c0_69, %c0_70] : memref<128x128xf32, #tpu.memory_space<vmem>>, vector<128x128xf32>
    %cst_71 = arith.constant dense<0.000000e+00> : vector<8x128xf32>
    %92 = tpu.matmul %0, %91, %cst_71 {dimension_numbers = #tpu.dot_dimension_numbers<[1], [0], [0], [1], [0, 0, 1, 1], [], []>} : vector<8x128xf32>, vector<128x128xf32>, vector<8x128xf32> -> vector<8x128xf32>
    %93 = arith.addf %92, %90 : vector<8x128xf32>
    %c0_72 = arith.constant 0 : index
    %c0_73 = arith.constant 0 : index
    %94 = vector.load %arg9[%c0_72, %c0_73] : memref<8x128xf32, #tpu.memory_space<vmem>>, vector<8x128xf32>
    tpu.vector_store %arg9[%c0_72, %c0_73], %93 {strides = array<i32>} : memref<8x128xf32, #tpu.memory_space<vmem>>, vector<8x128xf32>,
    return
  }
}

module attributes {stable_mosaic.version = 11 : i64} {
  func.func @_block_s2_kernel(%arg0: memref<32x128xf32, #tpu.memory_space<vmem>>, %arg1: memref<9x8x32xf32, #tpu.memory_space<vmem>>, %arg2: memref<9x1x128xf32, #tpu.memory_space<vmem>>, %arg3: memref<1x128xf32, #tpu.memory_space<vmem>>, %arg4: memref<128x128xbf16, #tpu.memory_space<vmem>>, %arg5: memref<1x128xf32, #tpu.memory_space<vmem>>, %arg6: memref<128x128xbf16, #tpu.memory_space<vmem>>, %arg7: memref<1x128xf32, #tpu.memory_space<vmem>>, %arg8: memref<9x1x128xf32, #tpu.memory_space<vmem>>, %arg9: memref<1x128xf32, #tpu.memory_space<vmem>>, %arg10: memref<128x128xbf16, #tpu.memory_space<vmem>>, %arg11: memref<1x128xf32, #tpu.memory_space<vmem>>, %arg12: memref<8x128xf32, #tpu.memory_space<vmem>>) attributes {dimension_semantics = [], scalar_prefetch = 0 : i64, scratch_operands = 0 : i64, tpu.core_type = #tpu.core_type<tc>} {
    %c0 = arith.constant 0 : index
    %c0_0 = arith.constant 0 : index
    %0 = vector.load %arg0[%c0, %c0_0] : memref<32x128xf32, #tpu.memory_space<vmem>>, vector<32x128xf32>
    %1 = arith.truncf %0 : vector<32x128xf32> to vector<32x128xbf16>
    %c0_1 = arith.constant 0 : index
    %c0_2 = arith.constant 0 : index
    %2 = vector.load %arg6[%c0_1, %c0_2] : memref<128x128xbf16, #tpu.memory_space<vmem>>, vector<128x128xbf16>
    %cst = arith.constant dense<0.000000e+00> : vector<32x128xf32>
    %3 = tpu.matmul %1, %2, %cst {dimension_numbers = #tpu.dot_dimension_numbers<[1], [0], [0], [1], [0, 0, 1, 1], [], []>} : vector<32x128xbf16>, vector<128x128xbf16>, vector<32x128xf32> -> vector<32x128xf32>
    %c0_3 = arith.constant 0 : index
    %c0_4 = arith.constant 0 : index
    %4 = vector.load %arg7[%c0_3, %c0_4] : memref<1x128xf32, #tpu.memory_space<vmem>>, vector<1x128xf32>
    %5 = vector.broadcast %4 : vector<1x128xf32> to vector<32x128xf32>
    %6 = arith.addf %3, %5 : vector<32x128xf32>
    %cst_5 = arith.constant 0.000000e+00 : f32
    %7 = vector.broadcast %cst_5 : f32 to vector<32x128xf32>
    %8 = arith.maximumf %6, %7 : vector<32x128xf32>
    %c0_6 = arith.constant 0 : index
    %c0_7 = arith.constant 0 : index
    %c0_8 = arith.constant 0 : index
    %9 = vector.load %arg1[%c0_6, %c0_7, %c0_8] : memref<9x8x32xf32, #tpu.memory_space<vmem>>, vector<1x8x32xf32>
    %10 = vector.shape_cast %9 : vector<1x8x32xf32> to vector<8x32xf32>
    %cst_9 = arith.constant dense<0.000000e+00> : vector<8x128xf32>
    %11 = tpu.matmul %10, %8, %cst_9 {dimension_numbers = #tpu.dot_dimension_numbers<[1], [0], [0], [1], [0, 0, 1, 1], [], []>} : vector<8x32xf32>, vector<32x128xf32>, vector<8x128xf32> -> vector<8x128xf32>
    %c0_10 = arith.constant 0 : index
    %c0_11 = arith.constant 0 : index
    %c0_12 = arith.constant 0 : index
    %12 = vector.load %arg8[%c0_10, %c0_11, %c0_12] : memref<9x1x128xf32, #tpu.memory_space<vmem>>, vector<1x1x128xf32>
    %13 = vector.shape_cast %12 : vector<1x1x128xf32> to vector<1x128xf32>
    %14 = vector.broadcast %13 : vector<1x128xf32> to vector<8x128xf32>
    %15 = arith.mulf %11, %14 : vector<8x128xf32>
    %c1 = arith.constant 1 : index
    %c0_13 = arith.constant 0 : index
    %c0_14 = arith.constant 0 : index
    %16 = vector.load %arg1[%c1, %c0_13, %c0_14] : memref<9x8x32xf32, #tpu.memory_space<vmem>>, vector<1x8x32xf32>
    %17 = vector.shape_cast %16 : vector<1x8x32xf32> to vector<8x32xf32>
    %cst_15 = arith.constant dense<0.000000e+00> : vector<8x128xf32>
    %18 = tpu.matmul %17, %8, %cst_15 {dimension_numbers = #tpu.dot_dimension_numbers<[1], [0], [0], [1], [0, 0, 1, 1], [], []>} : vector<8x32xf32>, vector<32x128xf32>, vector<8x128xf32> -> vector<8x128xf32>
    %c1_16 = arith.constant 1 : index
    %c0_17 = arith.constant 0 : index
    %c0_18 = arith.constant 0 : index
    %19 = vector.load %arg8[%c1_16, %c0_17, %c0_18] : memref<9x1x128xf32, #tpu.memory_space<vmem>>, vector<1x1x128xf32>
    %20 = vector.shape_cast %19 : vector<1x1x128xf32> to vector<1x128xf32>
    %21 = vector.broadcast %20 : vector<1x128xf32> to vector<8x128xf32>
    %22 = arith.mulf %18, %21 : vector<8x128xf32>
    %23 = arith.addf %15, %22 : vector<8x128xf32>
    %c2 = arith.constant 2 : index
    %c0_19 = arith.constant 0 : index
    %c0_20 = arith.constant 0 : index
    %24 = vector.load %arg1[%c2, %c0_19, %c0_20] : memref<9x8x32xf32, #tpu.memory_space<vmem>>, vector<1x8x32xf32>
    %25 = vector.shape_cast %24 : vector<1x8x32xf32> to vector<8x32xf32>
    %cst_21 = arith.constant dense<0.000000e+00> : vector<8x128xf32>
    %26 = tpu.matmul %25, %8, %cst_21 {dimension_numbers = #tpu.dot_dimension_numbers<[1], [0], [0], [1], [0, 0, 1, 1], [], []>} : vector<8x32xf32>, vector<32x128xf32>, vector<8x128xf32> -> vector<8x128xf32>
    %c2_22 = arith.constant 2 : index
    %c0_23 = arith.constant 0 : index
    %c0_24 = arith.constant 0 : index
    %27 = vector.load %arg8[%c2_22, %c0_23, %c0_24] : memref<9x1x128xf32, #tpu.memory_space<vmem>>, vector<1x1x128xf32>
    %28 = vector.shape_cast %27 : vector<1x1x128xf32> to vector<1x128xf32>
    %29 = vector.broadcast %28 : vector<1x128xf32> to vector<8x128xf32>
    %30 = arith.mulf %26, %29 : vector<8x128xf32>
    %31 = arith.addf %23, %30 : vector<8x128xf32>
    %c3 = arith.constant 3 : index
    %c0_25 = arith.constant 0 : index
    %c0_26 = arith.constant 0 : index
    %32 = vector.load %arg1[%c3, %c0_25, %c0_26] : memref<9x8x32xf32, #tpu.memory_space<vmem>>, vector<1x8x32xf32>
    %33 = vector.shape_cast %32 : vector<1x8x32xf32> to vector<8x32xf32>
    %cst_27 = arith.constant dense<0.000000e+00> : vector<8x128xf32>
    %34 = tpu.matmul %33, %8, %cst_27 {dimension_numbers = #tpu.dot_dimension_numbers<[1], [0], [0], [1], [0, 0, 1, 1], [], []>} : vector<8x32xf32>, vector<32x128xf32>, vector<8x128xf32> -> vector<8x128xf32>
    %c3_28 = arith.constant 3 : index
    %c0_29 = arith.constant 0 : index
    %c0_30 = arith.constant 0 : index
    %35 = vector.load %arg8[%c3_28, %c0_29, %c0_30] : memref<9x1x128xf32, #tpu.memory_space<vmem>>, vector<1x1x128xf32>
    %36 = vector.shape_cast %35 : vector<1x1x128xf32> to vector<1x128xf32>
    %37 = vector.broadcast %36 : vector<1x128xf32> to vector<8x128xf32>
    %38 = arith.mulf %34, %37 : vector<8x128xf32>
    %39 = arith.addf %31, %38 : vector<8x128xf32>
    %c4 = arith.constant 4 : index
    %c0_31 = arith.constant 0 : index
    %c0_32 = arith.constant 0 : index
    %40 = vector.load %arg1[%c4, %c0_31, %c0_32] : memref<9x8x32xf32, #tpu.memory_space<vmem>>, vector<1x8x32xf32>
    %41 = vector.shape_cast %40 : vector<1x8x32xf32> to vector<8x32xf32>
    %cst_33 = arith.constant dense<0.000000e+00> : vector<8x128xf32>
    %42 = tpu.matmul %41, %8, %cst_33 {dimension_numbers = #tpu.dot_dimension_numbers<[1], [0], [0], [1], [0, 0, 1, 1], [], []>} : vector<8x32xf32>, vector<32x128xf32>, vector<8x128xf32> -> vector<8x128xf32>
    %c4_34 = arith.constant 4 : index
    %c0_35 = arith.constant 0 : index
    %c0_36 = arith.constant 0 : index
    %43 = vector.load %arg8[%c4_34, %c0_35, %c0_36] : memref<9x1x128xf32, #tpu.memory_space<vmem>>, vector<1x1x128xf32>
    %44 = vector.shape_cast %43 : vector<1x1x128xf32> to vector<1x128xf32>
    %45 = vector.broadcast %44 : vector<1x128xf32> to vector<8x128xf32>
    %46 = arith.mulf %42, %45 : vector<8x128xf32>
    %47 = arith.addf %39, %46 : vector<8x128xf32>
    %c5 = arith.constant 5 : index
    %c0_37 = arith.constant 0 : index
    %c0_38 = arith.constant 0 : index
    %48 = vector.load %arg1[%c5, %c0_37, %c0_38] : memref<9x8x32xf32, #tpu.memory_space<vmem>>, vector<1x8x32xf32>
    %49 = vector.shape_cast %48 : vector<1x8x32xf32> to vector<8x32xf32>
    %cst_39 = arith.constant dense<0.000000e+00> : vector<8x128xf32>
    %50 = tpu.matmul %49, %8, %cst_39 {dimension_numbers = #tpu.dot_dimension_numbers<[1], [0], [0], [1], [0, 0, 1, 1], [], []>} : vector<8x32xf32>, vector<32x128xf32>, vector<8x128xf32> -> vector<8x128xf32>
    %c5_40 = arith.constant 5 : index
    %c0_41 = arith.constant 0 : index
    %c0_42 = arith.constant 0 : index
    %51 = vector.load %arg8[%c5_40, %c0_41, %c0_42] : memref<9x1x128xf32, #tpu.memory_space<vmem>>, vector<1x1x128xf32>
    %52 = vector.shape_cast %51 : vector<1x1x128xf32> to vector<1x128xf32>
    %53 = vector.broadcast %52 : vector<1x128xf32> to vector<8x128xf32>
    %54 = arith.mulf %50, %53 : vector<8x128xf32>
    %55 = arith.addf %47, %54 : vector<8x128xf32>
    %c6 = arith.constant 6 : index
    %c0_43 = arith.constant 0 : index
    %c0_44 = arith.constant 0 : index
    %56 = vector.load %arg1[%c6, %c0_43, %c0_44] : memref<9x8x32xf32, #tpu.memory_space<vmem>>, vector<1x8x32xf32>
    %57 = vector.shape_cast %56 : vector<1x8x32xf32> to vector<8x32xf32>
    %cst_45 = arith.constant dense<0.000000e+00> : vector<8x128xf32>
    %58 = tpu.matmul %57, %8, %cst_45 {dimension_numbers = #tpu.dot_dimension_numbers<[1], [0], [0], [1], [0, 0, 1, 1], [], []>} : vector<8x32xf32>, vector<32x128xf32>, vector<8x128xf32> -> vector<8x128xf32>
    %c6_46 = arith.constant 6 : index
    %c0_47 = arith.constant 0 : index
    %c0_48 = arith.constant 0 : index
    %59 = vector.load %arg8[%c6_46, %c0_47, %c0_48] : memref<9x1x128xf32, #tpu.memory_space<vmem>>, vector<1x1x128xf32>
    %60 = vector.shape_cast %59 : vector<1x1x128xf32> to vector<1x128xf32>
    %61 = vector.broadcast %60 : vector<1x128xf32> to vector<8x128xf32>
    %62 = arith.mulf %58, %61 : vector<8x128xf32>
    %63 = arith.addf %55, %62 : vector<8x128xf32>
    %c7 = arith.constant 7 : index
    %c0_49 = arith.constant 0 : index
    %c0_50 = arith.constant 0 : index
    %64 = vector.load %arg1[%c7, %c0_49, %c0_50] : memref<9x8x32xf32, #tpu.memory_space<vmem>>, vector<1x8x32xf32>
    %65 = vector.shape_cast %64 : vector<1x8x32xf32> to vector<8x32xf32>
    %cst_51 = arith.constant dense<0.000000e+00> : vector<8x128xf32>
    %66 = tpu.matmul %65, %8, %cst_51 {dimension_numbers = #tpu.dot_dimension_numbers<[1], [0], [0], [1], [0, 0, 1, 1], [], []>} : vector<8x32xf32>, vector<32x128xf32>, vector<8x128xf32> -> vector<8x128xf32>
    %c7_52 = arith.constant 7 : index
    %c0_53 = arith.constant 0 : index
    %c0_54 = arith.constant 0 : index
    %67 = vector.load %arg8[%c7_52, %c0_53, %c0_54] : memref<9x1x128xf32, #tpu.memory_space<vmem>>, vector<1x1x128xf32>
    %68 = vector.shape_cast %67 : vector<1x1x128xf32> to vector<1x128xf32>
    %69 = vector.broadcast %68 : vector<1x128xf32> to vector<8x128xf32>
    %70 = arith.mulf %66, %69 : vector<8x128xf32>
    %71 = arith.addf %63, %70 : vector<8x128xf32>
    %c8 = arith.constant 8 : index
    %c0_55 = arith.constant 0 : index
    %c0_56 = arith.constant 0 : index
    %72 = vector.load %arg1[%c8, %c0_55, %c0_56] : memref<9x8x32xf32, #tpu.memory_space<vmem>>, vector<1x8x32xf32>
    %73 = vector.shape_cast %72 : vector<1x8x32xf32> to vector<8x32xf32>
    %cst_57 = arith.constant dense<0.000000e+00> : vector<8x128xf32>
    %74 = tpu.matmul %73, %8, %cst_57 {dimension_numbers = #tpu.dot_dimension_numbers<[1], [0], [0], [1], [0, 0, 1, 1], [], []>} : vector<8x32xf32>, vector<32x128xf32>, vector<8x128xf32> -> vector<8x128xf32>
    %c8_58 = arith.constant 8 : index
    %c0_59 = arith.constant 0 : index
    %c0_60 = arith.constant 0 : index
    %75 = vector.load %arg8[%c8_58, %c0_59, %c0_60] : memref<9x1x128xf32, #tpu.memory_space<vmem>>, vector<1x1x128xf32>
    %76 = vector.shape_cast %75 : vector<1x1x128xf32> to vector<1x128xf32>
    %77 = vector.broadcast %76 : vector<1x128xf32> to vector<8x128xf32>
    %78 = arith.mulf %74, %77 : vector<8x128xf32>
    %79 = arith.addf %71, %78 : vector<8x128xf32>
    %c0_61 = arith.constant 0 : index
    %c0_62 = arith.constant 0 : index
    %80 = vector.load %arg9[%c0_61, %c0_62] : memref<1x128xf32, #tpu.memory_space<vmem>>, vector<1x128xf32>
    %81 = vector.broadcast %80 : vector<1x128xf32> to vector<8x128xf32>
    %82 = arith.addf %79, %81 : vector<8x128xf32>
    %83 = arith.truncf %82 : vector<8x128xf32> to vector<8x128xbf16>
    %c0_63 = arith.constant 0 : index
    %c0_64 = arith.constant 0 : index
    %84 = vector.load %arg10[%c0_63, %c0_64] : memref<128x128xbf16, #tpu.memory_space<vmem>>, vector<128x128xbf16>
    %cst_65 = arith.constant dense<0.000000e+00> : vector<8x128xf32>
    %85 = tpu.matmul %83, %84, %cst_65 {dimension_numbers = #tpu.dot_dimension_numbers<[1], [0], [0], [1], [0, 0, 1, 1], [], []>} : vector<8x128xbf16>, vector<128x128xbf16>, vector<8x128xf32> -> vector<8x128xf32>
    %c0_66 = arith.constant 0 : index
    %c0_67 = arith.constant 0 : index
    %86 = vector.load %arg11[%c0_66, %c0_67] : memref<1x128xf32, #tpu.memory_space<vmem>>, vector<1x128xf32>
    %87 = vector.broadcast %86 : vector<1x128xf32> to vector<8x128xf32>
    %88 = arith.addf %85, %87 : vector<8x128xf32>
    %cst_68 = arith.constant 0.000000e+00 : f32
    %89 = vector.broadcast %cst_68 : f32 to vector<8x128xf32>
    %90 = arith.maximumf %88, %89 : vector<8x128xf32>
    %c0_69 = arith.constant 0 : index
    %c0_70 = arith.constant 0 : index
    %c0_71 = arith.constant 0 : index
    %91 = vector.load %arg1[%c0_69, %c0_70, %c0_71] : memref<9x8x32xf32, #tpu.memory_space<vmem>>, vector<1x8x32xf32>
    %92 = vector.shape_cast %91 : vector<1x8x32xf32> to vector<8x32xf32>
    %cst_72 = arith.constant dense<0.000000e+00> : vector<8x128xf32>
    %93 = tpu.matmul %92, %0, %cst_72 {dimension_numbers = #tpu.dot_dimension_numbers<[1], [0], [0], [1], [0, 0, 1, 1], [], []>} : vector<8x32xf32>, vector<32x128xf32>, vector<8x128xf32> -> vector<8x128xf32>
    %c0_73 = arith.constant 0 : index
    %c0_74 = arith.constant 0 : index
    %c0_75 = arith.constant 0 : index
    %94 = vector.load %arg2[%c0_73, %c0_74, %c0_75] : memref<9x1x128xf32, #tpu.memory_space<vmem>>, vector<1x1x128xf32>
    %95 = vector.shape_cast %94 : vector<1x1x128xf32> to vector<1x128xf32>
    %96 = vector.broadcast %95 : vector<1x128xf32> to vector<8x128xf32>
    %97 = arith.mulf %93, %96 : vector<8x128xf32>
    %c1_76 = arith.constant 1 : index
    %c0_77 = arith.constant 0 : index
    %c0_78 = arith.constant 0 : index
    %98 = vector.load %arg1[%c1_76, %c0_77, %c0_78] : memref<9x8x32xf32, #tpu.memory_space<vmem>>, vector<1x8x32xf32>
    %99 = vector.shape_cast %98 : vector<1x8x32xf32> to vector<8x32xf32>
    %cst_79 = arith.constant dense<0.000000e+00> : vector<8x128xf32>
    %100 = tpu.matmul %99, %0, %cst_79 {dimension_numbers = #tpu.dot_dimension_numbers<[1], [0], [0], [1], [0, 0, 1, 1], [], []>} : vector<8x32xf32>, vector<32x128xf32>, vector<8x128xf32> -> vector<8x128xf32>
    %c1_80 = arith.constant 1 : index
    %c0_81 = arith.constant 0 : index
    %c0_82 = arith.constant 0 : index
    %101 = vector.load %arg2[%c1_80, %c0_81, %c0_82] : memref<9x1x128xf32, #tpu.memory_space<vmem>>, vector<1x1x128xf32>
    %102 = vector.shape_cast %101 : vector<1x1x128xf32> to vector<1x128xf32>
    %103 = vector.broadcast %102 : vector<1x128xf32> to vector<8x128xf32>
    %104 = arith.mulf %100, %103 : vector<8x128xf32>
    %105 = arith.addf %97, %104 : vector<8x128xf32>
    %c2_83 = arith.constant 2 : index
    %c0_84 = arith.constant 0 : index
    %c0_85 = arith.constant 0 : index
    %106 = vector.load %arg1[%c2_83, %c0_84, %c0_85] : memref<9x8x32xf32, #tpu.memory_space<vmem>>, vector<1x8x32xf32>
    %107 = vector.shape_cast %106 : vector<1x8x32xf32> to vector<8x32xf32>
    %cst_86 = arith.constant dense<0.000000e+00> : vector<8x128xf32>
    %108 = tpu.matmul %107, %0, %cst_86 {dimension_numbers = #tpu.dot_dimension_numbers<[1], [0], [0], [1], [0, 0, 1, 1], [], []>} : vector<8x32xf32>, vector<32x128xf32>, vector<8x128xf32> -> vector<8x128xf32>
    %c2_87 = arith.constant 2 : index
    %c0_88 = arith.constant 0 : index
    %c0_89 = arith.constant 0 : index
    %109 = vector.load %arg2[%c2_87, %c0_88, %c0_89] : memref<9x1x128xf32, #tpu.memory_space<vmem>>, vector<1x1x128xf32>
    %110 = vector.shape_cast %109 : vector<1x1x128xf32> to vector<1x128xf32>
    %111 = vector.broadcast %110 : vector<1x128xf32> to vector<8x128xf32>
    %112 = arith.mulf %108, %111 : vector<8x128xf32>
    %113 = arith.addf %105, %112 : vector<8x128xf32>
    %c3_90 = arith.constant 3 : index
    %c0_91 = arith.constant 0 : index
    %c0_92 = arith.constant 0 : index
    %114 = vector.load %arg1[%c3_90, %c0_91, %c0_92] : memref<9x8x32xf32, #tpu.memory_space<vmem>>, vector<1x8x32xf32>
    %115 = vector.shape_cast %114 : vector<1x8x32xf32> to vector<8x32xf32>
    %cst_93 = arith.constant dense<0.000000e+00> : vector<8x128xf32>
    %116 = tpu.matmul %115, %0, %cst_93 {dimension_numbers = #tpu.dot_dimension_numbers<[1], [0], [0], [1], [0, 0, 1, 1], [], []>} : vector<8x32xf32>, vector<32x128xf32>, vector<8x128xf32> -> vector<8x128xf32>
    %c3_94 = arith.constant 3 : index
    %c0_95 = arith.constant 0 : index
    %c0_96 = arith.constant 0 : index
    %117 = vector.load %arg2[%c3_94, %c0_95, %c0_96] : memref<9x1x128xf32, #tpu.memory_space<vmem>>, vector<1x1x128xf32>
    %118 = vector.shape_cast %117 : vector<1x1x128xf32> to vector<1x128xf32>
    %119 = vector.broadcast %118 : vector<1x128xf32> to vector<8x128xf32>
    %120 = arith.mulf %116, %119 : vector<8x128xf32>
    %121 = arith.addf %113, %120 : vector<8x128xf32>
    %c4_97 = arith.constant 4 : index
    %c0_98 = arith.constant 0 : index
    %c0_99 = arith.constant 0 : index
    %122 = vector.load %arg1[%c4_97, %c0_98, %c0_99] : memref<9x8x32xf32, #tpu.memory_space<vmem>>, vector<1x8x32xf32>
    %123 = vector.shape_cast %122 : vector<1x8x32xf32> to vector<8x32xf32>
    %cst_100 = arith.constant dense<0.000000e+00> : vector<8x128xf32>
    %124 = tpu.matmul %123, %0, %cst_100 {dimension_numbers = #tpu.dot_dimension_numbers<[1], [0], [0], [1], [0, 0, 1, 1], [], []>} : vector<8x32xf32>, vector<32x128xf32>, vector<8x128xf32> -> vector<8x128xf32>
    %c4_101 = arith.constant 4 : index
    %c0_102 = arith.constant 0 : index
    %c0_103 = arith.constant 0 : index
    %125 = vector.load %arg2[%c4_101, %c0_102, %c0_103] : memref<9x1x128xf32, #tpu.memory_space<vmem>>, vector<1x1x128xf32>
    %126 = vector.shape_cast %125 : vector<1x1x128xf32> to vector<1x128xf32>
    %127 = vector.broadcast %126 : vector<1x128xf32> to vector<8x128xf32>
    %128 = arith.mulf %124, %127 : vector<8x128xf32>
    %129 = arith.addf %121, %128 : vector<8x128xf32>
    %c5_104 = arith.constant 5 : index
    %c0_105 = arith.constant 0 : index
    %c0_106 = arith.constant 0 : index
    %130 = vector.load %arg1[%c5_104, %c0_105, %c0_106] : memref<9x8x32xf32, #tpu.memory_space<vmem>>, vector<1x8x32xf32>
    %131 = vector.shape_cast %130 : vector<1x8x32xf32> to vector<8x32xf32>
    %cst_107 = arith.constant dense<0.000000e+00> : vector<8x128xf32>
    %132 = tpu.matmul %131, %0, %cst_107 {dimension_numbers = #tpu.dot_dimension_numbers<[1], [0], [0], [1], [0, 0, 1, 1], [], []>} : vector<8x32xf32>, vector<32x128xf32>, vector<8x128xf32> -> vector<8x128xf32>
    %c5_108 = arith.constant 5 : index
    %c0_109 = arith.constant 0 : index
    %c0_110 = arith.constant 0 : index
    %133 = vector.load %arg2[%c5_108, %c0_109, %c0_110] : memref<9x1x128xf32, #tpu.memory_space<vmem>>, vector<1x1x128xf32>
    %134 = vector.shape_cast %133 : vector<1x1x128xf32> to vector<1x128xf32>
    %135 = vector.broadcast %134 : vector<1x128xf32> to vector<8x128xf32>
    %136 = arith.mulf %132, %135 : vector<8x128xf32>
    %137 = arith.addf %129, %136 : vector<8x128xf32>
    %c6_111 = arith.constant 6 : index
    %c0_112 = arith.constant 0 : index
    %c0_113 = arith.constant 0 : index
    %138 = vector.load %arg1[%c6_111, %c0_112, %c0_113] : memref<9x8x32xf32, #tpu.memory_space<vmem>>, vector<1x8x32xf32>
    %139 = vector.shape_cast %138 : vector<1x8x32xf32> to vector<8x32xf32>
    %cst_114 = arith.constant dense<0.000000e+00> : vector<8x128xf32>
    %140 = tpu.matmul %139, %0, %cst_114 {dimension_numbers = #tpu.dot_dimension_numbers<[1], [0], [0], [1], [0, 0, 1, 1], [], []>} : vector<8x32xf32>, vector<32x128xf32>, vector<8x128xf32> -> vector<8x128xf32>
    %c6_115 = arith.constant 6 : index
    %c0_116 = arith.constant 0 : index
    %c0_117 = arith.constant 0 : index
    %141 = vector.load %arg2[%c6_115, %c0_116, %c0_117] : memref<9x1x128xf32, #tpu.memory_space<vmem>>, vector<1x1x128xf32>
    %142 = vector.shape_cast %141 : vector<1x1x128xf32> to vector<1x128xf32>
    %143 = vector.broadcast %142 : vector<1x128xf32> to vector<8x128xf32>
    %144 = arith.mulf %140, %143 : vector<8x128xf32>
    %145 = arith.addf %137, %144 : vector<8x128xf32>
    %c7_118 = arith.constant 7 : index
    %c0_119 = arith.constant 0 : index
    %c0_120 = arith.constant 0 : index
    %146 = vector.load %arg1[%c7_118, %c0_119, %c0_120] : memref<9x8x32xf32, #tpu.memory_space<vmem>>, vector<1x8x32xf32>
    %147 = vector.shape_cast %146 : vector<1x8x32xf32> to vector<8x32xf32>
    %cst_121 = arith.constant dense<0.000000e+00> : vector<8x128xf32>
    %148 = tpu.matmul %147, %0, %cst_121 {dimension_numbers = #tpu.dot_dimension_numbers<[1], [0], [0], [1], [0, 0, 1, 1], [], []>} : vector<8x32xf32>, vector<32x128xf32>, vector<8x128xf32> -> vector<8x128xf32>
    %c7_122 = arith.constant 7 : index
    %c0_123 = arith.constant 0 : index
    %c0_124 = arith.constant 0 : index
    %149 = vector.load %arg2[%c7_122, %c0_123, %c0_124] : memref<9x1x128xf32, #tpu.memory_space<vmem>>, vector<1x1x128xf32>
    %150 = vector.shape_cast %149 : vector<1x1x128xf32> to vector<1x128xf32>
    %151 = vector.broadcast %150 : vector<1x128xf32> to vector<8x128xf32>
    %152 = arith.mulf %148, %151 : vector<8x128xf32>
    %153 = arith.addf %145, %152 : vector<8x128xf32>
    %c8_125 = arith.constant 8 : index
    %c0_126 = arith.constant 0 : index
    %c0_127 = arith.constant 0 : index
    %154 = vector.load %arg1[%c8_125, %c0_126, %c0_127] : memref<9x8x32xf32, #tpu.memory_space<vmem>>, vector<1x8x32xf32>
    %155 = vector.shape_cast %154 : vector<1x8x32xf32> to vector<8x32xf32>
    %cst_128 = arith.constant dense<0.000000e+00> : vector<8x128xf32>
    %156 = tpu.matmul %155, %0, %cst_128 {dimension_numbers = #tpu.dot_dimension_numbers<[1], [0], [0], [1], [0, 0, 1, 1], [], []>} : vector<8x32xf32>, vector<32x128xf32>, vector<8x128xf32> -> vector<8x128xf32>
    %c8_129 = arith.constant 8 : index
    %c0_130 = arith.constant 0 : index
    %c0_131 = arith.constant 0 : index
    %157 = vector.load %arg2[%c8_129, %c0_130, %c0_131] : memref<9x1x128xf32, #tpu.memory_space<vmem>>, vector<1x1x128xf32>
    %158 = vector.shape_cast %157 : vector<1x1x128xf32> to vector<1x128xf32>
    %159 = vector.broadcast %158 : vector<1x128xf32> to vector<8x128xf32>
    %160 = arith.mulf %156, %159 : vector<8x128xf32>
    %161 = arith.addf %153, %160 : vector<8x128xf32>
    %c0_132 = arith.constant 0 : index
    %c0_133 = arith.constant 0 : index
    %162 = vector.load %arg3[%c0_132, %c0_133] : memref<1x128xf32, #tpu.memory_space<vmem>>, vector<1x128xf32>
    %163 = vector.broadcast %162 : vector<1x128xf32> to vector<8x128xf32>
    %164 = arith.addf %161, %163 : vector<8x128xf32>
    %165 = arith.truncf %164 : vector<8x128xf32> to vector<8x128xbf16>
    %c0_134 = arith.constant 0 : index
    %c0_135 = arith.constant 0 : index
    %166 = vector.load %arg4[%c0_134, %c0_135] : memref<128x128xbf16, #tpu.memory_space<vmem>>, vector<128x128xbf16>
    %cst_136 = arith.constant dense<0.000000e+00> : vector<8x128xf32>
    %167 = tpu.matmul %165, %166, %cst_136 {dimension_numbers = #tpu.dot_dimension_numbers<[1], [0], [0], [1], [0, 0, 1, 1], [], []>} : vector<8x128xbf16>, vector<128x128xbf16>, vector<8x128xf32> -> vector<8x128xf32>
    %c0_137 = arith.constant 0 : index
    %c0_138 = arith.constant 0 : index
    %168 = vector.load %arg5[%c0_137, %c0_138] : memref<1x128xf32, #tpu.memory_space<vmem>>, vector<1x128xf32>
    %169 = vector.broadcast %168 : vector<1x128xf32> to vector<8x128xf32>
    %170 = arith.addf %167, %169 : vector<8x128xf32>
    %cst_139 = arith.constant 0.000000e+00 : f32
    %171 = vector.broadcast %cst_139 : f32 to vector<8x128xf32>
    %172 = arith.maximumf %170, %171 : vector<8x128xf32>
    %173 = arith.addf %172, %90 : vector<8x128xf32>
    %c0_140 = arith.constant 0 : index
    %c0_141 = arith.constant 0 : index
    %174 = vector.load %arg12[%c0_140, %c0_141] : memref<8x128xf32, #tpu.memory_space<vmem>>, vector<8x128xf32>
    tpu.vector_store %arg12[%c0_140, %c0_141], %173 {strides = array<i32>} : memref<8x128xf32, #tpu.memory_space<vmem>>, vector<8x128xf32>,
    return
  }
}

module attributes {stable_mosaic.version = 11 : i64} {
  func.func @_block_s2_kernel(%arg0: memref<8x128xf32, #tpu.memory_space<vmem>>, %arg1: memref<9x2x8xf32, #tpu.memory_space<vmem>>, %arg2: memref<9x1x128xf32, #tpu.memory_space<vmem>>, %arg3: memref<1x128xf32, #tpu.memory_space<vmem>>, %arg4: memref<128x128xbf16, #tpu.memory_space<vmem>>, %arg5: memref<1x128xf32, #tpu.memory_space<vmem>>, %arg6: memref<128x128xbf16, #tpu.memory_space<vmem>>, %arg7: memref<1x128xf32, #tpu.memory_space<vmem>>, %arg8: memref<9x1x128xf32, #tpu.memory_space<vmem>>, %arg9: memref<1x128xf32, #tpu.memory_space<vmem>>, %arg10: memref<128x128xbf16, #tpu.memory_space<vmem>>, %arg11: memref<1x128xf32, #tpu.memory_space<vmem>>, %arg12: memref<2x128xf32, #tpu.memory_space<vmem>>) attributes {dimension_semantics = [], scalar_prefetch = 0 : i64, scratch_operands = 0 : i64, tpu.core_type = #tpu.core_type<tc>} {
    %c0 = arith.constant 0 : index
    %c0_0 = arith.constant 0 : index
    %0 = vector.load %arg0[%c0, %c0_0] : memref<8x128xf32, #tpu.memory_space<vmem>>, vector<8x128xf32>
    %1 = arith.truncf %0 : vector<8x128xf32> to vector<8x128xbf16>
    %c0_1 = arith.constant 0 : index
    %c0_2 = arith.constant 0 : index
    %2 = vector.load %arg6[%c0_1, %c0_2] : memref<128x128xbf16, #tpu.memory_space<vmem>>, vector<128x128xbf16>
    %cst = arith.constant dense<0.000000e+00> : vector<8x128xf32>
    %3 = tpu.matmul %1, %2, %cst {dimension_numbers = #tpu.dot_dimension_numbers<[1], [0], [0], [1], [0, 0, 1, 1], [], []>} : vector<8x128xbf16>, vector<128x128xbf16>, vector<8x128xf32> -> vector<8x128xf32>
    %c0_3 = arith.constant 0 : index
    %c0_4 = arith.constant 0 : index
    %4 = vector.load %arg7[%c0_3, %c0_4] : memref<1x128xf32, #tpu.memory_space<vmem>>, vector<1x128xf32>
    %5 = vector.broadcast %4 : vector<1x128xf32> to vector<8x128xf32>
    %6 = arith.addf %3, %5 : vector<8x128xf32>
    %cst_5 = arith.constant 0.000000e+00 : f32
    %7 = vector.broadcast %cst_5 : f32 to vector<8x128xf32>
    %8 = arith.maximumf %6, %7 : vector<8x128xf32>
    %c0_6 = arith.constant 0 : index
    %c0_7 = arith.constant 0 : index
    %c0_8 = arith.constant 0 : index
    %9 = vector.load %arg1[%c0_6, %c0_7, %c0_8] : memref<9x2x8xf32, #tpu.memory_space<vmem>>, vector<1x2x8xf32>
    %10 = vector.shape_cast %9 : vector<1x2x8xf32> to vector<2x8xf32>
    %cst_9 = arith.constant dense<0.000000e+00> : vector<2x128xf32>
    %11 = tpu.matmul %10, %8, %cst_9 {dimension_numbers = #tpu.dot_dimension_numbers<[1], [0], [0], [1], [0, 0, 1, 1], [], []>} : vector<2x8xf32>, vector<8x128xf32>, vector<2x128xf32> -> vector<2x128xf32>
    %c0_10 = arith.constant 0 : index
    %c0_11 = arith.constant 0 : index
    %c0_12 = arith.constant 0 : index
    %12 = vector.load %arg8[%c0_10, %c0_11, %c0_12] : memref<9x1x128xf32, #tpu.memory_space<vmem>>, vector<1x1x128xf32>
    %13 = vector.shape_cast %12 : vector<1x1x128xf32> to vector<1x128xf32>
    %14 = vector.broadcast %13 : vector<1x128xf32> to vector<2x128xf32>
    %15 = arith.mulf %11, %14 : vector<2x128xf32>
    %c1 = arith.constant 1 : index
    %c0_13 = arith.constant 0 : index
    %c0_14 = arith.constant 0 : index
    %16 = vector.load %arg1[%c1, %c0_13, %c0_14] : memref<9x2x8xf32, #tpu.memory_space<vmem>>, vector<1x2x8xf32>
    %17 = vector.shape_cast %16 : vector<1x2x8xf32> to vector<2x8xf32>
    %cst_15 = arith.constant dense<0.000000e+00> : vector<2x128xf32>
    %18 = tpu.matmul %17, %8, %cst_15 {dimension_numbers = #tpu.dot_dimension_numbers<[1], [0], [0], [1], [0, 0, 1, 1], [], []>} : vector<2x8xf32>, vector<8x128xf32>, vector<2x128xf32> -> vector<2x128xf32>
    %c1_16 = arith.constant 1 : index
    %c0_17 = arith.constant 0 : index
    %c0_18 = arith.constant 0 : index
    %19 = vector.load %arg8[%c1_16, %c0_17, %c0_18] : memref<9x1x128xf32, #tpu.memory_space<vmem>>, vector<1x1x128xf32>
    %20 = vector.shape_cast %19 : vector<1x1x128xf32> to vector<1x128xf32>
    %21 = vector.broadcast %20 : vector<1x128xf32> to vector<2x128xf32>
    %22 = arith.mulf %18, %21 : vector<2x128xf32>
    %23 = arith.addf %15, %22 : vector<2x128xf32>
    %c2 = arith.constant 2 : index
    %c0_19 = arith.constant 0 : index
    %c0_20 = arith.constant 0 : index
    %24 = vector.load %arg1[%c2, %c0_19, %c0_20] : memref<9x2x8xf32, #tpu.memory_space<vmem>>, vector<1x2x8xf32>
    %25 = vector.shape_cast %24 : vector<1x2x8xf32> to vector<2x8xf32>
    %cst_21 = arith.constant dense<0.000000e+00> : vector<2x128xf32>
    %26 = tpu.matmul %25, %8, %cst_21 {dimension_numbers = #tpu.dot_dimension_numbers<[1], [0], [0], [1], [0, 0, 1, 1], [], []>} : vector<2x8xf32>, vector<8x128xf32>, vector<2x128xf32> -> vector<2x128xf32>
    %c2_22 = arith.constant 2 : index
    %c0_23 = arith.constant 0 : index
    %c0_24 = arith.constant 0 : index
    %27 = vector.load %arg8[%c2_22, %c0_23, %c0_24] : memref<9x1x128xf32, #tpu.memory_space<vmem>>, vector<1x1x128xf32>
    %28 = vector.shape_cast %27 : vector<1x1x128xf32> to vector<1x128xf32>
    %29 = vector.broadcast %28 : vector<1x128xf32> to vector<2x128xf32>
    %30 = arith.mulf %26, %29 : vector<2x128xf32>
    %31 = arith.addf %23, %30 : vector<2x128xf32>
    %c3 = arith.constant 3 : index
    %c0_25 = arith.constant 0 : index
    %c0_26 = arith.constant 0 : index
    %32 = vector.load %arg1[%c3, %c0_25, %c0_26] : memref<9x2x8xf32, #tpu.memory_space<vmem>>, vector<1x2x8xf32>
    %33 = vector.shape_cast %32 : vector<1x2x8xf32> to vector<2x8xf32>
    %cst_27 = arith.constant dense<0.000000e+00> : vector<2x128xf32>
    %34 = tpu.matmul %33, %8, %cst_27 {dimension_numbers = #tpu.dot_dimension_numbers<[1], [0], [0], [1], [0, 0, 1, 1], [], []>} : vector<2x8xf32>, vector<8x128xf32>, vector<2x128xf32> -> vector<2x128xf32>
    %c3_28 = arith.constant 3 : index
    %c0_29 = arith.constant 0 : index
    %c0_30 = arith.constant 0 : index
    %35 = vector.load %arg8[%c3_28, %c0_29, %c0_30] : memref<9x1x128xf32, #tpu.memory_space<vmem>>, vector<1x1x128xf32>
    %36 = vector.shape_cast %35 : vector<1x1x128xf32> to vector<1x128xf32>
    %37 = vector.broadcast %36 : vector<1x128xf32> to vector<2x128xf32>
    %38 = arith.mulf %34, %37 : vector<2x128xf32>
    %39 = arith.addf %31, %38 : vector<2x128xf32>
    %c4 = arith.constant 4 : index
    %c0_31 = arith.constant 0 : index
    %c0_32 = arith.constant 0 : index
    %40 = vector.load %arg1[%c4, %c0_31, %c0_32] : memref<9x2x8xf32, #tpu.memory_space<vmem>>, vector<1x2x8xf32>
    %41 = vector.shape_cast %40 : vector<1x2x8xf32> to vector<2x8xf32>
    %cst_33 = arith.constant dense<0.000000e+00> : vector<2x128xf32>
    %42 = tpu.matmul %41, %8, %cst_33 {dimension_numbers = #tpu.dot_dimension_numbers<[1], [0], [0], [1], [0, 0, 1, 1], [], []>} : vector<2x8xf32>, vector<8x128xf32>, vector<2x128xf32> -> vector<2x128xf32>
    %c4_34 = arith.constant 4 : index
    %c0_35 = arith.constant 0 : index
    %c0_36 = arith.constant 0 : index
    %43 = vector.load %arg8[%c4_34, %c0_35, %c0_36] : memref<9x1x128xf32, #tpu.memory_space<vmem>>, vector<1x1x128xf32>
    %44 = vector.shape_cast %43 : vector<1x1x128xf32> to vector<1x128xf32>
    %45 = vector.broadcast %44 : vector<1x128xf32> to vector<2x128xf32>
    %46 = arith.mulf %42, %45 : vector<2x128xf32>
    %47 = arith.addf %39, %46 : vector<2x128xf32>
    %c5 = arith.constant 5 : index
    %c0_37 = arith.constant 0 : index
    %c0_38 = arith.constant 0 : index
    %48 = vector.load %arg1[%c5, %c0_37, %c0_38] : memref<9x2x8xf32, #tpu.memory_space<vmem>>, vector<1x2x8xf32>
    %49 = vector.shape_cast %48 : vector<1x2x8xf32> to vector<2x8xf32>
    %cst_39 = arith.constant dense<0.000000e+00> : vector<2x128xf32>
    %50 = tpu.matmul %49, %8, %cst_39 {dimension_numbers = #tpu.dot_dimension_numbers<[1], [0], [0], [1], [0, 0, 1, 1], [], []>} : vector<2x8xf32>, vector<8x128xf32>, vector<2x128xf32> -> vector<2x128xf32>
    %c5_40 = arith.constant 5 : index
    %c0_41 = arith.constant 0 : index
    %c0_42 = arith.constant 0 : index
    %51 = vector.load %arg8[%c5_40, %c0_41, %c0_42] : memref<9x1x128xf32, #tpu.memory_space<vmem>>, vector<1x1x128xf32>
    %52 = vector.shape_cast %51 : vector<1x1x128xf32> to vector<1x128xf32>
    %53 = vector.broadcast %52 : vector<1x128xf32> to vector<2x128xf32>
    %54 = arith.mulf %50, %53 : vector<2x128xf32>
    %55 = arith.addf %47, %54 : vector<2x128xf32>
    %c6 = arith.constant 6 : index
    %c0_43 = arith.constant 0 : index
    %c0_44 = arith.constant 0 : index
    %56 = vector.load %arg1[%c6, %c0_43, %c0_44] : memref<9x2x8xf32, #tpu.memory_space<vmem>>, vector<1x2x8xf32>
    %57 = vector.shape_cast %56 : vector<1x2x8xf32> to vector<2x8xf32>
    %cst_45 = arith.constant dense<0.000000e+00> : vector<2x128xf32>
    %58 = tpu.matmul %57, %8, %cst_45 {dimension_numbers = #tpu.dot_dimension_numbers<[1], [0], [0], [1], [0, 0, 1, 1], [], []>} : vector<2x8xf32>, vector<8x128xf32>, vector<2x128xf32> -> vector<2x128xf32>
    %c6_46 = arith.constant 6 : index
    %c0_47 = arith.constant 0 : index
    %c0_48 = arith.constant 0 : index
    %59 = vector.load %arg8[%c6_46, %c0_47, %c0_48] : memref<9x1x128xf32, #tpu.memory_space<vmem>>, vector<1x1x128xf32>
    %60 = vector.shape_cast %59 : vector<1x1x128xf32> to vector<1x128xf32>
    %61 = vector.broadcast %60 : vector<1x128xf32> to vector<2x128xf32>
    %62 = arith.mulf %58, %61 : vector<2x128xf32>
    %63 = arith.addf %55, %62 : vector<2x128xf32>
    %c7 = arith.constant 7 : index
    %c0_49 = arith.constant 0 : index
    %c0_50 = arith.constant 0 : index
    %64 = vector.load %arg1[%c7, %c0_49, %c0_50] : memref<9x2x8xf32, #tpu.memory_space<vmem>>, vector<1x2x8xf32>
    %65 = vector.shape_cast %64 : vector<1x2x8xf32> to vector<2x8xf32>
    %cst_51 = arith.constant dense<0.000000e+00> : vector<2x128xf32>
    %66 = tpu.matmul %65, %8, %cst_51 {dimension_numbers = #tpu.dot_dimension_numbers<[1], [0], [0], [1], [0, 0, 1, 1], [], []>} : vector<2x8xf32>, vector<8x128xf32>, vector<2x128xf32> -> vector<2x128xf32>
    %c7_52 = arith.constant 7 : index
    %c0_53 = arith.constant 0 : index
    %c0_54 = arith.constant 0 : index
    %67 = vector.load %arg8[%c7_52, %c0_53, %c0_54] : memref<9x1x128xf32, #tpu.memory_space<vmem>>, vector<1x1x128xf32>
    %68 = vector.shape_cast %67 : vector<1x1x128xf32> to vector<1x128xf32>
    %69 = vector.broadcast %68 : vector<1x128xf32> to vector<2x128xf32>
    %70 = arith.mulf %66, %69 : vector<2x128xf32>
    %71 = arith.addf %63, %70 : vector<2x128xf32>
    %c8 = arith.constant 8 : index
    %c0_55 = arith.constant 0 : index
    %c0_56 = arith.constant 0 : index
    %72 = vector.load %arg1[%c8, %c0_55, %c0_56] : memref<9x2x8xf32, #tpu.memory_space<vmem>>, vector<1x2x8xf32>
    %73 = vector.shape_cast %72 : vector<1x2x8xf32> to vector<2x8xf32>
    %cst_57 = arith.constant dense<0.000000e+00> : vector<2x128xf32>
    %74 = tpu.matmul %73, %8, %cst_57 {dimension_numbers = #tpu.dot_dimension_numbers<[1], [0], [0], [1], [0, 0, 1, 1], [], []>} : vector<2x8xf32>, vector<8x128xf32>, vector<2x128xf32> -> vector<2x128xf32>
    %c8_58 = arith.constant 8 : index
    %c0_59 = arith.constant 0 : index
    %c0_60 = arith.constant 0 : index
    %75 = vector.load %arg8[%c8_58, %c0_59, %c0_60] : memref<9x1x128xf32, #tpu.memory_space<vmem>>, vector<1x1x128xf32>
    %76 = vector.shape_cast %75 : vector<1x1x128xf32> to vector<1x128xf32>
    %77 = vector.broadcast %76 : vector<1x128xf32> to vector<2x128xf32>
    %78 = arith.mulf %74, %77 : vector<2x128xf32>
    %79 = arith.addf %71, %78 : vector<2x128xf32>
    %c0_61 = arith.constant 0 : index
    %c0_62 = arith.constant 0 : index
    %80 = vector.load %arg9[%c0_61, %c0_62] : memref<1x128xf32, #tpu.memory_space<vmem>>, vector<1x128xf32>
    %81 = vector.broadcast %80 : vector<1x128xf32> to vector<2x128xf32>
    %82 = arith.addf %79, %81 : vector<2x128xf32>
    %83 = arith.truncf %82 : vector<2x128xf32> to vector<2x128xbf16>
    %c0_63 = arith.constant 0 : index
    %c0_64 = arith.constant 0 : index
    %84 = vector.load %arg10[%c0_63, %c0_64] : memref<128x128xbf16, #tpu.memory_space<vmem>>, vector<128x128xbf16>
    %cst_65 = arith.constant dense<0.000000e+00> : vector<2x128xf32>
    %85 = tpu.matmul %83, %84, %cst_65 {dimension_numbers = #tpu.dot_dimension_numbers<[1], [0], [0], [1], [0, 0, 1, 1], [], []>} : vector<2x128xbf16>, vector<128x128xbf16>, vector<2x128xf32> -> vector<2x128xf32>
    %c0_66 = arith.constant 0 : index
    %c0_67 = arith.constant 0 : index
    %86 = vector.load %arg11[%c0_66, %c0_67] : memref<1x128xf32, #tpu.memory_space<vmem>>, vector<1x128xf32>
    %87 = vector.broadcast %86 : vector<1x128xf32> to vector<2x128xf32>
    %88 = arith.addf %85, %87 : vector<2x128xf32>
    %cst_68 = arith.constant 0.000000e+00 : f32
    %89 = vector.broadcast %cst_68 : f32 to vector<2x128xf32>
    %90 = arith.maximumf %88, %89 : vector<2x128xf32>
    %c0_69 = arith.constant 0 : index
    %c0_70 = arith.constant 0 : index
    %c0_71 = arith.constant 0 : index
    %91 = vector.load %arg1[%c0_69, %c0_70, %c0_71] : memref<9x2x8xf32, #tpu.memory_space<vmem>>, vector<1x2x8xf32>
    %92 = vector.shape_cast %91 : vector<1x2x8xf32> to vector<2x8xf32>
    %cst_72 = arith.constant dense<0.000000e+00> : vector<2x128xf32>
    %93 = tpu.matmul %92, %0, %cst_72 {dimension_numbers = #tpu.dot_dimension_numbers<[1], [0], [0], [1], [0, 0, 1, 1], [], []>} : vector<2x8xf32>, vector<8x128xf32>, vector<2x128xf32> -> vector<2x128xf32>
    %c0_73 = arith.constant 0 : index
    %c0_74 = arith.constant 0 : index
    %c0_75 = arith.constant 0 : index
    %94 = vector.load %arg2[%c0_73, %c0_74, %c0_75] : memref<9x1x128xf32, #tpu.memory_space<vmem>>, vector<1x1x128xf32>
    %95 = vector.shape_cast %94 : vector<1x1x128xf32> to vector<1x128xf32>
    %96 = vector.broadcast %95 : vector<1x128xf32> to vector<2x128xf32>
    %97 = arith.mulf %93, %96 : vector<2x128xf32>
    %c1_76 = arith.constant 1 : index
    %c0_77 = arith.constant 0 : index
    %c0_78 = arith.constant 0 : index
    %98 = vector.load %arg1[%c1_76, %c0_77, %c0_78] : memref<9x2x8xf32, #tpu.memory_space<vmem>>, vector<1x2x8xf32>
    %99 = vector.shape_cast %98 : vector<1x2x8xf32> to vector<2x8xf32>
    %cst_79 = arith.constant dense<0.000000e+00> : vector<2x128xf32>
    %100 = tpu.matmul %99, %0, %cst_79 {dimension_numbers = #tpu.dot_dimension_numbers<[1], [0], [0], [1], [0, 0, 1, 1], [], []>} : vector<2x8xf32>, vector<8x128xf32>, vector<2x128xf32> -> vector<2x128xf32>
    %c1_80 = arith.constant 1 : index
    %c0_81 = arith.constant 0 : index
    %c0_82 = arith.constant 0 : index
    %101 = vector.load %arg2[%c1_80, %c0_81, %c0_82] : memref<9x1x128xf32, #tpu.memory_space<vmem>>, vector<1x1x128xf32>
    %102 = vector.shape_cast %101 : vector<1x1x128xf32> to vector<1x128xf32>
    %103 = vector.broadcast %102 : vector<1x128xf32> to vector<2x128xf32>
    %104 = arith.mulf %100, %103 : vector<2x128xf32>
    %105 = arith.addf %97, %104 : vector<2x128xf32>
    %c2_83 = arith.constant 2 : index
    %c0_84 = arith.constant 0 : index
    %c0_85 = arith.constant 0 : index
    %106 = vector.load %arg1[%c2_83, %c0_84, %c0_85] : memref<9x2x8xf32, #tpu.memory_space<vmem>>, vector<1x2x8xf32>
    %107 = vector.shape_cast %106 : vector<1x2x8xf32> to vector<2x8xf32>
    %cst_86 = arith.constant dense<0.000000e+00> : vector<2x128xf32>
    %108 = tpu.matmul %107, %0, %cst_86 {dimension_numbers = #tpu.dot_dimension_numbers<[1], [0], [0], [1], [0, 0, 1, 1], [], []>} : vector<2x8xf32>, vector<8x128xf32>, vector<2x128xf32> -> vector<2x128xf32>
    %c2_87 = arith.constant 2 : index
    %c0_88 = arith.constant 0 : index
    %c0_89 = arith.constant 0 : index
    %109 = vector.load %arg2[%c2_87, %c0_88, %c0_89] : memref<9x1x128xf32, #tpu.memory_space<vmem>>, vector<1x1x128xf32>
    %110 = vector.shape_cast %109 : vector<1x1x128xf32> to vector<1x128xf32>
    %111 = vector.broadcast %110 : vector<1x128xf32> to vector<2x128xf32>
    %112 = arith.mulf %108, %111 : vector<2x128xf32>
    %113 = arith.addf %105, %112 : vector<2x128xf32>
    %c3_90 = arith.constant 3 : index
    %c0_91 = arith.constant 0 : index
    %c0_92 = arith.constant 0 : index
    %114 = vector.load %arg1[%c3_90, %c0_91, %c0_92] : memref<9x2x8xf32, #tpu.memory_space<vmem>>, vector<1x2x8xf32>
    %115 = vector.shape_cast %114 : vector<1x2x8xf32> to vector<2x8xf32>
    %cst_93 = arith.constant dense<0.000000e+00> : vector<2x128xf32>
    %116 = tpu.matmul %115, %0, %cst_93 {dimension_numbers = #tpu.dot_dimension_numbers<[1], [0], [0], [1], [0, 0, 1, 1], [], []>} : vector<2x8xf32>, vector<8x128xf32>, vector<2x128xf32> -> vector<2x128xf32>
    %c3_94 = arith.constant 3 : index
    %c0_95 = arith.constant 0 : index
    %c0_96 = arith.constant 0 : index
    %117 = vector.load %arg2[%c3_94, %c0_95, %c0_96] : memref<9x1x128xf32, #tpu.memory_space<vmem>>, vector<1x1x128xf32>
    %118 = vector.shape_cast %117 : vector<1x1x128xf32> to vector<1x128xf32>
    %119 = vector.broadcast %118 : vector<1x128xf32> to vector<2x128xf32>
    %120 = arith.mulf %116, %119 : vector<2x128xf32>
    %121 = arith.addf %113, %120 : vector<2x128xf32>
    %c4_97 = arith.constant 4 : index
    %c0_98 = arith.constant 0 : index
    %c0_99 = arith.constant 0 : index
    %122 = vector.load %arg1[%c4_97, %c0_98, %c0_99] : memref<9x2x8xf32, #tpu.memory_space<vmem>>, vector<1x2x8xf32>
    %123 = vector.shape_cast %122 : vector<1x2x8xf32> to vector<2x8xf32>
    %cst_100 = arith.constant dense<0.000000e+00> : vector<2x128xf32>
    %124 = tpu.matmul %123, %0, %cst_100 {dimension_numbers = #tpu.dot_dimension_numbers<[1], [0], [0], [1], [0, 0, 1, 1], [], []>} : vector<2x8xf32>, vector<8x128xf32>, vector<2x128xf32> -> vector<2x128xf32>
    %c4_101 = arith.constant 4 : index
    %c0_102 = arith.constant 0 : index
    %c0_103 = arith.constant 0 : index
    %125 = vector.load %arg2[%c4_101, %c0_102, %c0_103] : memref<9x1x128xf32, #tpu.memory_space<vmem>>, vector<1x1x128xf32>
    %126 = vector.shape_cast %125 : vector<1x1x128xf32> to vector<1x128xf32>
    %127 = vector.broadcast %126 : vector<1x128xf32> to vector<2x128xf32>
    %128 = arith.mulf %124, %127 : vector<2x128xf32>
    %129 = arith.addf %121, %128 : vector<2x128xf32>
    %c5_104 = arith.constant 5 : index
    %c0_105 = arith.constant 0 : index
    %c0_106 = arith.constant 0 : index
    %130 = vector.load %arg1[%c5_104, %c0_105, %c0_106] : memref<9x2x8xf32, #tpu.memory_space<vmem>>, vector<1x2x8xf32>
    %131 = vector.shape_cast %130 : vector<1x2x8xf32> to vector<2x8xf32>
    %cst_107 = arith.constant dense<0.000000e+00> : vector<2x128xf32>
    %132 = tpu.matmul %131, %0, %cst_107 {dimension_numbers = #tpu.dot_dimension_numbers<[1], [0], [0], [1], [0, 0, 1, 1], [], []>} : vector<2x8xf32>, vector<8x128xf32>, vector<2x128xf32> -> vector<2x128xf32>
    %c5_108 = arith.constant 5 : index
    %c0_109 = arith.constant 0 : index
    %c0_110 = arith.constant 0 : index
    %133 = vector.load %arg2[%c5_108, %c0_109, %c0_110] : memref<9x1x128xf32, #tpu.memory_space<vmem>>, vector<1x1x128xf32>
    %134 = vector.shape_cast %133 : vector<1x1x128xf32> to vector<1x128xf32>
    %135 = vector.broadcast %134 : vector<1x128xf32> to vector<2x128xf32>
    %136 = arith.mulf %132, %135 : vector<2x128xf32>
    %137 = arith.addf %129, %136 : vector<2x128xf32>
    %c6_111 = arith.constant 6 : index
    %c0_112 = arith.constant 0 : index
    %c0_113 = arith.constant 0 : index
    %138 = vector.load %arg1[%c6_111, %c0_112, %c0_113] : memref<9x2x8xf32, #tpu.memory_space<vmem>>, vector<1x2x8xf32>
    %139 = vector.shape_cast %138 : vector<1x2x8xf32> to vector<2x8xf32>
    %cst_114 = arith.constant dense<0.000000e+00> : vector<2x128xf32>
    %140 = tpu.matmul %139, %0, %cst_114 {dimension_numbers = #tpu.dot_dimension_numbers<[1], [0], [0], [1], [0, 0, 1, 1], [], []>} : vector<2x8xf32>, vector<8x128xf32>, vector<2x128xf32> -> vector<2x128xf32>
    %c6_115 = arith.constant 6 : index
    %c0_116 = arith.constant 0 : index
    %c0_117 = arith.constant 0 : index
    %141 = vector.load %arg2[%c6_115, %c0_116, %c0_117] : memref<9x1x128xf32, #tpu.memory_space<vmem>>, vector<1x1x128xf32>
    %142 = vector.shape_cast %141 : vector<1x1x128xf32> to vector<1x128xf32>
    %143 = vector.broadcast %142 : vector<1x128xf32> to vector<2x128xf32>
    %144 = arith.mulf %140, %143 : vector<2x128xf32>
    %145 = arith.addf %137, %144 : vector<2x128xf32>
    %c7_118 = arith.constant 7 : index
    %c0_119 = arith.constant 0 : index
    %c0_120 = arith.constant 0 : index
    %146 = vector.load %arg1[%c7_118, %c0_119, %c0_120] : memref<9x2x8xf32, #tpu.memory_space<vmem>>, vector<1x2x8xf32>
    %147 = vector.shape_cast %146 : vector<1x2x8xf32> to vector<2x8xf32>
    %cst_121 = arith.constant dense<0.000000e+00> : vector<2x128xf32>
    %148 = tpu.matmul %147, %0, %cst_121 {dimension_numbers = #tpu.dot_dimension_numbers<[1], [0], [0], [1], [0, 0, 1, 1], [], []>} : vector<2x8xf32>, vector<8x128xf32>, vector<2x128xf32> -> vector<2x128xf32>
    %c7_122 = arith.constant 7 : index
    %c0_123 = arith.constant 0 : index
    %c0_124 = arith.constant 0 : index
    %149 = vector.load %arg2[%c7_122, %c0_123, %c0_124] : memref<9x1x128xf32, #tpu.memory_space<vmem>>, vector<1x1x128xf32>
    %150 = vector.shape_cast %149 : vector<1x1x128xf32> to vector<1x128xf32>
    %151 = vector.broadcast %150 : vector<1x128xf32> to vector<2x128xf32>
    %152 = arith.mulf %148, %151 : vector<2x128xf32>
    %153 = arith.addf %145, %152 : vector<2x128xf32>
    %c8_125 = arith.constant 8 : index
    %c0_126 = arith.constant 0 : index
    %c0_127 = arith.constant 0 : index
    %154 = vector.load %arg1[%c8_125, %c0_126, %c0_127] : memref<9x2x8xf32, #tpu.memory_space<vmem>>, vector<1x2x8xf32>
    %155 = vector.shape_cast %154 : vector<1x2x8xf32> to vector<2x8xf32>
    %cst_128 = arith.constant dense<0.000000e+00> : vector<2x128xf32>
    %156 = tpu.matmul %155, %0, %cst_128 {dimension_numbers = #tpu.dot_dimension_numbers<[1], [0], [0], [1], [0, 0, 1, 1], [], []>} : vector<2x8xf32>, vector<8x128xf32>, vector<2x128xf32> -> vector<2x128xf32>
    %c8_129 = arith.constant 8 : index
    %c0_130 = arith.constant 0 : index
    %c0_131 = arith.constant 0 : index
    %157 = vector.load %arg2[%c8_129, %c0_130, %c0_131] : memref<9x1x128xf32, #tpu.memory_space<vmem>>, vector<1x1x128xf32>
    %158 = vector.shape_cast %157 : vector<1x1x128xf32> to vector<1x128xf32>
    %159 = vector.broadcast %158 : vector<1x128xf32> to vector<2x128xf32>
    %160 = arith.mulf %156, %159 : vector<2x128xf32>
    %161 = arith.addf %153, %160 : vector<2x128xf32>
    %c0_132 = arith.constant 0 : index
    %c0_133 = arith.constant 0 : index
    %162 = vector.load %arg3[%c0_132, %c0_133] : memref<1x128xf32, #tpu.memory_space<vmem>>, vector<1x128xf32>
    %163 = vector.broadcast %162 : vector<1x128xf32> to vector<2x128xf32>
    %164 = arith.addf %161, %163 : vector<2x128xf32>
    %165 = arith.truncf %164 : vector<2x128xf32> to vector<2x128xbf16>
    %c0_134 = arith.constant 0 : index
    %c0_135 = arith.constant 0 : index
    %166 = vector.load %arg4[%c0_134, %c0_135] : memref<128x128xbf16, #tpu.memory_space<vmem>>, vector<128x128xbf16>
    %cst_136 = arith.constant dense<0.000000e+00> : vector<2x128xf32>
    %167 = tpu.matmul %165, %166, %cst_136 {dimension_numbers = #tpu.dot_dimension_numbers<[1], [0], [0], [1], [0, 0, 1, 1], [], []>} : vector<2x128xbf16>, vector<128x128xbf16>, vector<2x128xf32> -> vector<2x128xf32>
    %c0_137 = arith.constant 0 : index
    %c0_138 = arith.constant 0 : index
    %168 = vector.load %arg5[%c0_137, %c0_138] : memref<1x128xf32, #tpu.memory_space<vmem>>, vector<1x128xf32>
    %169 = vector.broadcast %168 : vector<1x128xf32> to vector<2x128xf32>
    %170 = arith.addf %167, %169 : vector<2x128xf32>
    %cst_139 = arith.constant 0.000000e+00 : f32
    %171 = vector.broadcast %cst_139 : f32 to vector<2x128xf32>
    %172 = arith.maximumf %170, %171 : vector<2x128xf32>
    %173 = arith.addf %172, %90 : vector<2x128xf32>
    %c0_140 = arith.constant 0 : index
    %c0_141 = arith.constant 0 : index
    %174 = vector.load %arg12[%c0_140, %c0_141] : memref<2x128xf32, #tpu.memory_space<vmem>>, vector<2x128xf32>
    tpu.vector_store %arg12[%c0_140, %c0_141], %173 {strides = array<i32>} : memref<2x128xf32, #tpu.memory_space<vmem>>, vector<2x128xf32>,
    return
  }
}

module attributes {stable_mosaic.version = 11 : i64} {
  func.func @_block_s1_kernel(%arg0: memref<2x128xf32, #tpu.memory_space<vmem>>, %arg1: memref<9x2x2xf32, #tpu.memory_space<vmem>>, %arg2: memref<128x128xf32, #tpu.memory_space<vmem>>, %arg3: memref<128x128xbf16, #tpu.memory_space<vmem>>, %arg4: memref<1x128xf32, #tpu.memory_space<vmem>>, %arg5: memref<9x1x128xf32, #tpu.memory_space<vmem>>, %arg6: memref<1x128xf32, #tpu.memory_space<vmem>>, %arg7: memref<128x128xbf16, #tpu.memory_space<vmem>>, %arg8: memref<1x128xf32, #tpu.memory_space<vmem>>, %arg9: memref<2x128xf32, #tpu.memory_space<vmem>>) attributes {dimension_semantics = [], scalar_prefetch = 0 : i64, scratch_operands = 0 : i64, tpu.core_type = #tpu.core_type<tc>} {
    %c0 = arith.constant 0 : index
    %c0_0 = arith.constant 0 : index
    %0 = vector.load %arg0[%c0, %c0_0] : memref<2x128xf32, #tpu.memory_space<vmem>>, vector<2x128xf32>
    %1 = arith.truncf %0 : vector<2x128xf32> to vector<2x128xbf16>
    %c0_1 = arith.constant 0 : index
    %c0_2 = arith.constant 0 : index
    %2 = vector.load %arg3[%c0_1, %c0_2] : memref<128x128xbf16, #tpu.memory_space<vmem>>, vector<128x128xbf16>
    %cst = arith.constant dense<0.000000e+00> : vector<2x128xf32>
    %3 = tpu.matmul %1, %2, %cst {dimension_numbers = #tpu.dot_dimension_numbers<[1], [0], [0], [1], [0, 0, 1, 1], [], []>} : vector<2x128xbf16>, vector<128x128xbf16>, vector<2x128xf32> -> vector<2x128xf32>
    %c0_3 = arith.constant 0 : index
    %c0_4 = arith.constant 0 : index
    %4 = vector.load %arg4[%c0_3, %c0_4] : memref<1x128xf32, #tpu.memory_space<vmem>>, vector<1x128xf32>
    %5 = vector.broadcast %4 : vector<1x128xf32> to vector<2x128xf32>
    %6 = arith.addf %3, %5 : vector<2x128xf32>
    %cst_5 = arith.constant 0.000000e+00 : f32
    %7 = vector.broadcast %cst_5 : f32 to vector<2x128xf32>
    %8 = arith.maximumf %6, %7 : vector<2x128xf32>
    %c0_6 = arith.constant 0 : index
    %c0_7 = arith.constant 0 : index
    %c0_8 = arith.constant 0 : index
    %9 = vector.load %arg1[%c0_6, %c0_7, %c0_8] : memref<9x2x2xf32, #tpu.memory_space<vmem>>, vector<1x2x2xf32>
    %10 = vector.shape_cast %9 : vector<1x2x2xf32> to vector<2x2xf32>
    %cst_9 = arith.constant dense<0.000000e+00> : vector<2x128xf32>
    %11 = tpu.matmul %10, %8, %cst_9 {dimension_numbers = #tpu.dot_dimension_numbers<[1], [0], [0], [1], [0, 0, 1, 1], [], []>} : vector<2x2xf32>, vector<2x128xf32>, vector<2x128xf32> -> vector<2x128xf32>
    %c0_10 = arith.constant 0 : index
    %c0_11 = arith.constant 0 : index
    %c0_12 = arith.constant 0 : index
    %12 = vector.load %arg5[%c0_10, %c0_11, %c0_12] : memref<9x1x128xf32, #tpu.memory_space<vmem>>, vector<1x1x128xf32>
    %13 = vector.shape_cast %12 : vector<1x1x128xf32> to vector<1x128xf32>
    %14 = vector.broadcast %13 : vector<1x128xf32> to vector<2x128xf32>
    %15 = arith.mulf %11, %14 : vector<2x128xf32>
    %c1 = arith.constant 1 : index
    %c0_13 = arith.constant 0 : index
    %c0_14 = arith.constant 0 : index
    %16 = vector.load %arg1[%c1, %c0_13, %c0_14] : memref<9x2x2xf32, #tpu.memory_space<vmem>>, vector<1x2x2xf32>
    %17 = vector.shape_cast %16 : vector<1x2x2xf32> to vector<2x2xf32>
    %cst_15 = arith.constant dense<0.000000e+00> : vector<2x128xf32>
    %18 = tpu.matmul %17, %8, %cst_15 {dimension_numbers = #tpu.dot_dimension_numbers<[1], [0], [0], [1], [0, 0, 1, 1], [], []>} : vector<2x2xf32>, vector<2x128xf32>, vector<2x128xf32> -> vector<2x128xf32>
    %c1_16 = arith.constant 1 : index
    %c0_17 = arith.constant 0 : index
    %c0_18 = arith.constant 0 : index
    %19 = vector.load %arg5[%c1_16, %c0_17, %c0_18] : memref<9x1x128xf32, #tpu.memory_space<vmem>>, vector<1x1x128xf32>
    %20 = vector.shape_cast %19 : vector<1x1x128xf32> to vector<1x128xf32>
    %21 = vector.broadcast %20 : vector<1x128xf32> to vector<2x128xf32>
    %22 = arith.mulf %18, %21 : vector<2x128xf32>
    %23 = arith.addf %15, %22 : vector<2x128xf32>
    %c2 = arith.constant 2 : index
    %c0_19 = arith.constant 0 : index
    %c0_20 = arith.constant 0 : index
    %24 = vector.load %arg1[%c2, %c0_19, %c0_20] : memref<9x2x2xf32, #tpu.memory_space<vmem>>, vector<1x2x2xf32>
    %25 = vector.shape_cast %24 : vector<1x2x2xf32> to vector<2x2xf32>
    %cst_21 = arith.constant dense<0.000000e+00> : vector<2x128xf32>
    %26 = tpu.matmul %25, %8, %cst_21 {dimension_numbers = #tpu.dot_dimension_numbers<[1], [0], [0], [1], [0, 0, 1, 1], [], []>} : vector<2x2xf32>, vector<2x128xf32>, vector<2x128xf32> -> vector<2x128xf32>
    %c2_22 = arith.constant 2 : index
    %c0_23 = arith.constant 0 : index
    %c0_24 = arith.constant 0 : index
    %27 = vector.load %arg5[%c2_22, %c0_23, %c0_24] : memref<9x1x128xf32, #tpu.memory_space<vmem>>, vector<1x1x128xf32>
    %28 = vector.shape_cast %27 : vector<1x1x128xf32> to vector<1x128xf32>
    %29 = vector.broadcast %28 : vector<1x128xf32> to vector<2x128xf32>
    %30 = arith.mulf %26, %29 : vector<2x128xf32>
    %31 = arith.addf %23, %30 : vector<2x128xf32>
    %c3 = arith.constant 3 : index
    %c0_25 = arith.constant 0 : index
    %c0_26 = arith.constant 0 : index
    %32 = vector.load %arg1[%c3, %c0_25, %c0_26] : memref<9x2x2xf32, #tpu.memory_space<vmem>>, vector<1x2x2xf32>
    %33 = vector.shape_cast %32 : vector<1x2x2xf32> to vector<2x2xf32>
    %cst_27 = arith.constant dense<0.000000e+00> : vector<2x128xf32>
    %34 = tpu.matmul %33, %8, %cst_27 {dimension_numbers = #tpu.dot_dimension_numbers<[1], [0], [0], [1], [0, 0, 1, 1], [], []>} : vector<2x2xf32>, vector<2x128xf32>, vector<2x128xf32> -> vector<2x128xf32>
    %c3_28 = arith.constant 3 : index
    %c0_29 = arith.constant 0 : index
    %c0_30 = arith.constant 0 : index
    %35 = vector.load %arg5[%c3_28, %c0_29, %c0_30] : memref<9x1x128xf32, #tpu.memory_space<vmem>>, vector<1x1x128xf32>
    %36 = vector.shape_cast %35 : vector<1x1x128xf32> to vector<1x128xf32>
    %37 = vector.broadcast %36 : vector<1x128xf32> to vector<2x128xf32>
    %38 = arith.mulf %34, %37 : vector<2x128xf32>
    %39 = arith.addf %31, %38 : vector<2x128xf32>
    %c4 = arith.constant 4 : index
    %c0_31 = arith.constant 0 : index
    %c0_32 = arith.constant 0 : index
    %40 = vector.load %arg1[%c4, %c0_31, %c0_32] : memref<9x2x2xf32, #tpu.memory_space<vmem>>, vector<1x2x2xf32>
    %41 = vector.shape_cast %40 : vector<1x2x2xf32> to vector<2x2xf32>
    %cst_33 = arith.constant dense<0.000000e+00> : vector<2x128xf32>
    %42 = tpu.matmul %41, %8, %cst_33 {dimension_numbers = #tpu.dot_dimension_numbers<[1], [0], [0], [1], [0, 0, 1, 1], [], []>} : vector<2x2xf32>, vector<2x128xf32>, vector<2x128xf32> -> vector<2x128xf32>
    %c4_34 = arith.constant 4 : index
    %c0_35 = arith.constant 0 : index
    %c0_36 = arith.constant 0 : index
    %43 = vector.load %arg5[%c4_34, %c0_35, %c0_36] : memref<9x1x128xf32, #tpu.memory_space<vmem>>, vector<1x1x128xf32>
    %44 = vector.shape_cast %43 : vector<1x1x128xf32> to vector<1x128xf32>
    %45 = vector.broadcast %44 : vector<1x128xf32> to vector<2x128xf32>
    %46 = arith.mulf %42, %45 : vector<2x128xf32>
    %47 = arith.addf %39, %46 : vector<2x128xf32>
    %c5 = arith.constant 5 : index
    %c0_37 = arith.constant 0 : index
    %c0_38 = arith.constant 0 : index
    %48 = vector.load %arg1[%c5, %c0_37, %c0_38] : memref<9x2x2xf32, #tpu.memory_space<vmem>>, vector<1x2x2xf32>
    %49 = vector.shape_cast %48 : vector<1x2x2xf32> to vector<2x2xf32>
    %cst_39 = arith.constant dense<0.000000e+00> : vector<2x128xf32>
    %50 = tpu.matmul %49, %8, %cst_39 {dimension_numbers = #tpu.dot_dimension_numbers<[1], [0], [0], [1], [0, 0, 1, 1], [], []>} : vector<2x2xf32>, vector<2x128xf32>, vector<2x128xf32> -> vector<2x128xf32>
    %c5_40 = arith.constant 5 : index
    %c0_41 = arith.constant 0 : index
    %c0_42 = arith.constant 0 : index
    %51 = vector.load %arg5[%c5_40, %c0_41, %c0_42] : memref<9x1x128xf32, #tpu.memory_space<vmem>>, vector<1x1x128xf32>
    %52 = vector.shape_cast %51 : vector<1x1x128xf32> to vector<1x128xf32>
    %53 = vector.broadcast %52 : vector<1x128xf32> to vector<2x128xf32>
    %54 = arith.mulf %50, %53 : vector<2x128xf32>
    %55 = arith.addf %47, %54 : vector<2x128xf32>
    %c6 = arith.constant 6 : index
    %c0_43 = arith.constant 0 : index
    %c0_44 = arith.constant 0 : index
    %56 = vector.load %arg1[%c6, %c0_43, %c0_44] : memref<9x2x2xf32, #tpu.memory_space<vmem>>, vector<1x2x2xf32>
    %57 = vector.shape_cast %56 : vector<1x2x2xf32> to vector<2x2xf32>
    %cst_45 = arith.constant dense<0.000000e+00> : vector<2x128xf32>
    %58 = tpu.matmul %57, %8, %cst_45 {dimension_numbers = #tpu.dot_dimension_numbers<[1], [0], [0], [1], [0, 0, 1, 1], [], []>} : vector<2x2xf32>, vector<2x128xf32>, vector<2x128xf32> -> vector<2x128xf32>
    %c6_46 = arith.constant 6 : index
    %c0_47 = arith.constant 0 : index
    %c0_48 = arith.constant 0 : index
    %59 = vector.load %arg5[%c6_46, %c0_47, %c0_48] : memref<9x1x128xf32, #tpu.memory_space<vmem>>, vector<1x1x128xf32>
    %60 = vector.shape_cast %59 : vector<1x1x128xf32> to vector<1x128xf32>
    %61 = vector.broadcast %60 : vector<1x128xf32> to vector<2x128xf32>
    %62 = arith.mulf %58, %61 : vector<2x128xf32>
    %63 = arith.addf %55, %62 : vector<2x128xf32>
    %c7 = arith.constant 7 : index
    %c0_49 = arith.constant 0 : index
    %c0_50 = arith.constant 0 : index
    %64 = vector.load %arg1[%c7, %c0_49, %c0_50] : memref<9x2x2xf32, #tpu.memory_space<vmem>>, vector<1x2x2xf32>
    %65 = vector.shape_cast %64 : vector<1x2x2xf32> to vector<2x2xf32>
    %cst_51 = arith.constant dense<0.000000e+00> : vector<2x128xf32>
    %66 = tpu.matmul %65, %8, %cst_51 {dimension_numbers = #tpu.dot_dimension_numbers<[1], [0], [0], [1], [0, 0, 1, 1], [], []>} : vector<2x2xf32>, vector<2x128xf32>, vector<2x128xf32> -> vector<2x128xf32>
    %c7_52 = arith.constant 7 : index
    %c0_53 = arith.constant 0 : index
    %c0_54 = arith.constant 0 : index
    %67 = vector.load %arg5[%c7_52, %c0_53, %c0_54] : memref<9x1x128xf32, #tpu.memory_space<vmem>>, vector<1x1x128xf32>
    %68 = vector.shape_cast %67 : vector<1x1x128xf32> to vector<1x128xf32>
    %69 = vector.broadcast %68 : vector<1x128xf32> to vector<2x128xf32>
    %70 = arith.mulf %66, %69 : vector<2x128xf32>
    %71 = arith.addf %63, %70 : vector<2x128xf32>
    %c8 = arith.constant 8 : index
    %c0_55 = arith.constant 0 : index
    %c0_56 = arith.constant 0 : index
    %72 = vector.load %arg1[%c8, %c0_55, %c0_56] : memref<9x2x2xf32, #tpu.memory_space<vmem>>, vector<1x2x2xf32>
    %73 = vector.shape_cast %72 : vector<1x2x2xf32> to vector<2x2xf32>
    %cst_57 = arith.constant dense<0.000000e+00> : vector<2x128xf32>
    %74 = tpu.matmul %73, %8, %cst_57 {dimension_numbers = #tpu.dot_dimension_numbers<[1], [0], [0], [1], [0, 0, 1, 1], [], []>} : vector<2x2xf32>, vector<2x128xf32>, vector<2x128xf32> -> vector<2x128xf32>
    %c8_58 = arith.constant 8 : index
    %c0_59 = arith.constant 0 : index
    %c0_60 = arith.constant 0 : index
    %75 = vector.load %arg5[%c8_58, %c0_59, %c0_60] : memref<9x1x128xf32, #tpu.memory_space<vmem>>, vector<1x1x128xf32>
    %76 = vector.shape_cast %75 : vector<1x1x128xf32> to vector<1x128xf32>
    %77 = vector.broadcast %76 : vector<1x128xf32> to vector<2x128xf32>
    %78 = arith.mulf %74, %77 : vector<2x128xf32>
    %79 = arith.addf %71, %78 : vector<2x128xf32>
    %c0_61 = arith.constant 0 : index
    %c0_62 = arith.constant 0 : index
    %80 = vector.load %arg6[%c0_61, %c0_62] : memref<1x128xf32, #tpu.memory_space<vmem>>, vector<1x128xf32>
    %81 = vector.broadcast %80 : vector<1x128xf32> to vector<2x128xf32>
    %82 = arith.addf %79, %81 : vector<2x128xf32>
    %83 = arith.truncf %82 : vector<2x128xf32> to vector<2x128xbf16>
    %c0_63 = arith.constant 0 : index
    %c0_64 = arith.constant 0 : index
    %84 = vector.load %arg7[%c0_63, %c0_64] : memref<128x128xbf16, #tpu.memory_space<vmem>>, vector<128x128xbf16>
    %cst_65 = arith.constant dense<0.000000e+00> : vector<2x128xf32>
    %85 = tpu.matmul %83, %84, %cst_65 {dimension_numbers = #tpu.dot_dimension_numbers<[1], [0], [0], [1], [0, 0, 1, 1], [], []>} : vector<2x128xbf16>, vector<128x128xbf16>, vector<2x128xf32> -> vector<2x128xf32>
    %c0_66 = arith.constant 0 : index
    %c0_67 = arith.constant 0 : index
    %86 = vector.load %arg8[%c0_66, %c0_67] : memref<1x128xf32, #tpu.memory_space<vmem>>, vector<1x128xf32>
    %87 = vector.broadcast %86 : vector<1x128xf32> to vector<2x128xf32>
    %88 = arith.addf %85, %87 : vector<2x128xf32>
    %cst_68 = arith.constant 0.000000e+00 : f32
    %89 = vector.broadcast %cst_68 : f32 to vector<2x128xf32>
    %90 = arith.maximumf %88, %89 : vector<2x128xf32>
    %c0_69 = arith.constant 0 : index
    %c0_70 = arith.constant 0 : index
    %91 = vector.load %arg2[%c0_69, %c0_70] : memref<128x128xf32, #tpu.memory_space<vmem>>, vector<128x128xf32>
    %cst_71 = arith.constant dense<0.000000e+00> : vector<2x128xf32>
    %92 = tpu.matmul %0, %91, %cst_71 {dimension_numbers = #tpu.dot_dimension_numbers<[1], [0], [0], [1], [0, 0, 1, 1], [], []>} : vector<2x128xf32>, vector<128x128xf32>, vector<2x128xf32> -> vector<2x128xf32>
    %93 = arith.addf %92, %90 : vector<2x128xf32>
    %c0_72 = arith.constant 0 : index
    %c0_73 = arith.constant 0 : index
    %94 = vector.load %arg9[%c0_72, %c0_73] : memref<2x128xf32, #tpu.memory_space<vmem>>, vector<2x128xf32>
    tpu.vector_store %arg9[%c0_72, %c0_73], %93 {strides = array<i32>} : memref<2x128xf32, #tpu.memory_space<vmem>>, vector<2x128xf32>,
    return
  }
}

</mosaic_0001>

<llo_original>
// kernel: forward.9
$region0: #{forward.9}
  #allocation0 [shape = 'u32[]', space=smem, size = 0x4, offset = 0x4, fixed_abs, tag = 'smem constant byte address 0x4 - core index']
  #allocation1 [shape = 'u32[72,128]{1,0:T(1,128)}', space=vmem, size = 0x9000, scoped, tag = 'internal scratch']
  %s0 = inlined_call_operand.vmem [shape: f32[32,128], index: 0, kind: input, shape index: {}]
  %s1 = inlined_call_operand.vmem [shape: f32[9,32,32], index: 1, kind: input, shape index: {}]
  %s2 = inlined_call_operand.vmem [shape: f32[128,128], index: 2, kind: input, shape index: {}]
  %s3 = inlined_call_operand.vmem [shape: bf16[128,128], index: 3, kind: input, shape index: {}]
  %s4 = inlined_call_operand.vmem [shape: f32[1,128], index: 4, kind: input, shape index: {}]
  %s5 = inlined_call_operand.vmem [shape: f32[9,1,128], index: 5, kind: input, shape index: {}]
  %s6 = inlined_call_operand.vmem [shape: f32[1,128], index: 6, kind: input, shape index: {}]
  %s7 = inlined_call_operand.vmem [shape: bf16[128,128], index: 7, kind: input, shape index: {}]
  %s8 = inlined_call_operand.vmem [shape: f32[1,128], index: 8, kind: input, shape index: {}]
  %s9 = inlined_call_operand.vmem [shape: f32[32,128], index: 9, kind: output, shape index: {}]
  %s10 = sld [smem:[#allocation0]]
  $region46: #{forward.9} parent=0
    _
  %s12 = ssub.s32 1, %s10
  %s13 = scalar_select 0, %s12, %s10
  // Predicated region
  $region2: #{forward.9} parent=0 // pred_check
    _
  $region3: #{forward.9} parent=0 // pred_check_branch
    %15 = sbr.rel (0) target = $region5
  $region4: #{forward.9} parent=0 // pred_region
    _
  $region5: #{forward.9} parent=0 // pred_fallthru
    _
  // Predicated region
  $region6: #{forward.9} parent=0 // pred_check
    _
  $region7: #{forward.9} parent=0 // pred_check_branch
    %17 = sbr.rel (0) target = $region9
  $region8: #{forward.9} parent=0 // pred_region
    _
  $region9: #{forward.9} parent=0 // pred_fallthru
    _
  // Predicated region
  $region10: #{forward.9} parent=0 // pred_check
    _
  $region11: #{forward.9} parent=0 // pred_check_branch
    %19 = sbr.rel (0) target = $region13
  $region12: #{forward.9} parent=0 // pred_region
    _
  $region13: #{forward.9} parent=0 // pred_fallthru
    _
  // Predicated region
  $region14: #{forward.9} parent=0 // pred_check
    _
  $region15: #{forward.9} parent=0 // pred_check_branch
    %21 = sbr.rel (0) target = $region17
  $region16: #{forward.9} parent=0 // pred_region
    _
  $region17: #{forward.9} parent=0 // pred_fallthru
    _
  // Predicated region
  $region18: #{forward.9} parent=0 // pred_check
    _
  $region19: #{forward.9} parent=0 // pred_check_branch
    %23 = sbr.rel (0) target = $region21
  $region20: #{forward.9} parent=0 // pred_region
    _
  $region21: #{forward.9} parent=0 // pred_fallthru
    _
  // Predicated region
  $region22: #{forward.9} parent=0 // pred_check
    _
  $region23: #{forward.9} parent=0 // pred_check_branch
    %25 = sbr.rel (0) target = $region25
  $region24: #{forward.9} parent=0 // pred_region
    _
  $region25: #{forward.9} parent=0 // pred_fallthru
    _
  // Predicated region
  $region26: #{forward.9} parent=0 // pred_check
    _
  $region27: #{forward.9} parent=0 // pred_check_branch
    %27 = sbr.rel (0) target = $region29
  $region28: #{forward.9} parent=0 // pred_region
    _
  $region29: #{forward.9} parent=0 // pred_fallthru
    _
  // Predicated region
  $region30: #{forward.9} parent=0 // pred_check
    _
  $region31: #{forward.9} parent=0 // pred_check_branch
    %29 = sbr.rel (0) target = $region33
  $region32: #{forward.9} parent=0 // pred_region
    _
  $region33: #{forward.9} parent=0 // pred_fallthru
    _
  // Predicated region
  $region34: #{forward.9} parent=0 // pred_check
    _
  $region35: #{forward.9} parent=0 // pred_check_branch
    %31 = sbr.rel (0) target = $region37
  $region36: #{forward.9} parent=0 // pred_region
    _
  $region37: #{forward.9} parent=0 // pred_fallthru
    _
  %v32 = vld [vmem:[%s0] sm:$0xff]
  %v33 = vld [vmem:[%s0 + $0x8] sm:$0xff]
  %v34 = vld [vmem:[%s0 + $0x10] sm:$0xff]
  %v35 = vld [vmem:[%s0 + $0x18] sm:$0xff]
  %v36 = vpack.c.bf16 %v33, %v32
  %v37 = vpack.c.bf16 %v35, %v34
  %v38 = vld [vmem:[%s3] sm:$0xf]
  %v39 = vld [vmem:[%s3 + $0x4] sm:$0xf]
  %v40 = vld [vmem:[%s3 + $0x8] sm:$0xf]
  %v41 = vld [vmem:[%s3 + $0xc] sm:$0xf]
  %v42 = vld [vmem:[%s3 + $0x10] sm:$0xf]
  %v43 = vld [vmem:[%s3 + $0x14] sm:$0xf]
  %v44 = vld [vmem:[%s3 + $0x18] sm:$0xf]
  %v45 = vld [vmem:[%s3 + $0x1c] sm:$0xf]
  %v46 = vld [vmem:[%s3 + $0x20] sm:$0xf]
  %v47 = vld [vmem:[%s3 + $0x24] sm:$0xf]
  %v48 = vld [vmem:[%s3 + $0x28] sm:$0xf]
  %v49 = vld [vmem:[%s3 + $0x2c] sm:$0xf]
  %v50 = vld [vmem:[%s3 + $0x30] sm:$0xf]
  %v51 = vld [vmem:[%s3 + $0x34] sm:$0xf]
  %v52 = vld [vmem:[%s3 + $0x38] sm:$0xf]
  %v53 = vld [vmem:[%s3 + $0x3c] sm:$0xf]
  %v54 = vld [vmem:[%s4] sm:$0x1]
  %v56 = vperm.slane %v54, 0
  %v74 = vunpack.c.l.b16 %v38
  %v75 = vunpack.c.l.b16 %v39
  %v76 = vunpack.c.l.b16 %v40
  %v77 = vunpack.c.l.b16 %v41
  %v78 = vunpack.c.l.b16 %v42
  %v79 = vunpack.c.l.b16 %v43
  %v80 = vunpack.c.l.b16 %v44
  %v81 = vunpack.c.l.b16 %v45
  %v82 = vunpack.c.l.b16 %v46
  %v83 = vunpack.c.l.b16 %v47
  %v84 = vunpack.c.l.b16 %v48
  %v85 = vunpack.c.l.b16 %v49
  %v86 = vunpack.c.l.b16 %v50
  %v87 = vunpack.c.l.b16 %v51
  %v88 = vunpack.c.l.b16 %v52
  %v89 = vunpack.c.l.b16 %v53
  %v90 = vpack.c.b16 %v75, %v74
  %v91 = vpack.c.b16 %v77, %v76
  %v92 = vpack.c.b16 %v79, %v78
  %v93 = vpack.c.b16 %v81, %v80
  %v94 = vpack.c.b16 %v83, %v82
  %v95 = vpack.c.b16 %v85, %v84
  %v96 = vpack.c.b16 %v87, %v86
  %v97 = vpack.c.b16 %v89, %v88
  %106 = vmatpush.bf16.msra.mxu0 %v97
  %107 = vmatpush.bf16.msra.mxu0 %v96
  %108 = vmatpush.bf16.msra.mxu0 %v95
  %109 = vmatpush.bf16.msra.mxu0 %v94
  %110 = vmatpush.bf16.msra.mxu0 %v93
  %111 = vmatpush.bf16.msra.mxu0 %v92
  %112 = vmatpush.bf16.msra.mxu0 %v91
  %113 = vmatpush.bf16.msra.mxu0 %v90
  %114 = vmatmul.bf16.gmra.mxu0 %v36
  %v115 = vpop.f32.mrf.mxu0
  %v116 = vadd.f32 %v56, %v115
  %v117 = vpop.f32.mrf.mxu0
  %v118 = vadd.f32 %v56, %v117
  %119 = vmatmul.bf16.gmra.mxu0 %v37
  %v120 = vpop.f32.mrf.mxu0
  %v121 = vadd.f32 %v56, %v120
  %v122 = vpop.f32.mrf.mxu0
  %v123 = vadd.f32 %v56, %v122
  %124 = vdwg.mxu0
  %v125 = vmax.f32 %v116, 0.0
  %v126 = vmax.f32 %v118, 0.0
  %v127 = vmax.f32 %v121, 0.0
  %v128 = vmax.f32 %v123, 0.0
  %v129 = vld [vmem:[%s1] sm:$0xff]
  %v130 = vld [vmem:[%s1 + $0x8] sm:$0xff]
  %v131 = vld [vmem:[%s1 + $0x10] sm:$0xff]
  %v132 = vld [vmem:[%s1 + $0x18] sm:$0xff]
  %vm133 = vcmask 261120
  %v135 = vsel %vm133, %v129, 0
  %v138 = vsel %vm133, %v130, 0
  %v141 = vsel %vm133, %v131, 0
  %v144 = vsel %vm133, %v132, 0
  %146 = vmatpush.msra.mxu0 0.0
  %147 = vmatpush.msra.mxu0 0.0
  %148 = vmatpush.msra.mxu0 0.0
  %149 = vmatpush.msra.mxu0 0.0
  %150 = vmatpush.msra.mxu0 0.0
  %151 = vmatpush.msra.mxu0 0.0
  %152 = vmatpush.msra.mxu0 0.0
  %153 = vmatpush.msra.mxu0 0.0
  %154 = vmatpush.msra.mxu0 0.0
  %155 = vmatpush.msra.mxu0 0.0
  %156 = vmatpush.msra.mxu0 0.0
  %157 = vmatpush.msra.mxu0 0.0
  %158 = vmatpush.msra.mxu0 %v128
  %159 = vmatpush.msra.mxu0 %v127
  %160 = vmatpush.msra.mxu0 %v126
  %161 = vmatpush.msra.mxu0 %v125
  %162 = vmatmul.f32.gmra.mxu0 %v135
  %v163 = vpop.f32.mrf.mxu0
  %v164 = vadd.f32 0.0, %v163
  %165 = vmatmul.f32.gmra.mxu0 %v138
  %v166 = vpop.f32.mrf.mxu0
  %v167 = vadd.f32 0.0, %v166
  %168 = vmatmul.f32.gmra.mxu0 %v141
  %v169 = vpop.f32.mrf.mxu0
  %v170 = vadd.f32 0.0, %v169
  %171 = vmatmul.f32.gmra.mxu0 %v144
  %v172 = vpop.f32.mrf.mxu0
  %v173 = vadd.f32 0.0, %v172
  %174 = vdwg.mxu0
  %v175 = vld [vmem:[%s5] sm:$0x1]
  %v177 = vperm.slane %v175, 0
  %v179 = vmul.f32 %v164, %v177
  %v180 = vmul.f32 %v167, %v177
  %v181 = vmul.f32 %v170, %v177
  %v182 = vmul.f32 %v173, %v177
  %s183 = scalar_lea.vmem %s1, 32
  %v184 = vld [vmem:[%s183] sm:$0xff]
  %v185 = vld [vmem:[%s183 + $0x8] sm:$0xff]
  %v186 = vld [vmem:[%s183 + $0x10] sm:$0xff]
  %v187 = vld [vmem:[%s183 + $0x18] sm:$0xff]
  %v189 = vsel %vm133, %v184, 0
  %v192 = vsel %vm133, %v185, 0
  %v195 = vsel %vm133, %v186, 0
  %v198 = vsel %vm133, %v187, 0
  %200 = vmatpush.msra.mxu0 0.0
  %201 = vmatpush.msra.mxu0 0.0
  %202 = vmatpush.msra.mxu0 0.0
  %203 = vmatpush.msra.mxu0 0.0
  %204 = vmatpush.msra.mxu0 0.0
  %205 = vmatpush.msra.mxu0 0.0
  %206 = vmatpush.msra.mxu0 0.0
  %207 = vmatpush.msra.mxu0 0.0
  %208 = vmatpush.msra.mxu0 0.0
  %209 = vmatpush.msra.mxu0 0.0
  %210 = vmatpush.msra.mxu0 0.0
  %211 = vmatpush.msra.mxu0 0.0
  %212 = vmatpush.msra.mxu0 %v128
  %213 = vmatpush.msra.mxu0 %v127
  %214 = vmatpush.msra.mxu0 %v126
  %215 = vmatpush.msra.mxu0 %v125
  %216 = vmatmul.f32.gmra.mxu0 %v189
  %v217 = vpop.f32.mrf.mxu0
  %v218 = vadd.f32 0.0, %v217
  %219 = vmatmul.f32.gmra.mxu0 %v192
  %v220 = vpop.f32.mrf.mxu0
  %v221 = vadd.f32 0.0, %v220
  %222 = vmatmul.f32.gmra.mxu0 %v195
  %v223 = vpop.f32.mrf.mxu0
  %v224 = vadd.f32 0.0, %v223
  %225 = vmatmul.f32.gmra.mxu0 %v198
  %v226 = vpop.f32.mrf.mxu0
  %v227 = vadd.f32 0.0, %v226
  %228 = vdwg.mxu0
  %s229 = scalar_lea.vmem %s5, 1
  %v230 = vld [vmem:[%s229] sm:$0x1]
  %v232 = vperm.slane %v230, 0
  %v234 = vmul.f32 %v218, %v232
  %v235 = vmul.f32 %v221, %v232
  %v236 = vmul.f32 %v224, %v232
  %v237 = vmul.f32 %v227, %v232
  %v238 = vadd.f32 %v179, %v234
  %v239 = vadd.f32 %v180, %v235
  %v240 = vadd.f32 %v181, %v236
  %v241 = vadd.f32 %v182, %v237
  %s242 = scalar_lea.vmem %s1, 64
  %v243 = vld [vmem:[%s242] sm:$0xff]
  %v244 = vld [vmem:[%s242 + $0x8] sm:$0xff]
  %v245 = vld [vmem:[%s242 + $0x10] sm:$0xff]
  %v246 = vld [vmem:[%s242 + $0x18] sm:$0xff]
  %v248 = vsel %vm133, %v243, 0
  %v251 = vsel %vm133, %v244, 0
  %v254 = vsel %vm133, %v245, 0
  %v257 = vsel %vm133, %v246, 0
  %259 = vmatpush.msra.mxu0 0.0
  %260 = vmatpush.msra.mxu0 0.0
  %261 = vmatpush.msra.mxu0 0.0
  %262 = vmatpush.msra.mxu0 0.0
  %263 = vmatpush.msra.mxu0 0.0
  %264 = vmatpush.msra.mxu0 0.0
  %265 = vmatpush.msra.mxu0 0.0
  %266 = vmatpush.msra.mxu0 0.0
  %267 = vmatpush.msra.mxu0 0.0
  %268 = vmatpush.msra.mxu0 0.0
  %269 = vmatpush.msra.mxu0 0.0
  %270 = vmatpush.msra.mxu0 0.0
  %271 = vmatpush.msra.mxu0 %v128
  %272 = vmatpush.msra.mxu0 %v127
  %273 = vmatpush.msra.mxu0 %v126
  %274 = vmatpush.msra.mxu0 %v125
  %275 = vmatmul.f32.gmra.mxu0 %v248
  %v276 = vpop.f32.mrf.mxu0
  %v277 = vadd.f32 0.0, %v276
  %278 = vmatmul.f32.gmra.mxu0 %v251
  %v279 = vpop.f32.mrf.mxu0
  %v280 = vadd.f32 0.0, %v279
  %281 = vmatmul.f32.gmra.mxu0 %v254
  %v282 = vpop.f32.mrf.mxu0
  %v283 = vadd.f32 0.0, %v282
  %284 = vmatmul.f32.gmra.mxu0 %v257
  %v285 = vpop.f32.mrf.mxu0
  %v286 = vadd.f32 0.0, %v285
  %287 = vdwg.mxu0
  %s288 = scalar_lea.vmem %s5, 2
  %v289 = vld [vmem:[%s288] sm:$0x1]
  %v291 = vperm.slane %v289, 0
  %v293 = vmul.f32 %v277, %v291
  %v294 = vmul.f32 %v280, %v291
  %v295 = vmul.f32 %v283, %v291
  %v296 = vmul.f32 %v286, %v291
  %v297 = vadd.f32 %v238, %v293
  %v298 = vadd.f32 %v239, %v294
  %v299 = vadd.f32 %v240, %v295
  %v300 = vadd.f32 %v241, %v296
  %s301 = scalar_lea.vmem %s1, 96
  %v302 = vld [vmem:[%s301] sm:$0xff]
  %v303 = vld [vmem:[%s301 + $0x8] sm:$0xff]
  %v304 = vld [vmem:[%s301 + $0x10] sm:$0xff]
  %v305 = vld [vmem:[%s301 + $0x18] sm:$0xff]
  %v307 = vsel %vm133, %v302, 0
  %v310 = vsel %vm133, %v303, 0
  %v313 = vsel %vm133, %v304, 0
  %v316 = vsel %vm133, %v305, 0
  %318 = vmatpush.msra.mxu0 0.0
  %319 = vmatpush.msra.mxu0 0.0
  %320 = vmatpush.msra.mxu0 0.0
  %321 = vmatpush.msra.mxu0 0.0
  %322 = vmatpush.msra.mxu0 0.0
  %323 = vmatpush.msra.mxu0 0.0
  %324 = vmatpush.msra.mxu0 0.0
  %325 = vmatpush.msra.mxu0 0.0
  %326 = vmatpush.msra.mxu0 0.0
  %327 = vmatpush.msra.mxu0 0.0
  %328 = vmatpush.msra.mxu0 0.0
  %329 = vmatpush.msra.mxu0 0.0
  %330 = vmatpush.msra.mxu0 %v128
  %331 = vmatpush.msra.mxu0 %v127
  %332 = vmatpush.msra.mxu0 %v126
  %333 = vmatpush.msra.mxu0 %v125
  %334 = vmatmul.f32.gmra.mxu0 %v307
  %v335 = vpop.f32.mrf.mxu0
  %v336 = vadd.f32 0.0, %v335
  %337 = vmatmul.f32.gmra.mxu0 %v310
  %v338 = vpop.f32.mrf.mxu0
  %v339 = vadd.f32 0.0, %v338
  %340 = vmatmul.f32.gmra.mxu0 %v313
  %v341 = vpop.f32.mrf.mxu0
  %v342 = vadd.f32 0.0, %v341
  %343 = vmatmul.f32.gmra.mxu0 %v316
  %v344 = vpop.f32.mrf.mxu0
  %v345 = vadd.f32 0.0, %v344
  %346 = vdwg.mxu0
  %s347 = scalar_lea.vmem %s5, 3
  %v348 = vld [vmem:[%s347] sm:$0x1]
  %v350 = vperm.slane %v348, 0
  %v352 = vmul.f32 %v336, %v350
  %v353 = vmul.f32 %v339, %v350
  %v354 = vmul.f32 %v342, %v350
  %v355 = vmul.f32 %v345, %v350
  %v356 = vadd.f32 %v297, %v352
  %v357 = vadd.f32 %v298, %v353
  %v358 = vadd.f32 %v299, %v354
  %v359 = vadd.f32 %v300, %v355
  %s360 = scalar_lea.vmem %s1, 128
  %v361 = vld [vmem:[%s360] sm:$0xff]
  %v362 = vld [vmem:[%s360 + $0x8] sm:$0xff]
  %v363 = vld [vmem:[%s360 + $0x10] sm:$0xff]
  %v364 = vld [vmem:[%s360 + $0x18] sm:$0xff]
  %v366 = vsel %vm133, %v361, 0
  %v369 = vsel %vm133, %v362, 0
  %v372 = vsel %vm133, %v363, 0
  %v375 = vsel %vm133, %v364, 0
  %377 = vmatpush.msra.mxu0 0.0
  %378 = vmatpush.msra.mxu0 0.0
  %379 = vmatpush.msra.mxu0 0.0
  %380 = vmatpush.msra.mxu0 0.0
  %381 = vmatpush.msra.mxu0 0.0
  %382 = vmatpush.msra.mxu0 0.0
  %383 = vmatpush.msra.mxu0 0.0
  %384 = vmatpush.msra.mxu0 0.0
  %385 = vmatpush.msra.mxu0 0.0
  %386 = vmatpush.msra.mxu0 0.0
  %387 = vmatpush.msra.mxu0 0.0
  %388 = vmatpush.msra.mxu0 0.0
  %389 = vmatpush.msra.mxu0 %v128
  %390 = vmatpush.msra.mxu0 %v127
  %391 = vmatpush.msra.mxu0 %v126
  %392 = vmatpush.msra.mxu0 %v125
  %393 = vmatmul.f32.gmra.mxu0 %v366
  %v394 = vpop.f32.mrf.mxu0
  %v395 = vadd.f32 0.0, %v394
  %396 = vmatmul.f32.gmra.mxu0 %v369
  %v397 = vpop.f32.mrf.mxu0
  %v398 = vadd.f32 0.0, %v397
  %399 = vmatmul.f32.gmra.mxu0 %v372
  %v400 = vpop.f32.mrf.mxu0
  %v401 = vadd.f32 0.0, %v400
  %402 = vmatmul.f32.gmra.mxu0 %v375
  %v403 = vpop.f32.mrf.mxu0
  %v404 = vadd.f32 0.0, %v403
  %405 = vdwg.mxu0
  %s406 = scalar_lea.vmem %s5, 4
  %v407 = vld [vmem:[%s406] sm:$0x1]
  %v409 = vperm.slane %v407, 0
  %v411 = vmul.f32 %v395, %v409
  %v412 = vmul.f32 %v398, %v409
  %v413 = vmul.f32 %v401, %v409
  %v414 = vmul.f32 %v404, %v409
  %v415 = vadd.f32 %v356, %v411
  %v416 = vadd.f32 %v357, %v412
  %v417 = vadd.f32 %v358, %v413
  %v418 = vadd.f32 %v359, %v414
  %s419 = scalar_lea.vmem %s1, 160
  %v420 = vld [vmem:[%s419] sm:$0xff]
  %v421 = vld [vmem:[%s419 + $0x8] sm:$0xff]
  %v422 = vld [vmem:[%s419 + $0x10] sm:$0xff]
  %v423 = vld [vmem:[%s419 + $0x18] sm:$0xff]
  %v425 = vsel %vm133, %v420, 0
  %v428 = vsel %vm133, %v421, 0
  %v431 = vsel %vm133, %v422, 0
  %v434 = vsel %vm133, %v423, 0
  %436 = vmatpush.msra.mxu0 0.0
  %437 = vmatpush.msra.mxu0 0.0
  %438 = vmatpush.msra.mxu0 0.0
  %439 = vmatpush.msra.mxu0 0.0
  %440 = vmatpush.msra.mxu0 0.0
  %441 = vmatpush.msra.mxu0 0.0
  %442 = vmatpush.msra.mxu0 0.0
  %443 = vmatpush.msra.mxu0 0.0
  %444 = vmatpush.msra.mxu0 0.0
  %445 = vmatpush.msra.mxu0 0.0
  %446 = vmatpush.msra.mxu0 0.0
  %447 = vmatpush.msra.mxu0 0.0
  %448 = vmatpush.msra.mxu0 %v128
  %449 = vmatpush.msra.mxu0 %v127
  %450 = vmatpush.msra.mxu0 %v126
  %451 = vmatpush.msra.mxu0 %v125
  %452 = vmatmul.f32.gmra.mxu0 %v425
  %v453 = vpop.f32.mrf.mxu0
  %v454 = vadd.f32 0.0, %v453
  %455 = vmatmul.f32.gmra.mxu0 %v428
  %v456 = vpop.f32.mrf.mxu0
  %v457 = vadd.f32 0.0, %v456
  %458 = vmatmul.f32.gmra.mxu0 %v431
  %v459 = vpop.f32.mrf.mxu0
  %v460 = vadd.f32 0.0, %v459
  %461 = vmatmul.f32.gmra.mxu0 %v434
  %v462 = vpop.f32.mrf.mxu0
  %v463 = vadd.f32 0.0, %v462
  %464 = vdwg.mxu0
  %s465 = scalar_lea.vmem %s5, 5
  %v466 = vld [vmem:[%s465] sm:$0x1]
  %v468 = vperm.slane %v466, 0
  %v470 = vmul.f32 %v454, %v468
  %v471 = vmul.f32 %v457, %v468
  %v472 = vmul.f32 %v460, %v468
  %v473 = vmul.f32 %v463, %v468
  %v474 = vadd.f32 %v415, %v470
  %v475 = vadd.f32 %v416, %v471
  %v476 = vadd.f32 %v417, %v472
  %v477 = vadd.f32 %v418, %v473
  %s478 = scalar_lea.vmem %s1, 192
  %v479 = vld [vmem:[%s478] sm:$0xff]
  %v480 = vld [vmem:[%s478 + $0x8] sm:$0xff]
  %v481 = vld [vmem:[%s478 + $0x10] sm:$0xff]
  %v482 = vld [vmem:[%s478 + $0x18] sm:$0xff]
  %v484 = vsel %vm133, %v479, 0
  %v487 = vsel %vm133, %v480, 0
  %v490 = vsel %vm133, %v481, 0
  %v493 = vsel %vm133, %v482, 0
  %495 = vmatpush.msra.mxu0 0.0
  %496 = vmatpush.msra.mxu0 0.0
  %497 = vmatpush.msra.mxu0 0.0
  %498 = vmatpush.msra.mxu0 0.0
  %499 = vmatpush.msra.mxu0 0.0
  %500 = vmatpush.msra.mxu0 0.0
  %501 = vmatpush.msra.mxu0 0.0
  %502 = vmatpush.msra.mxu0 0.0
  %503 = vmatpush.msra.mxu0 0.0
  %504 = vmatpush.msra.mxu0 0.0
  %505 = vmatpush.msra.mxu0 0.0
  %506 = vmatpush.msra.mxu0 0.0
  %507 = vmatpush.msra.mxu0 %v128
  %508 = vmatpush.msra.mxu0 %v127
  %509 = vmatpush.msra.mxu0 %v126
  %510 = vmatpush.msra.mxu0 %v125
  %511 = vmatmul.f32.gmra.mxu0 %v484
  %v512 = vpop.f32.mrf.mxu0
  %v513 = vadd.f32 0.0, %v512
  %514 = vmatmul.f32.gmra.mxu0 %v487
  %v515 = vpop.f32.mrf.mxu0
  %v516 = vadd.f32 0.0, %v515
  %517 = vmatmul.f32.gmra.mxu0 %v490
  %v518 = vpop.f32.mrf.mxu0
  %v519 = vadd.f32 0.0, %v518
  %520 = vmatmul.f32.gmra.mxu0 %v493
  %v521 = vpop.f32.mrf.mxu0
  %v522 = vadd.f32 0.0, %v521
  %523 = vdwg.mxu0
  %s524 = scalar_lea.vmem %s5, 6
  %v525 = vld [vmem:[%s524] sm:$0x1]
  %v527 = vperm.slane %v525, 0
  %v529 = vmul.f32 %v513, %v527
  %v530 = vmul.f32 %v516, %v527
  %v531 = vmul.f32 %v519, %v527
  %v532 = vmul.f32 %v522, %v527
  %v533 = vadd.f32 %v474, %v529
  %v534 = vadd.f32 %v475, %v530
  %v535 = vadd.f32 %v476, %v531
  %v536 = vadd.f32 %v477, %v532
  %s537 = scalar_lea.vmem %s1, 224
  %v538 = vld [vmem:[%s537] sm:$0xff]
  %v539 = vld [vmem:[%s537 + $0x8] sm:$0xff]
  %v540 = vld [vmem:[%s537 + $0x10] sm:$0xff]
  %v541 = vld [vmem:[%s537 + $0x18] sm:$0xff]
  %v543 = vsel %vm133, %v538, 0
  %v546 = vsel %vm133, %v539, 0
  %v549 = vsel %vm133, %v540, 0
  %v552 = vsel %vm133, %v541, 0
  %554 = vmatpush.msra.mxu0 0.0
  %555 = vmatpush.msra.mxu0 0.0
  %556 = vmatpush.msra.mxu0 0.0
  %557 = vmatpush.msra.mxu0 0.0
  %558 = vmatpush.msra.mxu0 0.0
  %559 = vmatpush.msra.mxu0 0.0
  %560 = vmatpush.msra.mxu0 0.0
  %561 = vmatpush.msra.mxu0 0.0
  %562 = vmatpush.msra.mxu0 0.0
  %563 = vmatpush.msra.mxu0 0.0
  %564 = vmatpush.msra.mxu0 0.0
  %565 = vmatpush.msra.mxu0 0.0
  %566 = vmatpush.msra.mxu0 %v128
  %567 = vmatpush.msra.mxu0 %v127
  %568 = vmatpush.msra.mxu0 %v126
  %569 = vmatpush.msra.mxu0 %v125
  %570 = vmatmul.f32.gmra.mxu0 %v543
  %v571 = vpop.f32.mrf.mxu0
  %v572 = vadd.f32 0.0, %v571
  %573 = vmatmul.f32.gmra.mxu0 %v546
  %v574 = vpop.f32.mrf.mxu0
  %v575 = vadd.f32 0.0, %v574
  %576 = vmatmul.f32.gmra.mxu0 %v549
  %v577 = vpop.f32.mrf.mxu0
  %v578 = vadd.f32 0.0, %v577
  %579 = vmatmul.f32.gmra.mxu0 %v552
  %v580 = vpop.f32.mrf.mxu0
  %v581 = vadd.f32 0.0, %v580
  %582 = vdwg.mxu0
  %s583 = scalar_lea.vmem %s5, 7
  %v584 = vld [vmem:[%s583] sm:$0x1]
  %v586 = vperm.slane %v584, 0
  %v588 = vmul.f32 %v572, %v586
  %v589 = vmul.f32 %v575, %v586
  %v590 = vmul.f32 %v578, %v586
  %v591 = vmul.f32 %v581, %v586
  %v592 = vadd.f32 %v533, %v588
  %v593 = vadd.f32 %v534, %v589
  %v594 = vadd.f32 %v535, %v590
  %v595 = vadd.f32 %v536, %v591
  %s596 = scalar_lea.vmem %s1, 256
  %v597 = vld [vmem:[%s596] sm:$0xff]
  %v598 = vld [vmem:[%s596 + $0x8] sm:$0xff]
  %v599 = vld [vmem:[%s596 + $0x10] sm:$0xff]
  %v600 = vld [vmem:[%s596 + $0x18] sm:$0xff]
  %v602 = vsel %vm133, %v597, 0
  %v605 = vsel %vm133, %v598, 0
  %v608 = vsel %vm133, %v599, 0
  %v611 = vsel %vm133, %v600, 0
  %613 = vmatpush.msra.mxu0 0.0
  %614 = vmatpush.msra.mxu0 0.0
  %615 = vmatpush.msra.mxu0 0.0
  %616 = vmatpush.msra.mxu0 0.0
  %617 = vmatpush.msra.mxu0 0.0
  %618 = vmatpush.msra.mxu0 0.0
  %619 = vmatpush.msra.mxu0 0.0
  %620 = vmatpush.msra.mxu0 0.0
  %621 = vmatpush.msra.mxu0 0.0
  %622 = vmatpush.msra.mxu0 0.0
  %623 = vmatpush.msra.mxu0 0.0
  %624 = vmatpush.msra.mxu0 0.0
  %625 = vmatpush.msra.mxu0 %v128
  %626 = vmatpush.msra.mxu0 %v127
  %627 = vmatpush.msra.mxu0 %v126
  %628 = vmatpush.msra.mxu0 %v125
  %629 = vmatmul.f32.gmra.mxu0 %v602
  %v630 = vpop.f32.mrf.mxu0
  %v631 = vadd.f32 0.0, %v630
  %632 = vmatmul.f32.gmra.mxu0 %v605
  %v633 = vpop.f32.mrf.mxu0
  %v634 = vadd.f32 0.0, %v633
  %635 = vmatmul.f32.gmra.mxu0 %v608
  %v636 = vpop.f32.mrf.mxu0
  %v637 = vadd.f32 0.0, %v636
  %638 = vmatmul.f32.gmra.mxu0 %v611
  %v639 = vpop.f32.mrf.mxu0
  %v640 = vadd.f32 0.0, %v639
  %641 = vdwg.mxu0
  %s642 = scalar_lea.vmem %s5, 8
  %v643 = vld [vmem:[%s642] sm:$0x1]
  %v645 = vperm.slane %v643, 0
  %v647 = vmul.f32 %v631, %v645
  %v648 = vmul.f32 %v634, %v645
  %v649 = vmul.f32 %v637, %v645
  %v650 = vmul.f32 %v640, %v645
  %v651 = vadd.f32 %v592, %v647
  %v652 = vadd.f32 %v593, %v648
  %v653 = vadd.f32 %v594, %v649
  %v654 = vadd.f32 %v595, %v650
  %v655 = vld [vmem:[%s6] sm:$0x1]
  %v657 = vperm.slane %v655, 0
  %v659 = vadd.f32 %v651, %v657
  %v660 = vadd.f32 %v652, %v657
  %v661 = vadd.f32 %v653, %v657
  %v662 = vadd.f32 %v654, %v657
  %v663 = vpack.c.bf16 %v660, %v659
  %v664 = vpack.c.bf16 %v662, %v661
  %v665 = vld [vmem:[%s7] sm:$0xf]
  %v666 = vld [vmem:[%s7 + $0x4] sm:$0xf]
  %v667 = vld [vmem:[%s7 + $0x8] sm:$0xf]
  %v668 = vld [vmem:[%s7 + $0xc] sm:$0xf]
  %v669 = vld [vmem:[%s7 + $0x10] sm:$0xf]
  %v670 = vld [vmem:[%s7 + $0x14] sm:$0xf]
  %v671 = vld [vmem:[%s7 + $0x18] sm:$0xf]
  %v672 = vld [vmem:[%s7 + $0x1c] sm:$0xf]
  %v673 = vld [vmem:[%s7 + $0x20] sm:$0xf]
  %v674 = vld [vmem:[%s7 + $0x24] sm:$0xf]
  %v675 = vld [vmem:[%s7 + $0x28] sm:$0xf]
  %v676 = vld [vmem:[%s7 + $0x2c] sm:$0xf]
  %v677 = vld [vmem:[%s7 + $0x30] sm:$0xf]
  %v678 = vld [vmem:[%s7 + $0x34] sm:$0xf]
  %v679 = vld [vmem:[%s7 + $0x38] sm:$0xf]
  %v680 = vld [vmem:[%s7 + $0x3c] sm:$0xf]
  %v681 = vld [vmem:[%s8] sm:$0x1]
  %v683 = vperm.slane %v681, 0
  %v701 = vunpack.c.l.b16 %v665
  %v702 = vunpack.c.l.b16 %v666
  %v703 = vunpack.c.l.b16 %v667
  %v704 = vunpack.c.l.b16 %v668
  %v705 = vunpack.c.l.b16 %v669
  %v706 = vunpack.c.l.b16 %v670
  %v707 = vunpack.c.l.b16 %v671
  %v708 = vunpack.c.l.b16 %v672
  %v709 = vunpack.c.l.b16 %v673
  %v710 = vunpack.c.l.b16 %v674
  %v711 = vunpack.c.l.b16 %v675
  %v712 = vunpack.c.l.b16 %v676
  %v713 = vunpack.c.l.b16 %v677
  %v714 = vunpack.c.l.b16 %v678
  %v715 = vunpack.c.l.b16 %v679
  %v716 = vunpack.c.l.b16 %v680
  %v717 = vpack.c.b16 %v702, %v701
  %v718 = vpack.c.b16 %v704, %v703
  %v719 = vpack.c.b16 %v706, %v705
  %v720 = vpack.c.b16 %v708, %v707
  %v721 = vpack.c.b16 %v710, %v709
  %v722 = vpack.c.b16 %v712, %v711
  %v723 = vpack.c.b16 %v714, %v713
  %v724 = vpack.c.b16 %v716, %v715
  %733 = vmatpush.bf16.msra.mxu0 %v724
  %734 = vmatpush.bf16.msra.mxu0 %v723
  %735 = vmatpush.bf16.msra.mxu0 %v722
  %736 = vmatpush.bf16.msra.mxu0 %v721
  %737 = vmatpush.bf16.msra.mxu0 %v720
  %738 = vmatpush.bf16.msra.mxu0 %v719
  %739 = vmatpush.bf16.msra.mxu0 %v718
  %740 = vmatpush.bf16.msra.mxu0 %v717
  %741 = vmatmul.bf16.gmra.mxu0 %v663
  %v742 = vpop.f32.mrf.mxu0
  %v743 = vadd.f32 %v683, %v742
  %v744 = vpop.f32.mrf.mxu0
  %v745 = vadd.f32 %v683, %v744
  %746 = vmatmul.bf16.gmra.mxu0 %v664
  %v747 = vpop.f32.mrf.mxu0
  %v748 = vadd.f32 %v683, %v747
  %v749 = vpop.f32.mrf.mxu0
  %v750 = vadd.f32 %v683, %v749
  %751 = vdwg.mxu0
  %v752 = vmax.f32 %v743, 0.0
  %v753 = vmax.f32 %v745, 0.0
  %v754 = vmax.f32 %v748, 0.0
  %v755 = vmax.f32 %v750, 0.0
  %v756 = vld [vmem:[%s2] sm:$0xff]
  %v757 = vld [vmem:[%s2 + $0x8] sm:$0xff]
  %v758 = vld [vmem:[%s2 + $0x10] sm:$0xff]
  %v759 = vld [vmem:[%s2 + $0x18] sm:$0xff]
  %v760 = vld [vmem:[%s2 + $0x20] sm:$0xff]
  %v761 = vld [vmem:[%s2 + $0x28] sm:$0xff]
  %v762 = vld [vmem:[%s2 + $0x30] sm:$0xff]
  %v763 = vld [vmem:[%s2 + $0x38] sm:$0xff]
  %v764 = vld [vmem:[%s2 + $0x40] sm:$0xff]
  %v765 = vld [vmem:[%s2 + $0x48] sm:$0xff]
  %v766 = vld [vmem:[%s2 + $0x50] sm:$0xff]
  %v767 = vld [vmem:[%s2 + $0x58] sm:$0xff]
  %v768 = vld [vmem:[%s2 + $0x60] sm:$0xff]
  %v769 = vld [vmem:[%s2 + $0x68] sm:$0xff]
  %v770 = vld [vmem:[%s2 + $0x70] sm:$0xff]
  %v771 = vld [vmem:[%s2 + $0x78] sm:$0xff]
  %772 = vmatpush.msra.mxu0 %v771
  %773 = vmatpush.msra.mxu0 %v770
  %774 = vmatpush.msra.mxu0 %v769
  %775 = vmatpush.msra.mxu0 %v768
  %776 = vmatpush.msra.mxu0 %v767
  %777 = vmatpush.msra.mxu0 %v766
  %778 = vmatpush.msra.mxu0 %v765
  %779 = vmatpush.msra.mxu0 %v764
  %780 = vmatpush.msra.mxu0 %v763
  %781 = vmatpush.msra.mxu0 %v762
  %782 = vmatpush.msra.mxu0 %v761
  %783 = vmatpush.msra.mxu0 %v760
  %784 = vmatpush.msra.mxu0 %v759
  %785 = vmatpush.msra.mxu0 %v758
  %786 = vmatpush.msra.mxu0 %v757
  %787 = vmatpush.msra.mxu0 %v756
  %788 = vmatmul.f32.gmra.mxu0 %v32
  %v789 = vpop.f32.mrf.mxu0
  %v790 = vadd.f32 %v752, %v789
  %791 = vmatmul.f32.gmra.mxu0 %v33
  %v792 = vpop.f32.mrf.mxu0
  %v793 = vadd.f32 %v753, %v792
  %794 = vmatmul.f32.gmra.mxu0 %v34
  %v795 = vpop.f32.mrf.mxu0
  %v796 = vadd.f32 %v754, %v795
  %797 = vmatmul.f32.gmra.mxu0 %v35
  %v798 = vpop.f32.mrf.mxu0
  %v799 = vadd.f32 %v755, %v798
  %800 = vdwg.mxu0
  %801 = vst [vmem:[%s9] sm:$0xff] %v790
  %802 = vst [vmem:[%s9 + $0x8] sm:$0xff] %v793
  %803 = vst [vmem:[%s9 + $0x10] sm:$0xff] %v796
  %804 = vst [vmem:[%s9 + $0x18] sm:$0xff] %v799
  // Predicated region
  $region38: #{forward.9} parent=0 // pred_check
    _
  $region39: #{forward.9} parent=0 // pred_check_branch
    %806 = sbr.rel (0) target = $region41
  $region40: #{forward.9} parent=0 // pred_region
    _
  $region41: #{forward.9} parent=0 // pred_fallthru
    _
  // Predicated region
  $region42: #{forward.9} parent=0 // pred_check
    _
  $region43: #{forward.9} parent=0 // pred_check_branch
    %808 = sbr.rel (0) target = $region45
  $region44: #{forward.9} parent=0 // pred_region
    _
  $region45: #{forward.9} parent=0 // pred_fallthru
    _

// kernel: forward.8
$region0: #{forward.8}
  #allocation0 [shape = 'u32[]', space=smem, size = 0x4, offset = 0x4, fixed_abs, tag = 'smem constant byte address 0x4 - core index']
  #allocation1 [shape = 'u32[72,128]{1,0:T(1,128)}', space=vmem, size = 0x9000, scoped, tag = 'internal scratch']
  %s0 = inlined_call_operand.vmem [shape: f32[128,128], index: 0, kind: input, shape index: {}]
  %s1 = inlined_call_operand.vmem [shape: f32[9,32,128], index: 1, kind: input, shape index: {}]
  %s2 = inlined_call_operand.vmem [shape: f32[9,1,128], index: 2, kind: input, shape index: {}]
  %s3 = inlined_call_operand.vmem [shape: f32[1,128], index: 3, kind: input, shape index: {}]
  %s4 = inlined_call_operand.vmem [shape: bf16[128,128], index: 4, kind: input, shape index: {}]
  %s5 = inlined_call_operand.vmem [shape: f32[1,128], index: 5, kind: input, shape index: {}]
  %s6 = inlined_call_operand.vmem [shape: bf16[128,128], index: 6, kind: input, shape index: {}]
  %s7 = inlined_call_operand.vmem [shape: f32[1,128], index: 7, kind: input, shape index: {}]
  %s8 = inlined_call_operand.vmem [shape: f32[9,1,128], index: 8, kind: input, shape index: {}]
  %s9 = inlined_call_operand.hbm [shape: f32[1,128], index: 9, kind: input, shape index: {}]
  %s10 = inlined_call_operand.vmem [shape: bf16[128,128], index: 10, kind: input, shape index: {}]
  %s11 = inlined_call_operand.hbm [shape: f32[1,128], index: 11, kind: input, shape index: {}]
  %s12 = inlined_call_operand.vmem [shape: f32[32,128], index: 12, kind: output, shape index: {}]
  %s13 = sld [smem:[#allocation0]]
  $region66: #{forward.8} parent=0
    _
  %s15 = ssub.s32 1, %s13
  %s16 = scalar_select 0, %s15, %s13
  $region1: #{forward.8} parent=0
    #allocation2 [shape = 'u8[512]{0}', space=vmem, size = 0x400, scoped, tag = 'input window, operand 9, single buffered']
    #allocation3 [shape = 's32[1]{0}', space=sflag, size = 0x4, scoped, tag = 'scoped memory for forward.8']
    #allocation4 [shape = 'u8[512]{0}', space=vmem, size = 0x400, scoped, tag = 'input window, operand 11, single buffered']
    #allocation5 [shape = 's32[1]{0}', space=sflag, size = 0x4, scoped, tag = 'scoped memory for forward.8']
    %17 = vsyncpa [#allocation3], 0
    %18 = vsyncpa [#allocation5], 0
    // Predicated region
    $region2: #{forward.8} parent=1 // pred_check
      _
    $region3: #{forward.8} parent=1 // pred_check_branch
      %20 = sbr.rel (0) target = $region5
    $region4: #{forward.8} parent=1 // pred_region
      _
    $region5: #{forward.8} parent=1 // pred_fallthru
      _
    // Predicated region
    $region6: #{forward.8} parent=1 // pred_check
      _
    $region7: #{forward.8} parent=1 // pred_check_branch
      %22 = sbr.rel (0) target = $region9
    $region8: #{forward.8} parent=1 // pred_region
      _
    $region9: #{forward.8} parent=1 // pred_fallthru
      _
    // Predicated region
    $region10: #{forward.8} parent=1 // pred_check
      _
    $region11: #{forward.8} parent=1 // pred_check_branch
      %24 = sbr.rel (0) target = $region13
    $region12: #{forward.8} parent=1 // pred_region
      _
    $region13: #{forward.8} parent=1 // pred_fallthru
      _
    // Predicated region
    $region14: #{forward.8} parent=1 // pred_check
      _
    $region15: #{forward.8} parent=1 // pred_check_branch
      %26 = sbr.rel (0) target = $region17
    $region16: #{forward.8} parent=1 // pred_region
      _
    $region17: #{forward.8} parent=1 // pred_fallthru
      _
    // Predicated region
    $region18: #{forward.8} parent=1 // pred_check
      _
    $region19: #{forward.8} parent=1 // pred_check_branch
      %28 = sbr.rel (0) target = $region21
    $region20: #{forward.8} parent=1 // pred_region
      _
    $region21: #{forward.8} parent=1 // pred_fallthru
      _
    // Predicated region
    $region22: #{forward.8} parent=1 // pred_check
      _
    $region23: #{forward.8} parent=1 // pred_check_branch
      %30 = sbr.rel (0) target = $region25
    $region24: #{forward.8} parent=1 // pred_region
      _
    $region25: #{forward.8} parent=1 // pred_fallthru
      _
    // Predicated region
    $region26: #{forward.8} parent=1 // pred_check
      _
    $region27: #{forward.8} parent=1 // pred_check_branch
      %32 = sbr.rel (0) target = $region29
    $region28: #{forward.8} parent=1 // pred_region
      _
    $region29: #{forward.8} parent=1 // pred_fallthru
      _
    // Predicated region
    $region30: #{forward.8} parent=1 // pred_check
      _
    $region31: #{forward.8} parent=1 // pred_check_branch
      %34 = sbr.rel (0) target = $region33
    $region32: #{forward.8} parent=1 // pred_region
      _
    $region33: #{forward.8} parent=1 // pred_fallthru
      _
    // Predicated region
    $region34: #{forward.8} parent=1 // pred_check
      _
    $region35: #{forward.8} parent=1 // pred_check_branch
      %36 = sbr.rel (0) target = $region37
    $region36: #{forward.8} parent=1 // pred_region
      _
    $region37: #{forward.8} parent=1 // pred_fallthru
      _
    // Predicated region
    $region38: #{forward.8} parent=1 // pred_check
      _
    $region39: #{forward.8} parent=1 // pred_check_branch
      %38 = sbr.rel (0) target = $region41
    $region40: #{forward.8} parent=1 // pred_region
      %40 = vsyncadd [#allocation3], 0
      %s42 = sshll.u32 %s9, 4
      %s43 = int_to_ptr.hbm [resolvable:$true] %s42
      %s44 = sshll.u32 [#allocation2], 4
      %s45 = int_to_ptr.vmem [resolvable:$true] %s44
      %47 = dma.hbm_to_vmem [thread:$0]  %s43, 16, %s45, [#allocation3]
    $region41: #{forward.8} parent=1 // pred_fallthru
      _
    // Predicated region
    $region42: #{forward.8} parent=1 // pred_check
      _
    $region43: #{forward.8} parent=1 // pred_check_branch
      %49 = sbr.rel (0) target = $region45
    $region44: #{forward.8} parent=1 // pred_region
      _
    $region45: #{forward.8} parent=1 // pred_fallthru
      _
    // Predicated region
    $region46: #{forward.8} parent=1 // pred_check
      _
    $region47: #{forward.8} parent=1 // pred_check_branch
      %51 = sbr.rel (0) target = $region49
    $region48: #{forward.8} parent=1 // pred_region
      %53 = vsyncadd [#allocation5], 0
      %s55 = sshll.u32 %s11, 4
      %s56 = int_to_ptr.hbm [resolvable:$true] %s55
      %s57 = sshll.u32 [#allocation4], 4
      %s58 = int_to_ptr.vmem [resolvable:$true] %s57
      %60 = dma.hbm_to_vmem [thread:$0]  %s56, 16, %s58, [#allocation5]
    $region49: #{forward.8} parent=1 // pred_fallthru
      _
    // Predicated region
    $region50: #{forward.8} parent=1 // pred_check
      _
    $region51: #{forward.8} parent=1 // pred_check_branch
      %62 = sbr.rel (0) target = $region53
    $region52: #{forward.8} parent=1 // pred_region
      %64 = dma.done [#allocation3], 16
    $region53: #{forward.8} parent=1 // pred_fallthru
      _
    // Predicated region
    $region54: #{forward.8} parent=1 // pred_check
      _
    $region55: #{forward.8} parent=1 // pred_check_branch
      %66 = sbr.rel (0) target = $region57
    $region56: #{forward.8} parent=1 // pred_region
      %68 = dma.done [#allocation5], 16
    $region57: #{forward.8} parent=1 // pred_fallthru
      _
    %v69 = vld [vmem:[%s0] sm:$0xff]
    %v70 = vld [vmem:[%s0 + $0x8] sm:$0xff]
    %v71 = vld [vmem:[%s0 + $0x10] sm:$0xff]
    %v72 = vld [vmem:[%s0 + $0x18] sm:$0xff]
    %v73 = vld [vmem:[%s0 + $0x20] sm:$0xff]
    %v74 = vld [vmem:[%s0 + $0x28] sm:$0xff]
    %v75 = vld [vmem:[%s0 + $0x30] sm:$0xff]
    %v76 = vld [vmem:[%s0 + $0x38] sm:$0xff]
    %v77 = vld [vmem:[%s0 + $0x40] sm:$0xff]
    %v78 = vld [vmem:[%s0 + $0x48] sm:$0xff]
    %v79 = vld [vmem:[%s0 + $0x50] sm:$0xff]
    %v80 = vld [vmem:[%s0 + $0x58] sm:$0xff]
    %v81 = vld [vmem:[%s0 + $0x60] sm:$0xff]
    %v82 = vld [vmem:[%s0 + $0x68] sm:$0xff]
    %v83 = vld [vmem:[%s0 + $0x70] sm:$0xff]
    %v84 = vld [vmem:[%s0 + $0x78] sm:$0xff]
    %v85 = vpack.c.bf16 %v70, %v69
    %v86 = vpack.c.bf16 %v72, %v71
    %v87 = vpack.c.bf16 %v74, %v73
    %v88 = vpack.c.bf16 %v76, %v75
    %v89 = vpack.c.bf16 %v78, %v77
    %v90 = vpack.c.bf16 %v80, %v79
    %v91 = vpack.c.bf16 %v82, %v81
    %v92 = vpack.c.bf16 %v84, %v83
    %v93 = vld [vmem:[%s6] sm:$0xf]
    %v94 = vld [vmem:[%s6 + $0x4] sm:$0xf]
    %v95 = vld [vmem:[%s6 + $0x8] sm:$0xf]
    %v96 = vld [vmem:[%s6 + $0xc] sm:$0xf]
    %v97 = vld [vmem:[%s6 + $0x10] sm:$0xf]
    %v98 = vld [vmem:[%s6 + $0x14] sm:$0xf]
    %v99 = vld [vmem:[%s6 + $0x18] sm:$0xf]
    %v100 = vld [vmem:[%s6 + $0x1c] sm:$0xf]
    %v101 = vld [vmem:[%s6 + $0x20] sm:$0xf]
    %v102 = vld [vmem:[%s6 + $0x24] sm:$0xf]
    %v103 = vld [vmem:[%s6 + $0x28] sm:$0xf]
    %v104 = vld [vmem:[%s6 + $0x2c] sm:$0xf]
    %v105 = vld [vmem:[%s6 + $0x30] sm:$0xf]
    %v106 = vld [vmem:[%s6 + $0x34] sm:$0xf]
    %v107 = vld [vmem:[%s6 + $0x38] sm:$0xf]
    %v108 = vld [vmem:[%s6 + $0x3c] sm:$0xf]
    %v109 = vld [vmem:[%s7] sm:$0x1]
    %v111 = vperm.slane %v109, 0
    %v129 = vunpack.c.l.b16 %v93
    %v130 = vunpack.c.l.b16 %v94
    %v131 = vunpack.c.l.b16 %v95
    %v132 = vunpack.c.l.b16 %v96
    %v133 = vunpack.c.l.b16 %v97
    %v134 = vunpack.c.l.b16 %v98
    %v135 = vunpack.c.l.b16 %v99
    %v136 = vunpack.c.l.b16 %v100
    %v137 = vunpack.c.l.b16 %v101
    %v138 = vunpack.c.l.b16 %v102
    %v139 = vunpack.c.l.b16 %v103
    %v140 = vunpack.c.l.b16 %v104
    %v141 = vunpack.c.l.b16 %v105
    %v142 = vunpack.c.l.b16 %v106
    %v143 = vunpack.c.l.b16 %v107
    %v144 = vunpack.c.l.b16 %v108
    %v145 = vpack.c.b16 %v130, %v129
    %v146 = vpack.c.b16 %v132, %v131
    %v147 = vpack.c.b16 %v134, %v133
    %v148 = vpack.c.b16 %v136, %v135
    %v149 = vpack.c.b16 %v138, %v137
    %v150 = vpack.c.b16 %v140, %v139
    %v151 = vpack.c.b16 %v142, %v141
    %v152 = vpack.c.b16 %v144, %v143
    %161 = vmatpush.bf16.msra.mxu0 %v152
    %162 = vmatpush.bf16.msra.mxu0 %v151
    %163 = vmatpush.bf16.msra.mxu0 %v150
    %164 = vmatpush.bf16.msra.mxu0 %v149
    %165 = vmatpush.bf16.msra.mxu0 %v148
    %166 = vmatpush.bf16.msra.mxu0 %v147
    %167 = vmatpush.bf16.msra.mxu0 %v146
    %168 = vmatpush.bf16.msra.mxu0 %v145
    %169 = vmatmul.bf16.gmra.mxu0 %v85
    %v170 = vpop.f32.mrf.mxu0
    %v171 = vadd.f32 %v111, %v170
    %v172 = vpop.f32.mrf.mxu0
    %v173 = vadd.f32 %v111, %v172
    %174 = vmatmul.bf16.gmra.mxu0 %v86
    %v175 = vpop.f32.mrf.mxu0
    %v176 = vadd.f32 %v111, %v175
    %v177 = vpop.f32.mrf.mxu0
    %v178 = vadd.f32 %v111, %v177
    %179 = vmatmul.bf16.gmra.mxu0 %v87
    %v180 = vpop.f32.mrf.mxu0
    %v181 = vadd.f32 %v111, %v180
    %v182 = vpop.f32.mrf.mxu0
    %v183 = vadd.f32 %v111, %v182
    %184 = vmatmul.bf16.gmra.mxu0 %v88
    %v185 = vpop.f32.mrf.mxu0
    %v186 = vadd.f32 %v111, %v185
    %v187 = vpop.f32.mrf.mxu0
    %v188 = vadd.f32 %v111, %v187
    %189 = vmatmul.bf16.gmra.mxu0 %v89
    %v190 = vpop.f32.mrf.mxu0
    %v191 = vadd.f32 %v111, %v190
    %v192 = vpop.f32.mrf.mxu0
    %v193 = vadd.f32 %v111, %v192
    %194 = vmatmul.bf16.gmra.mxu0 %v90
    %v195 = vpop.f32.mrf.mxu0
    %v196 = vadd.f32 %v111, %v195
    %v197 = vpop.f32.mrf.mxu0
    %v198 = vadd.f32 %v111, %v197
    %199 = vmatmul.bf16.gmra.mxu0 %v91
    %v200 = vpop.f32.mrf.mxu0
    %v201 = vadd.f32 %v111, %v200
    %v202 = vpop.f32.mrf.mxu0
    %v203 = vadd.f32 %v111, %v202
    %204 = vmatmul.bf16.gmra.mxu0 %v92
    %v205 = vpop.f32.mrf.mxu0
    %v206 = vadd.f32 %v111, %v205
    %v207 = vpop.f32.mrf.mxu0
    %v208 = vadd.f32 %v111, %v207
    %209 = vdwg.mxu0
    %v210 = vmax.f32 %v171, 0.0
    %v211 = vmax.f32 %v173, 0.0
    %v212 = vmax.f32 %v176, 0.0
    %v213 = vmax.f32 %v178, 0.0
    %v214 = vmax.f32 %v181, 0.0
    %v215 = vmax.f32 %v183, 0.0
    %v216 = vmax.f32 %v186, 0.0
    %v217 = vmax.f32 %v188, 0.0
    %v218 = vmax.f32 %v191, 0.0
    %v219 = vmax.f32 %v193, 0.0
    %v220 = vmax.f32 %v196, 0.0
    %v221 = vmax.f32 %v198, 0.0
    %v222 = vmax.f32 %v201, 0.0
    %v223 = vmax.f32 %v203, 0.0
    %v224 = vmax.f32 %v206, 0.0
    %v225 = vmax.f32 %v208, 0.0
    %v226 = vld [vmem:[%s1] sm:$0xff]
    %v227 = vld [vmem:[%s1 + $0x8] sm:$0xff]
    %v228 = vld [vmem:[%s1 + $0x10] sm:$0xff]
    %v229 = vld [vmem:[%s1 + $0x18] sm:$0xff]
    %230 = vmatpush.msra.mxu0 %v225
    %231 = vmatpush.msra.mxu0 %v224
    %232 = vmatpush.msra.mxu0 %v223
    %233 = vmatpush.msra.mxu0 %v222
    %234 = vmatpush.msra.mxu0 %v221
    %235 = vmatpush.msra.mxu0 %v220
    %236 = vmatpush.msra.mxu0 %v219
    %237 = vmatpush.msra.mxu0 %v218
    %238 = vmatpush.msra.mxu0 %v217
    %239 = vmatpush.msra.mxu0 %v216
    %240 = vmatpush.msra.mxu0 %v215
    %241 = vmatpush.msra.mxu0 %v214
    %242 = vmatpush.msra.mxu0 %v213
    %243 = vmatpush.msra.mxu0 %v212
    %244 = vmatpush.msra.mxu0 %v211
    %245 = vmatpush.msra.mxu0 %v210
    %246 = vmatmul.f32.gmra.mxu0 %v226
    %v247 = vpop.f32.mrf.mxu0
    %v248 = vadd.f32 0.0, %v247
    %249 = vmatmul.f32.gmra.mxu0 %v227
    %v250 = vpop.f32.mrf.mxu0
    %v251 = vadd.f32 0.0, %v250
    %252 = vmatmul.f32.gmra.mxu0 %v228
    %v253 = vpop.f32.mrf.mxu0
    %v254 = vadd.f32 0.0, %v253
    %255 = vmatmul.f32.gmra.mxu0 %v229
    %v256 = vpop.f32.mrf.mxu0
    %v257 = vadd.f32 0.0, %v256
    %258 = vdwg.mxu0
    %v259 = vld [vmem:[%s8] sm:$0x1]
    %v261 = vperm.slane %v259, 0
    %v263 = vmul.f32 %v248, %v261
    %v264 = vmul.f32 %v251, %v261
    %v265 = vmul.f32 %v254, %v261
    %v266 = vmul.f32 %v257, %v261
    %s267 = scalar_lea.vmem %s1, 32
    %v268 = vld [vmem:[%s267] sm:$0xff]
    %v269 = vld [vmem:[%s267 + $0x8] sm:$0xff]
    %v270 = vld [vmem:[%s267 + $0x10] sm:$0xff]
    %v271 = vld [vmem:[%s267 + $0x18] sm:$0xff]
    %272 = vmatpush.msra.mxu0 %v225
    %273 = vmatpush.msra.mxu0 %v224
    %274 = vmatpush.msra.mxu0 %v223
    %275 = vmatpush.msra.mxu0 %v222
    %276 = vmatpush.msra.mxu0 %v221
    %277 = vmatpush.msra.mxu0 %v220
    %278 = vmatpush.msra.mxu0 %v219
    %279 = vmatpush.msra.mxu0 %v218
    %280 = vmatpush.msra.mxu0 %v217
    %281 = vmatpush.msra.mxu0 %v216
    %282 = vmatpush.msra.mxu0 %v215
    %283 = vmatpush.msra.mxu0 %v214
    %284 = vmatpush.msra.mxu0 %v213
    %285 = vmatpush.msra.mxu0 %v212
    %286 = vmatpush.msra.mxu0 %v211
    %287 = vmatpush.msra.mxu0 %v210
    %288 = vmatmul.f32.gmra.mxu0 %v268
    %v289 = vpop.f32.mrf.mxu0
    %v290 = vadd.f32 0.0, %v289
    %291 = vmatmul.f32.gmra.mxu0 %v269
    %v292 = vpop.f32.mrf.mxu0
    %v293 = vadd.f32 0.0, %v292
    %294 = vmatmul.f32.gmra.mxu0 %v270
    %v295 = vpop.f32.mrf.mxu0
    %v296 = vadd.f32 0.0, %v295
    %297 = vmatmul.f32.gmra.mxu0 %v271
    %v298 = vpop.f32.mrf.mxu0
    %v299 = vadd.f32 0.0, %v298
    %300 = vdwg.mxu0
    %s301 = scalar_lea.vmem %s8, 1
    %v302 = vld [vmem:[%s301] sm:$0x1]
    %v304 = vperm.slane %v302, 0
    %v306 = vmul.f32 %v290, %v304
    %v307 = vmul.f32 %v293, %v304
    %v308 = vmul.f32 %v296, %v304
    %v309 = vmul.f32 %v299, %v304
    %v310 = vadd.f32 %v263, %v306
    %v311 = vadd.f32 %v264, %v307
    %v312 = vadd.f32 %v265, %v308
    %v313 = vadd.f32 %v266, %v309
    %s314 = scalar_lea.vmem %s1, 64
    %v315 = vld [vmem:[%s314] sm:$0xff]
    %v316 = vld [vmem:[%s314 + $0x8] sm:$0xff]
    %v317 = vld [vmem:[%s314 + $0x10] sm:$0xff]
    %v318 = vld [vmem:[%s314 + $0x18] sm:$0xff]
    %319 = vmatpush.msra.mxu0 %v225
    %320 = vmatpush.msra.mxu0 %v224
    %321 = vmatpush.msra.mxu0 %v223
    %322 = vmatpush.msra.mxu0 %v222
    %323 = vmatpush.msra.mxu0 %v221
    %324 = vmatpush.msra.mxu0 %v220
    %325 = vmatpush.msra.mxu0 %v219
    %326 = vmatpush.msra.mxu0 %v218
    %327 = vmatpush.msra.mxu0 %v217
    %328 = vmatpush.msra.mxu0 %v216
    %329 = vmatpush.msra.mxu0 %v215
    %330 = vmatpush.msra.mxu0 %v214
    %331 = vmatpush.msra.mxu0 %v213
    %332 = vmatpush.msra.mxu0 %v212
    %333 = vmatpush.msra.mxu0 %v211
    %334 = vmatpush.msra.mxu0 %v210
    %335 = vmatmul.f32.gmra.mxu0 %v315
    %v336 = vpop.f32.mrf.mxu0
    %v337 = vadd.f32 0.0, %v336
    %338 = vmatmul.f32.gmra.mxu0 %v316
    %v339 = vpop.f32.mrf.mxu0
    %v340 = vadd.f32 0.0, %v339
    %341 = vmatmul.f32.gmra.mxu0 %v317
    %v342 = vpop.f32.mrf.mxu0
    %v343 = vadd.f32 0.0, %v342
    %344 = vmatmul.f32.gmra.mxu0 %v318
    %v345 = vpop.f32.mrf.mxu0
    %v346 = vadd.f32 0.0, %v345
    %347 = vdwg.mxu0
    %s348 = scalar_lea.vmem %s8, 2
    %v349 = vld [vmem:[%s348] sm:$0x1]
    %v351 = vperm.slane %v349, 0
    %v353 = vmul.f32 %v337, %v351
    %v354 = vmul.f32 %v340, %v351
    %v355 = vmul.f32 %v343, %v351
    %v356 = vmul.f32 %v346, %v351
    %v357 = vadd.f32 %v310, %v353
    %v358 = vadd.f32 %v311, %v354
    %v359 = vadd.f32 %v312, %v355
    %v360 = vadd.f32 %v313, %v356
    %s361 = scalar_lea.vmem %s1, 96
    %v362 = vld [vmem:[%s361] sm:$0xff]
    %v363 = vld [vmem:[%s361 + $0x8] sm:$0xff]
    %v364 = vld [vmem:[%s361 + $0x10] sm:$0xff]
    %v365 = vld [vmem:[%s361 + $0x18] sm:$0xff]
    %366 = vmatpush.msra.mxu0 %v225
    %367 = vmatpush.msra.mxu0 %v224
    %368 = vmatpush.msra.mxu0 %v223
    %369 = vmatpush.msra.mxu0 %v222
    %370 = vmatpush.msra.mxu0 %v221
    %371 = vmatpush.msra.mxu0 %v220
    %372 = vmatpush.msra.mxu0 %v219
    %373 = vmatpush.msra.mxu0 %v218
    %374 = vmatpush.msra.mxu0 %v217
    %375 = vmatpush.msra.mxu0 %v216
    %376 = vmatpush.msra.mxu0 %v215
    %377 = vmatpush.msra.mxu0 %v214
    %378 = vmatpush.msra.mxu0 %v213
    %379 = vmatpush.msra.mxu0 %v212
    %380 = vmatpush.msra.mxu0 %v211
    %381 = vmatpush.msra.mxu0 %v210
    %382 = vmatmul.f32.gmra.mxu0 %v362
    %v383 = vpop.f32.mrf.mxu0
    %v384 = vadd.f32 0.0, %v383
    %385 = vmatmul.f32.gmra.mxu0 %v363
    %v386 = vpop.f32.mrf.mxu0
    %v387 = vadd.f32 0.0, %v386
    %388 = vmatmul.f32.gmra.mxu0 %v364
    %v389 = vpop.f32.mrf.mxu0
    %v390 = vadd.f32 0.0, %v389
    %391 = vmatmul.f32.gmra.mxu0 %v365
    %v392 = vpop.f32.mrf.mxu0
    %v393 = vadd.f32 0.0, %v392
    %394 = vdwg.mxu0
    %s395 = scalar_lea.vmem %s8, 3
    %v396 = vld [vmem:[%s395] sm:$0x1]
    %v398 = vperm.slane %v396, 0
    %v400 = vmul.f32 %v384, %v398
    %v401 = vmul.f32 %v387, %v398
    %v402 = vmul.f32 %v390, %v398
    %v403 = vmul.f32 %v393, %v398
    %v404 = vadd.f32 %v357, %v400
    %v405 = vadd.f32 %v358, %v401
    %v406 = vadd.f32 %v359, %v402
    %v407 = vadd.f32 %v360, %v403
    %s408 = scalar_lea.vmem %s1, 128
    %v409 = vld [vmem:[%s408] sm:$0xff]
    %v410 = vld [vmem:[%s408 + $0x8] sm:$0xff]
    %v411 = vld [vmem:[%s408 + $0x10] sm:$0xff]
    %v412 = vld [vmem:[%s408 + $0x18] sm:$0xff]
    %413 = vmatpush.msra.mxu0 %v225
    %414 = vmatpush.msra.mxu0 %v224
    %415 = vmatpush.msra.mxu0 %v223
    %416 = vmatpush.msra.mxu0 %v222
    %417 = vmatpush.msra.mxu0 %v221
    %418 = vmatpush.msra.mxu0 %v220
    %419 = vmatpush.msra.mxu0 %v219
    %420 = vmatpush.msra.mxu0 %v218
    %421 = vmatpush.msra.mxu0 %v217
    %422 = vmatpush.msra.mxu0 %v216
    %423 = vmatpush.msra.mxu0 %v215
    %424 = vmatpush.msra.mxu0 %v214
    %425 = vmatpush.msra.mxu0 %v213
    %426 = vmatpush.msra.mxu0 %v212
    %427 = vmatpush.msra.mxu0 %v211
    %428 = vmatpush.msra.mxu0 %v210
    %429 = vmatmul.f32.gmra.mxu0 %v409
    %v430 = vpop.f32.mrf.mxu0
    %v431 = vadd.f32 0.0, %v430
    %432 = vmatmul.f32.gmra.mxu0 %v410
    %v433 = vpop.f32.mrf.mxu0
    %v434 = vadd.f32 0.0, %v433
    %435 = vmatmul.f32.gmra.mxu0 %v411
    %v436 = vpop.f32.mrf.mxu0
    %v437 = vadd.f32 0.0, %v436
    %438 = vmatmul.f32.gmra.mxu0 %v412
    %v439 = vpop.f32.mrf.mxu0
    %v440 = vadd.f32 0.0, %v439
    %441 = vdwg.mxu0
    %s442 = scalar_lea.vmem %s8, 4
    %v443 = vld [vmem:[%s442] sm:$0x1]
    %v445 = vperm.slane %v443, 0
    %v447 = vmul.f32 %v431, %v445
    %v448 = vmul.f32 %v434, %v445
    %v449 = vmul.f32 %v437, %v445
    %v450 = vmul.f32 %v440, %v445
    %v451 = vadd.f32 %v404, %v447
    %v452 = vadd.f32 %v405, %v448
    %v453 = vadd.f32 %v406, %v449
    %v454 = vadd.f32 %v407, %v450
    %s455 = scalar_lea.vmem %s1, 160
    %v456 = vld [vmem:[%s455] sm:$0xff]
    %v457 = vld [vmem:[%s455 + $0x8] sm:$0xff]
    %v458 = vld [vmem:[%s455 + $0x10] sm:$0xff]
    %v459 = vld [vmem:[%s455 + $0x18] sm:$0xff]
    %460 = vmatpush.msra.mxu0 %v225
    %461 = vmatpush.msra.mxu0 %v224
    %462 = vmatpush.msra.mxu0 %v223
    %463 = vmatpush.msra.mxu0 %v222
    %464 = vmatpush.msra.mxu0 %v221
    %465 = vmatpush.msra.mxu0 %v220
    %466 = vmatpush.msra.mxu0 %v219
    %467 = vmatpush.msra.mxu0 %v218
    %468 = vmatpush.msra.mxu0 %v217
    %469 = vmatpush.msra.mxu0 %v216
    %470 = vmatpush.msra.mxu0 %v215
    %471 = vmatpush.msra.mxu0 %v214
    %472 = vmatpush.msra.mxu0 %v213
    %473 = vmatpush.msra.mxu0 %v212
    %474 = vmatpush.msra.mxu0 %v211
    %475 = vmatpush.msra.mxu0 %v210
    %476 = vmatmul.f32.gmra.mxu0 %v456
    %v477 = vpop.f32.mrf.mxu0
    %v478 = vadd.f32 0.0, %v477
    %479 = vmatmul.f32.gmra.mxu0 %v457
    %v480 = vpop.f32.mrf.mxu0
    %v481 = vadd.f32 0.0, %v480
    %482 = vmatmul.f32.gmra.mxu0 %v458
    %v483 = vpop.f32.mrf.mxu0
    %v484 = vadd.f32 0.0, %v483
    %485 = vmatmul.f32.gmra.mxu0 %v459
    %v486 = vpop.f32.mrf.mxu0
    %v487 = vadd.f32 0.0, %v486
    %488 = vdwg.mxu0
    %s489 = scalar_lea.vmem %s8, 5
    %v490 = vld [vmem:[%s489] sm:$0x1]
    %v492 = vperm.slane %v490, 0
    %v494 = vmul.f32 %v478, %v492
    %v495 = vmul.f32 %v481, %v492
    %v496 = vmul.f32 %v484, %v492
    %v497 = vmul.f32 %v487, %v492
    %v498 = vadd.f32 %v451, %v494
    %v499 = vadd.f32 %v452, %v495
    %v500 = vadd.f32 %v453, %v496
    %v501 = vadd.f32 %v454, %v497
    %s502 = scalar_lea.vmem %s1, 192
    %v503 = vld [vmem:[%s502] sm:$0xff]
    %v504 = vld [vmem:[%s502 + $0x8] sm:$0xff]
    %v505 = vld [vmem:[%s502 + $0x10] sm:$0xff]
    %v506 = vld [vmem:[%s502 + $0x18] sm:$0xff]
    %507 = vmatpush.msra.mxu0 %v225
    %508 = vmatpush.msra.mxu0 %v224
    %509 = vmatpush.msra.mxu0 %v223
    %510 = vmatpush.msra.mxu0 %v222
    %511 = vmatpush.msra.mxu0 %v221
    %512 = vmatpush.msra.mxu0 %v220
    %513 = vmatpush.msra.mxu0 %v219
    %514 = vmatpush.msra.mxu0 %v218
    %515 = vmatpush.msra.mxu0 %v217
    %516 = vmatpush.msra.mxu0 %v216
    %517 = vmatpush.msra.mxu0 %v215
    %518 = vmatpush.msra.mxu0 %v214
    %519 = vmatpush.msra.mxu0 %v213
    %520 = vmatpush.msra.mxu0 %v212
    %521 = vmatpush.msra.mxu0 %v211
    %522 = vmatpush.msra.mxu0 %v210
    %523 = vmatmul.f32.gmra.mxu0 %v503
    %v524 = vpop.f32.mrf.mxu0
    %v525 = vadd.f32 0.0, %v524
    %526 = vmatmul.f32.gmra.mxu0 %v504
    %v527 = vpop.f32.mrf.mxu0
    %v528 = vadd.f32 0.0, %v527
    %529 = vmatmul.f32.gmra.mxu0 %v505
    %v530 = vpop.f32.mrf.mxu0
    %v531 = vadd.f32 0.0, %v530
    %532 = vmatmul.f32.gmra.mxu0 %v506
    %v533 = vpop.f32.mrf.mxu0
    %v534 = vadd.f32 0.0, %v533
    %535 = vdwg.mxu0
    %s536 = scalar_lea.vmem %s8, 6
    %v537 = vld [vmem:[%s536] sm:$0x1]
    %v539 = vperm.slane %v537, 0
    %v541 = vmul.f32 %v525, %v539
    %v542 = vmul.f32 %v528, %v539
    %v543 = vmul.f32 %v531, %v539
    %v544 = vmul.f32 %v534, %v539
    %v545 = vadd.f32 %v498, %v541
    %v546 = vadd.f32 %v499, %v542
    %v547 = vadd.f32 %v500, %v543
    %v548 = vadd.f32 %v501, %v544
    %s549 = scalar_lea.vmem %s1, 224
    %v550 = vld [vmem:[%s549] sm:$0xff]
    %v551 = vld [vmem:[%s549 + $0x8] sm:$0xff]
    %v552 = vld [vmem:[%s549 + $0x10] sm:$0xff]
    %v553 = vld [vmem:[%s549 + $0x18] sm:$0xff]
    %554 = vmatpush.msra.mxu0 %v225
    %555 = vmatpush.msra.mxu0 %v224
    %556 = vmatpush.msra.mxu0 %v223
    %557 = vmatpush.msra.mxu0 %v222
    %558 = vmatpush.msra.mxu0 %v221
    %559 = vmatpush.msra.mxu0 %v220
    %560 = vmatpush.msra.mxu0 %v219
    %561 = vmatpush.msra.mxu0 %v218
    %562 = vmatpush.msra.mxu0 %v217
    %563 = vmatpush.msra.mxu0 %v216
    %564 = vmatpush.msra.mxu0 %v215
    %565 = vmatpush.msra.mxu0 %v214
    %566 = vmatpush.msra.mxu0 %v213
    %567 = vmatpush.msra.mxu0 %v212
    %568 = vmatpush.msra.mxu0 %v211
    %569 = vmatpush.msra.mxu0 %v210
    %570 = vmatmul.f32.gmra.mxu0 %v550
    %v571 = vpop.f32.mrf.mxu0
    %v572 = vadd.f32 0.0, %v571
    %573 = vmatmul.f32.gmra.mxu0 %v551
    %v574 = vpop.f32.mrf.mxu0
    %v575 = vadd.f32 0.0, %v574
    %576 = vmatmul.f32.gmra.mxu0 %v552
    %v577 = vpop.f32.mrf.mxu0
    %v578 = vadd.f32 0.0, %v577
    %579 = vmatmul.f32.gmra.mxu0 %v553
    %v580 = vpop.f32.mrf.mxu0
    %v581 = vadd.f32 0.0, %v580
    %582 = vdwg.mxu0
    %s583 = scalar_lea.vmem %s8, 7
    %v584 = vld [vmem:[%s583] sm:$0x1]
    %v586 = vperm.slane %v584, 0
    %v588 = vmul.f32 %v572, %v586
    %v589 = vmul.f32 %v575, %v586
    %v590 = vmul.f32 %v578, %v586
    %v591 = vmul.f32 %v581, %v586
    %v592 = vadd.f32 %v545, %v588
    %v593 = vadd.f32 %v546, %v589
    %v594 = vadd.f32 %v547, %v590
    %v595 = vadd.f32 %v548, %v591
    %s596 = scalar_lea.vmem %s1, 256
    %v597 = vld [vmem:[%s596] sm:$0xff]
    %v598 = vld [vmem:[%s596 + $0x8] sm:$0xff]
    %v599 = vld [vmem:[%s596 + $0x10] sm:$0xff]
    %v600 = vld [vmem:[%s596 + $0x18] sm:$0xff]
    %601 = vmatpush.msra.mxu0 %v225
    %602 = vmatpush.msra.mxu0 %v224
    %603 = vmatpush.msra.mxu0 %v223
    %604 = vmatpush.msra.mxu0 %v222
    %605 = vmatpush.msra.mxu0 %v221
    %606 = vmatpush.msra.mxu0 %v220
    %607 = vmatpush.msra.mxu0 %v219
    %608 = vmatpush.msra.mxu0 %v218
    %609 = vmatpush.msra.mxu0 %v217
    %610 = vmatpush.msra.mxu0 %v216
    %611 = vmatpush.msra.mxu0 %v215
    %612 = vmatpush.msra.mxu0 %v214
    %613 = vmatpush.msra.mxu0 %v213
    %614 = vmatpush.msra.mxu0 %v212
    %615 = vmatpush.msra.mxu0 %v211
    %616 = vmatpush.msra.mxu0 %v210
    %617 = vmatmul.f32.gmra.mxu0 %v597
    %v618 = vpop.f32.mrf.mxu0
    %v619 = vadd.f32 0.0, %v618
    %620 = vmatmul.f32.gmra.mxu0 %v598
    %v621 = vpop.f32.mrf.mxu0
    %v622 = vadd.f32 0.0, %v621
    %623 = vmatmul.f32.gmra.mxu0 %v599
    %v624 = vpop.f32.mrf.mxu0
    %v625 = vadd.f32 0.0, %v624
    %626 = vmatmul.f32.gmra.mxu0 %v600
    %v627 = vpop.f32.mrf.mxu0
    %v628 = vadd.f32 0.0, %v627
    %629 = vdwg.mxu0
    %s630 = scalar_lea.vmem %s8, 8
    %v631 = vld [vmem:[%s630] sm:$0x1]
    %v633 = vperm.slane %v631, 0
    %v635 = vmul.f32 %v619, %v633
    %v636 = vmul.f32 %v622, %v633
    %v637 = vmul.f32 %v625, %v633
    %v638 = vmul.f32 %v628, %v633
    %v639 = vadd.f32 %v592, %v635
    %v640 = vadd.f32 %v593, %v636
    %v641 = vadd.f32 %v594, %v637
    %v642 = vadd.f32 %v595, %v638
    %v643 = vld [vmem:[#allocation2] sm:$0x1]
    %v645 = vperm.slane %v643, 0
    %v647 = vadd.f32 %v639, %v645
    %v648 = vadd.f32 %v640, %v645
    %v649 = vadd.f32 %v641, %v645
    %v650 = vadd.f32 %v642, %v645
    %v651 = vpack.c.bf16 %v648, %v647
    %v652 = vpack.c.bf16 %v650, %v649
    %v653 = vld [vmem:[%s10] sm:$0xf]
    %v654 = vld [vmem:[%s10 + $0x4] sm:$0xf]
    %v655 = vld [vmem:[%s10 + $0x8] sm:$0xf]
    %v656 = vld [vmem:[%s10 + $0xc] sm:$0xf]
    %v657 = vld [vmem:[%s10 + $0x10] sm:$0xf]
    %v658 = vld [vmem:[%s10 + $0x14] sm:$0xf]
    %v659 = vld [vmem:[%s10 + $0x18] sm:$0xf]
    %v660 = vld [vmem:[%s10 + $0x1c] sm:$0xf]
    %v661 = vld [vmem:[%s10 + $0x20] sm:$0xf]
    %v662 = vld [vmem:[%s10 + $0x24] sm:$0xf]
    %v663 = vld [vmem:[%s10 + $0x28] sm:$0xf]
    %v664 = vld [vmem:[%s10 + $0x2c] sm:$0xf]
    %v665 = vld [vmem:[%s10 + $0x30] sm:$0xf]
    %v666 = vld [vmem:[%s10 + $0x34] sm:$0xf]
    %v667 = vld [vmem:[%s10 + $0x38] sm:$0xf]
    %v668 = vld [vmem:[%s10 + $0x3c] sm:$0xf]
    %v669 = vld [vmem:[#allocation4] sm:$0x1]
    %v671 = vperm.slane %v669, 0
    %v689 = vunpack.c.l.b16 %v653
    %v690 = vunpack.c.l.b16 %v654
    %v691 = vunpack.c.l.b16 %v655
    %v692 = vunpack.c.l.b16 %v656
    %v693 = vunpack.c.l.b16 %v657
    %v694 = vunpack.c.l.b16 %v658
    %v695 = vunpack.c.l.b16 %v659
    %v696 = vunpack.c.l.b16 %v660
    %v697 = vunpack.c.l.b16 %v661
    %v698 = vunpack.c.l.b16 %v662
    %v699 = vunpack.c.l.b16 %v663
    %v700 = vunpack.c.l.b16 %v664
    %v701 = vunpack.c.l.b16 %v665
    %v702 = vunpack.c.l.b16 %v666
    %v703 = vunpack.c.l.b16 %v667
    %v704 = vunpack.c.l.b16 %v668
    %v705 = vpack.c.b16 %v690, %v689
    %v706 = vpack.c.b16 %v692, %v691
    %v707 = vpack.c.b16 %v694, %v693
    %v708 = vpack.c.b16 %v696, %v695
    %v709 = vpack.c.b16 %v698, %v697
    %v710 = vpack.c.b16 %v700, %v699
    %v711 = vpack.c.b16 %v702, %v701
    %v712 = vpack.c.b16 %v704, %v703
    %721 = vmatpush.bf16.msra.mxu0 %v712
    %722 = vmatpush.bf16.msra.mxu0 %v711
    %723 = vmatpush.bf16.msra.mxu0 %v710
    %724 = vmatpush.bf16.msra.mxu0 %v709
    %725 = vmatpush.bf16.msra.mxu0 %v708
    %726 = vmatpush.bf16.msra.mxu0 %v707
    %727 = vmatpush.bf16.msra.mxu0 %v706
    %728 = vmatpush.bf16.msra.mxu0 %v705
    %729 = vmatmul.bf16.gmra.mxu0 %v651
    %v730 = vpop.f32.mrf.mxu0
    %v731 = vadd.f32 %v671, %v730
    %v732 = vpop.f32.mrf.mxu0
    %v733 = vadd.f32 %v671, %v732
    %734 = vmatmul.bf16.gmra.mxu0 %v652
    %v735 = vpop.f32.mrf.mxu0
    %v736 = vadd.f32 %v671, %v735
    %v737 = vpop.f32.mrf.mxu0
    %v738 = vadd.f32 %v671, %v737
    %739 = vdwg.mxu0
    %v740 = vmax.f32 %v731, 0.0
    %v741 = vmax.f32 %v733, 0.0
    %v742 = vmax.f32 %v736, 0.0
    %v743 = vmax.f32 %v738, 0.0
    %744 = vmatpush.msra.mxu0 %v84
    %745 = vmatpush.msra.mxu0 %v83
    %746 = vmatpush.msra.mxu0 %v82
    %747 = vmatpush.msra.mxu0 %v81
    %748 = vmatpush.msra.mxu0 %v80
    %749 = vmatpush.msra.mxu0 %v79
    %750 = vmatpush.msra.mxu0 %v78
    %751 = vmatpush.msra.mxu0 %v77
    %752 = vmatpush.msra.mxu0 %v76
    %753 = vmatpush.msra.mxu0 %v75
    %754 = vmatpush.msra.mxu0 %v74
    %755 = vmatpush.msra.mxu0 %v73
    %756 = vmatpush.msra.mxu0 %v72
    %757 = vmatpush.msra.mxu0 %v71
    %758 = vmatpush.msra.mxu0 %v70
    %759 = vmatpush.msra.mxu0 %v69
    %760 = vmatmul.f32.gmra.mxu0 %v226
    %v761 = vpop.f32.mrf.mxu0
    %v762 = vadd.f32 0.0, %v761
    %763 = vmatmul.f32.gmra.mxu0 %v227
    %v764 = vpop.f32.mrf.mxu0
    %v765 = vadd.f32 0.0, %v764
    %766 = vmatmul.f32.gmra.mxu0 %v228
    %v767 = vpop.f32.mrf.mxu0
    %v768 = vadd.f32 0.0, %v767
    %769 = vmatmul.f32.gmra.mxu0 %v229
    %v770 = vpop.f32.mrf.mxu0
    %v771 = vadd.f32 0.0, %v770
    %772 = vdwg.mxu0
    %v773 = vld [vmem:[%s2] sm:$0x1]
    %v775 = vperm.slane %v773, 0
    %v777 = vmul.f32 %v762, %v775
    %v778 = vmul.f32 %v765, %v775
    %v779 = vmul.f32 %v768, %v775
    %v780 = vmul.f32 %v771, %v775
    %781 = vmatpush.msra.mxu0 %v84
    %782 = vmatpush.msra.mxu0 %v83
    %783 = vmatpush.msra.mxu0 %v82
    %784 = vmatpush.msra.mxu0 %v81
    %785 = vmatpush.msra.mxu0 %v80
    %786 = vmatpush.msra.mxu0 %v79
    %787 = vmatpush.msra.mxu0 %v78
    %788 = vmatpush.msra.mxu0 %v77
    %789 = vmatpush.msra.mxu0 %v76
    %790 = vmatpush.msra.mxu0 %v75
    %791 = vmatpush.msra.mxu0 %v74
    %792 = vmatpush.msra.mxu0 %v73
    %793 = vmatpush.msra.mxu0 %v72
    %794 = vmatpush.msra.mxu0 %v71
    %795 = vmatpush.msra.mxu0 %v70
    %796 = vmatpush.msra.mxu0 %v69
    %797 = vmatmul.f32.gmra.mxu0 %v268
    %v798 = vpop.f32.mrf.mxu0
    %v799 = vadd.f32 0.0, %v798
    %800 = vmatmul.f32.gmra.mxu0 %v269
    %v801 = vpop.f32.mrf.mxu0
    %v802 = vadd.f32 0.0, %v801
    %803 = vmatmul.f32.gmra.mxu0 %v270
    %v804 = vpop.f32.mrf.mxu0
    %v805 = vadd.f32 0.0, %v804
    %806 = vmatmul.f32.gmra.mxu0 %v271
    %v807 = vpop.f32.mrf.mxu0
    %v808 = vadd.f32 0.0, %v807
    %809 = vdwg.mxu0
    %s810 = scalar_lea.vmem %s2, 1
    %v811 = vld [vmem:[%s810] sm:$0x1]
    %v813 = vperm.slane %v811, 0
    %v815 = vmul.f32 %v799, %v813
    %v816 = vmul.f32 %v802, %v813
    %v817 = vmul.f32 %v805, %v813
    %v818 = vmul.f32 %v808, %v813
    %v819 = vadd.f32 %v777, %v815
    %v820 = vadd.f32 %v778, %v816
    %v821 = vadd.f32 %v779, %v817
    %v822 = vadd.f32 %v780, %v818
    %823 = vmatpush.msra.mxu0 %v84
    %824 = vmatpush.msra.mxu0 %v83
    %825 = vmatpush.msra.mxu0 %v82
    %826 = vmatpush.msra.mxu0 %v81
    %827 = vmatpush.msra.mxu0 %v80
    %828 = vmatpush.msra.mxu0 %v79
    %829 = vmatpush.msra.mxu0 %v78
    %830 = vmatpush.msra.mxu0 %v77
    %831 = vmatpush.msra.mxu0 %v76
    %832 = vmatpush.msra.mxu0 %v75
    %833 = vmatpush.msra.mxu0 %v74
    %834 = vmatpush.msra.mxu0 %v73
    %835 = vmatpush.msra.mxu0 %v72
    %836 = vmatpush.msra.mxu0 %v71
    %837 = vmatpush.msra.mxu0 %v70
    %838 = vmatpush.msra.mxu0 %v69
    %839 = vmatmul.f32.gmra.mxu0 %v315
    %v840 = vpop.f32.mrf.mxu0
    %v841 = vadd.f32 0.0, %v840
    %842 = vmatmul.f32.gmra.mxu0 %v316
    %v843 = vpop.f32.mrf.mxu0
    %v844 = vadd.f32 0.0, %v843
    %845 = vmatmul.f32.gmra.mxu0 %v317
    %v846 = vpop.f32.mrf.mxu0
    %v847 = vadd.f32 0.0, %v846
    %848 = vmatmul.f32.gmra.mxu0 %v318
    %v849 = vpop.f32.mrf.mxu0
    %v850 = vadd.f32 0.0, %v849
    %851 = vdwg.mxu0
    %s852 = scalar_lea.vmem %s2, 2
    %v853 = vld [vmem:[%s852] sm:$0x1]
    %v855 = vperm.slane %v853, 0
    %v857 = vmul.f32 %v841, %v855
    %v858 = vmul.f32 %v844, %v855
    %v859 = vmul.f32 %v847, %v855
    %v860 = vmul.f32 %v850, %v855
    %v861 = vadd.f32 %v819, %v857
    %v862 = vadd.f32 %v820, %v858
    %v863 = vadd.f32 %v821, %v859
    %v864 = vadd.f32 %v822, %v860
    %865 = vmatpush.msra.mxu0 %v84
    %866 = vmatpush.msra.mxu0 %v83
    %867 = vmatpush.msra.mxu0 %v82
    %868 = vmatpush.msra.mxu0 %v81
    %869 = vmatpush.msra.mxu0 %v80
    %870 = vmatpush.msra.mxu0 %v79
    %871 = vmatpush.msra.mxu0 %v78
    %872 = vmatpush.msra.mxu0 %v77
    %873 = vmatpush.msra.mxu0 %v76
    %874 = vmatpush.msra.mxu0 %v75
    %875 = vmatpush.msra.mxu0 %v74
    %876 = vmatpush.msra.mxu0 %v73
    %877 = vmatpush.msra.mxu0 %v72
    %878 = vmatpush.msra.mxu0 %v71
    %879 = vmatpush.msra.mxu0 %v70
    %880 = vmatpush.msra.mxu0 %v69
    %881 = vmatmul.f32.gmra.mxu0 %v362
    %v882 = vpop.f32.mrf.mxu0
    %v883 = vadd.f32 0.0, %v882
    %884 = vmatmul.f32.gmra.mxu0 %v363
    %v885 = vpop.f32.mrf.mxu0
    %v886 = vadd.f32 0.0, %v885
    %887 = vmatmul.f32.gmra.mxu0 %v364
    %v888 = vpop.f32.mrf.mxu0
    %v889 = vadd.f32 0.0, %v888
    %890 = vmatmul.f32.gmra.mxu0 %v365
    %v891 = vpop.f32.mrf.mxu0
    %v892 = vadd.f32 0.0, %v891
    %893 = vdwg.mxu0
    %s894 = scalar_lea.vmem %s2, 3
    %v895 = vld [vmem:[%s894] sm:$0x1]
    %v897 = vperm.slane %v895, 0
    %v899 = vmul.f32 %v883, %v897
    %v900 = vmul.f32 %v886, %v897
    %v901 = vmul.f32 %v889, %v897
    %v902 = vmul.f32 %v892, %v897
    %v903 = vadd.f32 %v861, %v899
    %v904 = vadd.f32 %v862, %v900
    %v905 = vadd.f32 %v863, %v901
    %v906 = vadd.f32 %v864, %v902
    %907 = vmatpush.msra.mxu0 %v84
    %908 = vmatpush.msra.mxu0 %v83
    %909 = vmatpush.msra.mxu0 %v82
    %910 = vmatpush.msra.mxu0 %v81
    %911 = vmatpush.msra.mxu0 %v80
    %912 = vmatpush.msra.mxu0 %v79
    %913 = vmatpush.msra.mxu0 %v78
    %914 = vmatpush.msra.mxu0 %v77
    %915 = vmatpush.msra.mxu0 %v76
    %916 = vmatpush.msra.mxu0 %v75
    %917 = vmatpush.msra.mxu0 %v74
    %918 = vmatpush.msra.mxu0 %v73
    %919 = vmatpush.msra.mxu0 %v72
    %920 = vmatpush.msra.mxu0 %v71
    %921 = vmatpush.msra.mxu0 %v70
    %922 = vmatpush.msra.mxu0 %v69
    %923 = vmatmul.f32.gmra.mxu0 %v409
    %v924 = vpop.f32.mrf.mxu0
    %v925 = vadd.f32 0.0, %v924
    %926 = vmatmul.f32.gmra.mxu0 %v410
    %v927 = vpop.f32.mrf.mxu0
    %v928 = vadd.f32 0.0, %v927
    %929 = vmatmul.f32.gmra.mxu0 %v411
    %v930 = vpop.f32.mrf.mxu0
    %v931 = vadd.f32 0.0, %v930
    %932 = vmatmul.f32.gmra.mxu0 %v412
    %v933 = vpop.f32.mrf.mxu0
    %v934 = vadd.f32 0.0, %v933
    %935 = vdwg.mxu0
    %s936 = scalar_lea.vmem %s2, 4
    %v937 = vld [vmem:[%s936] sm:$0x1]
    %v939 = vperm.slane %v937, 0
    %v941 = vmul.f32 %v925, %v939
    %v942 = vmul.f32 %v928, %v939
    %v943 = vmul.f32 %v931, %v939
    %v944 = vmul.f32 %v934, %v939
    %v945 = vadd.f32 %v903, %v941
    %v946 = vadd.f32 %v904, %v942
    %v947 = vadd.f32 %v905, %v943
    %v948 = vadd.f32 %v906, %v944
    %949 = vmatpush.msra.mxu0 %v84
    %950 = vmatpush.msra.mxu0 %v83
    %951 = vmatpush.msra.mxu0 %v82
    %952 = vmatpush.msra.mxu0 %v81
    %953 = vmatpush.msra.mxu0 %v80
    %954 = vmatpush.msra.mxu0 %v79
    %955 = vmatpush.msra.mxu0 %v78
    %956 = vmatpush.msra.mxu0 %v77
    %957 = vmatpush.msra.mxu0 %v76
    %958 = vmatpush.msra.mxu0 %v75
    %959 = vmatpush.msra.mxu0 %v74
    %960 = vmatpush.msra.mxu0 %v73
    %961 = vmatpush.msra.mxu0 %v72
    %962 = vmatpush.msra.mxu0 %v71
    %963 = vmatpush.msra.mxu0 %v70
    %964 = vmatpush.msra.mxu0 %v69
    %965 = vmatmul.f32.gmra.mxu0 %v456
    %v966 = vpop.f32.mrf.mxu0
    %v967 = vadd.f32 0.0, %v966
    %968 = vmatmul.f32.gmra.mxu0 %v457
    %v969 = vpop.f32.mrf.mxu0
    %v970 = vadd.f32 0.0, %v969
    %971 = vmatmul.f32.gmra.mxu0 %v458
    %v972 = vpop.f32.mrf.mxu0
    %v973 = vadd.f32 0.0, %v972
    %974 = vmatmul.f32.gmra.mxu0 %v459
    %v975 = vpop.f32.mrf.mxu0
    %v976 = vadd.f32 0.0, %v975
    %977 = vdwg.mxu0
    %s978 = scalar_lea.vmem %s2, 5
    %v979 = vld [vmem:[%s978] sm:$0x1]
    %v981 = vperm.slane %v979, 0
    %v983 = vmul.f32 %v967, %v981
    %v984 = vmul.f32 %v970, %v981
    %v985 = vmul.f32 %v973, %v981
    %v986 = vmul.f32 %v976, %v981
    %v987 = vadd.f32 %v945, %v983
    %v988 = vadd.f32 %v946, %v984
    %v989 = vadd.f32 %v947, %v985
    %v990 = vadd.f32 %v948, %v986
    %991 = vmatpush.msra.mxu0 %v84
    %992 = vmatpush.msra.mxu0 %v83
    %993 = vmatpush.msra.mxu0 %v82
    %994 = vmatpush.msra.mxu0 %v81
    %995 = vmatpush.msra.mxu0 %v80
    %996 = vmatpush.msra.mxu0 %v79
    %997 = vmatpush.msra.mxu0 %v78
    %998 = vmatpush.msra.mxu0 %v77
    %999 = vmatpush.msra.mxu0 %v76
    %1000 = vmatpush.msra.mxu0 %v75
    %1001 = vmatpush.msra.mxu0 %v74
    %1002 = vmatpush.msra.mxu0 %v73
    %1003 = vmatpush.msra.mxu0 %v72
    %1004 = vmatpush.msra.mxu0 %v71
    %1005 = vmatpush.msra.mxu0 %v70
    %1006 = vmatpush.msra.mxu0 %v69
    %1007 = vmatmul.f32.gmra.mxu0 %v503
    %v1008 = vpop.f32.mrf.mxu0
    %v1009 = vadd.f32 0.0, %v1008
    %1010 = vmatmul.f32.gmra.mxu0 %v504
    %v1011 = vpop.f32.mrf.mxu0
    %v1012 = vadd.f32 0.0, %v1011
    %1013 = vmatmul.f32.gmra.mxu0 %v505
    %v1014 = vpop.f32.mrf.mxu0
    %v1015 = vadd.f32 0.0, %v1014
    %1016 = vmatmul.f32.gmra.mxu0 %v506
    %v1017 = vpop.f32.mrf.mxu0
    %v1018 = vadd.f32 0.0, %v1017
    %1019 = vdwg.mxu0
    %s1020 = scalar_lea.vmem %s2, 6
    %v1021 = vld [vmem:[%s1020] sm:$0x1]
    %v1023 = vperm.slane %v1021, 0
    %v1025 = vmul.f32 %v1009, %v1023
    %v1026 = vmul.f32 %v1012, %v1023
    %v1027 = vmul.f32 %v1015, %v1023
    %v1028 = vmul.f32 %v1018, %v1023
    %v1029 = vadd.f32 %v987, %v1025
    %v1030 = vadd.f32 %v988, %v1026
    %v1031 = vadd.f32 %v989, %v1027
    %v1032 = vadd.f32 %v990, %v1028
    %1033 = vmatpush.msra.mxu0 %v84
    %1034 = vmatpush.msra.mxu0 %v83
    %1035 = vmatpush.msra.mxu0 %v82
    %1036 = vmatpush.msra.mxu0 %v81
    %1037 = vmatpush.msra.mxu0 %v80
    %1038 = vmatpush.msra.mxu0 %v79
    %1039 = vmatpush.msra.mxu0 %v78
    %1040 = vmatpush.msra.mxu0 %v77
    %1041 = vmatpush.msra.mxu0 %v76
    %1042 = vmatpush.msra.mxu0 %v75
    %1043 = vmatpush.msra.mxu0 %v74
    %1044 = vmatpush.msra.mxu0 %v73
    %1045 = vmatpush.msra.mxu0 %v72
    %1046 = vmatpush.msra.mxu0 %v71
    %1047 = vmatpush.msra.mxu0 %v70
    %1048 = vmatpush.msra.mxu0 %v69
    %1049 = vmatmul.f32.gmra.mxu0 %v550
    %v1050 = vpop.f32.mrf.mxu0
    %v1051 = vadd.f32 0.0, %v1050
    %1052 = vmatmul.f32.gmra.mxu0 %v551
    %v1053 = vpop.f32.mrf.mxu0
    %v1054 = vadd.f32 0.0, %v1053
    %1055 = vmatmul.f32.gmra.mxu0 %v552
    %v1056 = vpop.f32.mrf.mxu0
    %v1057 = vadd.f32 0.0, %v1056
    %1058 = vmatmul.f32.gmra.mxu0 %v553
    %v1059 = vpop.f32.mrf.mxu0
    %v1060 = vadd.f32 0.0, %v1059
    %1061 = vdwg.mxu0
    %s1062 = scalar_lea.vmem %s2, 7
    %v1063 = vld [vmem:[%s1062] sm:$0x1]
    %v1065 = vperm.slane %v1063, 0
    %v1067 = vmul.f32 %v1051, %v1065
    %v1068 = vmul.f32 %v1054, %v1065
    %v1069 = vmul.f32 %v1057, %v1065
    %v1070 = vmul.f32 %v1060, %v1065
    %v1071 = vadd.f32 %v1029, %v1067
    %v1072 = vadd.f32 %v1030, %v1068
    %v1073 = vadd.f32 %v1031, %v1069
    %v1074 = vadd.f32 %v1032, %v1070
    %1075 = vmatpush.msra.mxu0 %v84
    %1076 = vmatpush.msra.mxu0 %v83
    %1077 = vmatpush.msra.mxu0 %v82
    %1078 = vmatpush.msra.mxu0 %v81
    %1079 = vmatpush.msra.mxu0 %v80
    %1080 = vmatpush.msra.mxu0 %v79
    %1081 = vmatpush.msra.mxu0 %v78
    %1082 = vmatpush.msra.mxu0 %v77
    %1083 = vmatpush.msra.mxu0 %v76
    %1084 = vmatpush.msra.mxu0 %v75
    %1085 = vmatpush.msra.mxu0 %v74
    %1086 = vmatpush.msra.mxu0 %v73
    %1087 = vmatpush.msra.mxu0 %v72
    %1088 = vmatpush.msra.mxu0 %v71
    %1089 = vmatpush.msra.mxu0 %v70
    %1090 = vmatpush.msra.mxu0 %v69
    %1091 = vmatmul.f32.gmra.mxu0 %v597
    %v1092 = vpop.f32.mrf.mxu0
    %v1093 = vadd.f32 0.0, %v1092
    %1094 = vmatmul.f32.gmra.mxu0 %v598
    %v1095 = vpop.f32.mrf.mxu0
    %v1096 = vadd.f32 0.0, %v1095
    %1097 = vmatmul.f32.gmra.mxu0 %v599
    %v1098 = vpop.f32.mrf.mxu0
    %v1099 = vadd.f32 0.0, %v1098
    %1100 = vmatmul.f32.gmra.mxu0 %v600
    %v1101 = vpop.f32.mrf.mxu0
    %v1102 = vadd.f32 0.0, %v1101
    %1103 = vdwg.mxu0
    %s1104 = scalar_lea.vmem %s2, 8
    %v1105 = vld [vmem:[%s1104] sm:$0x1]
    %v1107 = vperm.slane %v1105, 0
    %v1109 = vmul.f32 %v1093, %v1107
    %v1110 = vmul.f32 %v1096, %v1107
    %v1111 = vmul.f32 %v1099, %v1107
    %v1112 = vmul.f32 %v1102, %v1107
    %v1113 = vadd.f32 %v1071, %v1109
    %v1114 = vadd.f32 %v1072, %v1110
    %v1115 = vadd.f32 %v1073, %v1111
    %v1116 = vadd.f32 %v1074, %v1112
    %v1117 = vld [vmem:[%s3] sm:$0x1]
    %v1119 = vperm.slane %v1117, 0
    %v1121 = vadd.f32 %v1113, %v1119
    %v1122 = vadd.f32 %v1114, %v1119
    %v1123 = vadd.f32 %v1115, %v1119
    %v1124 = vadd.f32 %v1116, %v1119
    %v1125 = vpack.c.bf16 %v1122, %v1121
    %v1126 = vpack.c.bf16 %v1124, %v1123
    %v1127 = vld [vmem:[%s4] sm:$0xf]
    %v1128 = vld [vmem:[%s4 + $0x4] sm:$0xf]
    %v1129 = vld [vmem:[%s4 + $0x8] sm:$0xf]
    %v1130 = vld [vmem:[%s4 + $0xc] sm:$0xf]
    %v1131 = vld [vmem:[%s4 + $0x10] sm:$0xf]
    %v1132 = vld [vmem:[%s4 + $0x14] sm:$0xf]
    %v1133 = vld [vmem:[%s4 + $0x18] sm:$0xf]
    %v1134 = vld [vmem:[%s4 + $0x1c] sm:$0xf]
    %v1135 = vld [vmem:[%s4 + $0x20] sm:$0xf]
    %v1136 = vld [vmem:[%s4 + $0x24] sm:$0xf]
    %v1137 = vld [vmem:[%s4 + $0x28] sm:$0xf]
    %v1138 = vld [vmem:[%s4 + $0x2c] sm:$0xf]
    %v1139 = vld [vmem:[%s4 + $0x30] sm:$0xf]
    %v1140 = vld [vmem:[%s4 + $0x34] sm:$0xf]
    %v1141 = vld [vmem:[%s4 + $0x38] sm:$0xf]
    %v1142 = vld [vmem:[%s4 + $0x3c] sm:$0xf]
    %v1143 = vld [vmem:[%s5] sm:$0x1]
    %v1145 = vperm.slane %v1143, 0
    %v1163 = vunpack.c.l.b16 %v1127
    %v1164 = vunpack.c.l.b16 %v1128
    %v1165 = vunpack.c.l.b16 %v1129
    %v1166 = vunpack.c.l.b16 %v1130
    %v1167 = vunpack.c.l.b16 %v1131
    %v1168 = vunpack.c.l.b16 %v1132
    %v1169 = vunpack.c.l.b16 %v1133
    %v1170 = vunpack.c.l.b16 %v1134
    %v1171 = vunpack.c.l.b16 %v1135
    %v1172 = vunpack.c.l.b16 %v1136
    %v1173 = vunpack.c.l.b16 %v1137
    %v1174 = vunpack.c.l.b16 %v1138
    %v1175 = vunpack.c.l.b16 %v1139
    %v1176 = vunpack.c.l.b16 %v1140
    %v1177 = vunpack.c.l.b16 %v1141
    %v1178 = vunpack.c.l.b16 %v1142
    %v1179 = vpack.c.b16 %v1164, %v1163
    %v1180 = vpack.c.b16 %v1166, %v1165
    %v1181 = vpack.c.b16 %v1168, %v1167
    %v1182 = vpack.c.b16 %v1170, %v1169
    %v1183 = vpack.c.b16 %v1172, %v1171
    %v1184 = vpack.c.b16 %v1174, %v1173
    %v1185 = vpack.c.b16 %v1176, %v1175
    %v1186 = vpack.c.b16 %v1178, %v1177
    %1195 = vmatpush.bf16.msra.mxu0 %v1186
    %1196 = vmatpush.bf16.msra.mxu0 %v1185
    %1197 = vmatpush.bf16.msra.mxu0 %v1184
    %1198 = vmatpush.bf16.msra.mxu0 %v1183
    %1199 = vmatpush.bf16.msra.mxu0 %v1182
    %1200 = vmatpush.bf16.msra.mxu0 %v1181
    %1201 = vmatpush.bf16.msra.mxu0 %v1180
    %1202 = vmatpush.bf16.msra.mxu0 %v1179
    %1203 = vmatmul.bf16.gmra.mxu0 %v1125
    %v1204 = vpop.f32.mrf.mxu0
    %v1205 = vadd.f32 %v1145, %v1204
    %v1206 = vpop.f32.mrf.mxu0
    %v1207 = vadd.f32 %v1145, %v1206
    %1208 = vmatmul.bf16.gmra.mxu0 %v1126
    %v1209 = vpop.f32.mrf.mxu0
    %v1210 = vadd.f32 %v1145, %v1209
    %v1211 = vpop.f32.mrf.mxu0
    %v1212 = vadd.f32 %v1145, %v1211
    %1213 = vdwg.mxu0
    %v1214 = vmax.f32 %v1205, 0.0
    %v1215 = vmax.f32 %v1207, 0.0
    %v1216 = vmax.f32 %v1210, 0.0
    %v1217 = vmax.f32 %v1212, 0.0
    %v1218 = vadd.f32 %v1214, %v740
    %v1219 = vadd.f32 %v1215, %v741
    %v1220 = vadd.f32 %v1216, %v742
    %v1221 = vadd.f32 %v1217, %v743
    %1222 = vst [vmem:[%s12] sm:$0xff] %v1218
    %1223 = vst [vmem:[%s12 + $0x8] sm:$0xff] %v1219
    %1224 = vst [vmem:[%s12 + $0x10] sm:$0xff] %v1220
    %1225 = vst [vmem:[%s12 + $0x18] sm:$0xff] %v1221
    // Predicated region
    $region58: #{forward.8} parent=1 // pred_check
      _
    $region59: #{forward.8} parent=1 // pred_check_branch
      %1227 = sbr.rel (0) target = $region61
    $region60: #{forward.8} parent=1 // pred_region
      _
    $region61: #{forward.8} parent=1 // pred_fallthru
      _
    // Predicated region
    $region62: #{forward.8} parent=1 // pred_check
      _
    $region63: #{forward.8} parent=1 // pred_check_branch
      %1229 = sbr.rel (0) target = $region65
    $region64: #{forward.8} parent=1 // pred_region
      _
    $region65: #{forward.8} parent=1 // pred_fallthru
      _
    %1230 = vsyncpa [#allocation3], 1
    %1231 = vsyncpa [#allocation5], 1

// kernel: forward.11
$region0: #{forward.11}
  #allocation0 [shape = 'u32[]', space=smem, size = 0x4, offset = 0x4, fixed_abs, tag = 'smem constant byte address 0x4 - core index']
  #allocation1 [shape = 'u32[72,128]{1,0:T(1,128)}', space=vmem, size = 0x9000, scoped, tag = 'internal scratch']
  %s0 = inlined_call_operand.vmem [shape: f32[8,128], index: 0, kind: input, shape index: {}]
  %s1 = inlined_call_operand.vmem [shape: f32[9,8,8], index: 1, kind: input, shape index: {}]
  %s2 = inlined_call_operand.vmem [shape: f32[128,128], index: 2, kind: input, shape index: {}]
  %s3 = inlined_call_operand.vmem [shape: bf16[128,128], index: 3, kind: input, shape index: {}]
  %s4 = inlined_call_operand.hbm [shape: f32[1,128], index: 4, kind: input, shape index: {}]
  %s5 = inlined_call_operand.vmem [shape: f32[9,1,128], index: 5, kind: input, shape index: {}]
  %s6 = inlined_call_operand.hbm [shape: f32[1,128], index: 6, kind: input, shape index: {}]
  %s7 = inlined_call_operand.vmem [shape: bf16[128,128], index: 7, kind: input, shape index: {}]
  %s8 = inlined_call_operand.hbm [shape: f32[1,128], index: 8, kind: input, shape index: {}]
  %s9 = inlined_call_operand.vmem [shape: f32[8,128], index: 9, kind: output, shape index: {}]
  %s10 = sld [smem:[#allocation0]]
  $region58: #{forward.11} parent=0
    _
  %s12 = ssub.s32 1, %s10
  %s13 = scalar_select 0, %s12, %s10
  $region1: #{forward.11} parent=0
    #allocation2 [shape = 'u8[512]{0}', space=vmem, size = 0x400, scoped, tag = 'input window, operand 4, single buffered']
    #allocation3 [shape = 's32[1]{0}', space=sflag, size = 0x4, scoped, tag = 'scoped memory for forward.11']
    #allocation4 [shape = 'u8[512]{0}', space=vmem, size = 0x400, scoped, tag = 'input window, operand 6, single buffered']
    #allocation5 [shape = 's32[1]{0}', space=sflag, size = 0x4, scoped, tag = 'scoped memory for forward.11']
    #allocation6 [shape = 'u8[512]{0}', space=vmem, size = 0x400, scoped, tag = 'input window, operand 8, single buffered']
    %14 = vsyncpa [#allocation3], 0
    %15 = vsyncpa [#allocation5], 0
    // Predicated region
    $region2: #{forward.11} parent=1 // pred_check
      _
    $region3: #{forward.11} parent=1 // pred_check_branch
      %17 = sbr.rel (0) target = $region5
    $region4: #{forward.11} parent=1 // pred_region
      _
    $region5: #{forward.11} parent=1 // pred_fallthru
      _
    // Predicated region
    $region6: #{forward.11} parent=1 // pred_check
      _
    $region7: #{forward.11} parent=1 // pred_check_branch
      %19 = sbr.rel (0) target = $region9
    $region8: #{forward.11} parent=1 // pred_region
      _
    $region9: #{forward.11} parent=1 // pred_fallthru
      _
    // Predicated region
    $region10: #{forward.11} parent=1 // pred_check
      _
    $region11: #{forward.11} parent=1 // pred_check_branch
      %21 = sbr.rel (0) target = $region13
    $region12: #{forward.11} parent=1 // pred_region
      _
    $region13: #{forward.11} parent=1 // pred_fallthru
      _
    // Predicated region
    $region14: #{forward.11} parent=1 // pred_check
      _
    $region15: #{forward.11} parent=1 // pred_check_branch
      %23 = sbr.rel (0) target = $region17
    $region16: #{forward.11} parent=1 // pred_region
      _
    $region17: #{forward.11} parent=1 // pred_fallthru
      _
    // Predicated region
    $region18: #{forward.11} parent=1 // pred_check
      _
    $region19: #{forward.11} parent=1 // pred_check_branch
      %25 = sbr.rel (0) target = $region21
    $region20: #{forward.11} parent=1 // pred_region
      %27 = vsyncadd [#allocation3], 0
      %s29 = sshll.u32 %s4, 4
      %s30 = int_to_ptr.hbm [resolvable:$true] %s29
      %s31 = sshll.u32 [#allocation2], 4
      %s32 = int_to_ptr.vmem [resolvable:$true] %s31
      %34 = dma.hbm_to_vmem [thread:$0]  %s30, 16, %s32, [#allocation3]
    $region21: #{forward.11} parent=1 // pred_fallthru
      _
    // Predicated region
    $region22: #{forward.11} parent=1 // pred_check
      _
    $region23: #{forward.11} parent=1 // pred_check_branch
      %36 = sbr.rel (0) target = $region25
    $region24: #{forward.11} parent=1 // pred_region
      _
    $region25: #{forward.11} parent=1 // pred_fallthru
      _
    // Predicated region
    $region26: #{forward.11} parent=1 // pred_check
      _
    $region27: #{forward.11} parent=1 // pred_check_branch
      %38 = sbr.rel (0) target = $region29
    $region28: #{forward.11} parent=1 // pred_region
      %40 = vsyncadd [#allocation5], 0
      %s42 = sshll.u32 %s6, 4
      %s43 = int_to_ptr.hbm [resolvable:$true] %s42
      %s44 = sshll.u32 [#allocation4], 4
      %s45 = int_to_ptr.vmem [resolvable:$true] %s44
      %47 = dma.hbm_to_vmem [thread:$0]  %s43, 16, %s45, [#allocation5]
    $region29: #{forward.11} parent=1 // pred_fallthru
      _
    // Predicated region
    $region30: #{forward.11} parent=1 // pred_check
      _
    $region31: #{forward.11} parent=1 // pred_check_branch
      %49 = sbr.rel (0) target = $region33
    $region32: #{forward.11} parent=1 // pred_region
      _
    $region33: #{forward.11} parent=1 // pred_fallthru
      _
    // Predicated region
    $region34: #{forward.11} parent=1 // pred_check
      _
    $region35: #{forward.11} parent=1 // pred_check_branch
      %51 = sbr.rel (0) target = $region37
    $region36: #{forward.11} parent=1 // pred_region
      %53 = vsyncadd [#allocation5], 0
      %s55 = sshll.u32 %s8, 4
      %s56 = int_to_ptr.hbm [resolvable:$true] %s55
      %s57 = sshll.u32 [#allocation6], 4
      %s58 = int_to_ptr.vmem [resolvable:$true] %s57
      %60 = dma.hbm_to_vmem [thread:$0]  %s56, 16, %s58, [#allocation5]
    $region37: #{forward.11} parent=1 // pred_fallthru
      _
    // Predicated region
    $region38: #{forward.11} parent=1 // pred_check
      _
    $region39: #{forward.11} parent=1 // pred_check_branch
      %62 = sbr.rel (0) target = $region41
    $region40: #{forward.11} parent=1 // pred_region
      %64 = dma.done [#allocation3], 16
    $region41: #{forward.11} parent=1 // pred_fallthru
      _
    // Predicated region
    $region42: #{forward.11} parent=1 // pred_check
      _
    $region43: #{forward.11} parent=1 // pred_check_branch
      %66 = sbr.rel (0) target = $region45
    $region44: #{forward.11} parent=1 // pred_region
      %68 = dma.done [#allocation5], 16
    $region45: #{forward.11} parent=1 // pred_fallthru
      _
    // Predicated region
    $region46: #{forward.11} parent=1 // pred_check
      _
    $region47: #{forward.11} parent=1 // pred_check_branch
      %70 = sbr.rel (0) target = $region49
    $region48: #{forward.11} parent=1 // pred_region
      %72 = dma.done [#allocation5], 16
    $region49: #{forward.11} parent=1 // pred_fallthru
      _
    %v73 = vld [vmem:[%s0] sm:$0xff]
    %v74 = vpack.c.bf16 %v73, %v73
    %v75 = vld [vmem:[%s3] sm:$0xf]
    %v76 = vld [vmem:[%s3 + $0x4] sm:$0xf]
    %v77 = vld [vmem:[%s3 + $0x8] sm:$0xf]
    %v78 = vld [vmem:[%s3 + $0xc] sm:$0xf]
    %v79 = vld [vmem:[%s3 + $0x10] sm:$0xf]
    %v80 = vld [vmem:[%s3 + $0x14] sm:$0xf]
    %v81 = vld [vmem:[%s3 + $0x18] sm:$0xf]
    %v82 = vld [vmem:[%s3 + $0x1c] sm:$0xf]
    %v83 = vld [vmem:[%s3 + $0x20] sm:$0xf]
    %v84 = vld [vmem:[%s3 + $0x24] sm:$0xf]
    %v85 = vld [vmem:[%s3 + $0x28] sm:$0xf]
    %v86 = vld [vmem:[%s3 + $0x2c] sm:$0xf]
    %v87 = vld [vmem:[%s3 + $0x30] sm:$0xf]
    %v88 = vld [vmem:[%s3 + $0x34] sm:$0xf]
    %v89 = vld [vmem:[%s3 + $0x38] sm:$0xf]
    %v90 = vld [vmem:[%s3 + $0x3c] sm:$0xf]
    %v91 = vld [vmem:[#allocation2] sm:$0x1]
    %v93 = vperm.slane %v91, 0
    %v111 = vunpack.c.l.b16 %v75
    %v112 = vunpack.c.l.b16 %v76
    %v113 = vunpack.c.l.b16 %v77
    %v114 = vunpack.c.l.b16 %v78
    %v115 = vunpack.c.l.b16 %v79
    %v116 = vunpack.c.l.b16 %v80
    %v117 = vunpack.c.l.b16 %v81
    %v118 = vunpack.c.l.b16 %v82
    %v119 = vunpack.c.l.b16 %v83
    %v120 = vunpack.c.l.b16 %v84
    %v121 = vunpack.c.l.b16 %v85
    %v122 = vunpack.c.l.b16 %v86
    %v123 = vunpack.c.l.b16 %v87
    %v124 = vunpack.c.l.b16 %v88
    %v125 = vunpack.c.l.b16 %v89
    %v126 = vunpack.c.l.b16 %v90
    %v127 = vpack.c.b16 %v112, %v111
    %v128 = vpack.c.b16 %v114, %v113
    %v129 = vpack.c.b16 %v116, %v115
    %v130 = vpack.c.b16 %v118, %v117
    %v131 = vpack.c.b16 %v120, %v119
    %v132 = vpack.c.b16 %v122, %v121
    %v133 = vpack.c.b16 %v124, %v123
    %v134 = vpack.c.b16 %v126, %v125
    %143 = vmatpush.bf16.msra.mxu0 %v134
    %144 = vmatpush.bf16.msra.mxu0 %v133
    %145 = vmatpush.bf16.msra.mxu0 %v132
    %146 = vmatpush.bf16.msra.mxu0 %v131
    %147 = vmatpush.bf16.msra.mxu0 %v130
    %148 = vmatpush.bf16.msra.mxu0 %v129
    %149 = vmatpush.bf16.msra.mxu0 %v128
    %150 = vmatpush.bf16.msra.mxu0 %v127
    %151 = vmatmul.bf16.gmra.mxu0 %v74
    %v152 = vpop.f32.mrf.mxu0
    %v153 = vadd.f32 %v93, %v152
    %v154 = vpop.f32.mrf.mxu0
    %155 = vdwg.mxu0
    %v156 = vmax.f32 %v153, 0.0
    %v157 = vld [vmem:[%s1] sm:$0xff]
    %vm158 = vcmask 64512
    %v160 = vsel %vm158, %v157, 0
    %162 = vmatpush.msra.mxu0 0.0
    %163 = vmatpush.msra.mxu0 0.0
    %164 = vmatpush.msra.mxu0 0.0
    %165 = vmatpush.msra.mxu0 0.0
    %166 = vmatpush.msra.mxu0 0.0
    %167 = vmatpush.msra.mxu0 0.0
    %168 = vmatpush.msra.mxu0 0.0
    %169 = vmatpush.msra.mxu0 0.0
    %170 = vmatpush.msra.mxu0 0.0
    %171 = vmatpush.msra.mxu0 0.0
    %172 = vmatpush.msra.mxu0 0.0
    %173 = vmatpush.msra.mxu0 0.0
    %174 = vmatpush.msra.mxu0 0.0
    %175 = vmatpush.msra.mxu0 0.0
    %176 = vmatpush.msra.mxu0 0.0
    %177 = vmatpush.msra.mxu0 %v156
    %178 = vmatmul.f32.gmra.mxu0 %v160
    %v179 = vpop.f32.mrf.mxu0
    %v180 = vadd.f32 0.0, %v179
    %181 = vdwg.mxu0
    %v182 = vld [vmem:[%s5] sm:$0x1]
    %v184 = vperm.slane %v182, 0
    %v186 = vmul.f32 %v180, %v184
    %s187 = scalar_lea.vmem %s1, 8
    %v188 = vld [vmem:[%s187] sm:$0xff]
    %v190 = vsel %vm158, %v188, 0
    %192 = vmatpush.msra.mxu0 0.0
    %193 = vmatpush.msra.mxu0 0.0
    %194 = vmatpush.msra.mxu0 0.0
    %195 = vmatpush.msra.mxu0 0.0
    %196 = vmatpush.msra.mxu0 0.0
    %197 = vmatpush.msra.mxu0 0.0
    %198 = vmatpush.msra.mxu0 0.0
    %199 = vmatpush.msra.mxu0 0.0
    %200 = vmatpush.msra.mxu0 0.0
    %201 = vmatpush.msra.mxu0 0.0
    %202 = vmatpush.msra.mxu0 0.0
    %203 = vmatpush.msra.mxu0 0.0
    %204 = vmatpush.msra.mxu0 0.0
    %205 = vmatpush.msra.mxu0 0.0
    %206 = vmatpush.msra.mxu0 0.0
    %207 = vmatpush.msra.mxu0 %v156
    %208 = vmatmul.f32.gmra.mxu0 %v190
    %v209 = vpop.f32.mrf.mxu0
    %v210 = vadd.f32 0.0, %v209
    %211 = vdwg.mxu0
    %s212 = scalar_lea.vmem %s5, 1
    %v213 = vld [vmem:[%s212] sm:$0x1]
    %v215 = vperm.slane %v213, 0
    %v217 = vmul.f32 %v210, %v215
    %v218 = vadd.f32 %v186, %v217
    %s219 = scalar_lea.vmem %s1, 16
    %v220 = vld [vmem:[%s219] sm:$0xff]
    %v222 = vsel %vm158, %v220, 0
    %224 = vmatpush.msra.mxu0 0.0
    %225 = vmatpush.msra.mxu0 0.0
    %226 = vmatpush.msra.mxu0 0.0
    %227 = vmatpush.msra.mxu0 0.0
    %228 = vmatpush.msra.mxu0 0.0
    %229 = vmatpush.msra.mxu0 0.0
    %230 = vmatpush.msra.mxu0 0.0
    %231 = vmatpush.msra.mxu0 0.0
    %232 = vmatpush.msra.mxu0 0.0
    %233 = vmatpush.msra.mxu0 0.0
    %234 = vmatpush.msra.mxu0 0.0
    %235 = vmatpush.msra.mxu0 0.0
    %236 = vmatpush.msra.mxu0 0.0
    %237 = vmatpush.msra.mxu0 0.0
    %238 = vmatpush.msra.mxu0 0.0
    %239 = vmatpush.msra.mxu0 %v156
    %240 = vmatmul.f32.gmra.mxu0 %v222
    %v241 = vpop.f32.mrf.mxu0
    %v242 = vadd.f32 0.0, %v241
    %243 = vdwg.mxu0
    %s244 = scalar_lea.vmem %s5, 2
    %v245 = vld [vmem:[%s244] sm:$0x1]
    %v247 = vperm.slane %v245, 0
    %v249 = vmul.f32 %v242, %v247
    %v250 = vadd.f32 %v218, %v249
    %s251 = scalar_lea.vmem %s1, 24
    %v252 = vld [vmem:[%s251] sm:$0xff]
    %v254 = vsel %vm158, %v252, 0
    %256 = vmatpush.msra.mxu0 0.0
    %257 = vmatpush.msra.mxu0 0.0
    %258 = vmatpush.msra.mxu0 0.0
    %259 = vmatpush.msra.mxu0 0.0
    %260 = vmatpush.msra.mxu0 0.0
    %261 = vmatpush.msra.mxu0 0.0
    %262 = vmatpush.msra.mxu0 0.0
    %263 = vmatpush.msra.mxu0 0.0
    %264 = vmatpush.msra.mxu0 0.0
    %265 = vmatpush.msra.mxu0 0.0
    %266 = vmatpush.msra.mxu0 0.0
    %267 = vmatpush.msra.mxu0 0.0
    %268 = vmatpush.msra.mxu0 0.0
    %269 = vmatpush.msra.mxu0 0.0
    %270 = vmatpush.msra.mxu0 0.0
    %271 = vmatpush.msra.mxu0 %v156
    %272 = vmatmul.f32.gmra.mxu0 %v254
    %v273 = vpop.f32.mrf.mxu0
    %v274 = vadd.f32 0.0, %v273
    %275 = vdwg.mxu0
    %s276 = scalar_lea.vmem %s5, 3
    %v277 = vld [vmem:[%s276] sm:$0x1]
    %v279 = vperm.slane %v277, 0
    %v281 = vmul.f32 %v274, %v279
    %v282 = vadd.f32 %v250, %v281
    %s283 = scalar_lea.vmem %s1, 32
    %v284 = vld [vmem:[%s283] sm:$0xff]
    %v286 = vsel %vm158, %v284, 0
    %288 = vmatpush.msra.mxu0 0.0
    %289 = vmatpush.msra.mxu0 0.0
    %290 = vmatpush.msra.mxu0 0.0
    %291 = vmatpush.msra.mxu0 0.0
    %292 = vmatpush.msra.mxu0 0.0
    %293 = vmatpush.msra.mxu0 0.0
    %294 = vmatpush.msra.mxu0 0.0
    %295 = vmatpush.msra.mxu0 0.0
    %296 = vmatpush.msra.mxu0 0.0
    %297 = vmatpush.msra.mxu0 0.0
    %298 = vmatpush.msra.mxu0 0.0
    %299 = vmatpush.msra.mxu0 0.0
    %300 = vmatpush.msra.mxu0 0.0
    %301 = vmatpush.msra.mxu0 0.0
    %302 = vmatpush.msra.mxu0 0.0
    %303 = vmatpush.msra.mxu0 %v156
    %304 = vmatmul.f32.gmra.mxu0 %v286
    %v305 = vpop.f32.mrf.mxu0
    %v306 = vadd.f32 0.0, %v305
    %307 = vdwg.mxu0
    %s308 = scalar_lea.vmem %s5, 4
    %v309 = vld [vmem:[%s308] sm:$0x1]
    %v311 = vperm.slane %v309, 0
    %v313 = vmul.f32 %v306, %v311
    %v314 = vadd.f32 %v282, %v313
    %s315 = scalar_lea.vmem %s1, 40
    %v316 = vld [vmem:[%s315] sm:$0xff]
    %v318 = vsel %vm158, %v316, 0
    %320 = vmatpush.msra.mxu0 0.0
    %321 = vmatpush.msra.mxu0 0.0
    %322 = vmatpush.msra.mxu0 0.0
    %323 = vmatpush.msra.mxu0 0.0
    %324 = vmatpush.msra.mxu0 0.0
    %325 = vmatpush.msra.mxu0 0.0
    %326 = vmatpush.msra.mxu0 0.0
    %327 = vmatpush.msra.mxu0 0.0
    %328 = vmatpush.msra.mxu0 0.0
    %329 = vmatpush.msra.mxu0 0.0
    %330 = vmatpush.msra.mxu0 0.0
    %331 = vmatpush.msra.mxu0 0.0
    %332 = vmatpush.msra.mxu0 0.0
    %333 = vmatpush.msra.mxu0 0.0
    %334 = vmatpush.msra.mxu0 0.0
    %335 = vmatpush.msra.mxu0 %v156
    %336 = vmatmul.f32.gmra.mxu0 %v318
    %v337 = vpop.f32.mrf.mxu0
    %v338 = vadd.f32 0.0, %v337
    %339 = vdwg.mxu0
    %s340 = scalar_lea.vmem %s5, 5
    %v341 = vld [vmem:[%s340] sm:$0x1]
    %v343 = vperm.slane %v341, 0
    %v345 = vmul.f32 %v338, %v343
    %v346 = vadd.f32 %v314, %v345
    %s347 = scalar_lea.vmem %s1, 48
    %v348 = vld [vmem:[%s347] sm:$0xff]
    %v350 = vsel %vm158, %v348, 0
    %352 = vmatpush.msra.mxu0 0.0
    %353 = vmatpush.msra.mxu0 0.0
    %354 = vmatpush.msra.mxu0 0.0
    %355 = vmatpush.msra.mxu0 0.0
    %356 = vmatpush.msra.mxu0 0.0
    %357 = vmatpush.msra.mxu0 0.0
    %358 = vmatpush.msra.mxu0 0.0
    %359 = vmatpush.msra.mxu0 0.0
    %360 = vmatpush.msra.mxu0 0.0
    %361 = vmatpush.msra.mxu0 0.0
    %362 = vmatpush.msra.mxu0 0.0
    %363 = vmatpush.msra.mxu0 0.0
    %364 = vmatpush.msra.mxu0 0.0
    %365 = vmatpush.msra.mxu0 0.0
    %366 = vmatpush.msra.mxu0 0.0
    %367 = vmatpush.msra.mxu0 %v156
    %368 = vmatmul.f32.gmra.mxu0 %v350
    %v369 = vpop.f32.mrf.mxu0
    %v370 = vadd.f32 0.0, %v369
    %371 = vdwg.mxu0
    %s372 = scalar_lea.vmem %s5, 6
    %v373 = vld [vmem:[%s372] sm:$0x1]
    %v375 = vperm.slane %v373, 0
    %v377 = vmul.f32 %v370, %v375
    %v378 = vadd.f32 %v346, %v377
    %s379 = scalar_lea.vmem %s1, 56
    %v380 = vld [vmem:[%s379] sm:$0xff]
    %v382 = vsel %vm158, %v380, 0
    %384 = vmatpush.msra.mxu0 0.0
    %385 = vmatpush.msra.mxu0 0.0
    %386 = vmatpush.msra.mxu0 0.0
    %387 = vmatpush.msra.mxu0 0.0
    %388 = vmatpush.msra.mxu0 0.0
    %389 = vmatpush.msra.mxu0 0.0
    %390 = vmatpush.msra.mxu0 0.0
    %391 = vmatpush.msra.mxu0 0.0
    %392 = vmatpush.msra.mxu0 0.0
    %393 = vmatpush.msra.mxu0 0.0
    %394 = vmatpush.msra.mxu0 0.0
    %395 = vmatpush.msra.mxu0 0.0
    %396 = vmatpush.msra.mxu0 0.0
    %397 = vmatpush.msra.mxu0 0.0
    %398 = vmatpush.msra.mxu0 0.0
    %399 = vmatpush.msra.mxu0 %v156
    %400 = vmatmul.f32.gmra.mxu0 %v382
    %v401 = vpop.f32.mrf.mxu0
    %v402 = vadd.f32 0.0, %v401
    %403 = vdwg.mxu0
    %s404 = scalar_lea.vmem %s5, 7
    %v405 = vld [vmem:[%s404] sm:$0x1]
    %v407 = vperm.slane %v405, 0
    %v409 = vmul.f32 %v402, %v407
    %v410 = vadd.f32 %v378, %v409
    %s411 = scalar_lea.vmem %s1, 64
    %v412 = vld [vmem:[%s411] sm:$0xff]
    %v414 = vsel %vm158, %v412, 0
    %416 = vmatpush.msra.mxu0 0.0
    %417 = vmatpush.msra.mxu0 0.0
    %418 = vmatpush.msra.mxu0 0.0
    %419 = vmatpush.msra.mxu0 0.0
    %420 = vmatpush.msra.mxu0 0.0
    %421 = vmatpush.msra.mxu0 0.0
    %422 = vmatpush.msra.mxu0 0.0
    %423 = vmatpush.msra.mxu0 0.0
    %424 = vmatpush.msra.mxu0 0.0
    %425 = vmatpush.msra.mxu0 0.0
    %426 = vmatpush.msra.mxu0 0.0
    %427 = vmatpush.msra.mxu0 0.0
    %428 = vmatpush.msra.mxu0 0.0
    %429 = vmatpush.msra.mxu0 0.0
    %430 = vmatpush.msra.mxu0 0.0
    %431 = vmatpush.msra.mxu0 %v156
    %432 = vmatmul.f32.gmra.mxu0 %v414
    %v433 = vpop.f32.mrf.mxu0
    %v434 = vadd.f32 0.0, %v433
    %435 = vdwg.mxu0
    %s436 = scalar_lea.vmem %s5, 8
    %v437 = vld [vmem:[%s436] sm:$0x1]
    %v439 = vperm.slane %v437, 0
    %v441 = vmul.f32 %v434, %v439
    %v442 = vadd.f32 %v410, %v441
    %v443 = vld [vmem:[#allocation4] sm:$0x1]
    %v445 = vperm.slane %v443, 0
    %v447 = vadd.f32 %v442, %v445
    %v448 = vpack.c.bf16 %v447, %v447
    %v449 = vld [vmem:[%s7] sm:$0xf]
    %v450 = vld [vmem:[%s7 + $0x4] sm:$0xf]
    %v451 = vld [vmem:[%s7 + $0x8] sm:$0xf]
    %v452 = vld [vmem:[%s7 + $0xc] sm:$0xf]
    %v453 = vld [vmem:[%s7 + $0x10] sm:$0xf]
    %v454 = vld [vmem:[%s7 + $0x14] sm:$0xf]
    %v455 = vld [vmem:[%s7 + $0x18] sm:$0xf]
    %v456 = vld [vmem:[%s7 + $0x1c] sm:$0xf]
    %v457 = vld [vmem:[%s7 + $0x20] sm:$0xf]
    %v458 = vld [vmem:[%s7 + $0x24] sm:$0xf]
    %v459 = vld [vmem:[%s7 + $0x28] sm:$0xf]
    %v460 = vld [vmem:[%s7 + $0x2c] sm:$0xf]
    %v461 = vld [vmem:[%s7 + $0x30] sm:$0xf]
    %v462 = vld [vmem:[%s7 + $0x34] sm:$0xf]
    %v463 = vld [vmem:[%s7 + $0x38] sm:$0xf]
    %v464 = vld [vmem:[%s7 + $0x3c] sm:$0xf]
    %v465 = vld [vmem:[#allocation6] sm:$0x1]
    %v467 = vperm.slane %v465, 0
    %v485 = vunpack.c.l.b16 %v449
    %v486 = vunpack.c.l.b16 %v450
    %v487 = vunpack.c.l.b16 %v451
    %v488 = vunpack.c.l.b16 %v452
    %v489 = vunpack.c.l.b16 %v453
    %v490 = vunpack.c.l.b16 %v454
    %v491 = vunpack.c.l.b16 %v455
    %v492 = vunpack.c.l.b16 %v456
    %v493 = vunpack.c.l.b16 %v457
    %v494 = vunpack.c.l.b16 %v458
    %v495 = vunpack.c.l.b16 %v459
    %v496 = vunpack.c.l.b16 %v460
    %v497 = vunpack.c.l.b16 %v461
    %v498 = vunpack.c.l.b16 %v462
    %v499 = vunpack.c.l.b16 %v463
    %v500 = vunpack.c.l.b16 %v464
    %v501 = vpack.c.b16 %v486, %v485
    %v502 = vpack.c.b16 %v488, %v487
    %v503 = vpack.c.b16 %v490, %v489
    %v504 = vpack.c.b16 %v492, %v491
    %v505 = vpack.c.b16 %v494, %v493
    %v506 = vpack.c.b16 %v496, %v495
    %v507 = vpack.c.b16 %v498, %v497
    %v508 = vpack.c.b16 %v500, %v499
    %517 = vmatpush.bf16.msra.mxu0 %v508
    %518 = vmatpush.bf16.msra.mxu0 %v507
    %519 = vmatpush.bf16.msra.mxu0 %v506
    %520 = vmatpush.bf16.msra.mxu0 %v505
    %521 = vmatpush.bf16.msra.mxu0 %v504
    %522 = vmatpush.bf16.msra.mxu0 %v503
    %523 = vmatpush.bf16.msra.mxu0 %v502
    %524 = vmatpush.bf16.msra.mxu0 %v501
    %525 = vmatmul.bf16.gmra.mxu0 %v448
    %v526 = vpop.f32.mrf.mxu0
    %v527 = vadd.f32 %v467, %v526
    %v528 = vpop.f32.mrf.mxu0
    %529 = vdwg.mxu0
    %v530 = vmax.f32 %v527, 0.0
    %v531 = vld [vmem:[%s2] sm:$0xff]
    %v532 = vld [vmem:[%s2 + $0x8] sm:$0xff]
    %v533 = vld [vmem:[%s2 + $0x10] sm:$0xff]
    %v534 = vld [vmem:[%s2 + $0x18] sm:$0xff]
    %v535 = vld [vmem:[%s2 + $0x20] sm:$0xff]
    %v536 = vld [vmem:[%s2 + $0x28] sm:$0xff]
    %v537 = vld [vmem:[%s2 + $0x30] sm:$0xff]
    %v538 = vld [vmem:[%s2 + $0x38] sm:$0xff]
    %v539 = vld [vmem:[%s2 + $0x40] sm:$0xff]
    %v540 = vld [vmem:[%s2 + $0x48] sm:$0xff]
    %v541 = vld [vmem:[%s2 + $0x50] sm:$0xff]
    %v542 = vld [vmem:[%s2 + $0x58] sm:$0xff]
    %v543 = vld [vmem:[%s2 + $0x60] sm:$0xff]
    %v544 = vld [vmem:[%s2 + $0x68] sm:$0xff]
    %v545 = vld [vmem:[%s2 + $0x70] sm:$0xff]
    %v546 = vld [vmem:[%s2 + $0x78] sm:$0xff]
    %547 = vmatpush.msra.mxu0 %v546
    %548 = vmatpush.msra.mxu0 %v545
    %549 = vmatpush.msra.mxu0 %v544
    %550 = vmatpush.msra.mxu0 %v543
    %551 = vmatpush.msra.mxu0 %v542
    %552 = vmatpush.msra.mxu0 %v541
    %553 = vmatpush.msra.mxu0 %v540
    %554 = vmatpush.msra.mxu0 %v539
    %555 = vmatpush.msra.mxu0 %v538
    %556 = vmatpush.msra.mxu0 %v537
    %557 = vmatpush.msra.mxu0 %v536
    %558 = vmatpush.msra.mxu0 %v535
    %559 = vmatpush.msra.mxu0 %v534
    %560 = vmatpush.msra.mxu0 %v533
    %561 = vmatpush.msra.mxu0 %v532
    %562 = vmatpush.msra.mxu0 %v531
    %563 = vmatmul.f32.gmra.mxu0 %v73
    %v564 = vpop.f32.mrf.mxu0
    %v565 = vadd.f32 %v530, %v564
    %566 = vdwg.mxu0
    %567 = vst [vmem:[%s9] sm:$0xff] %v565
    // Predicated region
    $region50: #{forward.11} parent=1 // pred_check
      _
    $region51: #{forward.11} parent=1 // pred_check_branch
      %569 = sbr.rel (0) target = $region53
    $region52: #{forward.11} parent=1 // pred_region
      _
    $region53: #{forward.11} parent=1 // pred_fallthru
      _
    // Predicated region
    $region54: #{forward.11} parent=1 // pred_check
      _
    $region55: #{forward.11} parent=1 // pred_check_branch
      %571 = sbr.rel (0) target = $region57
    $region56: #{forward.11} parent=1 // pred_region
      _
    $region57: #{forward.11} parent=1 // pred_fallthru
      _
    %572 = vsyncpa [#allocation3], 1
    %573 = vsyncpa [#allocation5], 1

// kernel: forward.10
$region0: #{forward.10}
  #allocation0 [shape = 'u32[]', space=smem, size = 0x4, offset = 0x4, fixed_abs, tag = 'smem constant byte address 0x4 - core index']
  #allocation1 [shape = 'u32[72,128]{1,0:T(1,128)}', space=vmem, size = 0x9000, scoped, tag = 'internal scratch']
  %s0 = inlined_call_operand.vmem [shape: f32[32,128], index: 0, kind: input, shape index: {}]
  %s1 = inlined_call_operand.vmem [shape: f32[9,8,32], index: 1, kind: input, shape index: {}]
  %s2 = inlined_call_operand.vmem [shape: f32[9,1,128], index: 2, kind: input, shape index: {}]
  %s3 = inlined_call_operand.hbm [shape: f32[1,128], index: 3, kind: input, shape index: {}]
  %s4 = inlined_call_operand.vmem [shape: bf16[128,128], index: 4, kind: input, shape index: {}]
  %s5 = inlined_call_operand.hbm [shape: f32[1,128], index: 5, kind: input, shape index: {}]
  %s6 = inlined_call_operand.vmem [shape: bf16[128,128], index: 6, kind: input, shape index: {}]
  %s7 = inlined_call_operand.hbm [shape: f32[1,128], index: 7, kind: input, shape index: {}]
  %s8 = inlined_call_operand.vmem [shape: f32[9,1,128], index: 8, kind: input, shape index: {}]
  %s9 = inlined_call_operand.hbm [shape: f32[1,128], index: 9, kind: input, shape index: {}]
  %s10 = inlined_call_operand.vmem [shape: bf16[128,128], index: 10, kind: input, shape index: {}]
  %s11 = inlined_call_operand.hbm [shape: f32[1,128], index: 11, kind: input, shape index: {}]
  %s12 = inlined_call_operand.vmem [shape: f32[8,128], index: 12, kind: output, shape index: {}]
  %s13 = sld [smem:[#allocation0]]
  $region78: #{forward.10} parent=0
    _
  %s15 = ssub.s32 1, %s13
  %s16 = scalar_select 0, %s15, %s13
  $region1: #{forward.10} parent=0
    #allocation2 [shape = 'u8[512]{0}', space=vmem, size = 0x400, scoped, tag = 'input window, operand 3, single buffered']
    #allocation3 [shape = 's32[1]{0}', space=sflag, size = 0x4, scoped, tag = 'scoped memory for forward.10']
    #allocation4 [shape = 'u8[512]{0}', space=vmem, size = 0x400, scoped, tag = 'input window, operand 5, single buffered']
    #allocation5 [shape = 's32[1]{0}', space=sflag, size = 0x4, scoped, tag = 'scoped memory for forward.10']
    #allocation6 [shape = 'u8[512]{0}', space=vmem, size = 0x400, scoped, tag = 'input window, operand 7, single buffered']
    #allocation7 [shape = 'u8[512]{0}', space=vmem, size = 0x400, scoped, tag = 'input window, operand 9, single buffered']
    #allocation8 [shape = 's32[1]{0}', space=sflag, size = 0x4, scoped, tag = 'scoped memory for forward.10']
    #allocation9 [shape = 'u8[512]{0}', space=vmem, size = 0x400, scoped, tag = 'input window, operand 11, single buffered']
    %17 = vsyncpa [#allocation3], 0
    %18 = vsyncpa [#allocation5], 0
    %19 = vsyncpa [#allocation8], 0
    // Predicated region
    $region2: #{forward.10} parent=1 // pred_check
      _
    $region3: #{forward.10} parent=1 // pred_check_branch
      %21 = sbr.rel (0) target = $region5
    $region4: #{forward.10} parent=1 // pred_region
      _
    $region5: #{forward.10} parent=1 // pred_fallthru
      _
    // Predicated region
    $region6: #{forward.10} parent=1 // pred_check
      _
    $region7: #{forward.10} parent=1 // pred_check_branch
      %23 = sbr.rel (0) target = $region9
    $region8: #{forward.10} parent=1 // pred_region
      _
    $region9: #{forward.10} parent=1 // pred_fallthru
      _
    // Predicated region
    $region10: #{forward.10} parent=1 // pred_check
      _
    $region11: #{forward.10} parent=1 // pred_check_branch
      %25 = sbr.rel (0) target = $region13
    $region12: #{forward.10} parent=1 // pred_region
      _
    $region13: #{forward.10} parent=1 // pred_fallthru
      _
    // Predicated region
    $region14: #{forward.10} parent=1 // pred_check
      _
    $region15: #{forward.10} parent=1 // pred_check_branch
      %27 = sbr.rel (0) target = $region17
    $region16: #{forward.10} parent=1 // pred_region
      %29 = vsyncadd [#allocation3], 0
      %s31 = sshll.u32 %s3, 4
      %s32 = int_to_ptr.hbm [resolvable:$true] %s31
      %s33 = sshll.u32 [#allocation2], 4
      %s34 = int_to_ptr.vmem [resolvable:$true] %s33
      %36 = dma.hbm_to_vmem [thread:$0]  %s32, 16, %s34, [#allocation3]
    $region17: #{forward.10} parent=1 // pred_fallthru
      _
    // Predicated region
    $region18: #{forward.10} parent=1 // pred_check
      _
    $region19: #{forward.10} parent=1 // pred_check_branch
      %38 = sbr.rel (0) target = $region21
    $region20: #{forward.10} parent=1 // pred_region
      _
    $region21: #{forward.10} parent=1 // pred_fallthru
      _
    // Predicated region
    $region22: #{forward.10} parent=1 // pred_check
      _
    $region23: #{forward.10} parent=1 // pred_check_branch
      %40 = sbr.rel (0) target = $region25
    $region24: #{forward.10} parent=1 // pred_region
      %42 = vsyncadd [#allocation5], 0
      %s44 = sshll.u32 %s5, 4
      %s45 = int_to_ptr.hbm [resolvable:$true] %s44
      %s46 = sshll.u32 [#allocation4], 4
      %s47 = int_to_ptr.vmem [resolvable:$true] %s46
      %49 = dma.hbm_to_vmem [thread:$0]  %s45, 16, %s47, [#allocation5]
    $region25: #{forward.10} parent=1 // pred_fallthru
      _
    // Predicated region
    $region26: #{forward.10} parent=1 // pred_check
      _
    $region27: #{forward.10} parent=1 // pred_check_branch
      %51 = sbr.rel (0) target = $region29
    $region28: #{forward.10} parent=1 // pred_region
      _
    $region29: #{forward.10} parent=1 // pred_fallthru
      _
    // Predicated region
    $region30: #{forward.10} parent=1 // pred_check
      _
    $region31: #{forward.10} parent=1 // pred_check_branch
      %53 = sbr.rel (0) target = $region33
    $region32: #{forward.10} parent=1 // pred_region
      %55 = vsyncadd [#allocation5], 0
      %s57 = sshll.u32 %s7, 4
      %s58 = int_to_ptr.hbm [resolvable:$true] %s57
      %s59 = sshll.u32 [#allocation6], 4
      %s60 = int_to_ptr.vmem [resolvable:$true] %s59
      %62 = dma.hbm_to_vmem [thread:$0]  %s58, 16, %s60, [#allocation5]
    $region33: #{forward.10} parent=1 // pred_fallthru
      _
    // Predicated region
    $region34: #{forward.10} parent=1 // pred_check
      _
    $region35: #{forward.10} parent=1 // pred_check_branch
      %64 = sbr.rel (0) target = $region37
    $region36: #{forward.10} parent=1 // pred_region
      _
    $region37: #{forward.10} parent=1 // pred_fallthru
      _
    // Predicated region
    $region38: #{forward.10} parent=1 // pred_check
      _
    $region39: #{forward.10} parent=1 // pred_check_branch
      %66 = sbr.rel (0) target = $region41
    $region40: #{forward.10} parent=1 // pred_region
      %68 = vsyncadd [#allocation8], 0
      %s70 = sshll.u32 %s9, 4
      %s71 = int_to_ptr.hbm [resolvable:$true] %s70
      %s72 = sshll.u32 [#allocation7], 4
      %s73 = int_to_ptr.vmem [resolvable:$true] %s72
      %75 = dma.hbm_to_vmem [thread:$0]  %s71, 16, %s73, [#allocation8]
    $region41: #{forward.10} parent=1 // pred_fallthru
      _
    // Predicated region
    $region42: #{forward.10} parent=1 // pred_check
      _
    $region43: #{forward.10} parent=1 // pred_check_branch
      %77 = sbr.rel (0) target = $region45
    $region44: #{forward.10} parent=1 // pred_region
      _
    $region45: #{forward.10} parent=1 // pred_fallthru
      _
    // Predicated region
    $region46: #{forward.10} parent=1 // pred_check
      _
    $region47: #{forward.10} parent=1 // pred_check_branch
      %79 = sbr.rel (0) target = $region49
    $region48: #{forward.10} parent=1 // pred_region
      %81 = vsyncadd [#allocation8], 0
      %s83 = sshll.u32 %s11, 4
      %s84 = int_to_ptr.hbm [resolvable:$true] %s83
      %s85 = sshll.u32 [#allocation9], 4
      %s86 = int_to_ptr.vmem [resolvable:$true] %s85
      %88 = dma.hbm_to_vmem [thread:$0]  %s84, 16, %s86, [#allocation8]
    $region49: #{forward.10} parent=1 // pred_fallthru
      _
    // Predicated region
    $region50: #{forward.10} parent=1 // pred_check
      _
    $region51: #{forward.10} parent=1 // pred_check_branch
      %90 = sbr.rel (0) target = $region53
    $region52: #{forward.10} parent=1 // pred_region
      %92 = dma.done [#allocation3], 16
    $region53: #{forward.10} parent=1 // pred_fallthru
      _
    // Predicated region
    $region54: #{forward.10} parent=1 // pred_check
      _
    $region55: #{forward.10} parent=1 // pred_check_branch
      %94 = sbr.rel (0) target = $region57
    $region56: #{forward.10} parent=1 // pred_region
      %96 = dma.done [#allocation5], 16
    $region57: #{forward.10} parent=1 // pred_fallthru
      _
    // Predicated region
    $region58: #{forward.10} parent=1 // pred_check
      _
    $region59: #{forward.10} parent=1 // pred_check_branch
      %98 = sbr.rel (0) target = $region61
    $region60: #{forward.10} parent=1 // pred_region
      %100 = dma.done [#allocation5], 16
    $region61: #{forward.10} parent=1 // pred_fallthru
      _
    // Predicated region
    $region62: #{forward.10} parent=1 // pred_check
      _
    $region63: #{forward.10} parent=1 // pred_check_branch
      %102 = sbr.rel (0) target = $region65
    $region64: #{forward.10} parent=1 // pred_region
      %104 = dma.done [#allocation8], 16
    $region65: #{forward.10} parent=1 // pred_fallthru
      _
    // Predicated region
    $region66: #{forward.10} parent=1 // pred_check
      _
    $region67: #{forward.10} parent=1 // pred_check_branch
      %106 = sbr.rel (0) target = $region69
    $region68: #{forward.10} parent=1 // pred_region
      %108 = dma.done [#allocation8], 16
    $region69: #{forward.10} parent=1 // pred_fallthru
      _
    %v109 = vld [vmem:[%s0] sm:$0xff]
    %v110 = vld [vmem:[%s0 + $0x8] sm:$0xff]
    %v111 = vld [vmem:[%s0 + $0x10] sm:$0xff]
    %v112 = vld [vmem:[%s0 + $0x18] sm:$0xff]
    %v113 = vpack.c.bf16 %v110, %v109
    %v114 = vpack.c.bf16 %v112, %v111
    %v115 = vld [vmem:[%s6] sm:$0xf]
    %v116 = vld [vmem:[%s6 + $0x4] sm:$0xf]
    %v117 = vld [vmem:[%s6 + $0x8] sm:$0xf]
    %v118 = vld [vmem:[%s6 + $0xc] sm:$0xf]
    %v119 = vld [vmem:[%s6 + $0x10] sm:$0xf]
    %v120 = vld [vmem:[%s6 + $0x14] sm:$0xf]
    %v121 = vld [vmem:[%s6 + $0x18] sm:$0xf]
    %v122 = vld [vmem:[%s6 + $0x1c] sm:$0xf]
    %v123 = vld [vmem:[%s6 + $0x20] sm:$0xf]
    %v124 = vld [vmem:[%s6 + $0x24] sm:$0xf]
    %v125 = vld [vmem:[%s6 + $0x28] sm:$0xf]
    %v126 = vld [vmem:[%s6 + $0x2c] sm:$0xf]
    %v127 = vld [vmem:[%s6 + $0x30] sm:$0xf]
    %v128 = vld [vmem:[%s6 + $0x34] sm:$0xf]
    %v129 = vld [vmem:[%s6 + $0x38] sm:$0xf]
    %v130 = vld [vmem:[%s6 + $0x3c] sm:$0xf]
    %v131 = vld [vmem:[#allocation6] sm:$0x1]
    %v133 = vperm.slane %v131, 0
    %v151 = vunpack.c.l.b16 %v115
    %v152 = vunpack.c.l.b16 %v116
    %v153 = vunpack.c.l.b16 %v117
    %v154 = vunpack.c.l.b16 %v118
    %v155 = vunpack.c.l.b16 %v119
    %v156 = vunpack.c.l.b16 %v120
    %v157 = vunpack.c.l.b16 %v121
    %v158 = vunpack.c.l.b16 %v122
    %v159 = vunpack.c.l.b16 %v123
    %v160 = vunpack.c.l.b16 %v124
    %v161 = vunpack.c.l.b16 %v125
    %v162 = vunpack.c.l.b16 %v126
    %v163 = vunpack.c.l.b16 %v127
    %v164 = vunpack.c.l.b16 %v128
    %v165 = vunpack.c.l.b16 %v129
    %v166 = vunpack.c.l.b16 %v130
    %v167 = vpack.c.b16 %v152, %v151
    %v168 = vpack.c.b16 %v154, %v153
    %v169 = vpack.c.b16 %v156, %v155
    %v170 = vpack.c.b16 %v158, %v157
    %v171 = vpack.c.b16 %v160, %v159
    %v172 = vpack.c.b16 %v162, %v161
    %v173 = vpack.c.b16 %v164, %v163
    %v174 = vpack.c.b16 %v166, %v165
    %183 = vmatpush.bf16.msra.mxu0 %v174
    %184 = vmatpush.bf16.msra.mxu0 %v173
    %185 = vmatpush.bf16.msra.mxu0 %v172
    %186 = vmatpush.bf16.msra.mxu0 %v171
    %187 = vmatpush.bf16.msra.mxu0 %v170
    %188 = vmatpush.bf16.msra.mxu0 %v169
    %189 = vmatpush.bf16.msra.mxu0 %v168
    %190 = vmatpush.bf16.msra.mxu0 %v167
    %191 = vmatmul.bf16.gmra.mxu0 %v113
    %v192 = vpop.f32.mrf.mxu0
    %v193 = vadd.f32 %v133, %v192
    %v194 = vpop.f32.mrf.mxu0
    %v195 = vadd.f32 %v133, %v194
    %196 = vmatmul.bf16.gmra.mxu0 %v114
    %v197 = vpop.f32.mrf.mxu0
    %v198 = vadd.f32 %v133, %v197
    %v199 = vpop.f32.mrf.mxu0
    %v200 = vadd.f32 %v133, %v199
    %201 = vdwg.mxu0
    %v202 = vmax.f32 %v193, 0.0
    %v203 = vmax.f32 %v195, 0.0
    %v204 = vmax.f32 %v198, 0.0
    %v205 = vmax.f32 %v200, 0.0
    %v206 = vld [vmem:[%s1] sm:$0xff]
    %vm207 = vcmask 261120
    %v209 = vsel %vm207, %v206, 0
    %211 = vmatpush.msra.mxu0 0.0
    %212 = vmatpush.msra.mxu0 0.0
    %213 = vmatpush.msra.mxu0 0.0
    %214 = vmatpush.msra.mxu0 0.0
    %215 = vmatpush.msra.mxu0 0.0
    %216 = vmatpush.msra.mxu0 0.0
    %217 = vmatpush.msra.mxu0 0.0
    %218 = vmatpush.msra.mxu0 0.0
    %219 = vmatpush.msra.mxu0 0.0
    %220 = vmatpush.msra.mxu0 0.0
    %221 = vmatpush.msra.mxu0 0.0
    %222 = vmatpush.msra.mxu0 0.0
    %223 = vmatpush.msra.mxu0 %v205
    %224 = vmatpush.msra.mxu0 %v204
    %225 = vmatpush.msra.mxu0 %v203
    %226 = vmatpush.msra.mxu0 %v202
    %227 = vmatmul.f32.gmra.mxu0 %v209
    %v228 = vpop.f32.mrf.mxu0
    %v229 = vadd.f32 0.0, %v228
    %230 = vdwg.mxu0
    %v231 = vld [vmem:[%s8] sm:$0x1]
    %v233 = vperm.slane %v231, 0
    %v235 = vmul.f32 %v229, %v233
    %s236 = scalar_lea.vmem %s1, 8
    %v237 = vld [vmem:[%s236] sm:$0xff]
    %v239 = vsel %vm207, %v237, 0
    %241 = vmatpush.msra.mxu0 0.0
    %242 = vmatpush.msra.mxu0 0.0
    %243 = vmatpush.msra.mxu0 0.0
    %244 = vmatpush.msra.mxu0 0.0
    %245 = vmatpush.msra.mxu0 0.0
    %246 = vmatpush.msra.mxu0 0.0
    %247 = vmatpush.msra.mxu0 0.0
    %248 = vmatpush.msra.mxu0 0.0
    %249 = vmatpush.msra.mxu0 0.0
    %250 = vmatpush.msra.mxu0 0.0
    %251 = vmatpush.msra.mxu0 0.0
    %252 = vmatpush.msra.mxu0 0.0
    %253 = vmatpush.msra.mxu0 %v205
    %254 = vmatpush.msra.mxu0 %v204
    %255 = vmatpush.msra.mxu0 %v203
    %256 = vmatpush.msra.mxu0 %v202
    %257 = vmatmul.f32.gmra.mxu0 %v239
    %v258 = vpop.f32.mrf.mxu0
    %v259 = vadd.f32 0.0, %v258
    %260 = vdwg.mxu0
    %s261 = scalar_lea.vmem %s8, 1
    %v262 = vld [vmem:[%s261] sm:$0x1]
    %v264 = vperm.slane %v262, 0
    %v266 = vmul.f32 %v259, %v264
    %v267 = vadd.f32 %v235, %v266
    %s268 = scalar_lea.vmem %s1, 16
    %v269 = vld [vmem:[%s268] sm:$0xff]
    %v271 = vsel %vm207, %v269, 0
    %273 = vmatpush.msra.mxu0 0.0
    %274 = vmatpush.msra.mxu0 0.0
    %275 = vmatpush.msra.mxu0 0.0
    %276 = vmatpush.msra.mxu0 0.0
    %277 = vmatpush.msra.mxu0 0.0
    %278 = vmatpush.msra.mxu0 0.0
    %279 = vmatpush.msra.mxu0 0.0
    %280 = vmatpush.msra.mxu0 0.0
    %281 = vmatpush.msra.mxu0 0.0
    %282 = vmatpush.msra.mxu0 0.0
    %283 = vmatpush.msra.mxu0 0.0
    %284 = vmatpush.msra.mxu0 0.0
    %285 = vmatpush.msra.mxu0 %v205
    %286 = vmatpush.msra.mxu0 %v204
    %287 = vmatpush.msra.mxu0 %v203
    %288 = vmatpush.msra.mxu0 %v202
    %289 = vmatmul.f32.gmra.mxu0 %v271
    %v290 = vpop.f32.mrf.mxu0
    %v291 = vadd.f32 0.0, %v290
    %292 = vdwg.mxu0
    %s293 = scalar_lea.vmem %s8, 2
    %v294 = vld [vmem:[%s293] sm:$0x1]
    %v296 = vperm.slane %v294, 0
    %v298 = vmul.f32 %v291, %v296
    %v299 = vadd.f32 %v267, %v298
    %s300 = scalar_lea.vmem %s1, 24
    %v301 = vld [vmem:[%s300] sm:$0xff]
    %v303 = vsel %vm207, %v301, 0
    %305 = vmatpush.msra.mxu0 0.0
    %306 = vmatpush.msra.mxu0 0.0
    %307 = vmatpush.msra.mxu0 0.0
    %308 = vmatpush.msra.mxu0 0.0
    %309 = vmatpush.msra.mxu0 0.0
    %310 = vmatpush.msra.mxu0 0.0
    %311 = vmatpush.msra.mxu0 0.0
    %312 = vmatpush.msra.mxu0 0.0
    %313 = vmatpush.msra.mxu0 0.0
    %314 = vmatpush.msra.mxu0 0.0
    %315 = vmatpush.msra.mxu0 0.0
    %316 = vmatpush.msra.mxu0 0.0
    %317 = vmatpush.msra.mxu0 %v205
    %318 = vmatpush.msra.mxu0 %v204
    %319 = vmatpush.msra.mxu0 %v203
    %320 = vmatpush.msra.mxu0 %v202
    %321 = vmatmul.f32.gmra.mxu0 %v303
    %v322 = vpop.f32.mrf.mxu0
    %v323 = vadd.f32 0.0, %v322
    %324 = vdwg.mxu0
    %s325 = scalar_lea.vmem %s8, 3
    %v326 = vld [vmem:[%s325] sm:$0x1]
    %v328 = vperm.slane %v326, 0
    %v330 = vmul.f32 %v323, %v328
    %v331 = vadd.f32 %v299, %v330
    %s332 = scalar_lea.vmem %s1, 32
    %v333 = vld [vmem:[%s332] sm:$0xff]
    %v335 = vsel %vm207, %v333, 0
    %337 = vmatpush.msra.mxu0 0.0
    %338 = vmatpush.msra.mxu0 0.0
    %339 = vmatpush.msra.mxu0 0.0
    %340 = vmatpush.msra.mxu0 0.0
    %341 = vmatpush.msra.mxu0 0.0
    %342 = vmatpush.msra.mxu0 0.0
    %343 = vmatpush.msra.mxu0 0.0
    %344 = vmatpush.msra.mxu0 0.0
    %345 = vmatpush.msra.mxu0 0.0
    %346 = vmatpush.msra.mxu0 0.0
    %347 = vmatpush.msra.mxu0 0.0
    %348 = vmatpush.msra.mxu0 0.0
    %349 = vmatpush.msra.mxu0 %v205
    %350 = vmatpush.msra.mxu0 %v204
    %351 = vmatpush.msra.mxu0 %v203
    %352 = vmatpush.msra.mxu0 %v202
    %353 = vmatmul.f32.gmra.mxu0 %v335
    %v354 = vpop.f32.mrf.mxu0
    %v355 = vadd.f32 0.0, %v354
    %356 = vdwg.mxu0
    %s357 = scalar_lea.vmem %s8, 4
    %v358 = vld [vmem:[%s357] sm:$0x1]
    %v360 = vperm.slane %v358, 0
    %v362 = vmul.f32 %v355, %v360
    %v363 = vadd.f32 %v331, %v362
    %s364 = scalar_lea.vmem %s1, 40
    %v365 = vld [vmem:[%s364] sm:$0xff]
    %v367 = vsel %vm207, %v365, 0
    %369 = vmatpush.msra.mxu0 0.0
    %370 = vmatpush.msra.mxu0 0.0
    %371 = vmatpush.msra.mxu0 0.0
    %372 = vmatpush.msra.mxu0 0.0
    %373 = vmatpush.msra.mxu0 0.0
    %374 = vmatpush.msra.mxu0 0.0
    %375 = vmatpush.msra.mxu0 0.0
    %376 = vmatpush.msra.mxu0 0.0
    %377 = vmatpush.msra.mxu0 0.0
    %378 = vmatpush.msra.mxu0 0.0
    %379 = vmatpush.msra.mxu0 0.0
    %380 = vmatpush.msra.mxu0 0.0
    %381 = vmatpush.msra.mxu0 %v205
    %382 = vmatpush.msra.mxu0 %v204
    %383 = vmatpush.msra.mxu0 %v203
    %384 = vmatpush.msra.mxu0 %v202
    %385 = vmatmul.f32.gmra.mxu0 %v367
    %v386 = vpop.f32.mrf.mxu0
    %v387 = vadd.f32 0.0, %v386
    %388 = vdwg.mxu0
    %s389 = scalar_lea.vmem %s8, 5
    %v390 = vld [vmem:[%s389] sm:$0x1]
    %v392 = vperm.slane %v390, 0
    %v394 = vmul.f32 %v387, %v392
    %v395 = vadd.f32 %v363, %v394
    %s396 = scalar_lea.vmem %s1, 48
    %v397 = vld [vmem:[%s396] sm:$0xff]
    %v399 = vsel %vm207, %v397, 0
    %401 = vmatpush.msra.mxu0 0.0
    %402 = vmatpush.msra.mxu0 0.0
    %403 = vmatpush.msra.mxu0 0.0
    %404 = vmatpush.msra.mxu0 0.0
    %405 = vmatpush.msra.mxu0 0.0
    %406 = vmatpush.msra.mxu0 0.0
    %407 = vmatpush.msra.mxu0 0.0
    %408 = vmatpush.msra.mxu0 0.0
    %409 = vmatpush.msra.mxu0 0.0
    %410 = vmatpush.msra.mxu0 0.0
    %411 = vmatpush.msra.mxu0 0.0
    %412 = vmatpush.msra.mxu0 0.0
    %413 = vmatpush.msra.mxu0 %v205
    %414 = vmatpush.msra.mxu0 %v204
    %415 = vmatpush.msra.mxu0 %v203
    %416 = vmatpush.msra.mxu0 %v202
    %417 = vmatmul.f32.gmra.mxu0 %v399
    %v418 = vpop.f32.mrf.mxu0
    %v419 = vadd.f32 0.0, %v418
    %420 = vdwg.mxu0
    %s421 = scalar_lea.vmem %s8, 6
    %v422 = vld [vmem:[%s421] sm:$0x1]
    %v424 = vperm.slane %v422, 0
    %v426 = vmul.f32 %v419, %v424
    %v427 = vadd.f32 %v395, %v426
    %s428 = scalar_lea.vmem %s1, 56
    %v429 = vld [vmem:[%s428] sm:$0xff]
    %v431 = vsel %vm207, %v429, 0
    %433 = vmatpush.msra.mxu0 0.0
    %434 = vmatpush.msra.mxu0 0.0
    %435 = vmatpush.msra.mxu0 0.0
    %436 = vmatpush.msra.mxu0 0.0
    %437 = vmatpush.msra.mxu0 0.0
    %438 = vmatpush.msra.mxu0 0.0
    %439 = vmatpush.msra.mxu0 0.0
    %440 = vmatpush.msra.mxu0 0.0
    %441 = vmatpush.msra.mxu0 0.0
    %442 = vmatpush.msra.mxu0 0.0
    %443 = vmatpush.msra.mxu0 0.0
    %444 = vmatpush.msra.mxu0 0.0
    %445 = vmatpush.msra.mxu0 %v205
    %446 = vmatpush.msra.mxu0 %v204
    %447 = vmatpush.msra.mxu0 %v203
    %448 = vmatpush.msra.mxu0 %v202
    %449 = vmatmul.f32.gmra.mxu0 %v431
    %v450 = vpop.f32.mrf.mxu0
    %v451 = vadd.f32 0.0, %v450
    %452 = vdwg.mxu0
    %s453 = scalar_lea.vmem %s8, 7
    %v454 = vld [vmem:[%s453] sm:$0x1]
    %v456 = vperm.slane %v454, 0
    %v458 = vmul.f32 %v451, %v456
    %v459 = vadd.f32 %v427, %v458
    %s460 = scalar_lea.vmem %s1, 64
    %v461 = vld [vmem:[%s460] sm:$0xff]
    %v463 = vsel %vm207, %v461, 0
    %465 = vmatpush.msra.mxu0 0.0
    %466 = vmatpush.msra.mxu0 0.0
    %467 = vmatpush.msra.mxu0 0.0
    %468 = vmatpush.msra.mxu0 0.0
    %469 = vmatpush.msra.mxu0 0.0
    %470 = vmatpush.msra.mxu0 0.0
    %471 = vmatpush.msra.mxu0 0.0
    %472 = vmatpush.msra.mxu0 0.0
    %473 = vmatpush.msra.mxu0 0.0
    %474 = vmatpush.msra.mxu0 0.0
    %475 = vmatpush.msra.mxu0 0.0
    %476 = vmatpush.msra.mxu0 0.0
    %477 = vmatpush.msra.mxu0 %v205
    %478 = vmatpush.msra.mxu0 %v204
    %479 = vmatpush.msra.mxu0 %v203
    %480 = vmatpush.msra.mxu0 %v202
    %481 = vmatmul.f32.gmra.mxu0 %v463
    %v482 = vpop.f32.mrf.mxu0
    %v483 = vadd.f32 0.0, %v482
    %484 = vdwg.mxu0
    %s485 = scalar_lea.vmem %s8, 8
    %v486 = vld [vmem:[%s485] sm:$0x1]
    %v488 = vperm.slane %v486, 0
    %v490 = vmul.f32 %v483, %v488
    %v491 = vadd.f32 %v459, %v490
    %v492 = vld [vmem:[#allocation7] sm:$0x1]
    %v494 = vperm.slane %v492, 0
    %v496 = vadd.f32 %v491, %v494
    %v497 = vpack.c.bf16 %v496, %v496
    %v498 = vld [vmem:[%s10] sm:$0xf]
    %v499 = vld [vmem:[%s10 + $0x4] sm:$0xf]
    %v500 = vld [vmem:[%s10 + $0x8] sm:$0xf]
    %v501 = vld [vmem:[%s10 + $0xc] sm:$0xf]
    %v502 = vld [vmem:[%s10 + $0x10] sm:$0xf]
    %v503 = vld [vmem:[%s10 + $0x14] sm:$0xf]
    %v504 = vld [vmem:[%s10 + $0x18] sm:$0xf]
    %v505 = vld [vmem:[%s10 + $0x1c] sm:$0xf]
    %v506 = vld [vmem:[%s10 + $0x20] sm:$0xf]
    %v507 = vld [vmem:[%s10 + $0x24] sm:$0xf]
    %v508 = vld [vmem:[%s10 + $0x28] sm:$0xf]
    %v509 = vld [vmem:[%s10 + $0x2c] sm:$0xf]
    %v510 = vld [vmem:[%s10 + $0x30] sm:$0xf]
    %v511 = vld [vmem:[%s10 + $0x34] sm:$0xf]
    %v512 = vld [vmem:[%s10 + $0x38] sm:$0xf]
    %v513 = vld [vmem:[%s10 + $0x3c] sm:$0xf]
    %v514 = vld [vmem:[#allocation9] sm:$0x1]
    %v516 = vperm.slane %v514, 0
    %v534 = vunpack.c.l.b16 %v498
    %v535 = vunpack.c.l.b16 %v499
    %v536 = vunpack.c.l.b16 %v500
    %v537 = vunpack.c.l.b16 %v501
    %v538 = vunpack.c.l.b16 %v502
    %v539 = vunpack.c.l.b16 %v503
    %v540 = vunpack.c.l.b16 %v504
    %v541 = vunpack.c.l.b16 %v505
    %v542 = vunpack.c.l.b16 %v506
    %v543 = vunpack.c.l.b16 %v507
    %v544 = vunpack.c.l.b16 %v508
    %v545 = vunpack.c.l.b16 %v509
    %v546 = vunpack.c.l.b16 %v510
    %v547 = vunpack.c.l.b16 %v511
    %v548 = vunpack.c.l.b16 %v512
    %v549 = vunpack.c.l.b16 %v513
    %v550 = vpack.c.b16 %v535, %v534
    %v551 = vpack.c.b16 %v537, %v536
    %v552 = vpack.c.b16 %v539, %v538
    %v553 = vpack.c.b16 %v541, %v540
    %v554 = vpack.c.b16 %v543, %v542
    %v555 = vpack.c.b16 %v545, %v544
    %v556 = vpack.c.b16 %v547, %v546
    %v557 = vpack.c.b16 %v549, %v548
    %566 = vmatpush.bf16.msra.mxu0 %v557
    %567 = vmatpush.bf16.msra.mxu0 %v556
    %568 = vmatpush.bf16.msra.mxu0 %v555
    %569 = vmatpush.bf16.msra.mxu0 %v554
    %570 = vmatpush.bf16.msra.mxu0 %v553
    %571 = vmatpush.bf16.msra.mxu0 %v552
    %572 = vmatpush.bf16.msra.mxu0 %v551
    %573 = vmatpush.bf16.msra.mxu0 %v550
    %574 = vmatmul.bf16.gmra.mxu0 %v497
    %v575 = vpop.f32.mrf.mxu0
    %v576 = vadd.f32 %v516, %v575
    %v577 = vpop.f32.mrf.mxu0
    %578 = vdwg.mxu0
    %v579 = vmax.f32 %v576, 0.0
    %580 = vmatpush.msra.mxu0 0.0
    %581 = vmatpush.msra.mxu0 0.0
    %582 = vmatpush.msra.mxu0 0.0
    %583 = vmatpush.msra.mxu0 0.0
    %584 = vmatpush.msra.mxu0 0.0
    %585 = vmatpush.msra.mxu0 0.0
    %586 = vmatpush.msra.mxu0 0.0
    %587 = vmatpush.msra.mxu0 0.0
    %588 = vmatpush.msra.mxu0 0.0
    %589 = vmatpush.msra.mxu0 0.0
    %590 = vmatpush.msra.mxu0 0.0
    %591 = vmatpush.msra.mxu0 0.0
    %592 = vmatpush.msra.mxu0 %v112
    %593 = vmatpush.msra.mxu0 %v111
    %594 = vmatpush.msra.mxu0 %v110
    %595 = vmatpush.msra.mxu0 %v109
    %596 = vmatmul.f32.gmra.mxu0 %v209
    %v597 = vpop.f32.mrf.mxu0
    %v598 = vadd.f32 0.0, %v597
    %599 = vdwg.mxu0
    %v600 = vld [vmem:[%s2] sm:$0x1]
    %v602 = vperm.slane %v600, 0
    %v604 = vmul.f32 %v598, %v602
    %605 = vmatpush.msra.mxu0 0.0
    %606 = vmatpush.msra.mxu0 0.0
    %607 = vmatpush.msra.mxu0 0.0
    %608 = vmatpush.msra.mxu0 0.0
    %609 = vmatpush.msra.mxu0 0.0
    %610 = vmatpush.msra.mxu0 0.0
    %611 = vmatpush.msra.mxu0 0.0
    %612 = vmatpush.msra.mxu0 0.0
    %613 = vmatpush.msra.mxu0 0.0
    %614 = vmatpush.msra.mxu0 0.0
    %615 = vmatpush.msra.mxu0 0.0
    %616 = vmatpush.msra.mxu0 0.0
    %617 = vmatpush.msra.mxu0 %v112
    %618 = vmatpush.msra.mxu0 %v111
    %619 = vmatpush.msra.mxu0 %v110
    %620 = vmatpush.msra.mxu0 %v109
    %621 = vmatmul.f32.gmra.mxu0 %v239
    %v622 = vpop.f32.mrf.mxu0
    %v623 = vadd.f32 0.0, %v622
    %624 = vdwg.mxu0
    %s625 = scalar_lea.vmem %s2, 1
    %v626 = vld [vmem:[%s625] sm:$0x1]
    %v628 = vperm.slane %v626, 0
    %v630 = vmul.f32 %v623, %v628
    %v631 = vadd.f32 %v604, %v630
    %632 = vmatpush.msra.mxu0 0.0
    %633 = vmatpush.msra.mxu0 0.0
    %634 = vmatpush.msra.mxu0 0.0
    %635 = vmatpush.msra.mxu0 0.0
    %636 = vmatpush.msra.mxu0 0.0
    %637 = vmatpush.msra.mxu0 0.0
    %638 = vmatpush.msra.mxu0 0.0
    %639 = vmatpush.msra.mxu0 0.0
    %640 = vmatpush.msra.mxu0 0.0
    %641 = vmatpush.msra.mxu0 0.0
    %642 = vmatpush.msra.mxu0 0.0
    %643 = vmatpush.msra.mxu0 0.0
    %644 = vmatpush.msra.mxu0 %v112
    %645 = vmatpush.msra.mxu0 %v111
    %646 = vmatpush.msra.mxu0 %v110
    %647 = vmatpush.msra.mxu0 %v109
    %648 = vmatmul.f32.gmra.mxu0 %v271
    %v649 = vpop.f32.mrf.mxu0
    %v650 = vadd.f32 0.0, %v649
    %651 = vdwg.mxu0
    %s652 = scalar_lea.vmem %s2, 2
    %v653 = vld [vmem:[%s652] sm:$0x1]
    %v655 = vperm.slane %v653, 0
    %v657 = vmul.f32 %v650, %v655
    %v658 = vadd.f32 %v631, %v657
    %659 = vmatpush.msra.mxu0 0.0
    %660 = vmatpush.msra.mxu0 0.0
    %661 = vmatpush.msra.mxu0 0.0
    %662 = vmatpush.msra.mxu0 0.0
    %663 = vmatpush.msra.mxu0 0.0
    %664 = vmatpush.msra.mxu0 0.0
    %665 = vmatpush.msra.mxu0 0.0
    %666 = vmatpush.msra.mxu0 0.0
    %667 = vmatpush.msra.mxu0 0.0
    %668 = vmatpush.msra.mxu0 0.0
    %669 = vmatpush.msra.mxu0 0.0
    %670 = vmatpush.msra.mxu0 0.0
    %671 = vmatpush.msra.mxu0 %v112
    %672 = vmatpush.msra.mxu0 %v111
    %673 = vmatpush.msra.mxu0 %v110
    %674 = vmatpush.msra.mxu0 %v109
    %675 = vmatmul.f32.gmra.mxu0 %v303
    %v676 = vpop.f32.mrf.mxu0
    %v677 = vadd.f32 0.0, %v676
    %678 = vdwg.mxu0
    %s679 = scalar_lea.vmem %s2, 3
    %v680 = vld [vmem:[%s679] sm:$0x1]
    %v682 = vperm.slane %v680, 0
    %v684 = vmul.f32 %v677, %v682
    %v685 = vadd.f32 %v658, %v684
    %686 = vmatpush.msra.mxu0 0.0
    %687 = vmatpush.msra.mxu0 0.0
    %688 = vmatpush.msra.mxu0 0.0
    %689 = vmatpush.msra.mxu0 0.0
    %690 = vmatpush.msra.mxu0 0.0
    %691 = vmatpush.msra.mxu0 0.0
    %692 = vmatpush.msra.mxu0 0.0
    %693 = vmatpush.msra.mxu0 0.0
    %694 = vmatpush.msra.mxu0 0.0
    %695 = vmatpush.msra.mxu0 0.0
    %696 = vmatpush.msra.mxu0 0.0
    %697 = vmatpush.msra.mxu0 0.0
    %698 = vmatpush.msra.mxu0 %v112
    %699 = vmatpush.msra.mxu0 %v111
    %700 = vmatpush.msra.mxu0 %v110
    %701 = vmatpush.msra.mxu0 %v109
    %702 = vmatmul.f32.gmra.mxu0 %v335
    %v703 = vpop.f32.mrf.mxu0
    %v704 = vadd.f32 0.0, %v703
    %705 = vdwg.mxu0
    %s706 = scalar_lea.vmem %s2, 4
    %v707 = vld [vmem:[%s706] sm:$0x1]
    %v709 = vperm.slane %v707, 0
    %v711 = vmul.f32 %v704, %v709
    %v712 = vadd.f32 %v685, %v711
    %713 = vmatpush.msra.mxu0 0.0
    %714 = vmatpush.msra.mxu0 0.0
    %715 = vmatpush.msra.mxu0 0.0
    %716 = vmatpush.msra.mxu0 0.0
    %717 = vmatpush.msra.mxu0 0.0
    %718 = vmatpush.msra.mxu0 0.0
    %719 = vmatpush.msra.mxu0 0.0
    %720 = vmatpush.msra.mxu0 0.0
    %721 = vmatpush.msra.mxu0 0.0
    %722 = vmatpush.msra.mxu0 0.0
    %723 = vmatpush.msra.mxu0 0.0
    %724 = vmatpush.msra.mxu0 0.0
    %725 = vmatpush.msra.mxu0 %v112
    %726 = vmatpush.msra.mxu0 %v111
    %727 = vmatpush.msra.mxu0 %v110
    %728 = vmatpush.msra.mxu0 %v109
    %729 = vmatmul.f32.gmra.mxu0 %v367
    %v730 = vpop.f32.mrf.mxu0
    %v731 = vadd.f32 0.0, %v730
    %732 = vdwg.mxu0
    %s733 = scalar_lea.vmem %s2, 5
    %v734 = vld [vmem:[%s733] sm:$0x1]
    %v736 = vperm.slane %v734, 0
    %v738 = vmul.f32 %v731, %v736
    %v739 = vadd.f32 %v712, %v738
    %740 = vmatpush.msra.mxu0 0.0
    %741 = vmatpush.msra.mxu0 0.0
    %742 = vmatpush.msra.mxu0 0.0
    %743 = vmatpush.msra.mxu0 0.0
    %744 = vmatpush.msra.mxu0 0.0
    %745 = vmatpush.msra.mxu0 0.0
    %746 = vmatpush.msra.mxu0 0.0
    %747 = vmatpush.msra.mxu0 0.0
    %748 = vmatpush.msra.mxu0 0.0
    %749 = vmatpush.msra.mxu0 0.0
    %750 = vmatpush.msra.mxu0 0.0
    %751 = vmatpush.msra.mxu0 0.0
    %752 = vmatpush.msra.mxu0 %v112
    %753 = vmatpush.msra.mxu0 %v111
    %754 = vmatpush.msra.mxu0 %v110
    %755 = vmatpush.msra.mxu0 %v109
    %756 = vmatmul.f32.gmra.mxu0 %v399
    %v757 = vpop.f32.mrf.mxu0
    %v758 = vadd.f32 0.0, %v757
    %759 = vdwg.mxu0
    %s760 = scalar_lea.vmem %s2, 6
    %v761 = vld [vmem:[%s760] sm:$0x1]
    %v763 = vperm.slane %v761, 0
    %v765 = vmul.f32 %v758, %v763
    %v766 = vadd.f32 %v739, %v765
    %767 = vmatpush.msra.mxu0 0.0
    %768 = vmatpush.msra.mxu0 0.0
    %769 = vmatpush.msra.mxu0 0.0
    %770 = vmatpush.msra.mxu0 0.0
    %771 = vmatpush.msra.mxu0 0.0
    %772 = vmatpush.msra.mxu0 0.0
    %773 = vmatpush.msra.mxu0 0.0
    %774 = vmatpush.msra.mxu0 0.0
    %775 = vmatpush.msra.mxu0 0.0
    %776 = vmatpush.msra.mxu0 0.0
    %777 = vmatpush.msra.mxu0 0.0
    %778 = vmatpush.msra.mxu0 0.0
    %779 = vmatpush.msra.mxu0 %v112
    %780 = vmatpush.msra.mxu0 %v111
    %781 = vmatpush.msra.mxu0 %v110
    %782 = vmatpush.msra.mxu0 %v109
    %783 = vmatmul.f32.gmra.mxu0 %v431
    %v784 = vpop.f32.mrf.mxu0
    %v785 = vadd.f32 0.0, %v784
    %786 = vdwg.mxu0
    %s787 = scalar_lea.vmem %s2, 7
    %v788 = vld [vmem:[%s787] sm:$0x1]
    %v790 = vperm.slane %v788, 0
    %v792 = vmul.f32 %v785, %v790
    %v793 = vadd.f32 %v766, %v792
    %794 = vmatpush.msra.mxu0 0.0
    %795 = vmatpush.msra.mxu0 0.0
    %796 = vmatpush.msra.mxu0 0.0
    %797 = vmatpush.msra.mxu0 0.0
    %798 = vmatpush.msra.mxu0 0.0
    %799 = vmatpush.msra.mxu0 0.0
    %800 = vmatpush.msra.mxu0 0.0
    %801 = vmatpush.msra.mxu0 0.0
    %802 = vmatpush.msra.mxu0 0.0
    %803 = vmatpush.msra.mxu0 0.0
    %804 = vmatpush.msra.mxu0 0.0
    %805 = vmatpush.msra.mxu0 0.0
    %806 = vmatpush.msra.mxu0 %v112
    %807 = vmatpush.msra.mxu0 %v111
    %808 = vmatpush.msra.mxu0 %v110
    %809 = vmatpush.msra.mxu0 %v109
    %810 = vmatmul.f32.gmra.mxu0 %v463
    %v811 = vpop.f32.mrf.mxu0
    %v812 = vadd.f32 0.0, %v811
    %813 = vdwg.mxu0
    %s814 = scalar_lea.vmem %s2, 8
    %v815 = vld [vmem:[%s814] sm:$0x1]
    %v817 = vperm.slane %v815, 0
    %v819 = vmul.f32 %v812, %v817
    %v820 = vadd.f32 %v793, %v819
    %v821 = vld [vmem:[#allocation2] sm:$0x1]
    %v823 = vperm.slane %v821, 0
    %v825 = vadd.f32 %v820, %v823
    %v826 = vpack.c.bf16 %v825, %v825
    %v827 = vld [vmem:[%s4] sm:$0xf]
    %v828 = vld [vmem:[%s4 + $0x4] sm:$0xf]
    %v829 = vld [vmem:[%s4 + $0x8] sm:$0xf]
    %v830 = vld [vmem:[%s4 + $0xc] sm:$0xf]
    %v831 = vld [vmem:[%s4 + $0x10] sm:$0xf]
    %v832 = vld [vmem:[%s4 + $0x14] sm:$0xf]
    %v833 = vld [vmem:[%s4 + $0x18] sm:$0xf]
    %v834 = vld [vmem:[%s4 + $0x1c] sm:$0xf]
    %v835 = vld [vmem:[%s4 + $0x20] sm:$0xf]
    %v836 = vld [vmem:[%s4 + $0x24] sm:$0xf]
    %v837 = vld [vmem:[%s4 + $0x28] sm:$0xf]
    %v838 = vld [vmem:[%s4 + $0x2c] sm:$0xf]
    %v839 = vld [vmem:[%s4 + $0x30] sm:$0xf]
    %v840 = vld [vmem:[%s4 + $0x34] sm:$0xf]
    %v841 = vld [vmem:[%s4 + $0x38] sm:$0xf]
    %v842 = vld [vmem:[%s4 + $0x3c] sm:$0xf]
    %v843 = vld [vmem:[#allocation4] sm:$0x1]
    %v845 = vperm.slane %v843, 0
    %v863 = vunpack.c.l.b16 %v827
    %v864 = vunpack.c.l.b16 %v828
    %v865 = vunpack.c.l.b16 %v829
    %v866 = vunpack.c.l.b16 %v830
    %v867 = vunpack.c.l.b16 %v831
    %v868 = vunpack.c.l.b16 %v832
    %v869 = vunpack.c.l.b16 %v833
    %v870 = vunpack.c.l.b16 %v834
    %v871 = vunpack.c.l.b16 %v835
    %v872 = vunpack.c.l.b16 %v836
    %v873 = vunpack.c.l.b16 %v837
    %v874 = vunpack.c.l.b16 %v838
    %v875 = vunpack.c.l.b16 %v839
    %v876 = vunpack.c.l.b16 %v840
    %v877 = vunpack.c.l.b16 %v841
    %v878 = vunpack.c.l.b16 %v842
    %v879 = vpack.c.b16 %v864, %v863
    %v880 = vpack.c.b16 %v866, %v865
    %v881 = vpack.c.b16 %v868, %v867
    %v882 = vpack.c.b16 %v870, %v869
    %v883 = vpack.c.b16 %v872, %v871
    %v884 = vpack.c.b16 %v874, %v873
    %v885 = vpack.c.b16 %v876, %v875
    %v886 = vpack.c.b16 %v878, %v877
    %895 = vmatpush.bf16.msra.mxu0 %v886
    %896 = vmatpush.bf16.msra.mxu0 %v885
    %897 = vmatpush.bf16.msra.mxu0 %v884
    %898 = vmatpush.bf16.msra.mxu0 %v883
    %899 = vmatpush.bf16.msra.mxu0 %v882
    %900 = vmatpush.bf16.msra.mxu0 %v881
    %901 = vmatpush.bf16.msra.mxu0 %v880
    %902 = vmatpush.bf16.msra.mxu0 %v879
    %903 = vmatmul.bf16.gmra.mxu0 %v826
    %v904 = vpop.f32.mrf.mxu0
    %v905 = vadd.f32 %v845, %v904
    %v906 = vpop.f32.mrf.mxu0
    %907 = vdwg.mxu0
    %v908 = vmax.f32 %v905, 0.0
    %v909 = vadd.f32 %v908, %v579
    %910 = vst [vmem:[%s12] sm:$0xff] %v909
    // Predicated region
    $region70: #{forward.10} parent=1 // pred_check
      _
    $region71: #{forward.10} parent=1 // pred_check_branch
      %912 = sbr.rel (0) target = $region73
    $region72: #{forward.10} parent=1 // pred_region
      _
    $region73: #{forward.10} parent=1 // pred_fallthru
      _
    // Predicated region
    $region74: #{forward.10} parent=1 // pred_check
      _
    $region75: #{forward.10} parent=1 // pred_check_branch
      %914 = sbr.rel (0) target = $region77
    $region76: #{forward.10} parent=1 // pred_region
      _
    $region77: #{forward.10} parent=1 // pred_fallthru
      _
    %915 = vsyncpa [#allocation3], 1
    %916 = vsyncpa [#allocation5], 1
    %917 = vsyncpa [#allocation8], 1

// kernel: forward.12
$region0: #{forward.12}
  #allocation0 [shape = 'u32[]', space=smem, size = 0x4, offset = 0x4, fixed_abs, tag = 'smem constant byte address 0x4 - core index']
  #allocation1 [shape = 'u32[72,128]{1,0:T(1,128)}', space=vmem, size = 0x9000, scoped, tag = 'internal scratch']
  %s0 = inlined_call_operand.vmem [shape: f32[8,128], index: 0, kind: input, shape index: {}]
  %s1 = inlined_call_operand.vmem [shape: f32[9,2,8], index: 1, kind: input, shape index: {}]
  %s2 = inlined_call_operand.vmem [shape: f32[9,1,128], index: 2, kind: input, shape index: {}]
  %s3 = inlined_call_operand.hbm [shape: f32[1,128], index: 3, kind: input, shape index: {}]
  %s4 = inlined_call_operand.vmem [shape: bf16[128,128], index: 4, kind: input, shape index: {}]
  %s5 = inlined_call_operand.hbm [shape: f32[1,128], index: 5, kind: input, shape index: {}]
  %s6 = inlined_call_operand.vmem [shape: bf16[128,128], index: 6, kind: input, shape index: {}]
  %s7 = inlined_call_operand.hbm [shape: f32[1,128], index: 7, kind: input, shape index: {}]
  %s8 = inlined_call_operand.vmem [shape: f32[9,1,128], index: 8, kind: input, shape index: {}]
  %s9 = inlined_call_operand.hbm [shape: f32[1,128], index: 9, kind: input, shape index: {}]
  %s10 = inlined_call_operand.vmem [shape: bf16[128,128], index: 10, kind: input, shape index: {}]
  %s11 = inlined_call_operand.hbm [shape: f32[1,128], index: 11, kind: input, shape index: {}]
  %s12 = inlined_call_operand.vmem [shape: f32[2,128], index: 12, kind: output, shape index: {}]
  %s13 = sld [smem:[#allocation0]]
  $region78: #{forward.12} parent=0
    _
  %s15 = ssub.s32 1, %s13
  %s16 = scalar_select 0, %s15, %s13
  $region1: #{forward.12} parent=0
    #allocation2 [shape = 'u8[512]{0}', space=vmem, size = 0x400, scoped, tag = 'input window, operand 3, single buffered']
    #allocation3 [shape = 's32[1]{0}', space=sflag, size = 0x4, scoped, tag = 'scoped memory for forward.12']
    #allocation4 [shape = 'u8[512]{0}', space=vmem, size = 0x400, scoped, tag = 'input window, operand 5, single buffered']
    #allocation5 [shape = 's32[1]{0}', space=sflag, size = 0x4, scoped, tag = 'scoped memory for forward.12']
    #allocation6 [shape = 'u8[512]{0}', space=vmem, size = 0x400, scoped, tag = 'input window, operand 7, single buffered']
    #allocation7 [shape = 'u8[512]{0}', space=vmem, size = 0x400, scoped, tag = 'input window, operand 9, single buffered']
    #allocation8 [shape = 's32[1]{0}', space=sflag, size = 0x4, scoped, tag = 'scoped memory for forward.12']
    #allocation9 [shape = 'u8[512]{0}', space=vmem, size = 0x400, scoped, tag = 'input window, operand 11, single buffered']
    %17 = vsyncpa [#allocation3], 0
    %18 = vsyncpa [#allocation5], 0
    %19 = vsyncpa [#allocation8], 0
    // Predicated region
    $region2: #{forward.12} parent=1 // pred_check
      _
    $region3: #{forward.12} parent=1 // pred_check_branch
      %21 = sbr.rel (0) target = $region5
    $region4: #{forward.12} parent=1 // pred_region
      _
    $region5: #{forward.12} parent=1 // pred_fallthru
      _
    // Predicated region
    $region6: #{forward.12} parent=1 // pred_check
      _
    $region7: #{forward.12} parent=1 // pred_check_branch
      %23 = sbr.rel (0) target = $region9
    $region8: #{forward.12} parent=1 // pred_region
      _
    $region9: #{forward.12} parent=1 // pred_fallthru
      _
    // Predicated region
    $region10: #{forward.12} parent=1 // pred_check
      _
    $region11: #{forward.12} parent=1 // pred_check_branch
      %25 = sbr.rel (0) target = $region13
    $region12: #{forward.12} parent=1 // pred_region
      _
    $region13: #{forward.12} parent=1 // pred_fallthru
      _
    // Predicated region
    $region14: #{forward.12} parent=1 // pred_check
      _
    $region15: #{forward.12} parent=1 // pred_check_branch
      %27 = sbr.rel (0) target = $region17
    $region16: #{forward.12} parent=1 // pred_region
      %29 = vsyncadd [#allocation3], 0
      %s31 = sshll.u32 %s3, 4
      %s32 = int_to_ptr.hbm [resolvable:$true] %s31
      %s33 = sshll.u32 [#allocation2], 4
      %s34 = int_to_ptr.vmem [resolvable:$true] %s33
      %36 = dma.hbm_to_vmem [thread:$0]  %s32, 16, %s34, [#allocation3]
    $region17: #{forward.12} parent=1 // pred_fallthru
      _
    // Predicated region
    $region18: #{forward.12} parent=1 // pred_check
      _
    $region19: #{forward.12} parent=1 // pred_check_branch
      %38 = sbr.rel (0) target = $region21
    $region20: #{forward.12} parent=1 // pred_region
      _
    $region21: #{forward.12} parent=1 // pred_fallthru
      _
    // Predicated region
    $region22: #{forward.12} parent=1 // pred_check
      _
    $region23: #{forward.12} parent=1 // pred_check_branch
      %40 = sbr.rel (0) target = $region25
    $region24: #{forward.12} parent=1 // pred_region
      %42 = vsyncadd [#allocation5], 0
      %s44 = sshll.u32 %s5, 4
      %s45 = int_to_ptr.hbm [resolvable:$true] %s44
      %s46 = sshll.u32 [#allocation4], 4
      %s47 = int_to_ptr.vmem [resolvable:$true] %s46
      %49 = dma.hbm_to_vmem [thread:$0]  %s45, 16, %s47, [#allocation5]
    $region25: #{forward.12} parent=1 // pred_fallthru
      _
    // Predicated region
    $region26: #{forward.12} parent=1 // pred_check
      _
    $region27: #{forward.12} parent=1 // pred_check_branch
      %51 = sbr.rel (0) target = $region29
    $region28: #{forward.12} parent=1 // pred_region
      _
    $region29: #{forward.12} parent=1 // pred_fallthru
      _
    // Predicated region
    $region30: #{forward.12} parent=1 // pred_check
      _
    $region31: #{forward.12} parent=1 // pred_check_branch
      %53 = sbr.rel (0) target = $region33
    $region32: #{forward.12} parent=1 // pred_region
      %55 = vsyncadd [#allocation5], 0
      %s57 = sshll.u32 %s7, 4
      %s58 = int_to_ptr.hbm [resolvable:$true] %s57
      %s59 = sshll.u32 [#allocation6], 4
      %s60 = int_to_ptr.vmem [resolvable:$true] %s59
      %62 = dma.hbm_to_vmem [thread:$0]  %s58, 16, %s60, [#allocation5]
    $region33: #{forward.12} parent=1 // pred_fallthru
      _
    // Predicated region
    $region34: #{forward.12} parent=1 // pred_check
      _
    $region35: #{forward.12} parent=1 // pred_check_branch
      %64 = sbr.rel (0) target = $region37
    $region36: #{forward.12} parent=1 // pred_region
      _
    $region37: #{forward.12} parent=1 // pred_fallthru
      _
    // Predicated region
    $region38: #{forward.12} parent=1 // pred_check
      _
    $region39: #{forward.12} parent=1 // pred_check_branch
      %66 = sbr.rel (0) target = $region41
    $region40: #{forward.12} parent=1 // pred_region
      %68 = vsyncadd [#allocation8], 0
      %s70 = sshll.u32 %s9, 4
      %s71 = int_to_ptr.hbm [resolvable:$true] %s70
      %s72 = sshll.u32 [#allocation7], 4
      %s73 = int_to_ptr.vmem [resolvable:$true] %s72
      %75 = dma.hbm_to_vmem [thread:$0]  %s71, 16, %s73, [#allocation8]
    $region41: #{forward.12} parent=1 // pred_fallthru
      _
    // Predicated region
    $region42: #{forward.12} parent=1 // pred_check
      _
    $region43: #{forward.12} parent=1 // pred_check_branch
      %77 = sbr.rel (0) target = $region45
    $region44: #{forward.12} parent=1 // pred_region
      _
    $region45: #{forward.12} parent=1 // pred_fallthru
      _
    // Predicated region
    $region46: #{forward.12} parent=1 // pred_check
      _
    $region47: #{forward.12} parent=1 // pred_check_branch
      %79 = sbr.rel (0) target = $region49
    $region48: #{forward.12} parent=1 // pred_region
      %81 = vsyncadd [#allocation8], 0
      %s83 = sshll.u32 %s11, 4
      %s84 = int_to_ptr.hbm [resolvable:$true] %s83
      %s85 = sshll.u32 [#allocation9], 4
      %s86 = int_to_ptr.vmem [resolvable:$true] %s85
      %88 = dma.hbm_to_vmem [thread:$0]  %s84, 16, %s86, [#allocation8]
    $region49: #{forward.12} parent=1 // pred_fallthru
      _
    // Predicated region
    $region50: #{forward.12} parent=1 // pred_check
      _
    $region51: #{forward.12} parent=1 // pred_check_branch
      %90 = sbr.rel (0) target = $region53
    $region52: #{forward.12} parent=1 // pred_region
      %92 = dma.done [#allocation3], 16
    $region53: #{forward.12} parent=1 // pred_fallthru
      _
    // Predicated region
    $region54: #{forward.12} parent=1 // pred_check
      _
    $region55: #{forward.12} parent=1 // pred_check_branch
      %94 = sbr.rel (0) target = $region57
    $region56: #{forward.12} parent=1 // pred_region
      %96 = dma.done [#allocation5], 16
    $region57: #{forward.12} parent=1 // pred_fallthru
      _
    // Predicated region
    $region58: #{forward.12} parent=1 // pred_check
      _
    $region59: #{forward.12} parent=1 // pred_check_branch
      %98 = sbr.rel (0) target = $region61
    $region60: #{forward.12} parent=1 // pred_region
      %100 = dma.done [#allocation5], 16
    $region61: #{forward.12} parent=1 // pred_fallthru
      _
    // Predicated region
    $region62: #{forward.12} parent=1 // pred_check
      _
    $region63: #{forward.12} parent=1 // pred_check_branch
      %102 = sbr.rel (0) target = $region65
    $region64: #{forward.12} parent=1 // pred_region
      %104 = dma.done [#allocation8], 16
    $region65: #{forward.12} parent=1 // pred_fallthru
      _
    // Predicated region
    $region66: #{forward.12} parent=1 // pred_check
      _
    $region67: #{forward.12} parent=1 // pred_check_branch
      %106 = sbr.rel (0) target = $region69
    $region68: #{forward.12} parent=1 // pred_region
      %108 = dma.done [#allocation8], 16
    $region69: #{forward.12} parent=1 // pred_fallthru
      _
    %v109 = vld [vmem:[%s0] sm:$0xff]
    %v110 = vpack.c.bf16 %v109, %v109
    %v111 = vld [vmem:[%s6] sm:$0xf]
    %v112 = vld [vmem:[%s6 + $0x4] sm:$0xf]
    %v113 = vld [vmem:[%s6 + $0x8] sm:$0xf]
    %v114 = vld [vmem:[%s6 + $0xc] sm:$0xf]
    %v115 = vld [vmem:[%s6 + $0x10] sm:$0xf]
    %v116 = vld [vmem:[%s6 + $0x14] sm:$0xf]
    %v117 = vld [vmem:[%s6 + $0x18] sm:$0xf]
    %v118 = vld [vmem:[%s6 + $0x1c] sm:$0xf]
    %v119 = vld [vmem:[%s6 + $0x20] sm:$0xf]
    %v120 = vld [vmem:[%s6 + $0x24] sm:$0xf]
    %v121 = vld [vmem:[%s6 + $0x28] sm:$0xf]
    %v122 = vld [vmem:[%s6 + $0x2c] sm:$0xf]
    %v123 = vld [vmem:[%s6 + $0x30] sm:$0xf]
    %v124 = vld [vmem:[%s6 + $0x34] sm:$0xf]
    %v125 = vld [vmem:[%s6 + $0x38] sm:$0xf]
    %v126 = vld [vmem:[%s6 + $0x3c] sm:$0xf]
    %v127 = vld [vmem:[#allocation6] sm:$0x1]
    %v129 = vperm.slane %v127, 0
    %v147 = vunpack.c.l.b16 %v111
    %v148 = vunpack.c.l.b16 %v112
    %v149 = vunpack.c.l.b16 %v113
    %v150 = vunpack.c.l.b16 %v114
    %v151 = vunpack.c.l.b16 %v115
    %v152 = vunpack.c.l.b16 %v116
    %v153 = vunpack.c.l.b16 %v117
    %v154 = vunpack.c.l.b16 %v118
    %v155 = vunpack.c.l.b16 %v119
    %v156 = vunpack.c.l.b16 %v120
    %v157 = vunpack.c.l.b16 %v121
    %v158 = vunpack.c.l.b16 %v122
    %v159 = vunpack.c.l.b16 %v123
    %v160 = vunpack.c.l.b16 %v124
    %v161 = vunpack.c.l.b16 %v125
    %v162 = vunpack.c.l.b16 %v126
    %v163 = vpack.c.b16 %v148, %v147
    %v164 = vpack.c.b16 %v150, %v149
    %v165 = vpack.c.b16 %v152, %v151
    %v166 = vpack.c.b16 %v154, %v153
    %v167 = vpack.c.b16 %v156, %v155
    %v168 = vpack.c.b16 %v158, %v157
    %v169 = vpack.c.b16 %v160, %v159
    %v170 = vpack.c.b16 %v162, %v161
    %179 = vmatpush.bf16.msra.mxu0 %v170
    %180 = vmatpush.bf16.msra.mxu0 %v169
    %181 = vmatpush.bf16.msra.mxu0 %v168
    %182 = vmatpush.bf16.msra.mxu0 %v167
    %183 = vmatpush.bf16.msra.mxu0 %v166
    %184 = vmatpush.bf16.msra.mxu0 %v165
    %185 = vmatpush.bf16.msra.mxu0 %v164
    %186 = vmatpush.bf16.msra.mxu0 %v163
    %187 = vmatmul.bf16.gmra.mxu0 %v110
    %v188 = vpop.f32.mrf.mxu0
    %v189 = vadd.f32 %v129, %v188
    %v190 = vpop.f32.mrf.mxu0
    %191 = vdwg.mxu0
    %v192 = vmax.f32 %v189, 0.0
    %v193 = vld [vmem:[%s1] sm:$0x3]
    %vm194 = vcmask 64512
    %v196 = vsel %vm194, %v193, 0
    %198 = vmatpush.msra.mxu0 0.0
    %199 = vmatpush.msra.mxu0 0.0
    %200 = vmatpush.msra.mxu0 0.0
    %201 = vmatpush.msra.mxu0 0.0
    %202 = vmatpush.msra.mxu0 0.0
    %203 = vmatpush.msra.mxu0 0.0
    %204 = vmatpush.msra.mxu0 0.0
    %205 = vmatpush.msra.mxu0 0.0
    %206 = vmatpush.msra.mxu0 0.0
    %207 = vmatpush.msra.mxu0 0.0
    %208 = vmatpush.msra.mxu0 0.0
    %209 = vmatpush.msra.mxu0 0.0
    %210 = vmatpush.msra.mxu0 0.0
    %211 = vmatpush.msra.mxu0 0.0
    %212 = vmatpush.msra.mxu0 0.0
    %213 = vmatpush.msra.mxu0 %v192
    %214 = vmatmul.f32.gmra.mxu0 %v196
    %v215 = vpop.f32.mrf.mxu0
    %v216 = vadd.f32 0.0, %v215
    %217 = vdwg.mxu0
    %v218 = vld [vmem:[%s8] sm:$0x1]
    %v220 = vperm.slane %v218, 0
    %v222 = vmul.f32 %v216, %v220
    %s223 = scalar_lea.vmem %s1, 2
    %v224 = vld [vmem:[%s223] sm:$0x3]
    %v226 = vsel %vm194, %v224, 0
    %228 = vmatpush.msra.mxu0 0.0
    %229 = vmatpush.msra.mxu0 0.0
    %230 = vmatpush.msra.mxu0 0.0
    %231 = vmatpush.msra.mxu0 0.0
    %232 = vmatpush.msra.mxu0 0.0
    %233 = vmatpush.msra.mxu0 0.0
    %234 = vmatpush.msra.mxu0 0.0
    %235 = vmatpush.msra.mxu0 0.0
    %236 = vmatpush.msra.mxu0 0.0
    %237 = vmatpush.msra.mxu0 0.0
    %238 = vmatpush.msra.mxu0 0.0
    %239 = vmatpush.msra.mxu0 0.0
    %240 = vmatpush.msra.mxu0 0.0
    %241 = vmatpush.msra.mxu0 0.0
    %242 = vmatpush.msra.mxu0 0.0
    %243 = vmatpush.msra.mxu0 %v192
    %244 = vmatmul.f32.gmra.mxu0 %v226
    %v245 = vpop.f32.mrf.mxu0
    %v246 = vadd.f32 0.0, %v245
    %247 = vdwg.mxu0
    %s248 = scalar_lea.vmem %s8, 1
    %v249 = vld [vmem:[%s248] sm:$0x1]
    %v251 = vperm.slane %v249, 0
    %v253 = vmul.f32 %v246, %v251
    %v254 = vadd.f32 %v222, %v253
    %s255 = scalar_lea.vmem %s1, 4
    %v256 = vld [vmem:[%s255] sm:$0x3]
    %v258 = vsel %vm194, %v256, 0
    %260 = vmatpush.msra.mxu0 0.0
    %261 = vmatpush.msra.mxu0 0.0
    %262 = vmatpush.msra.mxu0 0.0
    %263 = vmatpush.msra.mxu0 0.0
    %264 = vmatpush.msra.mxu0 0.0
    %265 = vmatpush.msra.mxu0 0.0
    %266 = vmatpush.msra.mxu0 0.0
    %267 = vmatpush.msra.mxu0 0.0
    %268 = vmatpush.msra.mxu0 0.0
    %269 = vmatpush.msra.mxu0 0.0
    %270 = vmatpush.msra.mxu0 0.0
    %271 = vmatpush.msra.mxu0 0.0
    %272 = vmatpush.msra.mxu0 0.0
    %273 = vmatpush.msra.mxu0 0.0
    %274 = vmatpush.msra.mxu0 0.0
    %275 = vmatpush.msra.mxu0 %v192
    %276 = vmatmul.f32.gmra.mxu0 %v258
    %v277 = vpop.f32.mrf.mxu0
    %v278 = vadd.f32 0.0, %v277
    %279 = vdwg.mxu0
    %s280 = scalar_lea.vmem %s8, 2
    %v281 = vld [vmem:[%s280] sm:$0x1]
    %v283 = vperm.slane %v281, 0
    %v285 = vmul.f32 %v278, %v283
    %v286 = vadd.f32 %v254, %v285
    %s287 = scalar_lea.vmem %s1, 6
    %v288 = vld [vmem:[%s287] sm:$0x3]
    %v290 = vsel %vm194, %v288, 0
    %292 = vmatpush.msra.mxu0 0.0
    %293 = vmatpush.msra.mxu0 0.0
    %294 = vmatpush.msra.mxu0 0.0
    %295 = vmatpush.msra.mxu0 0.0
    %296 = vmatpush.msra.mxu0 0.0
    %297 = vmatpush.msra.mxu0 0.0
    %298 = vmatpush.msra.mxu0 0.0
    %299 = vmatpush.msra.mxu0 0.0
    %300 = vmatpush.msra.mxu0 0.0
    %301 = vmatpush.msra.mxu0 0.0
    %302 = vmatpush.msra.mxu0 0.0
    %303 = vmatpush.msra.mxu0 0.0
    %304 = vmatpush.msra.mxu0 0.0
    %305 = vmatpush.msra.mxu0 0.0
    %306 = vmatpush.msra.mxu0 0.0
    %307 = vmatpush.msra.mxu0 %v192
    %308 = vmatmul.f32.gmra.mxu0 %v290
    %v309 = vpop.f32.mrf.mxu0
    %v310 = vadd.f32 0.0, %v309
    %311 = vdwg.mxu0
    %s312 = scalar_lea.vmem %s8, 3
    %v313 = vld [vmem:[%s312] sm:$0x1]
    %v315 = vperm.slane %v313, 0
    %v317 = vmul.f32 %v310, %v315
    %v318 = vadd.f32 %v286, %v317
    %s319 = scalar_lea.vmem %s1, 8
    %v320 = vld [vmem:[%s319] sm:$0x3]
    %v322 = vsel %vm194, %v320, 0
    %324 = vmatpush.msra.mxu0 0.0
    %325 = vmatpush.msra.mxu0 0.0
    %326 = vmatpush.msra.mxu0 0.0
    %327 = vmatpush.msra.mxu0 0.0
    %328 = vmatpush.msra.mxu0 0.0
    %329 = vmatpush.msra.mxu0 0.0
    %330 = vmatpush.msra.mxu0 0.0
    %331 = vmatpush.msra.mxu0 0.0
    %332 = vmatpush.msra.mxu0 0.0
    %333 = vmatpush.msra.mxu0 0.0
    %334 = vmatpush.msra.mxu0 0.0
    %335 = vmatpush.msra.mxu0 0.0
    %336 = vmatpush.msra.mxu0 0.0
    %337 = vmatpush.msra.mxu0 0.0
    %338 = vmatpush.msra.mxu0 0.0
    %339 = vmatpush.msra.mxu0 %v192
    %340 = vmatmul.f32.gmra.mxu0 %v322
    %v341 = vpop.f32.mrf.mxu0
    %v342 = vadd.f32 0.0, %v341
    %343 = vdwg.mxu0
    %s344 = scalar_lea.vmem %s8, 4
    %v345 = vld [vmem:[%s344] sm:$0x1]
    %v347 = vperm.slane %v345, 0
    %v349 = vmul.f32 %v342, %v347
    %v350 = vadd.f32 %v318, %v349
    %s351 = scalar_lea.vmem %s1, 10
    %v352 = vld [vmem:[%s351] sm:$0x3]
    %v354 = vsel %vm194, %v352, 0
    %356 = vmatpush.msra.mxu0 0.0
    %357 = vmatpush.msra.mxu0 0.0
    %358 = vmatpush.msra.mxu0 0.0
    %359 = vmatpush.msra.mxu0 0.0
    %360 = vmatpush.msra.mxu0 0.0
    %361 = vmatpush.msra.mxu0 0.0
    %362 = vmatpush.msra.mxu0 0.0
    %363 = vmatpush.msra.mxu0 0.0
    %364 = vmatpush.msra.mxu0 0.0
    %365 = vmatpush.msra.mxu0 0.0
    %366 = vmatpush.msra.mxu0 0.0
    %367 = vmatpush.msra.mxu0 0.0
    %368 = vmatpush.msra.mxu0 0.0
    %369 = vmatpush.msra.mxu0 0.0
    %370 = vmatpush.msra.mxu0 0.0
    %371 = vmatpush.msra.mxu0 %v192
    %372 = vmatmul.f32.gmra.mxu0 %v354
    %v373 = vpop.f32.mrf.mxu0
    %v374 = vadd.f32 0.0, %v373
    %375 = vdwg.mxu0
    %s376 = scalar_lea.vmem %s8, 5
    %v377 = vld [vmem:[%s376] sm:$0x1]
    %v379 = vperm.slane %v377, 0
    %v381 = vmul.f32 %v374, %v379
    %v382 = vadd.f32 %v350, %v381
    %s383 = scalar_lea.vmem %s1, 12
    %v384 = vld [vmem:[%s383] sm:$0x3]
    %v386 = vsel %vm194, %v384, 0
    %388 = vmatpush.msra.mxu0 0.0
    %389 = vmatpush.msra.mxu0 0.0
    %390 = vmatpush.msra.mxu0 0.0
    %391 = vmatpush.msra.mxu0 0.0
    %392 = vmatpush.msra.mxu0 0.0
    %393 = vmatpush.msra.mxu0 0.0
    %394 = vmatpush.msra.mxu0 0.0
    %395 = vmatpush.msra.mxu0 0.0
    %396 = vmatpush.msra.mxu0 0.0
    %397 = vmatpush.msra.mxu0 0.0
    %398 = vmatpush.msra.mxu0 0.0
    %399 = vmatpush.msra.mxu0 0.0
    %400 = vmatpush.msra.mxu0 0.0
    %401 = vmatpush.msra.mxu0 0.0
    %402 = vmatpush.msra.mxu0 0.0
    %403 = vmatpush.msra.mxu0 %v192
    %404 = vmatmul.f32.gmra.mxu0 %v386
    %v405 = vpop.f32.mrf.mxu0
    %v406 = vadd.f32 0.0, %v405
    %407 = vdwg.mxu0
    %s408 = scalar_lea.vmem %s8, 6
    %v409 = vld [vmem:[%s408] sm:$0x1]
    %v411 = vperm.slane %v409, 0
    %v413 = vmul.f32 %v406, %v411
    %v414 = vadd.f32 %v382, %v413
    %s415 = scalar_lea.vmem %s1, 14
    %v416 = vld [vmem:[%s415] sm:$0x3]
    %v418 = vsel %vm194, %v416, 0
    %420 = vmatpush.msra.mxu0 0.0
    %421 = vmatpush.msra.mxu0 0.0
    %422 = vmatpush.msra.mxu0 0.0
    %423 = vmatpush.msra.mxu0 0.0
    %424 = vmatpush.msra.mxu0 0.0
    %425 = vmatpush.msra.mxu0 0.0
    %426 = vmatpush.msra.mxu0 0.0
    %427 = vmatpush.msra.mxu0 0.0
    %428 = vmatpush.msra.mxu0 0.0
    %429 = vmatpush.msra.mxu0 0.0
    %430 = vmatpush.msra.mxu0 0.0
    %431 = vmatpush.msra.mxu0 0.0
    %432 = vmatpush.msra.mxu0 0.0
    %433 = vmatpush.msra.mxu0 0.0
    %434 = vmatpush.msra.mxu0 0.0
    %435 = vmatpush.msra.mxu0 %v192
    %436 = vmatmul.f32.gmra.mxu0 %v418
    %v437 = vpop.f32.mrf.mxu0
    %v438 = vadd.f32 0.0, %v437
    %439 = vdwg.mxu0
    %s440 = scalar_lea.vmem %s8, 7
    %v441 = vld [vmem:[%s440] sm:$0x1]
    %v443 = vperm.slane %v441, 0
    %v445 = vmul.f32 %v438, %v443
    %v446 = vadd.f32 %v414, %v445
    %s447 = scalar_lea.vmem %s1, 16
    %v448 = vld [vmem:[%s447] sm:$0x3]
    %v450 = vsel %vm194, %v448, 0
    %452 = vmatpush.msra.mxu0 0.0
    %453 = vmatpush.msra.mxu0 0.0
    %454 = vmatpush.msra.mxu0 0.0
    %455 = vmatpush.msra.mxu0 0.0
    %456 = vmatpush.msra.mxu0 0.0
    %457 = vmatpush.msra.mxu0 0.0
    %458 = vmatpush.msra.mxu0 0.0
    %459 = vmatpush.msra.mxu0 0.0
    %460 = vmatpush.msra.mxu0 0.0
    %461 = vmatpush.msra.mxu0 0.0
    %462 = vmatpush.msra.mxu0 0.0
    %463 = vmatpush.msra.mxu0 0.0
    %464 = vmatpush.msra.mxu0 0.0
    %465 = vmatpush.msra.mxu0 0.0
    %466 = vmatpush.msra.mxu0 0.0
    %467 = vmatpush.msra.mxu0 %v192
    %468 = vmatmul.f32.gmra.mxu0 %v450
    %v469 = vpop.f32.mrf.mxu0
    %v470 = vadd.f32 0.0, %v469
    %471 = vdwg.mxu0
    %s472 = scalar_lea.vmem %s8, 8
    %v473 = vld [vmem:[%s472] sm:$0x1]
    %v475 = vperm.slane %v473, 0
    %v477 = vmul.f32 %v470, %v475
    %v478 = vadd.f32 %v446, %v477
    %v479 = vld [vmem:[#allocation7] sm:$0x1]
    %v481 = vperm.slane %v479, 0
    %v483 = vadd.f32 %v478, %v481
    %v484 = vpack.c.bf16 %v483, %v483
    %v485 = vld [vmem:[%s10] sm:$0xf]
    %v486 = vld [vmem:[%s10 + $0x4] sm:$0xf]
    %v487 = vld [vmem:[%s10 + $0x8] sm:$0xf]
    %v488 = vld [vmem:[%s10 + $0xc] sm:$0xf]
    %v489 = vld [vmem:[%s10 + $0x10] sm:$0xf]
    %v490 = vld [vmem:[%s10 + $0x14] sm:$0xf]
    %v491 = vld [vmem:[%s10 + $0x18] sm:$0xf]
    %v492 = vld [vmem:[%s10 + $0x1c] sm:$0xf]
    %v493 = vld [vmem:[%s10 + $0x20] sm:$0xf]
    %v494 = vld [vmem:[%s10 + $0x24] sm:$0xf]
    %v495 = vld [vmem:[%s10 + $0x28] sm:$0xf]
    %v496 = vld [vmem:[%s10 + $0x2c] sm:$0xf]
    %v497 = vld [vmem:[%s10 + $0x30] sm:$0xf]
    %v498 = vld [vmem:[%s10 + $0x34] sm:$0xf]
    %v499 = vld [vmem:[%s10 + $0x38] sm:$0xf]
    %v500 = vld [vmem:[%s10 + $0x3c] sm:$0xf]
    %v501 = vld [vmem:[#allocation9] sm:$0x1]
    %v503 = vperm.slane %v501, 0
    %v521 = vunpack.c.l.b16 %v485
    %v522 = vunpack.c.l.b16 %v486
    %v523 = vunpack.c.l.b16 %v487
    %v524 = vunpack.c.l.b16 %v488
    %v525 = vunpack.c.l.b16 %v489
    %v526 = vunpack.c.l.b16 %v490
    %v527 = vunpack.c.l.b16 %v491
    %v528 = vunpack.c.l.b16 %v492
    %v529 = vunpack.c.l.b16 %v493
    %v530 = vunpack.c.l.b16 %v494
    %v531 = vunpack.c.l.b16 %v495
    %v532 = vunpack.c.l.b16 %v496
    %v533 = vunpack.c.l.b16 %v497
    %v534 = vunpack.c.l.b16 %v498
    %v535 = vunpack.c.l.b16 %v499
    %v536 = vunpack.c.l.b16 %v500
    %v537 = vpack.c.b16 %v522, %v521
    %v538 = vpack.c.b16 %v524, %v523
    %v539 = vpack.c.b16 %v526, %v525
    %v540 = vpack.c.b16 %v528, %v527
    %v541 = vpack.c.b16 %v530, %v529
    %v542 = vpack.c.b16 %v532, %v531
    %v543 = vpack.c.b16 %v534, %v533
    %v544 = vpack.c.b16 %v536, %v535
    %553 = vmatpush.bf16.msra.mxu0 %v544
    %554 = vmatpush.bf16.msra.mxu0 %v543
    %555 = vmatpush.bf16.msra.mxu0 %v542
    %556 = vmatpush.bf16.msra.mxu0 %v541
    %557 = vmatpush.bf16.msra.mxu0 %v540
    %558 = vmatpush.bf16.msra.mxu0 %v539
    %559 = vmatpush.bf16.msra.mxu0 %v538
    %560 = vmatpush.bf16.msra.mxu0 %v537
    %561 = vmatmul.bf16.gmra.mxu0 %v484
    %v562 = vpop.f32.mrf.mxu0
    %v563 = vadd.f32 %v503, %v562
    %v564 = vpop.f32.mrf.mxu0
    %565 = vdwg.mxu0
    %v566 = vmax.f32 %v563, 0.0
    %567 = vmatpush.msra.mxu0 0.0
    %568 = vmatpush.msra.mxu0 0.0
    %569 = vmatpush.msra.mxu0 0.0
    %570 = vmatpush.msra.mxu0 0.0
    %571 = vmatpush.msra.mxu0 0.0
    %572 = vmatpush.msra.mxu0 0.0
    %573 = vmatpush.msra.mxu0 0.0
    %574 = vmatpush.msra.mxu0 0.0
    %575 = vmatpush.msra.mxu0 0.0
    %576 = vmatpush.msra.mxu0 0.0
    %577 = vmatpush.msra.mxu0 0.0
    %578 = vmatpush.msra.mxu0 0.0
    %579 = vmatpush.msra.mxu0 0.0
    %580 = vmatpush.msra.mxu0 0.0
    %581 = vmatpush.msra.mxu0 0.0
    %582 = vmatpush.msra.mxu0 %v109
    %583 = vmatmul.f32.gmra.mxu0 %v196
    %v584 = vpop.f32.mrf.mxu0
    %v585 = vadd.f32 0.0, %v584
    %586 = vdwg.mxu0
    %v587 = vld [vmem:[%s2] sm:$0x1]
    %v589 = vperm.slane %v587, 0
    %v591 = vmul.f32 %v585, %v589
    %592 = vmatpush.msra.mxu0 0.0
    %593 = vmatpush.msra.mxu0 0.0
    %594 = vmatpush.msra.mxu0 0.0
    %595 = vmatpush.msra.mxu0 0.0
    %596 = vmatpush.msra.mxu0 0.0
    %597 = vmatpush.msra.mxu0 0.0
    %598 = vmatpush.msra.mxu0 0.0
    %599 = vmatpush.msra.mxu0 0.0
    %600 = vmatpush.msra.mxu0 0.0
    %601 = vmatpush.msra.mxu0 0.0
    %602 = vmatpush.msra.mxu0 0.0
    %603 = vmatpush.msra.mxu0 0.0
    %604 = vmatpush.msra.mxu0 0.0
    %605 = vmatpush.msra.mxu0 0.0
    %606 = vmatpush.msra.mxu0 0.0
    %607 = vmatpush.msra.mxu0 %v109
    %608 = vmatmul.f32.gmra.mxu0 %v226
    %v609 = vpop.f32.mrf.mxu0
    %v610 = vadd.f32 0.0, %v609
    %611 = vdwg.mxu0
    %s612 = scalar_lea.vmem %s2, 1
    %v613 = vld [vmem:[%s612] sm:$0x1]
    %v615 = vperm.slane %v613, 0
    %v617 = vmul.f32 %v610, %v615
    %v618 = vadd.f32 %v591, %v617
    %619 = vmatpush.msra.mxu0 0.0
    %620 = vmatpush.msra.mxu0 0.0
    %621 = vmatpush.msra.mxu0 0.0
    %622 = vmatpush.msra.mxu0 0.0
    %623 = vmatpush.msra.mxu0 0.0
    %624 = vmatpush.msra.mxu0 0.0
    %625 = vmatpush.msra.mxu0 0.0
    %626 = vmatpush.msra.mxu0 0.0
    %627 = vmatpush.msra.mxu0 0.0
    %628 = vmatpush.msra.mxu0 0.0
    %629 = vmatpush.msra.mxu0 0.0
    %630 = vmatpush.msra.mxu0 0.0
    %631 = vmatpush.msra.mxu0 0.0
    %632 = vmatpush.msra.mxu0 0.0
    %633 = vmatpush.msra.mxu0 0.0
    %634 = vmatpush.msra.mxu0 %v109
    %635 = vmatmul.f32.gmra.mxu0 %v258
    %v636 = vpop.f32.mrf.mxu0
    %v637 = vadd.f32 0.0, %v636
    %638 = vdwg.mxu0
    %s639 = scalar_lea.vmem %s2, 2
    %v640 = vld [vmem:[%s639] sm:$0x1]
    %v642 = vperm.slane %v640, 0
    %v644 = vmul.f32 %v637, %v642
    %v645 = vadd.f32 %v618, %v644
    %646 = vmatpush.msra.mxu0 0.0
    %647 = vmatpush.msra.mxu0 0.0
    %648 = vmatpush.msra.mxu0 0.0
    %649 = vmatpush.msra.mxu0 0.0
    %650 = vmatpush.msra.mxu0 0.0
    %651 = vmatpush.msra.mxu0 0.0
    %652 = vmatpush.msra.mxu0 0.0
    %653 = vmatpush.msra.mxu0 0.0
    %654 = vmatpush.msra.mxu0 0.0
    %655 = vmatpush.msra.mxu0 0.0
    %656 = vmatpush.msra.mxu0 0.0
    %657 = vmatpush.msra.mxu0 0.0
    %658 = vmatpush.msra.mxu0 0.0
    %659 = vmatpush.msra.mxu0 0.0
    %660 = vmatpush.msra.mxu0 0.0
    %661 = vmatpush.msra.mxu0 %v109
    %662 = vmatmul.f32.gmra.mxu0 %v290
    %v663 = vpop.f32.mrf.mxu0
    %v664 = vadd.f32 0.0, %v663
    %665 = vdwg.mxu0
    %s666 = scalar_lea.vmem %s2, 3
    %v667 = vld [vmem:[%s666] sm:$0x1]
    %v669 = vperm.slane %v667, 0
    %v671 = vmul.f32 %v664, %v669
    %v672 = vadd.f32 %v645, %v671
    %673 = vmatpush.msra.mxu0 0.0
    %674 = vmatpush.msra.mxu0 0.0
    %675 = vmatpush.msra.mxu0 0.0
    %676 = vmatpush.msra.mxu0 0.0
    %677 = vmatpush.msra.mxu0 0.0
    %678 = vmatpush.msra.mxu0 0.0
    %679 = vmatpush.msra.mxu0 0.0
    %680 = vmatpush.msra.mxu0 0.0
    %681 = vmatpush.msra.mxu0 0.0
    %682 = vmatpush.msra.mxu0 0.0
    %683 = vmatpush.msra.mxu0 0.0
    %684 = vmatpush.msra.mxu0 0.0
    %685 = vmatpush.msra.mxu0 0.0
    %686 = vmatpush.msra.mxu0 0.0
    %687 = vmatpush.msra.mxu0 0.0
    %688 = vmatpush.msra.mxu0 %v109
    %689 = vmatmul.f32.gmra.mxu0 %v322
    %v690 = vpop.f32.mrf.mxu0
    %v691 = vadd.f32 0.0, %v690
    %692 = vdwg.mxu0
    %s693 = scalar_lea.vmem %s2, 4
    %v694 = vld [vmem:[%s693] sm:$0x1]
    %v696 = vperm.slane %v694, 0
    %v698 = vmul.f32 %v691, %v696
    %v699 = vadd.f32 %v672, %v698
    %700 = vmatpush.msra.mxu0 0.0
    %701 = vmatpush.msra.mxu0 0.0
    %702 = vmatpush.msra.mxu0 0.0
    %703 = vmatpush.msra.mxu0 0.0
    %704 = vmatpush.msra.mxu0 0.0
    %705 = vmatpush.msra.mxu0 0.0
    %706 = vmatpush.msra.mxu0 0.0
    %707 = vmatpush.msra.mxu0 0.0
    %708 = vmatpush.msra.mxu0 0.0
    %709 = vmatpush.msra.mxu0 0.0
    %710 = vmatpush.msra.mxu0 0.0
    %711 = vmatpush.msra.mxu0 0.0
    %712 = vmatpush.msra.mxu0 0.0
    %713 = vmatpush.msra.mxu0 0.0
    %714 = vmatpush.msra.mxu0 0.0
    %715 = vmatpush.msra.mxu0 %v109
    %716 = vmatmul.f32.gmra.mxu0 %v354
    %v717 = vpop.f32.mrf.mxu0
    %v718 = vadd.f32 0.0, %v717
    %719 = vdwg.mxu0
    %s720 = scalar_lea.vmem %s2, 5
    %v721 = vld [vmem:[%s720] sm:$0x1]
    %v723 = vperm.slane %v721, 0
    %v725 = vmul.f32 %v718, %v723
    %v726 = vadd.f32 %v699, %v725
    %727 = vmatpush.msra.mxu0 0.0
    %728 = vmatpush.msra.mxu0 0.0
    %729 = vmatpush.msra.mxu0 0.0
    %730 = vmatpush.msra.mxu0 0.0
    %731 = vmatpush.msra.mxu0 0.0
    %732 = vmatpush.msra.mxu0 0.0
    %733 = vmatpush.msra.mxu0 0.0
    %734 = vmatpush.msra.mxu0 0.0
    %735 = vmatpush.msra.mxu0 0.0
    %736 = vmatpush.msra.mxu0 0.0
    %737 = vmatpush.msra.mxu0 0.0
    %738 = vmatpush.msra.mxu0 0.0
    %739 = vmatpush.msra.mxu0 0.0
    %740 = vmatpush.msra.mxu0 0.0
    %741 = vmatpush.msra.mxu0 0.0
    %742 = vmatpush.msra.mxu0 %v109
    %743 = vmatmul.f32.gmra.mxu0 %v386
    %v744 = vpop.f32.mrf.mxu0
    %v745 = vadd.f32 0.0, %v744
    %746 = vdwg.mxu0
    %s747 = scalar_lea.vmem %s2, 6
    %v748 = vld [vmem:[%s747] sm:$0x1]
    %v750 = vperm.slane %v748, 0
    %v752 = vmul.f32 %v745, %v750
    %v753 = vadd.f32 %v726, %v752
    %754 = vmatpush.msra.mxu0 0.0
    %755 = vmatpush.msra.mxu0 0.0
    %756 = vmatpush.msra.mxu0 0.0
    %757 = vmatpush.msra.mxu0 0.0
    %758 = vmatpush.msra.mxu0 0.0
    %759 = vmatpush.msra.mxu0 0.0
    %760 = vmatpush.msra.mxu0 0.0
    %761 = vmatpush.msra.mxu0 0.0
    %762 = vmatpush.msra.mxu0 0.0
    %763 = vmatpush.msra.mxu0 0.0
    %764 = vmatpush.msra.mxu0 0.0
    %765 = vmatpush.msra.mxu0 0.0
    %766 = vmatpush.msra.mxu0 0.0
    %767 = vmatpush.msra.mxu0 0.0
    %768 = vmatpush.msra.mxu0 0.0
    %769 = vmatpush.msra.mxu0 %v109
    %770 = vmatmul.f32.gmra.mxu0 %v418
    %v771 = vpop.f32.mrf.mxu0
    %v772 = vadd.f32 0.0, %v771
    %773 = vdwg.mxu0
    %s774 = scalar_lea.vmem %s2, 7
    %v775 = vld [vmem:[%s774] sm:$0x1]
    %v777 = vperm.slane %v775, 0
    %v779 = vmul.f32 %v772, %v777
    %v780 = vadd.f32 %v753, %v779
    %781 = vmatpush.msra.mxu0 0.0
    %782 = vmatpush.msra.mxu0 0.0
    %783 = vmatpush.msra.mxu0 0.0
    %784 = vmatpush.msra.mxu0 0.0
    %785 = vmatpush.msra.mxu0 0.0
    %786 = vmatpush.msra.mxu0 0.0
    %787 = vmatpush.msra.mxu0 0.0
    %788 = vmatpush.msra.mxu0 0.0
    %789 = vmatpush.msra.mxu0 0.0
    %790 = vmatpush.msra.mxu0 0.0
    %791 = vmatpush.msra.mxu0 0.0
    %792 = vmatpush.msra.mxu0 0.0
    %793 = vmatpush.msra.mxu0 0.0
    %794 = vmatpush.msra.mxu0 0.0
    %795 = vmatpush.msra.mxu0 0.0
    %796 = vmatpush.msra.mxu0 %v109
    %797 = vmatmul.f32.gmra.mxu0 %v450
    %v798 = vpop.f32.mrf.mxu0
    %v799 = vadd.f32 0.0, %v798
    %800 = vdwg.mxu0
    %s801 = scalar_lea.vmem %s2, 8
    %v802 = vld [vmem:[%s801] sm:$0x1]
    %v804 = vperm.slane %v802, 0
    %v806 = vmul.f32 %v799, %v804
    %v807 = vadd.f32 %v780, %v806
    %v808 = vld [vmem:[#allocation2] sm:$0x1]
    %v810 = vperm.slane %v808, 0
    %v812 = vadd.f32 %v807, %v810
    %v813 = vpack.c.bf16 %v812, %v812
    %v814 = vld [vmem:[%s4] sm:$0xf]
    %v815 = vld [vmem:[%s4 + $0x4] sm:$0xf]
    %v816 = vld [vmem:[%s4 + $0x8] sm:$0xf]
    %v817 = vld [vmem:[%s4 + $0xc] sm:$0xf]
    %v818 = vld [vmem:[%s4 + $0x10] sm:$0xf]
    %v819 = vld [vmem:[%s4 + $0x14] sm:$0xf]
    %v820 = vld [vmem:[%s4 + $0x18] sm:$0xf]
    %v821 = vld [vmem:[%s4 + $0x1c] sm:$0xf]
    %v822 = vld [vmem:[%s4 + $0x20] sm:$0xf]
    %v823 = vld [vmem:[%s4 + $0x24] sm:$0xf]
    %v824 = vld [vmem:[%s4 + $0x28] sm:$0xf]
    %v825 = vld [vmem:[%s4 + $0x2c] sm:$0xf]
    %v826 = vld [vmem:[%s4 + $0x30] sm:$0xf]
    %v827 = vld [vmem:[%s4 + $0x34] sm:$0xf]
    %v828 = vld [vmem:[%s4 + $0x38] sm:$0xf]
    %v829 = vld [vmem:[%s4 + $0x3c] sm:$0xf]
    %v830 = vld [vmem:[#allocation4] sm:$0x1]
    %v832 = vperm.slane %v830, 0
    %v850 = vunpack.c.l.b16 %v814
    %v851 = vunpack.c.l.b16 %v815
    %v852 = vunpack.c.l.b16 %v816
    %v853 = vunpack.c.l.b16 %v817
    %v854 = vunpack.c.l.b16 %v818
    %v855 = vunpack.c.l.b16 %v819
    %v856 = vunpack.c.l.b16 %v820
    %v857 = vunpack.c.l.b16 %v821
    %v858 = vunpack.c.l.b16 %v822
    %v859 = vunpack.c.l.b16 %v823
    %v860 = vunpack.c.l.b16 %v824
    %v861 = vunpack.c.l.b16 %v825
    %v862 = vunpack.c.l.b16 %v826
    %v863 = vunpack.c.l.b16 %v827
    %v864 = vunpack.c.l.b16 %v828
    %v865 = vunpack.c.l.b16 %v829
    %v866 = vpack.c.b16 %v851, %v850
    %v867 = vpack.c.b16 %v853, %v852
    %v868 = vpack.c.b16 %v855, %v854
    %v869 = vpack.c.b16 %v857, %v856
    %v870 = vpack.c.b16 %v859, %v858
    %v871 = vpack.c.b16 %v861, %v860
    %v872 = vpack.c.b16 %v863, %v862
    %v873 = vpack.c.b16 %v865, %v864
    %882 = vmatpush.bf16.msra.mxu0 %v873
    %883 = vmatpush.bf16.msra.mxu0 %v872
    %884 = vmatpush.bf16.msra.mxu0 %v871
    %885 = vmatpush.bf16.msra.mxu0 %v870
    %886 = vmatpush.bf16.msra.mxu0 %v869
    %887 = vmatpush.bf16.msra.mxu0 %v868
    %888 = vmatpush.bf16.msra.mxu0 %v867
    %889 = vmatpush.bf16.msra.mxu0 %v866
    %890 = vmatmul.bf16.gmra.mxu0 %v813
    %v891 = vpop.f32.mrf.mxu0
    %v892 = vadd.f32 %v832, %v891
    %v893 = vpop.f32.mrf.mxu0
    %894 = vdwg.mxu0
    %v895 = vmax.f32 %v892, 0.0
    %v896 = vadd.f32 %v895, %v566
    %897 = vst [vmem:[%s12] sm:$0x3] %v896
    // Predicated region
    $region70: #{forward.12} parent=1 // pred_check
      _
    $region71: #{forward.12} parent=1 // pred_check_branch
      %899 = sbr.rel (0) target = $region73
    $region72: #{forward.12} parent=1 // pred_region
      _
    $region73: #{forward.12} parent=1 // pred_fallthru
      _
    // Predicated region
    $region74: #{forward.12} parent=1 // pred_check
      _
    $region75: #{forward.12} parent=1 // pred_check_branch
      %901 = sbr.rel (0) target = $region77
    $region76: #{forward.12} parent=1 // pred_region
      _
    $region77: #{forward.12} parent=1 // pred_fallthru
      _
    %902 = vsyncpa [#allocation3], 1
    %903 = vsyncpa [#allocation5], 1
    %904 = vsyncpa [#allocation8], 1

// kernel: forward.7
$region0: #{forward.7}
  #allocation0 [shape = 'u32[]', space=smem, size = 0x4, offset = 0x4, fixed_abs, tag = 'smem constant byte address 0x4 - core index']
  #allocation1 [shape = 'u32[72,128]{1,0:T(1,128)}', space=vmem, size = 0x9000, scoped, tag = 'internal scratch']
  %s0 = inlined_call_operand.vmem [shape: bf16[512,32], index: 0, kind: input, shape index: {}]
  %s1 = inlined_call_operand.hbm [shape: bf16[32,128], index: 1, kind: input, shape index: {}]
  %s2 = inlined_call_operand.hbm [shape: f32[1,128], index: 2, kind: input, shape index: {}]
  %s3 = inlined_call_operand.hbm [shape: f32[9,128,512], index: 3, kind: input, shape index: {}]
  %s4 = inlined_call_operand.vmem [shape: f32[9,128,1], index: 4, kind: input, shape index: {}]
  %s5 = inlined_call_operand.vmem [shape: f32[128,128], index: 5, kind: output, shape index: {}]
  %s6 = sld [smem:[#allocation0]]
  $region42: #{forward.7} parent=0
    _
  %s8 = ssub.s32 1, %s6
  %s9 = scalar_select 0, %s8, %s6
  $region1: #{forward.7} parent=0
    #allocation2 [shape = 'u8[8192]{0}', space=vmem, size = 0x2000, scoped, tag = 'input window, operand 1, single buffered']
    #allocation3 [shape = 's32[1]{0}', space=sflag, size = 0x4, scoped, tag = 'scoped memory for forward.7']
    #allocation4 [shape = 'u8[512]{0}', space=vmem, size = 0x400, scoped, tag = 'input window, operand 2, single buffered']
    #allocation5 [shape = 's32[1]{0}', space=sflag, size = 0x4, scoped, tag = 'scoped memory for forward.7']
    #allocation6 [shape = 'u8[2359296]{0}', space=vmem, size = 0x240000, scoped, tag = 'input window, operand 3, single buffered']
    %10 = vsyncpa [#allocation3], 0
    %11 = vsyncpa [#allocation5], 0
    // Predicated region
    $region2: #{forward.7} parent=1 // pred_check
      _
    $region3: #{forward.7} parent=1 // pred_check_branch
      %13 = sbr.rel (0) target = $region5
    $region4: #{forward.7} parent=1 // pred_region
      _
    $region5: #{forward.7} parent=1 // pred_fallthru
      _
    // Predicated region
    $region6: #{forward.7} parent=1 // pred_check
      _
    $region7: #{forward.7} parent=1 // pred_check_branch
      %15 = sbr.rel (0) target = $region9
    $region8: #{forward.7} parent=1 // pred_region
      %17 = vsyncadd [#allocation3], 0
      %s18 = sshll.u32 %s1, 4
      %s19 = int_to_ptr.hbm [resolvable:$true] %s18
      %s20 = sshll.u32 [#allocation2], 4
      %s21 = int_to_ptr.vmem [resolvable:$true] %s20
      %26 = dma.hbm_to_vmem [thread:$0]  %s19, 256, %s21, [#allocation3], 64, 64, 4
    $region9: #{forward.7} parent=1 // pred_fallthru
      _
    // Predicated region
    $region10: #{forward.7} parent=1 // pred_check
      _
    $region11: #{forward.7} parent=1 // pred_check_branch
      %28 = sbr.rel (0) target = $region13
    $region12: #{forward.7} parent=1 // pred_region
      %30 = vsyncadd [#allocation5], 0
      %s32 = sshll.u32 %s2, 4
      %s33 = int_to_ptr.hbm [resolvable:$true] %s32
      %s34 = sshll.u32 [#allocation4], 4
      %s35 = int_to_ptr.vmem [resolvable:$true] %s34
      %37 = dma.hbm_to_vmem [thread:$0]  %s33, 16, %s35, [#allocation5]
    $region13: #{forward.7} parent=1 // pred_fallthru
      _
    // Predicated region
    $region14: #{forward.7} parent=1 // pred_check
      _
    $region15: #{forward.7} parent=1 // pred_check_branch
      %39 = sbr.rel (0) target = $region17
    $region16: #{forward.7} parent=1 // pred_region
      %41 = vsyncadd [#allocation5], 0
      %s42 = sshll.u32 %s3, 4
      %s43 = int_to_ptr.hbm [resolvable:$true] %s42
      %s44 = sshll.u32 [#allocation6], 4
      %s45 = int_to_ptr.vmem [resolvable:$true] %s44
      %50 = dma.hbm_to_vmem [thread:$0]  %s43, 73728, %s45, [#allocation5], 512, 512, 32
    $region17: #{forward.7} parent=1 // pred_fallthru
      _
    // Predicated region
    $region18: #{forward.7} parent=1 // pred_check
      _
    $region19: #{forward.7} parent=1 // pred_check_branch
      %52 = sbr.rel (0) target = $region21
    $region20: #{forward.7} parent=1 // pred_region
      _
    $region21: #{forward.7} parent=1 // pred_fallthru
      _
    // Predicated region
    $region22: #{forward.7} parent=1 // pred_check
      _
    $region23: #{forward.7} parent=1 // pred_check_branch
      %54 = sbr.rel (0) target = $region25
    $region24: #{forward.7} parent=1 // pred_region
      %56 = dma.done [#allocation3], 256
    $region25: #{forward.7} parent=1 // pred_fallthru
      _
    // Predicated region
    $region26: #{forward.7} parent=1 // pred_check
      _
    $region27: #{forward.7} parent=1 // pred_check_branch
      %58 = sbr.rel (0) target = $region29
    $region28: #{forward.7} parent=1 // pred_region
      %60 = dma.done [#allocation5], 16
    $region29: #{forward.7} parent=1 // pred_fallthru
      _
    // Predicated region
    $region30: #{forward.7} parent=1 // pred_check
      _
    $region31: #{forward.7} parent=1 // pred_check_branch
      %62 = sbr.rel (0) target = $region33
    $region32: #{forward.7} parent=1 // pred_region
      %64 = dma.done [#allocation5], 73728
    $region33: #{forward.7} parent=1 // pred_fallthru
      _
    %v66 = vld [vmem:[%s0] sm:$0xf]
    %v67 = vld [vmem:[%s0 + $0x4] sm:$0xf]
    %v68 = vld [vmem:[%s0 + $0x8] sm:$0xf]
    %v69 = vld [vmem:[%s0 + $0xc] sm:$0xf]
    %v70 = vld [vmem:[%s0 + $0x10] sm:$0xf]
    %v71 = vld [vmem:[%s0 + $0x14] sm:$0xf]
    %v72 = vld [vmem:[%s0 + $0x18] sm:$0xf]
    %v73 = vld [vmem:[%s0 + $0x1c] sm:$0xf]
    %v74 = vld [vmem:[%s0 + $0x20] sm:$0xf]
    %v75 = vld [vmem:[%s0 + $0x24] sm:$0xf]
    %v76 = vld [vmem:[%s0 + $0x28] sm:$0xf]
    %v77 = vld [vmem:[%s0 + $0x2c] sm:$0xf]
    %v78 = vld [vmem:[%s0 + $0x30] sm:$0xf]
    %v79 = vld [vmem:[%s0 + $0x34] sm:$0xf]
    %v80 = vld [vmem:[%s0 + $0x38] sm:$0xf]
    %v81 = vld [vmem:[%s0 + $0x3c] sm:$0xf]
    %v82 = vld [vmem:[%s0 + $0x40] sm:$0xf]
    %v83 = vld [vmem:[%s0 + $0x44] sm:$0xf]
    %v84 = vld [vmem:[%s0 + $0x48] sm:$0xf]
    %v85 = vld [vmem:[%s0 + $0x4c] sm:$0xf]
    %v86 = vld [vmem:[%s0 + $0x50] sm:$0xf]
    %v87 = vld [vmem:[%s0 + $0x54] sm:$0xf]
    %v88 = vld [vmem:[%s0 + $0x58] sm:$0xf]
    %v89 = vld [vmem:[%s0 + $0x5c] sm:$0xf]
    %v90 = vld [vmem:[%s0 + $0x60] sm:$0xf]
    %v91 = vld [vmem:[%s0 + $0x64] sm:$0xf]
    %v92 = vld [vmem:[%s0 + $0x68] sm:$0xf]
    %v93 = vld [vmem:[%s0 + $0x6c] sm:$0xf]
    %v94 = vld [vmem:[%s0 + $0x70] sm:$0xf]
    %v95 = vld [vmem:[%s0 + $0x74] sm:$0xf]
    %v96 = vld [vmem:[%s0 + $0x78] sm:$0xf]
    %v97 = vld [vmem:[%s0 + $0x7c] sm:$0xf]
    %v98 = vld [vmem:[%s0 + $0x80] sm:$0xf]
    %v99 = vld [vmem:[%s0 + $0x84] sm:$0xf]
    %v100 = vld [vmem:[%s0 + $0x88] sm:$0xf]
    %v101 = vld [vmem:[%s0 + $0x8c] sm:$0xf]
    %v102 = vld [vmem:[%s0 + $0x90] sm:$0xf]
    %v103 = vld [vmem:[%s0 + $0x94] sm:$0xf]
    %v104 = vld [vmem:[%s0 + $0x98] sm:$0xf]
    %v105 = vld [vmem:[%s0 + $0x9c] sm:$0xf]
    %v106 = vld [vmem:[%s0 + $0xa0] sm:$0xf]
    %v107 = vld [vmem:[%s0 + $0xa4] sm:$0xf]
    %v108 = vld [vmem:[%s0 + $0xa8] sm:$0xf]
    %v109 = vld [vmem:[%s0 + $0xac] sm:$0xf]
    %v110 = vld [vmem:[%s0 + $0xb0] sm:$0xf]
    %v111 = vld [vmem:[%s0 + $0xb4] sm:$0xf]
    %v112 = vld [vmem:[%s0 + $0xb8] sm:$0xf]
    %v113 = vld [vmem:[%s0 + $0xbc] sm:$0xf]
    %v114 = vld [vmem:[%s0 + $0xc0] sm:$0xf]
    %v115 = vld [vmem:[%s0 + $0xc4] sm:$0xf]
    %v116 = vld [vmem:[%s0 + $0xc8] sm:$0xf]
    %v117 = vld [vmem:[%s0 + $0xcc] sm:$0xf]
    %v118 = vld [vmem:[%s0 + $0xd0] sm:$0xf]
    %v119 = vld [vmem:[%s0 + $0xd4] sm:$0xf]
    %v120 = vld [vmem:[%s0 + $0xd8] sm:$0xf]
    %v121 = vld [vmem:[%s0 + $0xdc] sm:$0xf]
    %v122 = vld [vmem:[%s0 + $0xe0] sm:$0xf]
    %v123 = vld [vmem:[%s0 + $0xe4] sm:$0xf]
    %v124 = vld [vmem:[%s0 + $0xe8] sm:$0xf]
    %v125 = vld [vmem:[%s0 + $0xec] sm:$0xf]
    %v126 = vld [vmem:[%s0 + $0xf0] sm:$0xf]
    %v127 = vld [vmem:[%s0 + $0xf4] sm:$0xf]
    %v128 = vld [vmem:[%s0 + $0xf8] sm:$0xf]
    %v129 = vld [vmem:[%s0 + $0xfc] sm:$0xf]
    %v130 = vld [vmem:[#allocation2] sm:$0xf]
    %v131 = vld [vmem:[#allocation2 + $0x4] sm:$0xf]
    %v132 = vld [vmem:[#allocation2 + $0x8] sm:$0xf]
    %v133 = vld [vmem:[#allocation2 + $0xc] sm:$0xf]
    %v134 = vld [vmem:[#allocation4] sm:$0x1]
    %v136 = vperm.slane %v134, 0
    %v202 = vunpack.c.l.b16 %v66
    %v203 = vunpack.c.l.b16 %v67
    %v204 = vunpack.c.l.b16 %v68
    %v205 = vunpack.c.l.b16 %v69
    %v206 = vunpack.c.l.b16 %v70
    %v207 = vunpack.c.l.b16 %v71
    %v208 = vunpack.c.l.b16 %v72
    %v209 = vunpack.c.l.b16 %v73
    %v210 = vunpack.c.l.b16 %v74
    %v211 = vunpack.c.l.b16 %v75
    %v212 = vunpack.c.l.b16 %v76
    %v213 = vunpack.c.l.b16 %v77
    %v214 = vunpack.c.l.b16 %v78
    %v215 = vunpack.c.l.b16 %v79
    %v216 = vunpack.c.l.b16 %v80
    %v217 = vunpack.c.l.b16 %v81
    %v218 = vunpack.c.l.b16 %v82
    %v219 = vunpack.c.l.b16 %v83
    %v220 = vunpack.c.l.b16 %v84
    %v221 = vunpack.c.l.b16 %v85
    %v222 = vunpack.c.l.b16 %v86
    %v223 = vunpack.c.l.b16 %v87
    %v224 = vunpack.c.l.b16 %v88
    %v225 = vunpack.c.l.b16 %v89
    %v226 = vunpack.c.l.b16 %v90
    %v227 = vunpack.c.l.b16 %v91
    %v228 = vunpack.c.l.b16 %v92
    %v229 = vunpack.c.l.b16 %v93
    %v230 = vunpack.c.l.b16 %v94
    %v231 = vunpack.c.l.b16 %v95
    %v232 = vunpack.c.l.b16 %v96
    %v233 = vunpack.c.l.b16 %v97
    %v234 = vunpack.c.l.b16 %v98
    %v235 = vunpack.c.l.b16 %v99
    %v236 = vunpack.c.l.b16 %v100
    %v237 = vunpack.c.l.b16 %v101
    %v238 = vunpack.c.l.b16 %v102
    %v239 = vunpack.c.l.b16 %v103
    %v240 = vunpack.c.l.b16 %v104
    %v241 = vunpack.c.l.b16 %v105
    %v242 = vunpack.c.l.b16 %v106
    %v243 = vunpack.c.l.b16 %v107
    %v244 = vunpack.c.l.b16 %v108
    %v245 = vunpack.c.l.b16 %v109
    %v246 = vunpack.c.l.b16 %v110
    %v247 = vunpack.c.l.b16 %v111
    %v248 = vunpack.c.l.b16 %v112
    %v249 = vunpack.c.l.b16 %v113
    %v250 = vunpack.c.l.b16 %v114
    %v251 = vunpack.c.l.b16 %v115
    %v252 = vunpack.c.l.b16 %v116
    %v253 = vunpack.c.l.b16 %v117
    %v254 = vunpack.c.l.b16 %v118
    %v255 = vunpack.c.l.b16 %v119
    %v256 = vunpack.c.l.b16 %v120
    %v257 = vunpack.c.l.b16 %v121
    %v258 = vunpack.c.l.b16 %v122
    %v259 = vunpack.c.l.b16 %v123
    %v260 = vunpack.c.l.b16 %v124
    %v261 = vunpack.c.l.b16 %v125
    %v262 = vunpack.c.l.b16 %v126
    %v263 = vunpack.c.l.b16 %v127
    %v264 = vunpack.c.l.b16 %v128
    %v265 = vunpack.c.l.b16 %v129
    %v266 = vpack.c.b16 %v203, %v202
    %v267 = vpack.c.b16 %v205, %v204
    %v268 = vpack.c.b16 %v207, %v206
    %v269 = vpack.c.b16 %v209, %v208
    %v270 = vpack.c.b16 %v211, %v210
    %v271 = vpack.c.b16 %v213, %v212
    %v272 = vpack.c.b16 %v215, %v214
    %v273 = vpack.c.b16 %v217, %v216
    %v274 = vpack.c.b16 %v219, %v218
    %v275 = vpack.c.b16 %v221, %v220
    %v276 = vpack.c.b16 %v223, %v222
    %v277 = vpack.c.b16 %v225, %v224
    %v278 = vpack.c.b16 %v227, %v226
    %v279 = vpack.c.b16 %v229, %v228
    %v280 = vpack.c.b16 %v231, %v230
    %v281 = vpack.c.b16 %v233, %v232
    %v282 = vpack.c.b16 %v235, %v234
    %v283 = vpack.c.b16 %v237, %v236
    %v284 = vpack.c.b16 %v239, %v238
    %v285 = vpack.c.b16 %v241, %v240
    %v286 = vpack.c.b16 %v243, %v242
    %v287 = vpack.c.b16 %v245, %v244
    %v288 = vpack.c.b16 %v247, %v246
    %v289 = vpack.c.b16 %v249, %v248
    %v290 = vpack.c.b16 %v251, %v250
    %v291 = vpack.c.b16 %v253, %v252
    %v292 = vpack.c.b16 %v255, %v254
    %v293 = vpack.c.b16 %v257, %v256
    %v294 = vpack.c.b16 %v259, %v258
    %v295 = vpack.c.b16 %v261, %v260
    %v296 = vpack.c.b16 %v263, %v262
    %v297 = vpack.c.b16 %v265, %v264
    %v302 = vunpack.c.l.b16 %v130
    %v303 = vunpack.c.l.b16 %v131
    %v304 = vunpack.c.l.b16 %v132
    %v305 = vunpack.c.l.b16 %v133
    %v306 = vpack.c.b16 %v303, %v302
    %v307 = vpack.c.b16 %v305, %v304
    %vm310 = vcmask 261120
    %v312 = vsel %vm310, %v266, 0
    %v315 = vsel %vm310, %v267, 0
    %v318 = vsel %vm310, %v268, 0
    %v321 = vsel %vm310, %v269, 0
    %v324 = vsel %vm310, %v270, 0
    %v327 = vsel %vm310, %v271, 0
    %v330 = vsel %vm310, %v272, 0
    %v333 = vsel %vm310, %v273, 0
    %v336 = vsel %vm310, %v274, 0
    %v339 = vsel %vm310, %v275, 0
    %v342 = vsel %vm310, %v276, 0
    %v345 = vsel %vm310, %v277, 0
    %v348 = vsel %vm310, %v278, 0
    %v351 = vsel %vm310, %v279, 0
    %v354 = vsel %vm310, %v280, 0
    %v357 = vsel %vm310, %v281, 0
    %v360 = vsel %vm310, %v282, 0
    %v363 = vsel %vm310, %v283, 0
    %v366 = vsel %vm310, %v284, 0
    %v369 = vsel %vm310, %v285, 0
    %v372 = vsel %vm310, %v286, 0
    %v375 = vsel %vm310, %v287, 0
    %v378 = vsel %vm310, %v288, 0
    %v381 = vsel %vm310, %v289, 0
    %v384 = vsel %vm310, %v290, 0
    %v387 = vsel %vm310, %v291, 0
    %v390 = vsel %vm310, %v292, 0
    %v393 = vsel %vm310, %v293, 0
    %v396 = vsel %vm310, %v294, 0
    %v399 = vsel %vm310, %v295, 0
    %v402 = vsel %vm310, %v296, 0
    %v405 = vsel %vm310, %v297, 0
    %407 = vmatpush.bf16.msra.mxu0 0
    %408 = vmatpush.bf16.msra.mxu0 0
    %409 = vmatpush.bf16.msra.mxu0 0
    %410 = vmatpush.bf16.msra.mxu0 0
    %411 = vmatpush.bf16.msra.mxu0 0
    %412 = vmatpush.bf16.msra.mxu0 0
    %413 = vmatpush.bf16.msra.mxu0 %v307
    %414 = vmatpush.bf16.msra.mxu0 %v306
    %415 = vmatmul.bf16.gmra.mxu0 %v312
    %v416 = vpop.f32.mrf.mxu0
    %v417 = vadd.f32 %v136, %v416
    %v418 = vpop.f32.mrf.mxu0
    %v419 = vadd.f32 %v136, %v418
    %420 = vmatmul.bf16.gmra.mxu0 %v315
    %v421 = vpop.f32.mrf.mxu0
    %v422 = vadd.f32 %v136, %v421
    %v423 = vpop.f32.mrf.mxu0
    %v424 = vadd.f32 %v136, %v423
    %425 = vmatmul.bf16.gmra.mxu0 %v318
    %v426 = vpop.f32.mrf.mxu0
    %v427 = vadd.f32 %v136, %v426
    %v428 = vpop.f32.mrf.mxu0
    %v429 = vadd.f32 %v136, %v428
    %430 = vmatmul.bf16.gmra.mxu0 %v321
    %v431 = vpop.f32.mrf.mxu0
    %v432 = vadd.f32 %v136, %v431
    %v433 = vpop.f32.mrf.mxu0
    %v434 = vadd.f32 %v136, %v433
    %435 = vmatmul.bf16.gmra.mxu0 %v324
    %v436 = vpop.f32.mrf.mxu0
    %v437 = vadd.f32 %v136, %v436
    %v438 = vpop.f32.mrf.mxu0
    %v439 = vadd.f32 %v136, %v438
    %440 = vmatmul.bf16.gmra.mxu0 %v327
    %v441 = vpop.f32.mrf.mxu0
    %v442 = vadd.f32 %v136, %v441
    %v443 = vpop.f32.mrf.mxu0
    %v444 = vadd.f32 %v136, %v443
    %445 = vmatmul.bf16.gmra.mxu0 %v330
    %v446 = vpop.f32.mrf.mxu0
    %v447 = vadd.f32 %v136, %v446
    %v448 = vpop.f32.mrf.mxu0
    %v449 = vadd.f32 %v136, %v448
    %450 = vmatmul.bf16.gmra.mxu0 %v333
    %v451 = vpop.f32.mrf.mxu0
    %v452 = vadd.f32 %v136, %v451
    %v453 = vpop.f32.mrf.mxu0
    %v454 = vadd.f32 %v136, %v453
    %455 = vmatmul.bf16.gmra.mxu0 %v336
    %v456 = vpop.f32.mrf.mxu0
    %v457 = vadd.f32 %v136, %v456
    %v458 = vpop.f32.mrf.mxu0
    %v459 = vadd.f32 %v136, %v458
    %460 = vmatmul.bf16.gmra.mxu0 %v339
    %v461 = vpop.f32.mrf.mxu0
    %v462 = vadd.f32 %v136, %v461
    %v463 = vpop.f32.mrf.mxu0
    %v464 = vadd.f32 %v136, %v463
    %465 = vmatmul.bf16.gmra.mxu0 %v342
    %v466 = vpop.f32.mrf.mxu0
    %v467 = vadd.f32 %v136, %v466
    %v468 = vpop.f32.mrf.mxu0
    %v469 = vadd.f32 %v136, %v468
    %470 = vmatmul.bf16.gmra.mxu0 %v345
    %v471 = vpop.f32.mrf.mxu0
    %v472 = vadd.f32 %v136, %v471
    %v473 = vpop.f32.mrf.mxu0
    %v474 = vadd.f32 %v136, %v473
    %475 = vmatmul.bf16.gmra.mxu0 %v348
    %v476 = vpop.f32.mrf.mxu0
    %v477 = vadd.f32 %v136, %v476
    %v478 = vpop.f32.mrf.mxu0
    %v479 = vadd.f32 %v136, %v478
    %480 = vmatmul.bf16.gmra.mxu0 %v351
    %v481 = vpop.f32.mrf.mxu0
    %v482 = vadd.f32 %v136, %v481
    %v483 = vpop.f32.mrf.mxu0
    %v484 = vadd.f32 %v136, %v483
    %485 = vmatmul.bf16.gmra.mxu0 %v354
    %v486 = vpop.f32.mrf.mxu0
    %v487 = vadd.f32 %v136, %v486
    %v488 = vpop.f32.mrf.mxu0
    %v489 = vadd.f32 %v136, %v488
    %490 = vmatmul.bf16.gmra.mxu0 %v357
    %v491 = vpop.f32.mrf.mxu0
    %v492 = vadd.f32 %v136, %v491
    %v493 = vpop.f32.mrf.mxu0
    %v494 = vadd.f32 %v136, %v493
    %495 = vmatmul.bf16.gmra.mxu0 %v360
    %v496 = vpop.f32.mrf.mxu0
    %v497 = vadd.f32 %v136, %v496
    %v498 = vpop.f32.mrf.mxu0
    %v499 = vadd.f32 %v136, %v498
    %500 = vmatmul.bf16.gmra.mxu0 %v363
    %v501 = vpop.f32.mrf.mxu0
    %v502 = vadd.f32 %v136, %v501
    %v503 = vpop.f32.mrf.mxu0
    %v504 = vadd.f32 %v136, %v503
    %505 = vmatmul.bf16.gmra.mxu0 %v366
    %v506 = vpop.f32.mrf.mxu0
    %v507 = vadd.f32 %v136, %v506
    %v508 = vpop.f32.mrf.mxu0
    %v509 = vadd.f32 %v136, %v508
    %510 = vmatmul.bf16.gmra.mxu0 %v369
    %v511 = vpop.f32.mrf.mxu0
    %v512 = vadd.f32 %v136, %v511
    %v513 = vpop.f32.mrf.mxu0
    %v514 = vadd.f32 %v136, %v513
    %515 = vmatmul.bf16.gmra.mxu0 %v372
    %v516 = vpop.f32.mrf.mxu0
    %v517 = vadd.f32 %v136, %v516
    %v518 = vpop.f32.mrf.mxu0
    %v519 = vadd.f32 %v136, %v518
    %520 = vmatmul.bf16.gmra.mxu0 %v375
    %v521 = vpop.f32.mrf.mxu0
    %v522 = vadd.f32 %v136, %v521
    %v523 = vpop.f32.mrf.mxu0
    %v524 = vadd.f32 %v136, %v523
    %525 = vmatmul.bf16.gmra.mxu0 %v378
    %v526 = vpop.f32.mrf.mxu0
    %v527 = vadd.f32 %v136, %v526
    %v528 = vpop.f32.mrf.mxu0
    %v529 = vadd.f32 %v136, %v528
    %530 = vmatmul.bf16.gmra.mxu0 %v381
    %v531 = vpop.f32.mrf.mxu0
    %v532 = vadd.f32 %v136, %v531
    %v533 = vpop.f32.mrf.mxu0
    %v534 = vadd.f32 %v136, %v533
    %535 = vmatmul.bf16.gmra.mxu0 %v384
    %v536 = vpop.f32.mrf.mxu0
    %v537 = vadd.f32 %v136, %v536
    %v538 = vpop.f32.mrf.mxu0
    %v539 = vadd.f32 %v136, %v538
    %540 = vmatmul.bf16.gmra.mxu0 %v387
    %v541 = vpop.f32.mrf.mxu0
    %v542 = vadd.f32 %v136, %v541
    %v543 = vpop.f32.mrf.mxu0
    %v544 = vadd.f32 %v136, %v543
    %545 = vmatmul.bf16.gmra.mxu0 %v390
    %v546 = vpop.f32.mrf.mxu0
    %v547 = vadd.f32 %v136, %v546
    %v548 = vpop.f32.mrf.mxu0
    %v549 = vadd.f32 %v136, %v548
    %550 = vmatmul.bf16.gmra.mxu0 %v393
    %v551 = vpop.f32.mrf.mxu0
    %v552 = vadd.f32 %v136, %v551
    %v553 = vpop.f32.mrf.mxu0
    %v554 = vadd.f32 %v136, %v553
    %555 = vmatmul.bf16.gmra.mxu0 %v396
    %v556 = vpop.f32.mrf.mxu0
    %v557 = vadd.f32 %v136, %v556
    %v558 = vpop.f32.mrf.mxu0
    %v559 = vadd.f32 %v136, %v558
    %560 = vmatmul.bf16.gmra.mxu0 %v399
    %v561 = vpop.f32.mrf.mxu0
    %v562 = vadd.f32 %v136, %v561
    %v563 = vpop.f32.mrf.mxu0
    %v564 = vadd.f32 %v136, %v563
    %565 = vmatmul.bf16.gmra.mxu0 %v402
    %v566 = vpop.f32.mrf.mxu0
    %v567 = vadd.f32 %v136, %v566
    %v568 = vpop.f32.mrf.mxu0
    %v569 = vadd.f32 %v136, %v568
    %570 = vmatmul.bf16.gmra.mxu0 %v405
    %v571 = vpop.f32.mrf.mxu0
    %v572 = vadd.f32 %v136, %v571
    %v573 = vpop.f32.mrf.mxu0
    %v574 = vadd.f32 %v136, %v573
    %575 = vdwg.mxu0
    %v576 = vmax.f32 %v417, 0.0
    %v577 = vmax.f32 %v419, 0.0
    %v578 = vmax.f32 %v422, 0.0
    %v579 = vmax.f32 %v424, 0.0
    %v580 = vmax.f32 %v427, 0.0
    %v581 = vmax.f32 %v429, 0.0
    %v582 = vmax.f32 %v432, 0.0
    %v583 = vmax.f32 %v434, 0.0
    %v584 = vmax.f32 %v437, 0.0
    %v585 = vmax.f32 %v439, 0.0
    %v586 = vmax.f32 %v442, 0.0
    %v587 = vmax.f32 %v444, 0.0
    %v588 = vmax.f32 %v447, 0.0
    %v589 = vmax.f32 %v449, 0.0
    %v590 = vmax.f32 %v452, 0.0
    %v591 = vmax.f32 %v454, 0.0
    %v592 = vmax.f32 %v457, 0.0
    %v593 = vmax.f32 %v459, 0.0
    %v594 = vmax.f32 %v462, 0.0
    %v595 = vmax.f32 %v464, 0.0
    %v596 = vmax.f32 %v467, 0.0
    %v597 = vmax.f32 %v469, 0.0
    %v598 = vmax.f32 %v472, 0.0
    %v599 = vmax.f32 %v474, 0.0
    %v600 = vmax.f32 %v477, 0.0
    %v601 = vmax.f32 %v479, 0.0
    %v602 = vmax.f32 %v482, 0.0
    %v603 = vmax.f32 %v484, 0.0
    %v604 = vmax.f32 %v487, 0.0
    %v605 = vmax.f32 %v489, 0.0
    %v606 = vmax.f32 %v492, 0.0
    %v607 = vmax.f32 %v494, 0.0
    %v608 = vmax.f32 %v497, 0.0
    %v609 = vmax.f32 %v499, 0.0
    %v610 = vmax.f32 %v502, 0.0
    %v611 = vmax.f32 %v504, 0.0
    %v612 = vmax.f32 %v507, 0.0
    %v613 = vmax.f32 %v509, 0.0
    %v614 = vmax.f32 %v512, 0.0
    %v615 = vmax.f32 %v514, 0.0
    %v616 = vmax.f32 %v517, 0.0
    %v617 = vmax.f32 %v519, 0.0
    %v618 = vmax.f32 %v522, 0.0
    %v619 = vmax.f32 %v524, 0.0
    %v620 = vmax.f32 %v527, 0.0
    %v621 = vmax.f32 %v529, 0.0
    %v622 = vmax.f32 %v532, 0.0
    %v623 = vmax.f32 %v534, 0.0
    %v624 = vmax.f32 %v537, 0.0
    %v625 = vmax.f32 %v539, 0.0
    %v626 = vmax.f32 %v542, 0.0
    %v627 = vmax.f32 %v544, 0.0
    %v628 = vmax.f32 %v547, 0.0
    %v629 = vmax.f32 %v549, 0.0
    %v630 = vmax.f32 %v552, 0.0
    %v631 = vmax.f32 %v554, 0.0
    %v632 = vmax.f32 %v557, 0.0
    %v633 = vmax.f32 %v559, 0.0
    %v634 = vmax.f32 %v562, 0.0
    %v635 = vmax.f32 %v564, 0.0
    %v636 = vmax.f32 %v567, 0.0
    %v637 = vmax.f32 %v569, 0.0
    %v638 = vmax.f32 %v572, 0.0
    %v639 = vmax.f32 %v574, 0.0
    %v640 = vld [vmem:[#allocation6] sm:$0xff]
    %v641 = vld [vmem:[#allocation6 + $0x8] sm:$0xff]
    %v642 = vld [vmem:[#allocation6 + $0x10] sm:$0xff]
    %v643 = vld [vmem:[#allocation6 + $0x18] sm:$0xff]
    %v644 = vld [vmem:[#allocation6 + $0x20] sm:$0xff]
    %v645 = vld [vmem:[#allocation6 + $0x28] sm:$0xff]
    %v646 = vld [vmem:[#allocation6 + $0x30] sm:$0xff]
    %v647 = vld [vmem:[#allocation6 + $0x38] sm:$0xff]
    %v648 = vld [vmem:[#allocation6 + $0x40] sm:$0xff]
    %v649 = vld [vmem:[#allocation6 + $0x48] sm:$0xff]
    %v650 = vld [vmem:[#allocation6 + $0x50] sm:$0xff]
    %v651 = vld [vmem:[#allocation6 + $0x58] sm:$0xff]
    %v652 = vld [vmem:[#allocation6 + $0x60] sm:$0xff]
    %v653 = vld [vmem:[#allocation6 + $0x68] sm:$0xff]
    %v654 = vld [vmem:[#allocation6 + $0x70] sm:$0xff]
    %v655 = vld [vmem:[#allocation6 + $0x78] sm:$0xff]
    %v656 = vld [vmem:[#allocation6 + $0x80] sm:$0xff]
    %v657 = vld [vmem:[#allocation6 + $0x88] sm:$0xff]
    %v658 = vld [vmem:[#allocation6 + $0x90] sm:$0xff]
    %v659 = vld [vmem:[#allocation6 + $0x98] sm:$0xff]
    %v660 = vld [vmem:[#allocation6 + $0xa0] sm:$0xff]
    %v661 = vld [vmem:[#allocation6 + $0xa8] sm:$0xff]
    %v662 = vld [vmem:[#allocation6 + $0xb0] sm:$0xff]
    %v663 = vld [vmem:[#allocation6 + $0xb8] sm:$0xff]
    %v664 = vld [vmem:[#allocation6 + $0xc0] sm:$0xff]
    %v665 = vld [vmem:[#allocation6 + $0xc8] sm:$0xff]
    %v666 = vld [vmem:[#allocation6 + $0xd0] sm:$0xff]
    %v667 = vld [vmem:[#allocation6 + $0xd8] sm:$0xff]
    %v668 = vld [vmem:[#allocation6 + $0xe0] sm:$0xff]
    %v669 = vld [vmem:[#allocation6 + $0xe8] sm:$0xff]
    %v670 = vld [vmem:[#allocation6 + $0xf0] sm:$0xff]
    %v671 = vld [vmem:[#allocation6 + $0xf8] sm:$0xff]
    %v672 = vld [vmem:[#allocation6 + $0x100] sm:$0xff]
    %v673 = vld [vmem:[#allocation6 + $0x108] sm:$0xff]
    %v674 = vld [vmem:[#allocation6 + $0x110] sm:$0xff]
    %v675 = vld [vmem:[#allocation6 + $0x118] sm:$0xff]
    %v676 = vld [vmem:[#allocation6 + $0x120] sm:$0xff]
    %v677 = vld [vmem:[#allocation6 + $0x128] sm:$0xff]
    %v678 = vld [vmem:[#allocation6 + $0x130] sm:$0xff]
    %v679 = vld [vmem:[#allocation6 + $0x138] sm:$0xff]
    %v680 = vld [vmem:[#allocation6 + $0x140] sm:$0xff]
    %v681 = vld [vmem:[#allocation6 + $0x148] sm:$0xff]
    %v682 = vld [vmem:[#allocation6 + $0x150] sm:$0xff]
    %v683 = vld [vmem:[#allocation6 + $0x158] sm:$0xff]
    %v684 = vld [vmem:[#allocation6 + $0x160] sm:$0xff]
    %v685 = vld [vmem:[#allocation6 + $0x168] sm:$0xff]
    %v686 = vld [vmem:[#allocation6 + $0x170] sm:$0xff]
    %v687 = vld [vmem:[#allocation6 + $0x178] sm:$0xff]
    %v688 = vld [vmem:[#allocation6 + $0x180] sm:$0xff]
    %v689 = vld [vmem:[#allocation6 + $0x188] sm:$0xff]
    %v690 = vld [vmem:[#allocation6 + $0x190] sm:$0xff]
    %v691 = vld [vmem:[#allocation6 + $0x198] sm:$0xff]
    %v692 = vld [vmem:[#allocation6 + $0x1a0] sm:$0xff]
    %v693 = vld [vmem:[#allocation6 + $0x1a8] sm:$0xff]
    %v694 = vld [vmem:[#allocation6 + $0x1b0] sm:$0xff]
    %v695 = vld [vmem:[#allocation6 + $0x1b8] sm:$0xff]
    %v696 = vld [vmem:[#allocation6 + $0x1c0] sm:$0xff]
    %v697 = vld [vmem:[#allocation6 + $0x1c8] sm:$0xff]
    %v698 = vld [vmem:[#allocation6 + $0x1d0] sm:$0xff]
    %v699 = vld [vmem:[#allocation6 + $0x1d8] sm:$0xff]
    %v700 = vld [vmem:[#allocation6 + $0x1e0] sm:$0xff]
    %v701 = vld [vmem:[#allocation6 + $0x1e8] sm:$0xff]
    %v702 = vld [vmem:[#allocation6 + $0x1f0] sm:$0xff]
    %v703 = vld [vmem:[#allocation6 + $0x1f8] sm:$0xff]
    %v704 = vld [vmem:[%s4] sm:$0xff]
    %v705 = vld [vmem:[%s4 + $0x8] sm:$0xff]
    %v706 = vld [vmem:[%s4 + $0x10] sm:$0xff]
    %v707 = vld [vmem:[%s4 + $0x18] sm:$0xff]
    %v708 = vld [vmem:[%s4 + $0x20] sm:$0xff]
    %v709 = vld [vmem:[%s4 + $0x28] sm:$0xff]
    %v710 = vld [vmem:[%s4 + $0x30] sm:$0xff]
    %v711 = vld [vmem:[%s4 + $0x38] sm:$0xff]
    %v712 = vld [vmem:[%s4 + $0x40] sm:$0xff]
    %v713 = vld [vmem:[%s4 + $0x48] sm:$0xff]
    %v714 = vld [vmem:[%s4 + $0x50] sm:$0xff]
    %v715 = vld [vmem:[%s4 + $0x58] sm:$0xff]
    %v716 = vld [vmem:[%s4 + $0x60] sm:$0xff]
    %v717 = vld [vmem:[%s4 + $0x68] sm:$0xff]
    %v718 = vld [vmem:[%s4 + $0x70] sm:$0xff]
    %v719 = vld [vmem:[%s4 + $0x78] sm:$0xff]
    %721 = vset.pattern.permute.xlu0 0
    %722 = vperm.xlu0 %721, %v704
    %v723 = vpop.permute.xlu0 %722
    %726 = vset.pattern.permute.xlu0 0
    %727 = vperm.xlu0 %726, %v705
    %v728 = vpop.permute.xlu0 %727
    %731 = vset.pattern.permute.xlu0 0
    %732 = vperm.xlu0 %731, %v706
    %v733 = vpop.permute.xlu0 %732
    %736 = vset.pattern.permute.xlu0 0
    %737 = vperm.xlu0 %736, %v707
    %v738 = vpop.permute.xlu0 %737
    %741 = vset.pattern.permute.xlu0 0
    %742 = vperm.xlu0 %741, %v708
    %v743 = vpop.permute.xlu0 %742
    %746 = vset.pattern.permute.xlu0 0
    %747 = vperm.xlu0 %746, %v709
    %v748 = vpop.permute.xlu0 %747
    %751 = vset.pattern.permute.xlu0 0
    %752 = vperm.xlu0 %751, %v710
    %v753 = vpop.permute.xlu0 %752
    %756 = vset.pattern.permute.xlu0 0
    %757 = vperm.xlu0 %756, %v711
    %v758 = vpop.permute.xlu0 %757
    %761 = vset.pattern.permute.xlu0 0
    %762 = vperm.xlu0 %761, %v712
    %v763 = vpop.permute.xlu0 %762
    %766 = vset.pattern.permute.xlu0 0
    %767 = vperm.xlu0 %766, %v713
    %v768 = vpop.permute.xlu0 %767
    %771 = vset.pattern.permute.xlu0 0
    %772 = vperm.xlu0 %771, %v714
    %v773 = vpop.permute.xlu0 %772
    %776 = vset.pattern.permute.xlu0 0
    %777 = vperm.xlu0 %776, %v715
    %v778 = vpop.permute.xlu0 %777
    %781 = vset.pattern.permute.xlu0 0
    %782 = vperm.xlu0 %781, %v716
    %v783 = vpop.permute.xlu0 %782
    %786 = vset.pattern.permute.xlu0 0
    %787 = vperm.xlu0 %786, %v717
    %v788 = vpop.permute.xlu0 %787
    %791 = vset.pattern.permute.xlu0 0
    %792 = vperm.xlu0 %791, %v718
    %v793 = vpop.permute.xlu0 %792
    %796 = vset.pattern.permute.xlu0 0
    %797 = vperm.xlu0 %796, %v719
    %v798 = vpop.permute.xlu0 %797
    %800 = vmatpush.msra.mxu0 %v591
    %801 = vmatpush.msra.mxu0 %v590
    %802 = vmatpush.msra.mxu0 %v589
    %803 = vmatpush.msra.mxu0 %v588
    %804 = vmatpush.msra.mxu0 %v587
    %805 = vmatpush.msra.mxu0 %v586
    %806 = vmatpush.msra.mxu0 %v585
    %807 = vmatpush.msra.mxu0 %v584
    %808 = vmatpush.msra.mxu0 %v583
    %809 = vmatpush.msra.mxu0 %v582
    %810 = vmatpush.msra.mxu0 %v581
    %811 = vmatpush.msra.mxu0 %v580
    %812 = vmatpush.msra.mxu0 %v579
    %813 = vmatpush.msra.mxu0 %v578
    %814 = vmatpush.msra.mxu0 %v577
    %815 = vmatpush.msra.mxu0 %v576
    %816 = vmatmul.f32.gmra.mxu0 %v640
    %v817 = vpop.f32.mrf.mxu0
    %v818 = vadd.f32 %v723, %v817
    %819 = vmatmul.f32.gmra.mxu0 %v644
    %v820 = vpop.f32.mrf.mxu0
    %v821 = vadd.f32 %v728, %v820
    %822 = vmatmul.f32.gmra.mxu0 %v648
    %v823 = vpop.f32.mrf.mxu0
    %v824 = vadd.f32 %v733, %v823
    %825 = vmatmul.f32.gmra.mxu0 %v652
    %v826 = vpop.f32.mrf.mxu0
    %v827 = vadd.f32 %v738, %v826
    %828 = vmatmul.f32.gmra.mxu0 %v656
    %v829 = vpop.f32.mrf.mxu0
    %v830 = vadd.f32 %v743, %v829
    %831 = vmatmul.f32.gmra.mxu0 %v660
    %v832 = vpop.f32.mrf.mxu0
    %v833 = vadd.f32 %v748, %v832
    %834 = vmatmul.f32.gmra.mxu0 %v664
    %v835 = vpop.f32.mrf.mxu0
    %v836 = vadd.f32 %v753, %v835
    %837 = vmatmul.f32.gmra.mxu0 %v668
    %v838 = vpop.f32.mrf.mxu0
    %v839 = vadd.f32 %v758, %v838
    %840 = vmatmul.f32.gmra.mxu0 %v672
    %v841 = vpop.f32.mrf.mxu0
    %v842 = vadd.f32 %v763, %v841
    %843 = vmatmul.f32.gmra.mxu0 %v676
    %v844 = vpop.f32.mrf.mxu0
    %v845 = vadd.f32 %v768, %v844
    %846 = vmatmul.f32.gmra.mxu0 %v680
    %v847 = vpop.f32.mrf.mxu0
    %v848 = vadd.f32 %v773, %v847
    %849 = vmatmul.f32.gmra.mxu0 %v684
    %v850 = vpop.f32.mrf.mxu0
    %v851 = vadd.f32 %v778, %v850
    %852 = vmatmul.f32.gmra.mxu0 %v688
    %v853 = vpop.f32.mrf.mxu0
    %v854 = vadd.f32 %v783, %v853
    %855 = vmatmul.f32.gmra.mxu0 %v692
    %v856 = vpop.f32.mrf.mxu0
    %v857 = vadd.f32 %v788, %v856
    %858 = vmatmul.f32.gmra.mxu0 %v696
    %v859 = vpop.f32.mrf.mxu0
    %v860 = vadd.f32 %v793, %v859
    %861 = vmatmul.f32.gmra.mxu0 %v700
    %v862 = vpop.f32.mrf.mxu0
    %v863 = vadd.f32 %v798, %v862
    %864 = vdwg.mxu0
    %865 = vmatpush.msra.mxu0 %v607
    %866 = vmatpush.msra.mxu0 %v606
    %867 = vmatpush.msra.mxu0 %v605
    %868 = vmatpush.msra.mxu0 %v604
    %869 = vmatpush.msra.mxu0 %v603
    %870 = vmatpush.msra.mxu0 %v602
    %871 = vmatpush.msra.mxu0 %v601
    %872 = vmatpush.msra.mxu0 %v600
    %873 = vmatpush.msra.mxu0 %v599
    %874 = vmatpush.msra.mxu0 %v598
    %875 = vmatpush.msra.mxu0 %v597
    %876 = vmatpush.msra.mxu0 %v596
    %877 = vmatpush.msra.mxu0 %v595
    %878 = vmatpush.msra.mxu0 %v594
    %879 = vmatpush.msra.mxu0 %v593
    %880 = vmatpush.msra.mxu0 %v592
    %881 = vmatmul.f32.gmra.mxu0 %v641
    %v882 = vpop.f32.mrf.mxu0
    %v883 = vadd.f32 %v818, %v882
    %884 = vmatmul.f32.gmra.mxu0 %v645
    %v885 = vpop.f32.mrf.mxu0
    %v886 = vadd.f32 %v821, %v885
    %887 = vmatmul.f32.gmra.mxu0 %v649
    %v888 = vpop.f32.mrf.mxu0
    %v889 = vadd.f32 %v824, %v888
    %890 = vmatmul.f32.gmra.mxu0 %v653
    %v891 = vpop.f32.mrf.mxu0
    %v892 = vadd.f32 %v827, %v891
    %893 = vmatmul.f32.gmra.mxu0 %v657
    %v894 = vpop.f32.mrf.mxu0
    %v895 = vadd.f32 %v830, %v894
    %896 = vmatmul.f32.gmra.mxu0 %v661
    %v897 = vpop.f32.mrf.mxu0
    %v898 = vadd.f32 %v833, %v897
    %899 = vmatmul.f32.gmra.mxu0 %v665
    %v900 = vpop.f32.mrf.mxu0
    %v901 = vadd.f32 %v836, %v900
    %902 = vmatmul.f32.gmra.mxu0 %v669
    %v903 = vpop.f32.mrf.mxu0
    %v904 = vadd.f32 %v839, %v903
    %905 = vmatmul.f32.gmra.mxu0 %v673
    %v906 = vpop.f32.mrf.mxu0
    %v907 = vadd.f32 %v842, %v906
    %908 = vmatmul.f32.gmra.mxu0 %v677
    %v909 = vpop.f32.mrf.mxu0
    %v910 = vadd.f32 %v845, %v909
    %911 = vmatmul.f32.gmra.mxu0 %v681
    %v912 = vpop.f32.mrf.mxu0
    %v913 = vadd.f32 %v848, %v912
    %914 = vmatmul.f32.gmra.mxu0 %v685
    %v915 = vpop.f32.mrf.mxu0
    %v916 = vadd.f32 %v851, %v915
    %917 = vmatmul.f32.gmra.mxu0 %v689
    %v918 = vpop.f32.mrf.mxu0
    %v919 = vadd.f32 %v854, %v918
    %920 = vmatmul.f32.gmra.mxu0 %v693
    %v921 = vpop.f32.mrf.mxu0
    %v922 = vadd.f32 %v857, %v921
    %923 = vmatmul.f32.gmra.mxu0 %v697
    %v924 = vpop.f32.mrf.mxu0
    %v925 = vadd.f32 %v860, %v924
    %926 = vmatmul.f32.gmra.mxu0 %v701
    %v927 = vpop.f32.mrf.mxu0
    %v928 = vadd.f32 %v863, %v927
    %929 = vdwg.mxu0
    %930 = vmatpush.msra.mxu0 %v623
    %931 = vmatpush.msra.mxu0 %v622
    %932 = vmatpush.msra.mxu0 %v621
    %933 = vmatpush.msra.mxu0 %v620
    %934 = vmatpush.msra.mxu0 %v619
    %935 = vmatpush.msra.mxu0 %v618
    %936 = vmatpush.msra.mxu0 %v617
    %937 = vmatpush.msra.mxu0 %v616
    %938 = vmatpush.msra.mxu0 %v615
    %939 = vmatpush.msra.mxu0 %v614
    %940 = vmatpush.msra.mxu0 %v613
    %941 = vmatpush.msra.mxu0 %v612
    %942 = vmatpush.msra.mxu0 %v611
    %943 = vmatpush.msra.mxu0 %v610
    %944 = vmatpush.msra.mxu0 %v609
    %945 = vmatpush.msra.mxu0 %v608
    %946 = vmatmul.f32.gmra.mxu0 %v642
    %v947 = vpop.f32.mrf.mxu0
    %v948 = vadd.f32 %v883, %v947
    %949 = vmatmul.f32.gmra.mxu0 %v646
    %v950 = vpop.f32.mrf.mxu0
    %v951 = vadd.f32 %v886, %v950
    %952 = vmatmul.f32.gmra.mxu0 %v650
    %v953 = vpop.f32.mrf.mxu0
    %v954 = vadd.f32 %v889, %v953
    %955 = vmatmul.f32.gmra.mxu0 %v654
    %v956 = vpop.f32.mrf.mxu0
    %v957 = vadd.f32 %v892, %v956
    %958 = vmatmul.f32.gmra.mxu0 %v658
    %v959 = vpop.f32.mrf.mxu0
    %v960 = vadd.f32 %v895, %v959
    %961 = vmatmul.f32.gmra.mxu0 %v662
    %v962 = vpop.f32.mrf.mxu0
    %v963 = vadd.f32 %v898, %v962
    %964 = vmatmul.f32.gmra.mxu0 %v666
    %v965 = vpop.f32.mrf.mxu0
    %v966 = vadd.f32 %v901, %v965
    %967 = vmatmul.f32.gmra.mxu0 %v670
    %v968 = vpop.f32.mrf.mxu0
    %v969 = vadd.f32 %v904, %v968
    %970 = vmatmul.f32.gmra.mxu0 %v674
    %v971 = vpop.f32.mrf.mxu0
    %v972 = vadd.f32 %v907, %v971
    %973 = vmatmul.f32.gmra.mxu0 %v678
    %v974 = vpop.f32.mrf.mxu0
    %v975 = vadd.f32 %v910, %v974
    %976 = vmatmul.f32.gmra.mxu0 %v682
    %v977 = vpop.f32.mrf.mxu0
    %v978 = vadd.f32 %v913, %v977
    %979 = vmatmul.f32.gmra.mxu0 %v686
    %v980 = vpop.f32.mrf.mxu0
    %v981 = vadd.f32 %v916, %v980
    %982 = vmatmul.f32.gmra.mxu0 %v690
    %v983 = vpop.f32.mrf.mxu0
    %v984 = vadd.f32 %v919, %v983
    %985 = vmatmul.f32.gmra.mxu0 %v694
    %v986 = vpop.f32.mrf.mxu0
    %v987 = vadd.f32 %v922, %v986
    %988 = vmatmul.f32.gmra.mxu0 %v698
    %v989 = vpop.f32.mrf.mxu0
    %v990 = vadd.f32 %v925, %v989
    %991 = vmatmul.f32.gmra.mxu0 %v702
    %v992 = vpop.f32.mrf.mxu0
    %v993 = vadd.f32 %v928, %v992
    %994 = vdwg.mxu0
    %995 = vmatpush.msra.mxu0 %v639
    %996 = vmatpush.msra.mxu0 %v638
    %997 = vmatpush.msra.mxu0 %v637
    %998 = vmatpush.msra.mxu0 %v636
    %999 = vmatpush.msra.mxu0 %v635
    %1000 = vmatpush.msra.mxu0 %v634
    %1001 = vmatpush.msra.mxu0 %v633
    %1002 = vmatpush.msra.mxu0 %v632
    %1003 = vmatpush.msra.mxu0 %v631
    %1004 = vmatpush.msra.mxu0 %v630
    %1005 = vmatpush.msra.mxu0 %v629
    %1006 = vmatpush.msra.mxu0 %v628
    %1007 = vmatpush.msra.mxu0 %v627
    %1008 = vmatpush.msra.mxu0 %v626
    %1009 = vmatpush.msra.mxu0 %v625
    %1010 = vmatpush.msra.mxu0 %v624
    %1011 = vmatmul.f32.gmra.mxu0 %v643
    %v1012 = vpop.f32.mrf.mxu0
    %v1013 = vadd.f32 %v948, %v1012
    %1014 = vmatmul.f32.gmra.mxu0 %v647
    %v1015 = vpop.f32.mrf.mxu0
    %v1016 = vadd.f32 %v951, %v1015
    %1017 = vmatmul.f32.gmra.mxu0 %v651
    %v1018 = vpop.f32.mrf.mxu0
    %v1019 = vadd.f32 %v954, %v1018
    %1020 = vmatmul.f32.gmra.mxu0 %v655
    %v1021 = vpop.f32.mrf.mxu0
    %v1022 = vadd.f32 %v957, %v1021
    %1023 = vmatmul.f32.gmra.mxu0 %v659
    %v1024 = vpop.f32.mrf.mxu0
    %v1025 = vadd.f32 %v960, %v1024
    %1026 = vmatmul.f32.gmra.mxu0 %v663
    %v1027 = vpop.f32.mrf.mxu0
    %v1028 = vadd.f32 %v963, %v1027
    %1029 = vmatmul.f32.gmra.mxu0 %v667
    %v1030 = vpop.f32.mrf.mxu0
    %v1031 = vadd.f32 %v966, %v1030
    %1032 = vmatmul.f32.gmra.mxu0 %v671
    %v1033 = vpop.f32.mrf.mxu0
    %v1034 = vadd.f32 %v969, %v1033
    %1035 = vmatmul.f32.gmra.mxu0 %v675
    %v1036 = vpop.f32.mrf.mxu0
    %v1037 = vadd.f32 %v972, %v1036
    %1038 = vmatmul.f32.gmra.mxu0 %v679
    %v1039 = vpop.f32.mrf.mxu0
    %v1040 = vadd.f32 %v975, %v1039
    %1041 = vmatmul.f32.gmra.mxu0 %v683
    %v1042 = vpop.f32.mrf.mxu0
    %v1043 = vadd.f32 %v978, %v1042
    %1044 = vmatmul.f32.gmra.mxu0 %v687
    %v1045 = vpop.f32.mrf.mxu0
    %v1046 = vadd.f32 %v981, %v1045
    %1047 = vmatmul.f32.gmra.mxu0 %v691
    %v1048 = vpop.f32.mrf.mxu0
    %v1049 = vadd.f32 %v984, %v1048
    %1050 = vmatmul.f32.gmra.mxu0 %v695
    %v1051 = vpop.f32.mrf.mxu0
    %v1052 = vadd.f32 %v987, %v1051
    %1053 = vmatmul.f32.gmra.mxu0 %v699
    %v1054 = vpop.f32.mrf.mxu0
    %v1055 = vadd.f32 %v990, %v1054
    %1056 = vmatmul.f32.gmra.mxu0 %v703
    %v1057 = vpop.f32.mrf.mxu0
    %v1058 = vadd.f32 %v993, %v1057
    %1059 = vdwg.mxu0
    %s1060 = scalar_lea.vmem [#allocation6], 512
    %v1061 = vld [vmem:[%s1060] sm:$0xff]
    %v1062 = vld [vmem:[%s1060 + $0x8] sm:$0xff]
    %v1063 = vld [vmem:[%s1060 + $0x10] sm:$0xff]
    %v1064 = vld [vmem:[%s1060 + $0x18] sm:$0xff]
    %v1065 = vld [vmem:[%s1060 + $0x20] sm:$0xff]
    %v1066 = vld [vmem:[%s1060 + $0x28] sm:$0xff]
    %v1067 = vld [vmem:[%s1060 + $0x30] sm:$0xff]
    %v1068 = vld [vmem:[%s1060 + $0x38] sm:$0xff]
    %v1069 = vld [vmem:[%s1060 + $0x40] sm:$0xff]
    %v1070 = vld [vmem:[%s1060 + $0x48] sm:$0xff]
    %v1071 = vld [vmem:[%s1060 + $0x50] sm:$0xff]
    %v1072 = vld [vmem:[%s1060 + $0x58] sm:$0xff]
    %v1073 = vld [vmem:[%s1060 + $0x60] sm:$0xff]
    %v1074 = vld [vmem:[%s1060 + $0x68] sm:$0xff]
    %v1075 = vld [vmem:[%s1060 + $0x70] sm:$0xff]
    %v1076 = vld [vmem:[%s1060 + $0x78] sm:$0xff]
    %v1077 = vld [vmem:[%s1060 + $0x80] sm:$0xff]
    %v1078 = vld [vmem:[%s1060 + $0x88] sm:$0xff]
    %v1079 = vld [vmem:[%s1060 + $0x90] sm:$0xff]
    %v1080 = vld [vmem:[%s1060 + $0x98] sm:$0xff]
    %v1081 = vld [vmem:[%s1060 + $0xa0] sm:$0xff]
    %v1082 = vld [vmem:[%s1060 + $0xa8] sm:$0xff]
    %v1083 = vld [vmem:[%s1060 + $0xb0] sm:$0xff]
    %v1084 = vld [vmem:[%s1060 + $0xb8] sm:$0xff]
    %v1085 = vld [vmem:[%s1060 + $0xc0] sm:$0xff]
    %v1086 = vld [vmem:[%s1060 + $0xc8] sm:$0xff]
    %v1087 = vld [vmem:[%s1060 + $0xd0] sm:$0xff]
    %v1088 = vld [vmem:[%s1060 + $0xd8] sm:$0xff]
    %v1089 = vld [vmem:[%s1060 + $0xe0] sm:$0xff]
    %v1090 = vld [vmem:[%s1060 + $0xe8] sm:$0xff]
    %v1091 = vld [vmem:[%s1060 + $0xf0] sm:$0xff]
    %v1092 = vld [vmem:[%s1060 + $0xf8] sm:$0xff]
    %v1093 = vld [vmem:[%s1060 + $0x100] sm:$0xff]
    %v1094 = vld [vmem:[%s1060 + $0x108] sm:$0xff]
    %v1095 = vld [vmem:[%s1060 + $0x110] sm:$0xff]
    %v1096 = vld [vmem:[%s1060 + $0x118] sm:$0xff]
    %v1097 = vld [vmem:[%s1060 + $0x120] sm:$0xff]
    %v1098 = vld [vmem:[%s1060 + $0x128] sm:$0xff]
    %v1099 = vld [vmem:[%s1060 + $0x130] sm:$0xff]
    %v1100 = vld [vmem:[%s1060 + $0x138] sm:$0xff]
    %v1101 = vld [vmem:[%s1060 + $0x140] sm:$0xff]
    %v1102 = vld [vmem:[%s1060 + $0x148] sm:$0xff]
    %v1103 = vld [vmem:[%s1060 + $0x150] sm:$0xff]
    %v1104 = vld [vmem:[%s1060 + $0x158] sm:$0xff]
    %v1105 = vld [vmem:[%s1060 + $0x160] sm:$0xff]
    %v1106 = vld [vmem:[%s1060 + $0x168] sm:$0xff]
    %v1107 = vld [vmem:[%s1060 + $0x170] sm:$0xff]
    %v1108 = vld [vmem:[%s1060 + $0x178] sm:$0xff]
    %v1109 = vld [vmem:[%s1060 + $0x180] sm:$0xff]
    %v1110 = vld [vmem:[%s1060 + $0x188] sm:$0xff]
    %v1111 = vld [vmem:[%s1060 + $0x190] sm:$0xff]
    %v1112 = vld [vmem:[%s1060 + $0x198] sm:$0xff]
    %v1113 = vld [vmem:[%s1060 + $0x1a0] sm:$0xff]
    %v1114 = vld [vmem:[%s1060 + $0x1a8] sm:$0xff]
    %v1115 = vld [vmem:[%s1060 + $0x1b0] sm:$0xff]
    %v1116 = vld [vmem:[%s1060 + $0x1b8] sm:$0xff]
    %v1117 = vld [vmem:[%s1060 + $0x1c0] sm:$0xff]
    %v1118 = vld [vmem:[%s1060 + $0x1c8] sm:$0xff]
    %v1119 = vld [vmem:[%s1060 + $0x1d0] sm:$0xff]
    %v1120 = vld [vmem:[%s1060 + $0x1d8] sm:$0xff]
    %v1121 = vld [vmem:[%s1060 + $0x1e0] sm:$0xff]
    %v1122 = vld [vmem:[%s1060 + $0x1e8] sm:$0xff]
    %v1123 = vld [vmem:[%s1060 + $0x1f0] sm:$0xff]
    %v1124 = vld [vmem:[%s1060 + $0x1f8] sm:$0xff]
    %s1125 = scalar_lea.vmem %s4, 128
    %v1126 = vld [vmem:[%s1125] sm:$0xff]
    %v1127 = vld [vmem:[%s1125 + $0x8] sm:$0xff]
    %v1128 = vld [vmem:[%s1125 + $0x10] sm:$0xff]
    %v1129 = vld [vmem:[%s1125 + $0x18] sm:$0xff]
    %v1130 = vld [vmem:[%s1125 + $0x20] sm:$0xff]
    %v1131 = vld [vmem:[%s1125 + $0x28] sm:$0xff]
    %v1132 = vld [vmem:[%s1125 + $0x30] sm:$0xff]
    %v1133 = vld [vmem:[%s1125 + $0x38] sm:$0xff]
    %v1134 = vld [vmem:[%s1125 + $0x40] sm:$0xff]
    %v1135 = vld [vmem:[%s1125 + $0x48] sm:$0xff]
    %v1136 = vld [vmem:[%s1125 + $0x50] sm:$0xff]
    %v1137 = vld [vmem:[%s1125 + $0x58] sm:$0xff]
    %v1138 = vld [vmem:[%s1125 + $0x60] sm:$0xff]
    %v1139 = vld [vmem:[%s1125 + $0x68] sm:$0xff]
    %v1140 = vld [vmem:[%s1125 + $0x70] sm:$0xff]
    %v1141 = vld [vmem:[%s1125 + $0x78] sm:$0xff]
    %1143 = vset.pattern.permute.xlu0 0
    %1144 = vperm.xlu0 %1143, %v1126
    %v1145 = vpop.permute.xlu0 %1144
    %1148 = vset.pattern.permute.xlu0 0
    %1149 = vperm.xlu0 %1148, %v1127
    %v1150 = vpop.permute.xlu0 %1149
    %1153 = vset.pattern.permute.xlu0 0
    %1154 = vperm.xlu0 %1153, %v1128
    %v1155 = vpop.permute.xlu0 %1154
    %1158 = vset.pattern.permute.xlu0 0
    %1159 = vperm.xlu0 %1158, %v1129
    %v1160 = vpop.permute.xlu0 %1159
    %1163 = vset.pattern.permute.xlu0 0
    %1164 = vperm.xlu0 %1163, %v1130
    %v1165 = vpop.permute.xlu0 %1164
    %1168 = vset.pattern.permute.xlu0 0
    %1169 = vperm.xlu0 %1168, %v1131
    %v1170 = vpop.permute.xlu0 %1169
    %1173 = vset.pattern.permute.xlu0 0
    %1174 = vperm.xlu0 %1173, %v1132
    %v1175 = vpop.permute.xlu0 %1174
    %1178 = vset.pattern.permute.xlu0 0
    %1179 = vperm.xlu0 %1178, %v1133
    %v1180 = vpop.permute.xlu0 %1179
    %1183 = vset.pattern.permute.xlu0 0
    %1184 = vperm.xlu0 %1183, %v1134
    %v1185 = vpop.permute.xlu0 %1184
    %1188 = vset.pattern.permute.xlu0 0
    %1189 = vperm.xlu0 %1188, %v1135
    %v1190 = vpop.permute.xlu0 %1189
    %1193 = vset.pattern.permute.xlu0 0
    %1194 = vperm.xlu0 %1193, %v1136
    %v1195 = vpop.permute.xlu0 %1194
    %1198 = vset.pattern.permute.xlu0 0
    %1199 = vperm.xlu0 %1198, %v1137
    %v1200 = vpop.permute.xlu0 %1199
    %1203 = vset.pattern.permute.xlu0 0
    %1204 = vperm.xlu0 %1203, %v1138
    %v1205 = vpop.permute.xlu0 %1204
    %1208 = vset.pattern.permute.xlu0 0
    %1209 = vperm.xlu0 %1208, %v1139
    %v1210 = vpop.permute.xlu0 %1209
    %1213 = vset.pattern.permute.xlu0 0
    %1214 = vperm.xlu0 %1213, %v1140
    %v1215 = vpop.permute.xlu0 %1214
    %1218 = vset.pattern.permute.xlu0 0
    %1219 = vperm.xlu0 %1218, %v1141
    %v1220 = vpop.permute.xlu0 %1219
    %1222 = vmatpush.msra.mxu0 %v591
    %1223 = vmatpush.msra.mxu0 %v590
    %1224 = vmatpush.msra.mxu0 %v589
    %1225 = vmatpush.msra.mxu0 %v588
    %1226 = vmatpush.msra.mxu0 %v587
    %1227 = vmatpush.msra.mxu0 %v586
    %1228 = vmatpush.msra.mxu0 %v585
    %1229 = vmatpush.msra.mxu0 %v584
    %1230 = vmatpush.msra.mxu0 %v583
    %1231 = vmatpush.msra.mxu0 %v582
    %1232 = vmatpush.msra.mxu0 %v581
    %1233 = vmatpush.msra.mxu0 %v580
    %1234 = vmatpush.msra.mxu0 %v579
    %1235 = vmatpush.msra.mxu0 %v578
    %1236 = vmatpush.msra.mxu0 %v577
    %1237 = vmatpush.msra.mxu0 %v576
    %1238 = vmatmul.f32.gmra.mxu0 %v1061
    %v1239 = vpop.f32.mrf.mxu0
    %v1240 = vadd.f32 %v1145, %v1239
    %1241 = vmatmul.f32.gmra.mxu0 %v1065
    %v1242 = vpop.f32.mrf.mxu0
    %v1243 = vadd.f32 %v1150, %v1242
    %1244 = vmatmul.f32.gmra.mxu0 %v1069
    %v1245 = vpop.f32.mrf.mxu0
    %v1246 = vadd.f32 %v1155, %v1245
    %1247 = vmatmul.f32.gmra.mxu0 %v1073
    %v1248 = vpop.f32.mrf.mxu0
    %v1249 = vadd.f32 %v1160, %v1248
    %1250 = vmatmul.f32.gmra.mxu0 %v1077
    %v1251 = vpop.f32.mrf.mxu0
    %v1252 = vadd.f32 %v1165, %v1251
    %1253 = vmatmul.f32.gmra.mxu0 %v1081
    %v1254 = vpop.f32.mrf.mxu0
    %v1255 = vadd.f32 %v1170, %v1254
    %1256 = vmatmul.f32.gmra.mxu0 %v1085
    %v1257 = vpop.f32.mrf.mxu0
    %v1258 = vadd.f32 %v1175, %v1257
    %1259 = vmatmul.f32.gmra.mxu0 %v1089
    %v1260 = vpop.f32.mrf.mxu0
    %v1261 = vadd.f32 %v1180, %v1260
    %1262 = vmatmul.f32.gmra.mxu0 %v1093
    %v1263 = vpop.f32.mrf.mxu0
    %v1264 = vadd.f32 %v1185, %v1263
    %1265 = vmatmul.f32.gmra.mxu0 %v1097
    %v1266 = vpop.f32.mrf.mxu0
    %v1267 = vadd.f32 %v1190, %v1266
    %1268 = vmatmul.f32.gmra.mxu0 %v1101
    %v1269 = vpop.f32.mrf.mxu0
    %v1270 = vadd.f32 %v1195, %v1269
    %1271 = vmatmul.f32.gmra.mxu0 %v1105
    %v1272 = vpop.f32.mrf.mxu0
    %v1273 = vadd.f32 %v1200, %v1272
    %1274 = vmatmul.f32.gmra.mxu0 %v1109
    %v1275 = vpop.f32.mrf.mxu0
    %v1276 = vadd.f32 %v1205, %v1275
    %1277 = vmatmul.f32.gmra.mxu0 %v1113
    %v1278 = vpop.f32.mrf.mxu0
    %v1279 = vadd.f32 %v1210, %v1278
    %1280 = vmatmul.f32.gmra.mxu0 %v1117
    %v1281 = vpop.f32.mrf.mxu0
    %v1282 = vadd.f32 %v1215, %v1281
    %1283 = vmatmul.f32.gmra.mxu0 %v1121
    %v1284 = vpop.f32.mrf.mxu0
    %v1285 = vadd.f32 %v1220, %v1284
    %1286 = vdwg.mxu0
    %1287 = vmatpush.msra.mxu0 %v607
    %1288 = vmatpush.msra.mxu0 %v606
    %1289 = vmatpush.msra.mxu0 %v605
    %1290 = vmatpush.msra.mxu0 %v604
    %1291 = vmatpush.msra.mxu0 %v603
    %1292 = vmatpush.msra.mxu0 %v602
    %1293 = vmatpush.msra.mxu0 %v601
    %1294 = vmatpush.msra.mxu0 %v600
    %1295 = vmatpush.msra.mxu0 %v599
    %1296 = vmatpush.msra.mxu0 %v598
    %1297 = vmatpush.msra.mxu0 %v597
    %1298 = vmatpush.msra.mxu0 %v596
    %1299 = vmatpush.msra.mxu0 %v595
    %1300 = vmatpush.msra.mxu0 %v594
    %1301 = vmatpush.msra.mxu0 %v593
    %1302 = vmatpush.msra.mxu0 %v592
    %1303 = vmatmul.f32.gmra.mxu0 %v1062
    %v1304 = vpop.f32.mrf.mxu0
    %v1305 = vadd.f32 %v1240, %v1304
    %1306 = vmatmul.f32.gmra.mxu0 %v1066
    %v1307 = vpop.f32.mrf.mxu0
    %v1308 = vadd.f32 %v1243, %v1307
    %1309 = vmatmul.f32.gmra.mxu0 %v1070
    %v1310 = vpop.f32.mrf.mxu0
    %v1311 = vadd.f32 %v1246, %v1310
    %1312 = vmatmul.f32.gmra.mxu0 %v1074
    %v1313 = vpop.f32.mrf.mxu0
    %v1314 = vadd.f32 %v1249, %v1313
    %1315 = vmatmul.f32.gmra.mxu0 %v1078
    %v1316 = vpop.f32.mrf.mxu0
    %v1317 = vadd.f32 %v1252, %v1316
    %1318 = vmatmul.f32.gmra.mxu0 %v1082
    %v1319 = vpop.f32.mrf.mxu0
    %v1320 = vadd.f32 %v1255, %v1319
    %1321 = vmatmul.f32.gmra.mxu0 %v1086
    %v1322 = vpop.f32.mrf.mxu0
    %v1323 = vadd.f32 %v1258, %v1322
    %1324 = vmatmul.f32.gmra.mxu0 %v1090
    %v1325 = vpop.f32.mrf.mxu0
    %v1326 = vadd.f32 %v1261, %v1325
    %1327 = vmatmul.f32.gmra.mxu0 %v1094
    %v1328 = vpop.f32.mrf.mxu0
    %v1329 = vadd.f32 %v1264, %v1328
    %1330 = vmatmul.f32.gmra.mxu0 %v1098
    %v1331 = vpop.f32.mrf.mxu0
    %v1332 = vadd.f32 %v1267, %v1331
    %1333 = vmatmul.f32.gmra.mxu0 %v1102
    %v1334 = vpop.f32.mrf.mxu0
    %v1335 = vadd.f32 %v1270, %v1334
    %1336 = vmatmul.f32.gmra.mxu0 %v1106
    %v1337 = vpop.f32.mrf.mxu0
    %v1338 = vadd.f32 %v1273, %v1337
    %1339 = vmatmul.f32.gmra.mxu0 %v1110
    %v1340 = vpop.f32.mrf.mxu0
    %v1341 = vadd.f32 %v1276, %v1340
    %1342 = vmatmul.f32.gmra.mxu0 %v1114
    %v1343 = vpop.f32.mrf.mxu0
    %v1344 = vadd.f32 %v1279, %v1343
    %1345 = vmatmul.f32.gmra.mxu0 %v1118
    %v1346 = vpop.f32.mrf.mxu0
    %v1347 = vadd.f32 %v1282, %v1346
    %1348 = vmatmul.f32.gmra.mxu0 %v1122
    %v1349 = vpop.f32.mrf.mxu0
    %v1350 = vadd.f32 %v1285, %v1349
    %1351 = vdwg.mxu0
    %1352 = vmatpush.msra.mxu0 %v623
    %1353 = vmatpush.msra.mxu0 %v622
    %1354 = vmatpush.msra.mxu0 %v621
    %1355 = vmatpush.msra.mxu0 %v620
    %1356 = vmatpush.msra.mxu0 %v619
    %1357 = vmatpush.msra.mxu0 %v618
    %1358 = vmatpush.msra.mxu0 %v617
    %1359 = vmatpush.msra.mxu0 %v616
    %1360 = vmatpush.msra.mxu0 %v615
    %1361 = vmatpush.msra.mxu0 %v614
    %1362 = vmatpush.msra.mxu0 %v613
    %1363 = vmatpush.msra.mxu0 %v612
    %1364 = vmatpush.msra.mxu0 %v611
    %1365 = vmatpush.msra.mxu0 %v610
    %1366 = vmatpush.msra.mxu0 %v609
    %1367 = vmatpush.msra.mxu0 %v608
    %1368 = vmatmul.f32.gmra.mxu0 %v1063
    %v1369 = vpop.f32.mrf.mxu0
    %v1370 = vadd.f32 %v1305, %v1369
    %1371 = vmatmul.f32.gmra.mxu0 %v1067
    %v1372 = vpop.f32.mrf.mxu0
    %v1373 = vadd.f32 %v1308, %v1372
    %1374 = vmatmul.f32.gmra.mxu0 %v1071
    %v1375 = vpop.f32.mrf.mxu0
    %v1376 = vadd.f32 %v1311, %v1375
    %1377 = vmatmul.f32.gmra.mxu0 %v1075
    %v1378 = vpop.f32.mrf.mxu0
    %v1379 = vadd.f32 %v1314, %v1378
    %1380 = vmatmul.f32.gmra.mxu0 %v1079
    %v1381 = vpop.f32.mrf.mxu0
    %v1382 = vadd.f32 %v1317, %v1381
    %1383 = vmatmul.f32.gmra.mxu0 %v1083
    %v1384 = vpop.f32.mrf.mxu0
    %v1385 = vadd.f32 %v1320, %v1384
    %1386 = vmatmul.f32.gmra.mxu0 %v1087
    %v1387 = vpop.f32.mrf.mxu0
    %v1388 = vadd.f32 %v1323, %v1387
    %1389 = vmatmul.f32.gmra.mxu0 %v1091
    %v1390 = vpop.f32.mrf.mxu0
    %v1391 = vadd.f32 %v1326, %v1390
    %1392 = vmatmul.f32.gmra.mxu0 %v1095
    %v1393 = vpop.f32.mrf.mxu0
    %v1394 = vadd.f32 %v1329, %v1393
    %1395 = vmatmul.f32.gmra.mxu0 %v1099
    %v1396 = vpop.f32.mrf.mxu0
    %v1397 = vadd.f32 %v1332, %v1396
    %1398 = vmatmul.f32.gmra.mxu0 %v1103
    %v1399 = vpop.f32.mrf.mxu0
    %v1400 = vadd.f32 %v1335, %v1399
    %1401 = vmatmul.f32.gmra.mxu0 %v1107
    %v1402 = vpop.f32.mrf.mxu0
    %v1403 = vadd.f32 %v1338, %v1402
    %1404 = vmatmul.f32.gmra.mxu0 %v1111
    %v1405 = vpop.f32.mrf.mxu0
    %v1406 = vadd.f32 %v1341, %v1405
    %1407 = vmatmul.f32.gmra.mxu0 %v1115
    %v1408 = vpop.f32.mrf.mxu0
    %v1409 = vadd.f32 %v1344, %v1408
    %1410 = vmatmul.f32.gmra.mxu0 %v1119
    %v1411 = vpop.f32.mrf.mxu0
    %v1412 = vadd.f32 %v1347, %v1411
    %1413 = vmatmul.f32.gmra.mxu0 %v1123
    %v1414 = vpop.f32.mrf.mxu0
    %v1415 = vadd.f32 %v1350, %v1414
    %1416 = vdwg.mxu0
    %1417 = vmatpush.msra.mxu0 %v639
    %1418 = vmatpush.msra.mxu0 %v638
    %1419 = vmatpush.msra.mxu0 %v637
    %1420 = vmatpush.msra.mxu0 %v636
    %1421 = vmatpush.msra.mxu0 %v635
    %1422 = vmatpush.msra.mxu0 %v634
    %1423 = vmatpush.msra.mxu0 %v633
    %1424 = vmatpush.msra.mxu0 %v632
    %1425 = vmatpush.msra.mxu0 %v631
    %1426 = vmatpush.msra.mxu0 %v630
    %1427 = vmatpush.msra.mxu0 %v629
    %1428 = vmatpush.msra.mxu0 %v628
    %1429 = vmatpush.msra.mxu0 %v627
    %1430 = vmatpush.msra.mxu0 %v626
    %1431 = vmatpush.msra.mxu0 %v625
    %1432 = vmatpush.msra.mxu0 %v624
    %1433 = vmatmul.f32.gmra.mxu0 %v1064
    %v1434 = vpop.f32.mrf.mxu0
    %v1435 = vadd.f32 %v1370, %v1434
    %1436 = vmatmul.f32.gmra.mxu0 %v1068
    %v1437 = vpop.f32.mrf.mxu0
    %v1438 = vadd.f32 %v1373, %v1437
    %1439 = vmatmul.f32.gmra.mxu0 %v1072
    %v1440 = vpop.f32.mrf.mxu0
    %v1441 = vadd.f32 %v1376, %v1440
    %1442 = vmatmul.f32.gmra.mxu0 %v1076
    %v1443 = vpop.f32.mrf.mxu0
    %v1444 = vadd.f32 %v1379, %v1443
    %1445 = vmatmul.f32.gmra.mxu0 %v1080
    %v1446 = vpop.f32.mrf.mxu0
    %v1447 = vadd.f32 %v1382, %v1446
    %1448 = vmatmul.f32.gmra.mxu0 %v1084
    %v1449 = vpop.f32.mrf.mxu0
    %v1450 = vadd.f32 %v1385, %v1449
    %1451 = vmatmul.f32.gmra.mxu0 %v1088
    %v1452 = vpop.f32.mrf.mxu0
    %v1453 = vadd.f32 %v1388, %v1452
    %1454 = vmatmul.f32.gmra.mxu0 %v1092
    %v1455 = vpop.f32.mrf.mxu0
    %v1456 = vadd.f32 %v1391, %v1455
    %1457 = vmatmul.f32.gmra.mxu0 %v1096
    %v1458 = vpop.f32.mrf.mxu0
    %v1459 = vadd.f32 %v1394, %v1458
    %1460 = vmatmul.f32.gmra.mxu0 %v1100
    %v1461 = vpop.f32.mrf.mxu0
    %v1462 = vadd.f32 %v1397, %v1461
    %1463 = vmatmul.f32.gmra.mxu0 %v1104
    %v1464 = vpop.f32.mrf.mxu0
    %v1465 = vadd.f32 %v1400, %v1464
    %1466 = vmatmul.f32.gmra.mxu0 %v1108
    %v1467 = vpop.f32.mrf.mxu0
    %v1468 = vadd.f32 %v1403, %v1467
    %1469 = vmatmul.f32.gmra.mxu0 %v1112
    %v1470 = vpop.f32.mrf.mxu0
    %v1471 = vadd.f32 %v1406, %v1470
    %1472 = vmatmul.f32.gmra.mxu0 %v1116
    %v1473 = vpop.f32.mrf.mxu0
    %v1474 = vadd.f32 %v1409, %v1473
    %1475 = vmatmul.f32.gmra.mxu0 %v1120
    %v1476 = vpop.f32.mrf.mxu0
    %v1477 = vadd.f32 %v1412, %v1476
    %1478 = vmatmul.f32.gmra.mxu0 %v1124
    %v1479 = vpop.f32.mrf.mxu0
    %v1480 = vadd.f32 %v1415, %v1479
    %1481 = vdwg.mxu0
    %v1482 = vmax.f32 %v1013, %v1435
    %v1483 = vmax.f32 %v1016, %v1438
    %v1484 = vmax.f32 %v1019, %v1441
    %v1485 = vmax.f32 %v1022, %v1444
    %v1486 = vmax.f32 %v1025, %v1447
    %v1487 = vmax.f32 %v1028, %v1450
    %v1488 = vmax.f32 %v1031, %v1453
    %v1489 = vmax.f32 %v1034, %v1456
    %v1490 = vmax.f32 %v1037, %v1459
    %v1491 = vmax.f32 %v1040, %v1462
    %v1492 = vmax.f32 %v1043, %v1465
    %v1493 = vmax.f32 %v1046, %v1468
    %v1494 = vmax.f32 %v1049, %v1471
    %v1495 = vmax.f32 %v1052, %v1474
    %v1496 = vmax.f32 %v1055, %v1477
    %v1497 = vmax.f32 %v1058, %v1480
    %s1498 = scalar_lea.vmem [#allocation6], 1024
    %v1499 = vld [vmem:[%s1498] sm:$0xff]
    %v1500 = vld [vmem:[%s1498 + $0x8] sm:$0xff]
    %v1501 = vld [vmem:[%s1498 + $0x10] sm:$0xff]
    %v1502 = vld [vmem:[%s1498 + $0x18] sm:$0xff]
    %v1503 = vld [vmem:[%s1498 + $0x20] sm:$0xff]
    %v1504 = vld [vmem:[%s1498 + $0x28] sm:$0xff]
    %v1505 = vld [vmem:[%s1498 + $0x30] sm:$0xff]
    %v1506 = vld [vmem:[%s1498 + $0x38] sm:$0xff]
    %v1507 = vld [vmem:[%s1498 + $0x40] sm:$0xff]
    %v1508 = vld [vmem:[%s1498 + $0x48] sm:$0xff]
    %v1509 = vld [vmem:[%s1498 + $0x50] sm:$0xff]
    %v1510 = vld [vmem:[%s1498 + $0x58] sm:$0xff]
    %v1511 = vld [vmem:[%s1498 + $0x60] sm:$0xff]
    %v1512 = vld [vmem:[%s1498 + $0x68] sm:$0xff]
    %v1513 = vld [vmem:[%s1498 + $0x70] sm:$0xff]
    %v1514 = vld [vmem:[%s1498 + $0x78] sm:$0xff]
    %v1515 = vld [vmem:[%s1498 + $0x80] sm:$0xff]
    %v1516 = vld [vmem:[%s1498 + $0x88] sm:$0xff]
    %v1517 = vld [vmem:[%s1498 + $0x90] sm:$0xff]
    %v1518 = vld [vmem:[%s1498 + $0x98] sm:$0xff]
    %v1519 = vld [vmem:[%s1498 + $0xa0] sm:$0xff]
    %v1520 = vld [vmem:[%s1498 + $0xa8] sm:$0xff]
    %v1521 = vld [vmem:[%s1498 + $0xb0] sm:$0xff]
    %v1522 = vld [vmem:[%s1498 + $0xb8] sm:$0xff]
    %v1523 = vld [vmem:[%s1498 + $0xc0] sm:$0xff]
    %v1524 = vld [vmem:[%s1498 + $0xc8] sm:$0xff]
    %v1525 = vld [vmem:[%s1498 + $0xd0] sm:$0xff]
    %v1526 = vld [vmem:[%s1498 + $0xd8] sm:$0xff]
    %v1527 = vld [vmem:[%s1498 + $0xe0] sm:$0xff]
    %v1528 = vld [vmem:[%s1498 + $0xe8] sm:$0xff]
    %v1529 = vld [vmem:[%s1498 + $0xf0] sm:$0xff]
    %v1530 = vld [vmem:[%s1498 + $0xf8] sm:$0xff]
    %v1531 = vld [vmem:[%s1498 + $0x100] sm:$0xff]
    %v1532 = vld [vmem:[%s1498 + $0x108] sm:$0xff]
    %v1533 = vld [vmem:[%s1498 + $0x110] sm:$0xff]
    %v1534 = vld [vmem:[%s1498 + $0x118] sm:$0xff]
    %v1535 = vld [vmem:[%s1498 + $0x120] sm:$0xff]
    %v1536 = vld [vmem:[%s1498 + $0x128] sm:$0xff]
    %v1537 = vld [vmem:[%s1498 + $0x130] sm:$0xff]
    %v1538 = vld [vmem:[%s1498 + $0x138] sm:$0xff]
    %v1539 = vld [vmem:[%s1498 + $0x140] sm:$0xff]
    %v1540 = vld [vmem:[%s1498 + $0x148] sm:$0xff]
    %v1541 = vld [vmem:[%s1498 + $0x150] sm:$0xff]
    %v1542 = vld [vmem:[%s1498 + $0x158] sm:$0xff]
    %v1543 = vld [vmem:[%s1498 + $0x160] sm:$0xff]
    %v1544 = vld [vmem:[%s1498 + $0x168] sm:$0xff]
    %v1545 = vld [vmem:[%s1498 + $0x170] sm:$0xff]
    %v1546 = vld [vmem:[%s1498 + $0x178] sm:$0xff]
    %v1547 = vld [vmem:[%s1498 + $0x180] sm:$0xff]
    %v1548 = vld [vmem:[%s1498 + $0x188] sm:$0xff]
    %v1549 = vld [vmem:[%s1498 + $0x190] sm:$0xff]
    %v1550 = vld [vmem:[%s1498 + $0x198] sm:$0xff]
    %v1551 = vld [vmem:[%s1498 + $0x1a0] sm:$0xff]
    %v1552 = vld [vmem:[%s1498 + $0x1a8] sm:$0xff]
    %v1553 = vld [vmem:[%s1498 + $0x1b0] sm:$0xff]
    %v1554 = vld [vmem:[%s1498 + $0x1b8] sm:$0xff]
    %v1555 = vld [vmem:[%s1498 + $0x1c0] sm:$0xff]
    %v1556 = vld [vmem:[%s1498 + $0x1c8] sm:$0xff]
    %v1557 = vld [vmem:[%s1498 + $0x1d0] sm:$0xff]
    %v1558 = vld [vmem:[%s1498 + $0x1d8] sm:$0xff]
    %v1559 = vld [vmem:[%s1498 + $0x1e0] sm:$0xff]
    %v1560 = vld [vmem:[%s1498 + $0x1e8] sm:$0xff]
    %v1561 = vld [vmem:[%s1498 + $0x1f0] sm:$0xff]
    %v1562 = vld [vmem:[%s1498 + $0x1f8] sm:$0xff]
    %s1563 = scalar_lea.vmem %s4, 256
    %v1564 = vld [vmem:[%s1563] sm:$0xff]
    %v1565 = vld [vmem:[%s1563 + $0x8] sm:$0xff]
    %v1566 = vld [vmem:[%s1563 + $0x10] sm:$0xff]
    %v1567 = vld [vmem:[%s1563 + $0x18] sm:$0xff]
    %v1568 = vld [vmem:[%s1563 + $0x20] sm:$0xff]
    %v1569 = vld [vmem:[%s1563 + $0x28] sm:$0xff]
    %v1570 = vld [vmem:[%s1563 + $0x30] sm:$0xff]
    %v1571 = vld [vmem:[%s1563 + $0x38] sm:$0xff]
    %v1572 = vld [vmem:[%s1563 + $0x40] sm:$0xff]
    %v1573 = vld [vmem:[%s1563 + $0x48] sm:$0xff]
    %v1574 = vld [vmem:[%s1563 + $0x50] sm:$0xff]
    %v1575 = vld [vmem:[%s1563 + $0x58] sm:$0xff]
    %v1576 = vld [vmem:[%s1563 + $0x60] sm:$0xff]
    %v1577 = vld [vmem:[%s1563 + $0x68] sm:$0xff]
    %v1578 = vld [vmem:[%s1563 + $0x70] sm:$0xff]
    %v1579 = vld [vmem:[%s1563 + $0x78] sm:$0xff]
    %1581 = vset.pattern.permute.xlu0 0
    %1582 = vperm.xlu0 %1581, %v1564
    %v1583 = vpop.permute.xlu0 %1582
    %1586 = vset.pattern.permute.xlu0 0
    %1587 = vperm.xlu0 %1586, %v1565
    %v1588 = vpop.permute.xlu0 %1587
    %1591 = vset.pattern.permute.xlu0 0
    %1592 = vperm.xlu0 %1591, %v1566
    %v1593 = vpop.permute.xlu0 %1592
    %1596 = vset.pattern.permute.xlu0 0
    %1597 = vperm.xlu0 %1596, %v1567
    %v1598 = vpop.permute.xlu0 %1597
    %1601 = vset.pattern.permute.xlu0 0
    %1602 = vperm.xlu0 %1601, %v1568
    %v1603 = vpop.permute.xlu0 %1602
    %1606 = vset.pattern.permute.xlu0 0
    %1607 = vperm.xlu0 %1606, %v1569
    %v1608 = vpop.permute.xlu0 %1607
    %1611 = vset.pattern.permute.xlu0 0
    %1612 = vperm.xlu0 %1611, %v1570
    %v1613 = vpop.permute.xlu0 %1612
    %1616 = vset.pattern.permute.xlu0 0
    %1617 = vperm.xlu0 %1616, %v1571
    %v1618 = vpop.permute.xlu0 %1617
    %1621 = vset.pattern.permute.xlu0 0
    %1622 = vperm.xlu0 %1621, %v1572
    %v1623 = vpop.permute.xlu0 %1622
    %1626 = vset.pattern.permute.xlu0 0
    %1627 = vperm.xlu0 %1626, %v1573
    %v1628 = vpop.permute.xlu0 %1627
    %1631 = vset.pattern.permute.xlu0 0
    %1632 = vperm.xlu0 %1631, %v1574
    %v1633 = vpop.permute.xlu0 %1632
    %1636 = vset.pattern.permute.xlu0 0
    %1637 = vperm.xlu0 %1636, %v1575
    %v1638 = vpop.permute.xlu0 %1637
    %1641 = vset.pattern.permute.xlu0 0
    %1642 = vperm.xlu0 %1641, %v1576
    %v1643 = vpop.permute.xlu0 %1642
    %1646 = vset.pattern.permute.xlu0 0
    %1647 = vperm.xlu0 %1646, %v1577
    %v1648 = vpop.permute.xlu0 %1647
    %1651 = vset.pattern.permute.xlu0 0
    %1652 = vperm.xlu0 %1651, %v1578
    %v1653 = vpop.permute.xlu0 %1652
    %1656 = vset.pattern.permute.xlu0 0
    %1657 = vperm.xlu0 %1656, %v1579
    %v1658 = vpop.permute.xlu0 %1657
    %1660 = vmatpush.msra.mxu0 %v591
    %1661 = vmatpush.msra.mxu0 %v590
    %1662 = vmatpush.msra.mxu0 %v589
    %1663 = vmatpush.msra.mxu0 %v588
    %1664 = vmatpush.msra.mxu0 %v587
    %1665 = vmatpush.msra.mxu0 %v586
    %1666 = vmatpush.msra.mxu0 %v585
    %1667 = vmatpush.msra.mxu0 %v584
    %1668 = vmatpush.msra.mxu0 %v583
    %1669 = vmatpush.msra.mxu0 %v582
    %1670 = vmatpush.msra.mxu0 %v581
    %1671 = vmatpush.msra.mxu0 %v580
    %1672 = vmatpush.msra.mxu0 %v579
    %1673 = vmatpush.msra.mxu0 %v578
    %1674 = vmatpush.msra.mxu0 %v577
    %1675 = vmatpush.msra.mxu0 %v576
    %1676 = vmatmul.f32.gmra.mxu0 %v1499
    %v1677 = vpop.f32.mrf.mxu0
    %v1678 = vadd.f32 %v1583, %v1677
    %1679 = vmatmul.f32.gmra.mxu0 %v1503
    %v1680 = vpop.f32.mrf.mxu0
    %v1681 = vadd.f32 %v1588, %v1680
    %1682 = vmatmul.f32.gmra.mxu0 %v1507
    %v1683 = vpop.f32.mrf.mxu0
    %v1684 = vadd.f32 %v1593, %v1683
    %1685 = vmatmul.f32.gmra.mxu0 %v1511
    %v1686 = vpop.f32.mrf.mxu0
    %v1687 = vadd.f32 %v1598, %v1686
    %1688 = vmatmul.f32.gmra.mxu0 %v1515
    %v1689 = vpop.f32.mrf.mxu0
    %v1690 = vadd.f32 %v1603, %v1689
    %1691 = vmatmul.f32.gmra.mxu0 %v1519
    %v1692 = vpop.f32.mrf.mxu0
    %v1693 = vadd.f32 %v1608, %v1692
    %1694 = vmatmul.f32.gmra.mxu0 %v1523
    %v1695 = vpop.f32.mrf.mxu0
    %v1696 = vadd.f32 %v1613, %v1695
    %1697 = vmatmul.f32.gmra.mxu0 %v1527
    %v1698 = vpop.f32.mrf.mxu0
    %v1699 = vadd.f32 %v1618, %v1698
    %1700 = vmatmul.f32.gmra.mxu0 %v1531
    %v1701 = vpop.f32.mrf.mxu0
    %v1702 = vadd.f32 %v1623, %v1701
    %1703 = vmatmul.f32.gmra.mxu0 %v1535
    %v1704 = vpop.f32.mrf.mxu0
    %v1705 = vadd.f32 %v1628, %v1704
    %1706 = vmatmul.f32.gmra.mxu0 %v1539
    %v1707 = vpop.f32.mrf.mxu0
    %v1708 = vadd.f32 %v1633, %v1707
    %1709 = vmatmul.f32.gmra.mxu0 %v1543
    %v1710 = vpop.f32.mrf.mxu0
    %v1711 = vadd.f32 %v1638, %v1710
    %1712 = vmatmul.f32.gmra.mxu0 %v1547
    %v1713 = vpop.f32.mrf.mxu0
    %v1714 = vadd.f32 %v1643, %v1713
    %1715 = vmatmul.f32.gmra.mxu0 %v1551
    %v1716 = vpop.f32.mrf.mxu0
    %v1717 = vadd.f32 %v1648, %v1716
    %1718 = vmatmul.f32.gmra.mxu0 %v1555
    %v1719 = vpop.f32.mrf.mxu0
    %v1720 = vadd.f32 %v1653, %v1719
    %1721 = vmatmul.f32.gmra.mxu0 %v1559
    %v1722 = vpop.f32.mrf.mxu0
    %v1723 = vadd.f32 %v1658, %v1722
    %1724 = vdwg.mxu0
    %1725 = vmatpush.msra.mxu0 %v607
    %1726 = vmatpush.msra.mxu0 %v606
    %1727 = vmatpush.msra.mxu0 %v605
    %1728 = vmatpush.msra.mxu0 %v604
    %1729 = vmatpush.msra.mxu0 %v603
    %1730 = vmatpush.msra.mxu0 %v602
    %1731 = vmatpush.msra.mxu0 %v601
    %1732 = vmatpush.msra.mxu0 %v600
    %1733 = vmatpush.msra.mxu0 %v599
    %1734 = vmatpush.msra.mxu0 %v598
    %1735 = vmatpush.msra.mxu0 %v597
    %1736 = vmatpush.msra.mxu0 %v596
    %1737 = vmatpush.msra.mxu0 %v595
    %1738 = vmatpush.msra.mxu0 %v594
    %1739 = vmatpush.msra.mxu0 %v593
    %1740 = vmatpush.msra.mxu0 %v592
    %1741 = vmatmul.f32.gmra.mxu0 %v1500
    %v1742 = vpop.f32.mrf.mxu0
    %v1743 = vadd.f32 %v1678, %v1742
    %1744 = vmatmul.f32.gmra.mxu0 %v1504
    %v1745 = vpop.f32.mrf.mxu0
    %v1746 = vadd.f32 %v1681, %v1745
    %1747 = vmatmul.f32.gmra.mxu0 %v1508
    %v1748 = vpop.f32.mrf.mxu0
    %v1749 = vadd.f32 %v1684, %v1748
    %1750 = vmatmul.f32.gmra.mxu0 %v1512
    %v1751 = vpop.f32.mrf.mxu0
    %v1752 = vadd.f32 %v1687, %v1751
    %1753 = vmatmul.f32.gmra.mxu0 %v1516
    %v1754 = vpop.f32.mrf.mxu0
    %v1755 = vadd.f32 %v1690, %v1754
    %1756 = vmatmul.f32.gmra.mxu0 %v1520
    %v1757 = vpop.f32.mrf.mxu0
    %v1758 = vadd.f32 %v1693, %v1757
    %1759 = vmatmul.f32.gmra.mxu0 %v1524
    %v1760 = vpop.f32.mrf.mxu0
    %v1761 = vadd.f32 %v1696, %v1760
    %1762 = vmatmul.f32.gmra.mxu0 %v1528
    %v1763 = vpop.f32.mrf.mxu0
    %v1764 = vadd.f32 %v1699, %v1763
    %1765 = vmatmul.f32.gmra.mxu0 %v1532
    %v1766 = vpop.f32.mrf.mxu0
    %v1767 = vadd.f32 %v1702, %v1766
    %1768 = vmatmul.f32.gmra.mxu0 %v1536
    %v1769 = vpop.f32.mrf.mxu0
    %v1770 = vadd.f32 %v1705, %v1769
    %1771 = vmatmul.f32.gmra.mxu0 %v1540
    %v1772 = vpop.f32.mrf.mxu0
    %v1773 = vadd.f32 %v1708, %v1772
    %1774 = vmatmul.f32.gmra.mxu0 %v1544
    %v1775 = vpop.f32.mrf.mxu0
    %v1776 = vadd.f32 %v1711, %v1775
    %1777 = vmatmul.f32.gmra.mxu0 %v1548
    %v1778 = vpop.f32.mrf.mxu0
    %v1779 = vadd.f32 %v1714, %v1778
    %1780 = vmatmul.f32.gmra.mxu0 %v1552
    %v1781 = vpop.f32.mrf.mxu0
    %v1782 = vadd.f32 %v1717, %v1781
    %1783 = vmatmul.f32.gmra.mxu0 %v1556
    %v1784 = vpop.f32.mrf.mxu0
    %v1785 = vadd.f32 %v1720, %v1784
    %1786 = vmatmul.f32.gmra.mxu0 %v1560
    %v1787 = vpop.f32.mrf.mxu0
    %v1788 = vadd.f32 %v1723, %v1787
    %1789 = vdwg.mxu0
    %1790 = vmatpush.msra.mxu0 %v623
    %1791 = vmatpush.msra.mxu0 %v622
    %1792 = vmatpush.msra.mxu0 %v621
    %1793 = vmatpush.msra.mxu0 %v620
    %1794 = vmatpush.msra.mxu0 %v619
    %1795 = vmatpush.msra.mxu0 %v618
    %1796 = vmatpush.msra.mxu0 %v617
    %1797 = vmatpush.msra.mxu0 %v616
    %1798 = vmatpush.msra.mxu0 %v615
    %1799 = vmatpush.msra.mxu0 %v614
    %1800 = vmatpush.msra.mxu0 %v613
    %1801 = vmatpush.msra.mxu0 %v612
    %1802 = vmatpush.msra.mxu0 %v611
    %1803 = vmatpush.msra.mxu0 %v610
    %1804 = vmatpush.msra.mxu0 %v609
    %1805 = vmatpush.msra.mxu0 %v608
    %1806 = vmatmul.f32.gmra.mxu0 %v1501
    %v1807 = vpop.f32.mrf.mxu0
    %v1808 = vadd.f32 %v1743, %v1807
    %1809 = vmatmul.f32.gmra.mxu0 %v1505
    %v1810 = vpop.f32.mrf.mxu0
    %v1811 = vadd.f32 %v1746, %v1810
    %1812 = vmatmul.f32.gmra.mxu0 %v1509
    %v1813 = vpop.f32.mrf.mxu0
    %v1814 = vadd.f32 %v1749, %v1813
    %1815 = vmatmul.f32.gmra.mxu0 %v1513
    %v1816 = vpop.f32.mrf.mxu0
    %v1817 = vadd.f32 %v1752, %v1816
    %1818 = vmatmul.f32.gmra.mxu0 %v1517
    %v1819 = vpop.f32.mrf.mxu0
    %v1820 = vadd.f32 %v1755, %v1819
    %1821 = vmatmul.f32.gmra.mxu0 %v1521
    %v1822 = vpop.f32.mrf.mxu0
    %v1823 = vadd.f32 %v1758, %v1822
    %1824 = vmatmul.f32.gmra.mxu0 %v1525
    %v1825 = vpop.f32.mrf.mxu0
    %v1826 = vadd.f32 %v1761, %v1825
    %1827 = vmatmul.f32.gmra.mxu0 %v1529
    %v1828 = vpop.f32.mrf.mxu0
    %v1829 = vadd.f32 %v1764, %v1828
    %1830 = vmatmul.f32.gmra.mxu0 %v1533
    %v1831 = vpop.f32.mrf.mxu0
    %v1832 = vadd.f32 %v1767, %v1831
    %1833 = vmatmul.f32.gmra.mxu0 %v1537
    %v1834 = vpop.f32.mrf.mxu0
    %v1835 = vadd.f32 %v1770, %v1834
    %1836 = vmatmul.f32.gmra.mxu0 %v1541
    %v1837 = vpop.f32.mrf.mxu0
    %v1838 = vadd.f32 %v1773, %v1837
    %1839 = vmatmul.f32.gmra.mxu0 %v1545
    %v1840 = vpop.f32.mrf.mxu0
    %v1841 = vadd.f32 %v1776, %v1840
    %1842 = vmatmul.f32.gmra.mxu0 %v1549
    %v1843 = vpop.f32.mrf.mxu0
    %v1844 = vadd.f32 %v1779, %v1843
    %1845 = vmatmul.f32.gmra.mxu0 %v1553
    %v1846 = vpop.f32.mrf.mxu0
    %v1847 = vadd.f32 %v1782, %v1846
    %1848 = vmatmul.f32.gmra.mxu0 %v1557
    %v1849 = vpop.f32.mrf.mxu0
    %v1850 = vadd.f32 %v1785, %v1849
    %1851 = vmatmul.f32.gmra.mxu0 %v1561
    %v1852 = vpop.f32.mrf.mxu0
    %v1853 = vadd.f32 %v1788, %v1852
    %1854 = vdwg.mxu0
    %1855 = vmatpush.msra.mxu0 %v639
    %1856 = vmatpush.msra.mxu0 %v638
    %1857 = vmatpush.msra.mxu0 %v637
    %1858 = vmatpush.msra.mxu0 %v636
    %1859 = vmatpush.msra.mxu0 %v635
    %1860 = vmatpush.msra.mxu0 %v634
    %1861 = vmatpush.msra.mxu0 %v633
    %1862 = vmatpush.msra.mxu0 %v632
    %1863 = vmatpush.msra.mxu0 %v631
    %1864 = vmatpush.msra.mxu0 %v630
    %1865 = vmatpush.msra.mxu0 %v629
    %1866 = vmatpush.msra.mxu0 %v628
    %1867 = vmatpush.msra.mxu0 %v627
    %1868 = vmatpush.msra.mxu0 %v626
    %1869 = vmatpush.msra.mxu0 %v625
    %1870 = vmatpush.msra.mxu0 %v624
    %1871 = vmatmul.f32.gmra.mxu0 %v1502
    %v1872 = vpop.f32.mrf.mxu0
    %v1873 = vadd.f32 %v1808, %v1872
    %1874 = vmatmul.f32.gmra.mxu0 %v1506
    %v1875 = vpop.f32.mrf.mxu0
    %v1876 = vadd.f32 %v1811, %v1875
    %1877 = vmatmul.f32.gmra.mxu0 %v1510
    %v1878 = vpop.f32.mrf.mxu0
    %v1879 = vadd.f32 %v1814, %v1878
    %1880 = vmatmul.f32.gmra.mxu0 %v1514
    %v1881 = vpop.f32.mrf.mxu0
    %v1882 = vadd.f32 %v1817, %v1881
    %1883 = vmatmul.f32.gmra.mxu0 %v1518
    %v1884 = vpop.f32.mrf.mxu0
    %v1885 = vadd.f32 %v1820, %v1884
    %1886 = vmatmul.f32.gmra.mxu0 %v1522
    %v1887 = vpop.f32.mrf.mxu0
    %v1888 = vadd.f32 %v1823, %v1887
    %1889 = vmatmul.f32.gmra.mxu0 %v1526
    %v1890 = vpop.f32.mrf.mxu0
    %v1891 = vadd.f32 %v1826, %v1890
    %1892 = vmatmul.f32.gmra.mxu0 %v1530
    %v1893 = vpop.f32.mrf.mxu0
    %v1894 = vadd.f32 %v1829, %v1893
    %1895 = vmatmul.f32.gmra.mxu0 %v1534
    %v1896 = vpop.f32.mrf.mxu0
    %v1897 = vadd.f32 %v1832, %v1896
    %1898 = vmatmul.f32.gmra.mxu0 %v1538
    %v1899 = vpop.f32.mrf.mxu0
    %v1900 = vadd.f32 %v1835, %v1899
    %1901 = vmatmul.f32.gmra.mxu0 %v1542
    %v1902 = vpop.f32.mrf.mxu0
    %v1903 = vadd.f32 %v1838, %v1902
    %1904 = vmatmul.f32.gmra.mxu0 %v1546
    %v1905 = vpop.f32.mrf.mxu0
    %v1906 = vadd.f32 %v1841, %v1905
    %1907 = vmatmul.f32.gmra.mxu0 %v1550
    %v1908 = vpop.f32.mrf.mxu0
    %v1909 = vadd.f32 %v1844, %v1908
    %1910 = vmatmul.f32.gmra.mxu0 %v1554
    %v1911 = vpop.f32.mrf.mxu0
    %v1912 = vadd.f32 %v1847, %v1911
    %1913 = vmatmul.f32.gmra.mxu0 %v1558
    %v1914 = vpop.f32.mrf.mxu0
    %v1915 = vadd.f32 %v1850, %v1914
    %1916 = vmatmul.f32.gmra.mxu0 %v1562
    %v1917 = vpop.f32.mrf.mxu0
    %v1918 = vadd.f32 %v1853, %v1917
    %1919 = vdwg.mxu0
    %v1920 = vmax.f32 %v1482, %v1873
    %v1921 = vmax.f32 %v1483, %v1876
    %v1922 = vmax.f32 %v1484, %v1879
    %v1923 = vmax.f32 %v1485, %v1882
    %v1924 = vmax.f32 %v1486, %v1885
    %v1925 = vmax.f32 %v1487, %v1888
    %v1926 = vmax.f32 %v1488, %v1891
    %v1927 = vmax.f32 %v1489, %v1894
    %v1928 = vmax.f32 %v1490, %v1897
    %v1929 = vmax.f32 %v1491, %v1900
    %v1930 = vmax.f32 %v1492, %v1903
    %v1931 = vmax.f32 %v1493, %v1906
    %v1932 = vmax.f32 %v1494, %v1909
    %v1933 = vmax.f32 %v1495, %v1912
    %v1934 = vmax.f32 %v1496, %v1915
    %v1935 = vmax.f32 %v1497, %v1918
    %s1936 = scalar_lea.vmem [#allocation6], 1536
    %v1937 = vld [vmem:[%s1936] sm:$0xff]
    %v1938 = vld [vmem:[%s1936 + $0x8] sm:$0xff]
    %v1939 = vld [vmem:[%s1936 + $0x10] sm:$0xff]
    %v1940 = vld [vmem:[%s1936 + $0x18] sm:$0xff]
    %v1941 = vld [vmem:[%s1936 + $0x20] sm:$0xff]
    %v1942 = vld [vmem:[%s1936 + $0x28] sm:$0xff]
    %v1943 = vld [vmem:[%s1936 + $0x30] sm:$0xff]
    %v1944 = vld [vmem:[%s1936 + $0x38] sm:$0xff]
    %v1945 = vld [vmem:[%s1936 + $0x40] sm:$0xff]
    %v1946 = vld [vmem:[%s1936 + $0x48] sm:$0xff]
    %v1947 = vld [vmem:[%s1936 + $0x50] sm:$0xff]
    %v1948 = vld [vmem:[%s1936 + $0x58] sm:$0xff]
    %v1949 = vld [vmem:[%s1936 + $0x60] sm:$0xff]
    %v1950 = vld [vmem:[%s1936 + $0x68] sm:$0xff]
    %v1951 = vld [vmem:[%s1936 + $0x70] sm:$0xff]
    %v1952 = vld [vmem:[%s1936 + $0x78] sm:$0xff]
    %v1953 = vld [vmem:[%s1936 + $0x80] sm:$0xff]
    %v1954 = vld [vmem:[%s1936 + $0x88] sm:$0xff]
    %v1955 = vld [vmem:[%s1936 + $0x90] sm:$0xff]
    %v1956 = vld [vmem:[%s1936 + $0x98] sm:$0xff]
    %v1957 = vld [vmem:[%s1936 + $0xa0] sm:$0xff]
    %v1958 = vld [vmem:[%s1936 + $0xa8] sm:$0xff]
    %v1959 = vld [vmem:[%s1936 + $0xb0] sm:$0xff]
    %v1960 = vld [vmem:[%s1936 + $0xb8] sm:$0xff]
    %v1961 = vld [vmem:[%s1936 + $0xc0] sm:$0xff]
    %v1962 = vld [vmem:[%s1936 + $0xc8] sm:$0xff]
    %v1963 = vld [vmem:[%s1936 + $0xd0] sm:$0xff]
    %v1964 = vld [vmem:[%s1936 + $0xd8] sm:$0xff]
    %v1965 = vld [vmem:[%s1936 + $0xe0] sm:$0xff]
    %v1966 = vld [vmem:[%s1936 + $0xe8] sm:$0xff]
    %v1967 = vld [vmem:[%s1936 + $0xf0] sm:$0xff]
    %v1968 = vld [vmem:[%s1936 + $0xf8] sm:$0xff]
    %v1969 = vld [vmem:[%s1936 + $0x100] sm:$0xff]
    %v1970 = vld [vmem:[%s1936 + $0x108] sm:$0xff]
    %v1971 = vld [vmem:[%s1936 + $0x110] sm:$0xff]
    %v1972 = vld [vmem:[%s1936 + $0x118] sm:$0xff]
    %v1973 = vld [vmem:[%s1936 + $0x120] sm:$0xff]
    %v1974 = vld [vmem:[%s1936 + $0x128] sm:$0xff]
    %v1975 = vld [vmem:[%s1936 + $0x130] sm:$0xff]
    %v1976 = vld [vmem:[%s1936 + $0x138] sm:$0xff]
    %v1977 = vld [vmem:[%s1936 + $0x140] sm:$0xff]
    %v1978 = vld [vmem:[%s1936 + $0x148] sm:$0xff]
    %v1979 = vld [vmem:[%s1936 + $0x150] sm:$0xff]
    %v1980 = vld [vmem:[%s1936 + $0x158] sm:$0xff]
    %v1981 = vld [vmem:[%s1936 + $0x160] sm:$0xff]
    %v1982 = vld [vmem:[%s1936 + $0x168] sm:$0xff]
    %v1983 = vld [vmem:[%s1936 + $0x170] sm:$0xff]
    %v1984 = vld [vmem:[%s1936 + $0x178] sm:$0xff]
    %v1985 = vld [vmem:[%s1936 + $0x180] sm:$0xff]
    %v1986 = vld [vmem:[%s1936 + $0x188] sm:$0xff]
    %v1987 = vld [vmem:[%s1936 + $0x190] sm:$0xff]
    %v1988 = vld [vmem:[%s1936 + $0x198] sm:$0xff]
    %v1989 = vld [vmem:[%s1936 + $0x1a0] sm:$0xff]
    %v1990 = vld [vmem:[%s1936 + $0x1a8] sm:$0xff]
    %v1991 = vld [vmem:[%s1936 + $0x1b0] sm:$0xff]
    %v1992 = vld [vmem:[%s1936 + $0x1b8] sm:$0xff]
    %v1993 = vld [vmem:[%s1936 + $0x1c0] sm:$0xff]
    %v1994 = vld [vmem:[%s1936 + $0x1c8] sm:$0xff]
    %v1995 = vld [vmem:[%s1936 + $0x1d0] sm:$0xff]
    %v1996 = vld [vmem:[%s1936 + $0x1d8] sm:$0xff]
    %v1997 = vld [vmem:[%s1936 + $0x1e0] sm:$0xff]
    %v1998 = vld [vmem:[%s1936 + $0x1e8] sm:$0xff]
    %v1999 = vld [vmem:[%s1936 + $0x1f0] sm:$0xff]
    %v2000 = vld [vmem:[%s1936 + $0x1f8] sm:$0xff]
    %s2001 = scalar_lea.vmem %s4, 384
    %v2002 = vld [vmem:[%s2001] sm:$0xff]
    %v2003 = vld [vmem:[%s2001 + $0x8] sm:$0xff]
    %v2004 = vld [vmem:[%s2001 + $0x10] sm:$0xff]
    %v2005 = vld [vmem:[%s2001 + $0x18] sm:$0xff]
    %v2006 = vld [vmem:[%s2001 + $0x20] sm:$0xff]
    %v2007 = vld [vmem:[%s2001 + $0x28] sm:$0xff]
    %v2008 = vld [vmem:[%s2001 + $0x30] sm:$0xff]
    %v2009 = vld [vmem:[%s2001 + $0x38] sm:$0xff]
    %v2010 = vld [vmem:[%s2001 + $0x40] sm:$0xff]
    %v2011 = vld [vmem:[%s2001 + $0x48] sm:$0xff]
    %v2012 = vld [vmem:[%s2001 + $0x50] sm:$0xff]
    %v2013 = vld [vmem:[%s2001 + $0x58] sm:$0xff]
    %v2014 = vld [vmem:[%s2001 + $0x60] sm:$0xff]
    %v2015 = vld [vmem:[%s2001 + $0x68] sm:$0xff]
    %v2016 = vld [vmem:[%s2001 + $0x70] sm:$0xff]
    %v2017 = vld [vmem:[%s2001 + $0x78] sm:$0xff]
    %2019 = vset.pattern.permute.xlu0 0
    %2020 = vperm.xlu0 %2019, %v2002
    %v2021 = vpop.permute.xlu0 %2020
    %2024 = vset.pattern.permute.xlu0 0
    %2025 = vperm.xlu0 %2024, %v2003
    %v2026 = vpop.permute.xlu0 %2025
    %2029 = vset.pattern.permute.xlu0 0
    %2030 = vperm.xlu0 %2029, %v2004
    %v2031 = vpop.permute.xlu0 %2030
    %2034 = vset.pattern.permute.xlu0 0
    %2035 = vperm.xlu0 %2034, %v2005
    %v2036 = vpop.permute.xlu0 %2035
    %2039 = vset.pattern.permute.xlu0 0
    %2040 = vperm.xlu0 %2039, %v2006
    %v2041 = vpop.permute.xlu0 %2040
    %2044 = vset.pattern.permute.xlu0 0
    %2045 = vperm.xlu0 %2044, %v2007
    %v2046 = vpop.permute.xlu0 %2045
    %2049 = vset.pattern.permute.xlu0 0
    %2050 = vperm.xlu0 %2049, %v2008
    %v2051 = vpop.permute.xlu0 %2050
    %2054 = vset.pattern.permute.xlu0 0
    %2055 = vperm.xlu0 %2054, %v2009
    %v2056 = vpop.permute.xlu0 %2055
    %2059 = vset.pattern.permute.xlu0 0
    %2060 = vperm.xlu0 %2059, %v2010
    %v2061 = vpop.permute.xlu0 %2060
    %2064 = vset.pattern.permute.xlu0 0
    %2065 = vperm.xlu0 %2064, %v2011
    %v2066 = vpop.permute.xlu0 %2065
    %2069 = vset.pattern.permute.xlu0 0
    %2070 = vperm.xlu0 %2069, %v2012
    %v2071 = vpop.permute.xlu0 %2070
    %2074 = vset.pattern.permute.xlu0 0
    %2075 = vperm.xlu0 %2074, %v2013
    %v2076 = vpop.permute.xlu0 %2075
    %2079 = vset.pattern.permute.xlu0 0
    %2080 = vperm.xlu0 %2079, %v2014
    %v2081 = vpop.permute.xlu0 %2080
    %2084 = vset.pattern.permute.xlu0 0
    %2085 = vperm.xlu0 %2084, %v2015
    %v2086 = vpop.permute.xlu0 %2085
    %2089 = vset.pattern.permute.xlu0 0
    %2090 = vperm.xlu0 %2089, %v2016
    %v2091 = vpop.permute.xlu0 %2090
    %2094 = vset.pattern.permute.xlu0 0
    %2095 = vperm.xlu0 %2094, %v2017
    %v2096 = vpop.permute.xlu0 %2095
    %2098 = vmatpush.msra.mxu0 %v591
    %2099 = vmatpush.msra.mxu0 %v590
    %2100 = vmatpush.msra.mxu0 %v589
    %2101 = vmatpush.msra.mxu0 %v588
    %2102 = vmatpush.msra.mxu0 %v587
    %2103 = vmatpush.msra.mxu0 %v586
    %2104 = vmatpush.msra.mxu0 %v585
    %2105 = vmatpush.msra.mxu0 %v584
    %2106 = vmatpush.msra.mxu0 %v583
    %2107 = vmatpush.msra.mxu0 %v582
    %2108 = vmatpush.msra.mxu0 %v581
    %2109 = vmatpush.msra.mxu0 %v580
    %2110 = vmatpush.msra.mxu0 %v579
    %2111 = vmatpush.msra.mxu0 %v578
    %2112 = vmatpush.msra.mxu0 %v577
    %2113 = vmatpush.msra.mxu0 %v576
    %2114 = vmatmul.f32.gmra.mxu0 %v1937
    %v2115 = vpop.f32.mrf.mxu0
    %v2116 = vadd.f32 %v2021, %v2115
    %2117 = vmatmul.f32.gmra.mxu0 %v1941
    %v2118 = vpop.f32.mrf.mxu0
    %v2119 = vadd.f32 %v2026, %v2118
    %2120 = vmatmul.f32.gmra.mxu0 %v1945
    %v2121 = vpop.f32.mrf.mxu0
    %v2122 = vadd.f32 %v2031, %v2121
    %2123 = vmatmul.f32.gmra.mxu0 %v1949
    %v2124 = vpop.f32.mrf.mxu0
    %v2125 = vadd.f32 %v2036, %v2124
    %2126 = vmatmul.f32.gmra.mxu0 %v1953
    %v2127 = vpop.f32.mrf.mxu0
    %v2128 = vadd.f32 %v2041, %v2127
    %2129 = vmatmul.f32.gmra.mxu0 %v1957
    %v2130 = vpop.f32.mrf.mxu0
    %v2131 = vadd.f32 %v2046, %v2130
    %2132 = vmatmul.f32.gmra.mxu0 %v1961
    %v2133 = vpop.f32.mrf.mxu0
    %v2134 = vadd.f32 %v2051, %v2133
    %2135 = vmatmul.f32.gmra.mxu0 %v1965
    %v2136 = vpop.f32.mrf.mxu0
    %v2137 = vadd.f32 %v2056, %v2136
    %2138 = vmatmul.f32.gmra.mxu0 %v1969
    %v2139 = vpop.f32.mrf.mxu0
    %v2140 = vadd.f32 %v2061, %v2139
    %2141 = vmatmul.f32.gmra.mxu0 %v1973
    %v2142 = vpop.f32.mrf.mxu0
    %v2143 = vadd.f32 %v2066, %v2142
    %2144 = vmatmul.f32.gmra.mxu0 %v1977
    %v2145 = vpop.f32.mrf.mxu0
    %v2146 = vadd.f32 %v2071, %v2145
    %2147 = vmatmul.f32.gmra.mxu0 %v1981
    %v2148 = vpop.f32.mrf.mxu0
    %v2149 = vadd.f32 %v2076, %v2148
    %2150 = vmatmul.f32.gmra.mxu0 %v1985
    %v2151 = vpop.f32.mrf.mxu0
    %v2152 = vadd.f32 %v2081, %v2151
    %2153 = vmatmul.f32.gmra.mxu0 %v1989
    %v2154 = vpop.f32.mrf.mxu0
    %v2155 = vadd.f32 %v2086, %v2154
    %2156 = vmatmul.f32.gmra.mxu0 %v1993
    %v2157 = vpop.f32.mrf.mxu0
    %v2158 = vadd.f32 %v2091, %v2157
    %2159 = vmatmul.f32.gmra.mxu0 %v1997
    %v2160 = vpop.f32.mrf.mxu0
    %v2161 = vadd.f32 %v2096, %v2160
    %2162 = vdwg.mxu0
    %2163 = vmatpush.msra.mxu0 %v607
    %2164 = vmatpush.msra.mxu0 %v606
    %2165 = vmatpush.msra.mxu0 %v605
    %2166 = vmatpush.msra.mxu0 %v604
    %2167 = vmatpush.msra.mxu0 %v603
    %2168 = vmatpush.msra.mxu0 %v602
    %2169 = vmatpush.msra.mxu0 %v601
    %2170 = vmatpush.msra.mxu0 %v600
    %2171 = vmatpush.msra.mxu0 %v599
    %2172 = vmatpush.msra.mxu0 %v598
    %2173 = vmatpush.msra.mxu0 %v597
    %2174 = vmatpush.msra.mxu0 %v596
    %2175 = vmatpush.msra.mxu0 %v595
    %2176 = vmatpush.msra.mxu0 %v594
    %2177 = vmatpush.msra.mxu0 %v593
    %2178 = vmatpush.msra.mxu0 %v592
    %2179 = vmatmul.f32.gmra.mxu0 %v1938
    %v2180 = vpop.f32.mrf.mxu0
    %v2181 = vadd.f32 %v2116, %v2180
    %2182 = vmatmul.f32.gmra.mxu0 %v1942
    %v2183 = vpop.f32.mrf.mxu0
    %v2184 = vadd.f32 %v2119, %v2183
    %2185 = vmatmul.f32.gmra.mxu0 %v1946
    %v2186 = vpop.f32.mrf.mxu0
    %v2187 = vadd.f32 %v2122, %v2186
    %2188 = vmatmul.f32.gmra.mxu0 %v1950
    %v2189 = vpop.f32.mrf.mxu0
    %v2190 = vadd.f32 %v2125, %v2189
    %2191 = vmatmul.f32.gmra.mxu0 %v1954
    %v2192 = vpop.f32.mrf.mxu0
    %v2193 = vadd.f32 %v2128, %v2192
    %2194 = vmatmul.f32.gmra.mxu0 %v1958
    %v2195 = vpop.f32.mrf.mxu0
    %v2196 = vadd.f32 %v2131, %v2195
    %2197 = vmatmul.f32.gmra.mxu0 %v1962
    %v2198 = vpop.f32.mrf.mxu0
    %v2199 = vadd.f32 %v2134, %v2198
    %2200 = vmatmul.f32.gmra.mxu0 %v1966
    %v2201 = vpop.f32.mrf.mxu0
    %v2202 = vadd.f32 %v2137, %v2201
    %2203 = vmatmul.f32.gmra.mxu0 %v1970
    %v2204 = vpop.f32.mrf.mxu0
    %v2205 = vadd.f32 %v2140, %v2204
    %2206 = vmatmul.f32.gmra.mxu0 %v1974
    %v2207 = vpop.f32.mrf.mxu0
    %v2208 = vadd.f32 %v2143, %v2207
    %2209 = vmatmul.f32.gmra.mxu0 %v1978
    %v2210 = vpop.f32.mrf.mxu0
    %v2211 = vadd.f32 %v2146, %v2210
    %2212 = vmatmul.f32.gmra.mxu0 %v1982
    %v2213 = vpop.f32.mrf.mxu0
    %v2214 = vadd.f32 %v2149, %v2213
    %2215 = vmatmul.f32.gmra.mxu0 %v1986
    %v2216 = vpop.f32.mrf.mxu0
    %v2217 = vadd.f32 %v2152, %v2216
    %2218 = vmatmul.f32.gmra.mxu0 %v1990
    %v2219 = vpop.f32.mrf.mxu0
    %v2220 = vadd.f32 %v2155, %v2219
    %2221 = vmatmul.f32.gmra.mxu0 %v1994
    %v2222 = vpop.f32.mrf.mxu0
    %v2223 = vadd.f32 %v2158, %v2222
    %2224 = vmatmul.f32.gmra.mxu0 %v1998
    %v2225 = vpop.f32.mrf.mxu0
    %v2226 = vadd.f32 %v2161, %v2225
    %2227 = vdwg.mxu0
    %2228 = vmatpush.msra.mxu0 %v623
    %2229 = vmatpush.msra.mxu0 %v622
    %2230 = vmatpush.msra.mxu0 %v621
    %2231 = vmatpush.msra.mxu0 %v620
    %2232 = vmatpush.msra.mxu0 %v619
    %2233 = vmatpush.msra.mxu0 %v618
    %2234 = vmatpush.msra.mxu0 %v617
    %2235 = vmatpush.msra.mxu0 %v616
    %2236 = vmatpush.msra.mxu0 %v615
    %2237 = vmatpush.msra.mxu0 %v614
    %2238 = vmatpush.msra.mxu0 %v613
    %2239 = vmatpush.msra.mxu0 %v612
    %2240 = vmatpush.msra.mxu0 %v611
    %2241 = vmatpush.msra.mxu0 %v610
    %2242 = vmatpush.msra.mxu0 %v609
    %2243 = vmatpush.msra.mxu0 %v608
    %2244 = vmatmul.f32.gmra.mxu0 %v1939
    %v2245 = vpop.f32.mrf.mxu0
    %v2246 = vadd.f32 %v2181, %v2245
    %2247 = vmatmul.f32.gmra.mxu0 %v1943
    %v2248 = vpop.f32.mrf.mxu0
    %v2249 = vadd.f32 %v2184, %v2248
    %2250 = vmatmul.f32.gmra.mxu0 %v1947
    %v2251 = vpop.f32.mrf.mxu0
    %v2252 = vadd.f32 %v2187, %v2251
    %2253 = vmatmul.f32.gmra.mxu0 %v1951
    %v2254 = vpop.f32.mrf.mxu0
    %v2255 = vadd.f32 %v2190, %v2254
    %2256 = vmatmul.f32.gmra.mxu0 %v1955
    %v2257 = vpop.f32.mrf.mxu0
    %v2258 = vadd.f32 %v2193, %v2257
    %2259 = vmatmul.f32.gmra.mxu0 %v1959
    %v2260 = vpop.f32.mrf.mxu0
    %v2261 = vadd.f32 %v2196, %v2260
    %2262 = vmatmul.f32.gmra.mxu0 %v1963
    %v2263 = vpop.f32.mrf.mxu0
    %v2264 = vadd.f32 %v2199, %v2263
    %2265 = vmatmul.f32.gmra.mxu0 %v1967
    %v2266 = vpop.f32.mrf.mxu0
    %v2267 = vadd.f32 %v2202, %v2266
    %2268 = vmatmul.f32.gmra.mxu0 %v1971
    %v2269 = vpop.f32.mrf.mxu0
    %v2270 = vadd.f32 %v2205, %v2269
    %2271 = vmatmul.f32.gmra.mxu0 %v1975
    %v2272 = vpop.f32.mrf.mxu0
    %v2273 = vadd.f32 %v2208, %v2272
    %2274 = vmatmul.f32.gmra.mxu0 %v1979
    %v2275 = vpop.f32.mrf.mxu0
    %v2276 = vadd.f32 %v2211, %v2275
    %2277 = vmatmul.f32.gmra.mxu0 %v1983
    %v2278 = vpop.f32.mrf.mxu0
    %v2279 = vadd.f32 %v2214, %v2278
    %2280 = vmatmul.f32.gmra.mxu0 %v1987
    %v2281 = vpop.f32.mrf.mxu0
    %v2282 = vadd.f32 %v2217, %v2281
    %2283 = vmatmul.f32.gmra.mxu0 %v1991
    %v2284 = vpop.f32.mrf.mxu0
    %v2285 = vadd.f32 %v2220, %v2284
    %2286 = vmatmul.f32.gmra.mxu0 %v1995
    %v2287 = vpop.f32.mrf.mxu0
    %v2288 = vadd.f32 %v2223, %v2287
    %2289 = vmatmul.f32.gmra.mxu0 %v1999
    %v2290 = vpop.f32.mrf.mxu0
    %v2291 = vadd.f32 %v2226, %v2290
    %2292 = vdwg.mxu0
    %2293 = vmatpush.msra.mxu0 %v639
    %2294 = vmatpush.msra.mxu0 %v638
    %2295 = vmatpush.msra.mxu0 %v637
    %2296 = vmatpush.msra.mxu0 %v636
    %2297 = vmatpush.msra.mxu0 %v635
    %2298 = vmatpush.msra.mxu0 %v634
    %2299 = vmatpush.msra.mxu0 %v633
    %2300 = vmatpush.msra.mxu0 %v632
    %2301 = vmatpush.msra.mxu0 %v631
    %2302 = vmatpush.msra.mxu0 %v630
    %2303 = vmatpush.msra.mxu0 %v629
    %2304 = vmatpush.msra.mxu0 %v628
    %2305 = vmatpush.msra.mxu0 %v627
    %2306 = vmatpush.msra.mxu0 %v626
    %2307 = vmatpush.msra.mxu0 %v625
    %2308 = vmatpush.msra.mxu0 %v624
    %2309 = vmatmul.f32.gmra.mxu0 %v1940
    %v2310 = vpop.f32.mrf.mxu0
    %v2311 = vadd.f32 %v2246, %v2310
    %2312 = vmatmul.f32.gmra.mxu0 %v1944
    %v2313 = vpop.f32.mrf.mxu0
    %v2314 = vadd.f32 %v2249, %v2313
    %2315 = vmatmul.f32.gmra.mxu0 %v1948
    %v2316 = vpop.f32.mrf.mxu0
    %v2317 = vadd.f32 %v2252, %v2316
    %2318 = vmatmul.f32.gmra.mxu0 %v1952
    %v2319 = vpop.f32.mrf.mxu0
    %v2320 = vadd.f32 %v2255, %v2319
    %2321 = vmatmul.f32.gmra.mxu0 %v1956
    %v2322 = vpop.f32.mrf.mxu0
    %v2323 = vadd.f32 %v2258, %v2322
    %2324 = vmatmul.f32.gmra.mxu0 %v1960
    %v2325 = vpop.f32.mrf.mxu0
    %v2326 = vadd.f32 %v2261, %v2325
    %2327 = vmatmul.f32.gmra.mxu0 %v1964
    %v2328 = vpop.f32.mrf.mxu0
    %v2329 = vadd.f32 %v2264, %v2328
    %2330 = vmatmul.f32.gmra.mxu0 %v1968
    %v2331 = vpop.f32.mrf.mxu0
    %v2332 = vadd.f32 %v2267, %v2331
    %2333 = vmatmul.f32.gmra.mxu0 %v1972
    %v2334 = vpop.f32.mrf.mxu0
    %v2335 = vadd.f32 %v2270, %v2334
    %2336 = vmatmul.f32.gmra.mxu0 %v1976
    %v2337 = vpop.f32.mrf.mxu0
    %v2338 = vadd.f32 %v2273, %v2337
    %2339 = vmatmul.f32.gmra.mxu0 %v1980
    %v2340 = vpop.f32.mrf.mxu0
    %v2341 = vadd.f32 %v2276, %v2340
    %2342 = vmatmul.f32.gmra.mxu0 %v1984
    %v2343 = vpop.f32.mrf.mxu0
    %v2344 = vadd.f32 %v2279, %v2343
    %2345 = vmatmul.f32.gmra.mxu0 %v1988
    %v2346 = vpop.f32.mrf.mxu0
    %v2347 = vadd.f32 %v2282, %v2346
    %2348 = vmatmul.f32.gmra.mxu0 %v1992
    %v2349 = vpop.f32.mrf.mxu0
    %v2350 = vadd.f32 %v2285, %v2349
    %2351 = vmatmul.f32.gmra.mxu0 %v1996
    %v2352 = vpop.f32.mrf.mxu0
    %v2353 = vadd.f32 %v2288, %v2352
    %2354 = vmatmul.f32.gmra.mxu0 %v2000
    %v2355 = vpop.f32.mrf.mxu0
    %v2356 = vadd.f32 %v2291, %v2355
    %2357 = vdwg.mxu0
    %v2358 = vmax.f32 %v1920, %v2311
    %v2359 = vmax.f32 %v1921, %v2314
    %v2360 = vmax.f32 %v1922, %v2317
    %v2361 = vmax.f32 %v1923, %v2320
    %v2362 = vmax.f32 %v1924, %v2323
    %v2363 = vmax.f32 %v1925, %v2326
    %v2364 = vmax.f32 %v1926, %v2329
    %v2365 = vmax.f32 %v1927, %v2332
    %v2366 = vmax.f32 %v1928, %v2335
    %v2367 = vmax.f32 %v1929, %v2338
    %v2368 = vmax.f32 %v1930, %v2341
    %v2369 = vmax.f32 %v1931, %v2344
    %v2370 = vmax.f32 %v1932, %v2347
    %v2371 = vmax.f32 %v1933, %v2350
    %v2372 = vmax.f32 %v1934, %v2353
    %v2373 = vmax.f32 %v1935, %v2356
    %s2374 = scalar_lea.vmem [#allocation6], 2048
    %v2375 = vld [vmem:[%s2374] sm:$0xff]
    %v2376 = vld [vmem:[%s2374 + $0x8] sm:$0xff]
    %v2377 = vld [vmem:[%s2374 + $0x10] sm:$0xff]
    %v2378 = vld [vmem:[%s2374 + $0x18] sm:$0xff]
    %v2379 = vld [vmem:[%s2374 + $0x20] sm:$0xff]
    %v2380 = vld [vmem:[%s2374 + $0x28] sm:$0xff]
    %v2381 = vld [vmem:[%s2374 + $0x30] sm:$0xff]
    %v2382 = vld [vmem:[%s2374 + $0x38] sm:$0xff]
    %v2383 = vld [vmem:[%s2374 + $0x40] sm:$0xff]
    %v2384 = vld [vmem:[%s2374 + $0x48] sm:$0xff]
    %v2385 = vld [vmem:[%s2374 + $0x50] sm:$0xff]
    %v2386 = vld [vmem:[%s2374 + $0x58] sm:$0xff]
    %v2387 = vld [vmem:[%s2374 + $0x60] sm:$0xff]
    %v2388 = vld [vmem:[%s2374 + $0x68] sm:$0xff]
    %v2389 = vld [vmem:[%s2374 + $0x70] sm:$0xff]
    %v2390 = vld [vmem:[%s2374 + $0x78] sm:$0xff]
    %v2391 = vld [vmem:[%s2374 + $0x80] sm:$0xff]
    %v2392 = vld [vmem:[%s2374 + $0x88] sm:$0xff]
    %v2393 = vld [vmem:[%s2374 + $0x90] sm:$0xff]
    %v2394 = vld [vmem:[%s2374 + $0x98] sm:$0xff]
    %v2395 = vld [vmem:[%s2374 + $0xa0] sm:$0xff]
    %v2396 = vld [vmem:[%s2374 + $0xa8] sm:$0xff]
    %v2397 = vld [vmem:[%s2374 + $0xb0] sm:$0xff]
    %v2398 = vld [vmem:[%s2374 + $0xb8] sm:$0xff]
    %v2399 = vld [vmem:[%s2374 + $0xc0] sm:$0xff]
    %v2400 = vld [vmem:[%s2374 + $0xc8] sm:$0xff]
    %v2401 = vld [vmem:[%s2374 + $0xd0] sm:$0xff]
    %v2402 = vld [vmem:[%s2374 + $0xd8] sm:$0xff]
    %v2403 = vld [vmem:[%s2374 + $0xe0] sm:$0xff]
    %v2404 = vld [vmem:[%s2374 + $0xe8] sm:$0xff]
    %v2405 = vld [vmem:[%s2374 + $0xf0] sm:$0xff]
    %v2406 = vld [vmem:[%s2374 + $0xf8] sm:$0xff]
    %v2407 = vld [vmem:[%s2374 + $0x100] sm:$0xff]
    %v2408 = vld [vmem:[%s2374 + $0x108] sm:$0xff]
    %v2409 = vld [vmem:[%s2374 + $0x110] sm:$0xff]
    %v2410 = vld [vmem:[%s2374 + $0x118] sm:$0xff]
    %v2411 = vld [vmem:[%s2374 + $0x120] sm:$0xff]
    %v2412 = vld [vmem:[%s2374 + $0x128] sm:$0xff]
    %v2413 = vld [vmem:[%s2374 + $0x130] sm:$0xff]
    %v2414 = vld [vmem:[%s2374 + $0x138] sm:$0xff]
    %v2415 = vld [vmem:[%s2374 + $0x140] sm:$0xff]
    %v2416 = vld [vmem:[%s2374 + $0x148] sm:$0xff]
    %v2417 = vld [vmem:[%s2374 + $0x150] sm:$0xff]
    %v2418 = vld [vmem:[%s2374 + $0x158] sm:$0xff]
    %v2419 = vld [vmem:[%s2374 + $0x160] sm:$0xff]
    %v2420 = vld [vmem:[%s2374 + $0x168] sm:$0xff]
    %v2421 = vld [vmem:[%s2374 + $0x170] sm:$0xff]
    %v2422 = vld [vmem:[%s2374 + $0x178] sm:$0xff]
    %v2423 = vld [vmem:[%s2374 + $0x180] sm:$0xff]
    %v2424 = vld [vmem:[%s2374 + $0x188] sm:$0xff]
    %v2425 = vld [vmem:[%s2374 + $0x190] sm:$0xff]
    %v2426 = vld [vmem:[%s2374 + $0x198] sm:$0xff]
    %v2427 = vld [vmem:[%s2374 + $0x1a0] sm:$0xff]
    %v2428 = vld [vmem:[%s2374 + $0x1a8] sm:$0xff]
    %v2429 = vld [vmem:[%s2374 + $0x1b0] sm:$0xff]
    %v2430 = vld [vmem:[%s2374 + $0x1b8] sm:$0xff]
    %v2431 = vld [vmem:[%s2374 + $0x1c0] sm:$0xff]
    %v2432 = vld [vmem:[%s2374 + $0x1c8] sm:$0xff]
    %v2433 = vld [vmem:[%s2374 + $0x1d0] sm:$0xff]
    %v2434 = vld [vmem:[%s2374 + $0x1d8] sm:$0xff]
    %v2435 = vld [vmem:[%s2374 + $0x1e0] sm:$0xff]
    %v2436 = vld [vmem:[%s2374 + $0x1e8] sm:$0xff]
    %v2437 = vld [vmem:[%s2374 + $0x1f0] sm:$0xff]
    %v2438 = vld [vmem:[%s2374 + $0x1f8] sm:$0xff]
    %s2439 = scalar_lea.vmem %s4, 512
    %v2440 = vld [vmem:[%s2439] sm:$0xff]
    %v2441 = vld [vmem:[%s2439 + $0x8] sm:$0xff]
    %v2442 = vld [vmem:[%s2439 + $0x10] sm:$0xff]
    %v2443 = vld [vmem:[%s2439 + $0x18] sm:$0xff]
    %v2444 = vld [vmem:[%s2439 + $0x20] sm:$0xff]
    %v2445 = vld [vmem:[%s2439 + $0x28] sm:$0xff]
    %v2446 = vld [vmem:[%s2439 + $0x30] sm:$0xff]
    %v2447 = vld [vmem:[%s2439 + $0x38] sm:$0xff]
    %v2448 = vld [vmem:[%s2439 + $0x40] sm:$0xff]
    %v2449 = vld [vmem:[%s2439 + $0x48] sm:$0xff]
    %v2450 = vld [vmem:[%s2439 + $0x50] sm:$0xff]
    %v2451 = vld [vmem:[%s2439 + $0x58] sm:$0xff]
    %v2452 = vld [vmem:[%s2439 + $0x60] sm:$0xff]
    %v2453 = vld [vmem:[%s2439 + $0x68] sm:$0xff]
    %v2454 = vld [vmem:[%s2439 + $0x70] sm:$0xff]
    %v2455 = vld [vmem:[%s2439 + $0x78] sm:$0xff]
    %2457 = vset.pattern.permute.xlu0 0
    %2458 = vperm.xlu0 %2457, %v2440
    %v2459 = vpop.permute.xlu0 %2458
    %2462 = vset.pattern.permute.xlu0 0
    %2463 = vperm.xlu0 %2462, %v2441
    %v2464 = vpop.permute.xlu0 %2463
    %2467 = vset.pattern.permute.xlu0 0
    %2468 = vperm.xlu0 %2467, %v2442
    %v2469 = vpop.permute.xlu0 %2468
    %2472 = vset.pattern.permute.xlu0 0
    %2473 = vperm.xlu0 %2472, %v2443
    %v2474 = vpop.permute.xlu0 %2473
    %2477 = vset.pattern.permute.xlu0 0
    %2478 = vperm.xlu0 %2477, %v2444
    %v2479 = vpop.permute.xlu0 %2478
    %2482 = vset.pattern.permute.xlu0 0
    %2483 = vperm.xlu0 %2482, %v2445
    %v2484 = vpop.permute.xlu0 %2483
    %2487 = vset.pattern.permute.xlu0 0
    %2488 = vperm.xlu0 %2487, %v2446
    %v2489 = vpop.permute.xlu0 %2488
    %2492 = vset.pattern.permute.xlu0 0
    %2493 = vperm.xlu0 %2492, %v2447
    %v2494 = vpop.permute.xlu0 %2493
    %2497 = vset.pattern.permute.xlu0 0
    %2498 = vperm.xlu0 %2497, %v2448
    %v2499 = vpop.permute.xlu0 %2498
    %2502 = vset.pattern.permute.xlu0 0
    %2503 = vperm.xlu0 %2502, %v2449
    %v2504 = vpop.permute.xlu0 %2503
    %2507 = vset.pattern.permute.xlu0 0
    %2508 = vperm.xlu0 %2507, %v2450
    %v2509 = vpop.permute.xlu0 %2508
    %2512 = vset.pattern.permute.xlu0 0
    %2513 = vperm.xlu0 %2512, %v2451
    %v2514 = vpop.permute.xlu0 %2513
    %2517 = vset.pattern.permute.xlu0 0
    %2518 = vperm.xlu0 %2517, %v2452
    %v2519 = vpop.permute.xlu0 %2518
    %2522 = vset.pattern.permute.xlu0 0
    %2523 = vperm.xlu0 %2522, %v2453
    %v2524 = vpop.permute.xlu0 %2523
    %2527 = vset.pattern.permute.xlu0 0
    %2528 = vperm.xlu0 %2527, %v2454
    %v2529 = vpop.permute.xlu0 %2528
    %2532 = vset.pattern.permute.xlu0 0
    %2533 = vperm.xlu0 %2532, %v2455
    %v2534 = vpop.permute.xlu0 %2533
    %2536 = vmatpush.msra.mxu0 %v591
    %2537 = vmatpush.msra.mxu0 %v590
    %2538 = vmatpush.msra.mxu0 %v589
    %2539 = vmatpush.msra.mxu0 %v588
    %2540 = vmatpush.msra.mxu0 %v587
    %2541 = vmatpush.msra.mxu0 %v586
    %2542 = vmatpush.msra.mxu0 %v585
    %2543 = vmatpush.msra.mxu0 %v584
    %2544 = vmatpush.msra.mxu0 %v583
    %2545 = vmatpush.msra.mxu0 %v582
    %2546 = vmatpush.msra.mxu0 %v581
    %2547 = vmatpush.msra.mxu0 %v580
    %2548 = vmatpush.msra.mxu0 %v579
    %2549 = vmatpush.msra.mxu0 %v578
    %2550 = vmatpush.msra.mxu0 %v577
    %2551 = vmatpush.msra.mxu0 %v576
    %2552 = vmatmul.f32.gmra.mxu0 %v2375
    %v2553 = vpop.f32.mrf.mxu0
    %v2554 = vadd.f32 %v2459, %v2553
    %2555 = vmatmul.f32.gmra.mxu0 %v2379
    %v2556 = vpop.f32.mrf.mxu0
    %v2557 = vadd.f32 %v2464, %v2556
    %2558 = vmatmul.f32.gmra.mxu0 %v2383
    %v2559 = vpop.f32.mrf.mxu0
    %v2560 = vadd.f32 %v2469, %v2559
    %2561 = vmatmul.f32.gmra.mxu0 %v2387
    %v2562 = vpop.f32.mrf.mxu0
    %v2563 = vadd.f32 %v2474, %v2562
    %2564 = vmatmul.f32.gmra.mxu0 %v2391
    %v2565 = vpop.f32.mrf.mxu0
    %v2566 = vadd.f32 %v2479, %v2565
    %2567 = vmatmul.f32.gmra.mxu0 %v2395
    %v2568 = vpop.f32.mrf.mxu0
    %v2569 = vadd.f32 %v2484, %v2568
    %2570 = vmatmul.f32.gmra.mxu0 %v2399
    %v2571 = vpop.f32.mrf.mxu0
    %v2572 = vadd.f32 %v2489, %v2571
    %2573 = vmatmul.f32.gmra.mxu0 %v2403
    %v2574 = vpop.f32.mrf.mxu0
    %v2575 = vadd.f32 %v2494, %v2574
    %2576 = vmatmul.f32.gmra.mxu0 %v2407
    %v2577 = vpop.f32.mrf.mxu0
    %v2578 = vadd.f32 %v2499, %v2577
    %2579 = vmatmul.f32.gmra.mxu0 %v2411
    %v2580 = vpop.f32.mrf.mxu0
    %v2581 = vadd.f32 %v2504, %v2580
    %2582 = vmatmul.f32.gmra.mxu0 %v2415
    %v2583 = vpop.f32.mrf.mxu0
    %v2584 = vadd.f32 %v2509, %v2583
    %2585 = vmatmul.f32.gmra.mxu0 %v2419
    %v2586 = vpop.f32.mrf.mxu0
    %v2587 = vadd.f32 %v2514, %v2586
    %2588 = vmatmul.f32.gmra.mxu0 %v2423
    %v2589 = vpop.f32.mrf.mxu0
    %v2590 = vadd.f32 %v2519, %v2589
    %2591 = vmatmul.f32.gmra.mxu0 %v2427
    %v2592 = vpop.f32.mrf.mxu0
    %v2593 = vadd.f32 %v2524, %v2592
    %2594 = vmatmul.f32.gmra.mxu0 %v2431
    %v2595 = vpop.f32.mrf.mxu0
    %v2596 = vadd.f32 %v2529, %v2595
    %2597 = vmatmul.f32.gmra.mxu0 %v2435
    %v2598 = vpop.f32.mrf.mxu0
    %v2599 = vadd.f32 %v2534, %v2598
    %2600 = vdwg.mxu0
    %2601 = vmatpush.msra.mxu0 %v607
    %2602 = vmatpush.msra.mxu0 %v606
    %2603 = vmatpush.msra.mxu0 %v605
    %2604 = vmatpush.msra.mxu0 %v604
    %2605 = vmatpush.msra.mxu0 %v603
    %2606 = vmatpush.msra.mxu0 %v602
    %2607 = vmatpush.msra.mxu0 %v601
    %2608 = vmatpush.msra.mxu0 %v600
    %2609 = vmatpush.msra.mxu0 %v599
    %2610 = vmatpush.msra.mxu0 %v598
    %2611 = vmatpush.msra.mxu0 %v597
    %2612 = vmatpush.msra.mxu0 %v596
    %2613 = vmatpush.msra.mxu0 %v595
    %2614 = vmatpush.msra.mxu0 %v594
    %2615 = vmatpush.msra.mxu0 %v593
    %2616 = vmatpush.msra.mxu0 %v592
    %2617 = vmatmul.f32.gmra.mxu0 %v2376
    %v2618 = vpop.f32.mrf.mxu0
    %v2619 = vadd.f32 %v2554, %v2618
    %2620 = vmatmul.f32.gmra.mxu0 %v2380
    %v2621 = vpop.f32.mrf.mxu0
    %v2622 = vadd.f32 %v2557, %v2621
    %2623 = vmatmul.f32.gmra.mxu0 %v2384
    %v2624 = vpop.f32.mrf.mxu0
    %v2625 = vadd.f32 %v2560, %v2624
    %2626 = vmatmul.f32.gmra.mxu0 %v2388
    %v2627 = vpop.f32.mrf.mxu0
    %v2628 = vadd.f32 %v2563, %v2627
    %2629 = vmatmul.f32.gmra.mxu0 %v2392
    %v2630 = vpop.f32.mrf.mxu0
    %v2631 = vadd.f32 %v2566, %v2630
    %2632 = vmatmul.f32.gmra.mxu0 %v2396
    %v2633 = vpop.f32.mrf.mxu0
    %v2634 = vadd.f32 %v2569, %v2633
    %2635 = vmatmul.f32.gmra.mxu0 %v2400
    %v2636 = vpop.f32.mrf.mxu0
    %v2637 = vadd.f32 %v2572, %v2636
    %2638 = vmatmul.f32.gmra.mxu0 %v2404
    %v2639 = vpop.f32.mrf.mxu0
    %v2640 = vadd.f32 %v2575, %v2639
    %2641 = vmatmul.f32.gmra.mxu0 %v2408
    %v2642 = vpop.f32.mrf.mxu0
    %v2643 = vadd.f32 %v2578, %v2642
    %2644 = vmatmul.f32.gmra.mxu0 %v2412
    %v2645 = vpop.f32.mrf.mxu0
    %v2646 = vadd.f32 %v2581, %v2645
    %2647 = vmatmul.f32.gmra.mxu0 %v2416
    %v2648 = vpop.f32.mrf.mxu0
    %v2649 = vadd.f32 %v2584, %v2648
    %2650 = vmatmul.f32.gmra.mxu0 %v2420
    %v2651 = vpop.f32.mrf.mxu0
    %v2652 = vadd.f32 %v2587, %v2651
    %2653 = vmatmul.f32.gmra.mxu0 %v2424
    %v2654 = vpop.f32.mrf.mxu0
    %v2655 = vadd.f32 %v2590, %v2654
    %2656 = vmatmul.f32.gmra.mxu0 %v2428
    %v2657 = vpop.f32.mrf.mxu0
    %v2658 = vadd.f32 %v2593, %v2657
    %2659 = vmatmul.f32.gmra.mxu0 %v2432
    %v2660 = vpop.f32.mrf.mxu0
    %v2661 = vadd.f32 %v2596, %v2660
    %2662 = vmatmul.f32.gmra.mxu0 %v2436
    %v2663 = vpop.f32.mrf.mxu0
    %v2664 = vadd.f32 %v2599, %v2663
    %2665 = vdwg.mxu0
    %2666 = vmatpush.msra.mxu0 %v623
    %2667 = vmatpush.msra.mxu0 %v622
    %2668 = vmatpush.msra.mxu0 %v621
    %2669 = vmatpush.msra.mxu0 %v620
    %2670 = vmatpush.msra.mxu0 %v619
    %2671 = vmatpush.msra.mxu0 %v618
    %2672 = vmatpush.msra.mxu0 %v617
    %2673 = vmatpush.msra.mxu0 %v616
    %2674 = vmatpush.msra.mxu0 %v615
    %2675 = vmatpush.msra.mxu0 %v614
    %2676 = vmatpush.msra.mxu0 %v613
    %2677 = vmatpush.msra.mxu0 %v612
    %2678 = vmatpush.msra.mxu0 %v611
    %2679 = vmatpush.msra.mxu0 %v610
    %2680 = vmatpush.msra.mxu0 %v609
    %2681 = vmatpush.msra.mxu0 %v608
    %2682 = vmatmul.f32.gmra.mxu0 %v2377
    %v2683 = vpop.f32.mrf.mxu0
    %v2684 = vadd.f32 %v2619, %v2683
    %2685 = vmatmul.f32.gmra.mxu0 %v2381
    %v2686 = vpop.f32.mrf.mxu0
    %v2687 = vadd.f32 %v2622, %v2686
    %2688 = vmatmul.f32.gmra.mxu0 %v2385
    %v2689 = vpop.f32.mrf.mxu0
    %v2690 = vadd.f32 %v2625, %v2689
    %2691 = vmatmul.f32.gmra.mxu0 %v2389
    %v2692 = vpop.f32.mrf.mxu0
    %v2693 = vadd.f32 %v2628, %v2692
    %2694 = vmatmul.f32.gmra.mxu0 %v2393
    %v2695 = vpop.f32.mrf.mxu0
    %v2696 = vadd.f32 %v2631, %v2695
    %2697 = vmatmul.f32.gmra.mxu0 %v2397
    %v2698 = vpop.f32.mrf.mxu0
    %v2699 = vadd.f32 %v2634, %v2698
    %2700 = vmatmul.f32.gmra.mxu0 %v2401
    %v2701 = vpop.f32.mrf.mxu0
    %v2702 = vadd.f32 %v2637, %v2701
    %2703 = vmatmul.f32.gmra.mxu0 %v2405
    %v2704 = vpop.f32.mrf.mxu0
    %v2705 = vadd.f32 %v2640, %v2704
    %2706 = vmatmul.f32.gmra.mxu0 %v2409
    %v2707 = vpop.f32.mrf.mxu0
    %v2708 = vadd.f32 %v2643, %v2707
    %2709 = vmatmul.f32.gmra.mxu0 %v2413
    %v2710 = vpop.f32.mrf.mxu0
    %v2711 = vadd.f32 %v2646, %v2710
    %2712 = vmatmul.f32.gmra.mxu0 %v2417
    %v2713 = vpop.f32.mrf.mxu0
    %v2714 = vadd.f32 %v2649, %v2713
    %2715 = vmatmul.f32.gmra.mxu0 %v2421
    %v2716 = vpop.f32.mrf.mxu0
    %v2717 = vadd.f32 %v2652, %v2716
    %2718 = vmatmul.f32.gmra.mxu0 %v2425
    %v2719 = vpop.f32.mrf.mxu0
    %v2720 = vadd.f32 %v2655, %v2719
    %2721 = vmatmul.f32.gmra.mxu0 %v2429
    %v2722 = vpop.f32.mrf.mxu0
    %v2723 = vadd.f32 %v2658, %v2722
    %2724 = vmatmul.f32.gmra.mxu0 %v2433
    %v2725 = vpop.f32.mrf.mxu0
    %v2726 = vadd.f32 %v2661, %v2725
    %2727 = vmatmul.f32.gmra.mxu0 %v2437
    %v2728 = vpop.f32.mrf.mxu0
    %v2729 = vadd.f32 %v2664, %v2728
    %2730 = vdwg.mxu0
    %2731 = vmatpush.msra.mxu0 %v639
    %2732 = vmatpush.msra.mxu0 %v638
    %2733 = vmatpush.msra.mxu0 %v637
    %2734 = vmatpush.msra.mxu0 %v636
    %2735 = vmatpush.msra.mxu0 %v635
    %2736 = vmatpush.msra.mxu0 %v634
    %2737 = vmatpush.msra.mxu0 %v633
    %2738 = vmatpush.msra.mxu0 %v632
    %2739 = vmatpush.msra.mxu0 %v631
    %2740 = vmatpush.msra.mxu0 %v630
    %2741 = vmatpush.msra.mxu0 %v629
    %2742 = vmatpush.msra.mxu0 %v628
    %2743 = vmatpush.msra.mxu0 %v627
    %2744 = vmatpush.msra.mxu0 %v626
    %2745 = vmatpush.msra.mxu0 %v625
    %2746 = vmatpush.msra.mxu0 %v624
    %2747 = vmatmul.f32.gmra.mxu0 %v2378
    %v2748 = vpop.f32.mrf.mxu0
    %v2749 = vadd.f32 %v2684, %v2748
    %2750 = vmatmul.f32.gmra.mxu0 %v2382
    %v2751 = vpop.f32.mrf.mxu0
    %v2752 = vadd.f32 %v2687, %v2751
    %2753 = vmatmul.f32.gmra.mxu0 %v2386
    %v2754 = vpop.f32.mrf.mxu0
    %v2755 = vadd.f32 %v2690, %v2754
    %2756 = vmatmul.f32.gmra.mxu0 %v2390
    %v2757 = vpop.f32.mrf.mxu0
    %v2758 = vadd.f32 %v2693, %v2757
    %2759 = vmatmul.f32.gmra.mxu0 %v2394
    %v2760 = vpop.f32.mrf.mxu0
    %v2761 = vadd.f32 %v2696, %v2760
    %2762 = vmatmul.f32.gmra.mxu0 %v2398
    %v2763 = vpop.f32.mrf.mxu0
    %v2764 = vadd.f32 %v2699, %v2763
    %2765 = vmatmul.f32.gmra.mxu0 %v2402
    %v2766 = vpop.f32.mrf.mxu0
    %v2767 = vadd.f32 %v2702, %v2766
    %2768 = vmatmul.f32.gmra.mxu0 %v2406
    %v2769 = vpop.f32.mrf.mxu0
    %v2770 = vadd.f32 %v2705, %v2769
    %2771 = vmatmul.f32.gmra.mxu0 %v2410
    %v2772 = vpop.f32.mrf.mxu0
    %v2773 = vadd.f32 %v2708, %v2772
    %2774 = vmatmul.f32.gmra.mxu0 %v2414
    %v2775 = vpop.f32.mrf.mxu0
    %v2776 = vadd.f32 %v2711, %v2775
    %2777 = vmatmul.f32.gmra.mxu0 %v2418
    %v2778 = vpop.f32.mrf.mxu0
    %v2779 = vadd.f32 %v2714, %v2778
    %2780 = vmatmul.f32.gmra.mxu0 %v2422
    %v2781 = vpop.f32.mrf.mxu0
    %v2782 = vadd.f32 %v2717, %v2781
    %2783 = vmatmul.f32.gmra.mxu0 %v2426
    %v2784 = vpop.f32.mrf.mxu0
    %v2785 = vadd.f32 %v2720, %v2784
    %2786 = vmatmul.f32.gmra.mxu0 %v2430
    %v2787 = vpop.f32.mrf.mxu0
    %v2788 = vadd.f32 %v2723, %v2787
    %2789 = vmatmul.f32.gmra.mxu0 %v2434
    %v2790 = vpop.f32.mrf.mxu0
    %v2791 = vadd.f32 %v2726, %v2790
    %2792 = vmatmul.f32.gmra.mxu0 %v2438
    %v2793 = vpop.f32.mrf.mxu0
    %v2794 = vadd.f32 %v2729, %v2793
    %2795 = vdwg.mxu0
    %v2796 = vmax.f32 %v2358, %v2749
    %v2797 = vmax.f32 %v2359, %v2752
    %v2798 = vmax.f32 %v2360, %v2755
    %v2799 = vmax.f32 %v2361, %v2758
    %v2800 = vmax.f32 %v2362, %v2761
    %v2801 = vmax.f32 %v2363, %v2764
    %v2802 = vmax.f32 %v2364, %v2767
    %v2803 = vmax.f32 %v2365, %v2770
    %v2804 = vmax.f32 %v2366, %v2773
    %v2805 = vmax.f32 %v2367, %v2776
    %v2806 = vmax.f32 %v2368, %v2779
    %v2807 = vmax.f32 %v2369, %v2782
    %v2808 = vmax.f32 %v2370, %v2785
    %v2809 = vmax.f32 %v2371, %v2788
    %v2810 = vmax.f32 %v2372, %v2791
    %v2811 = vmax.f32 %v2373, %v2794
    %s2812 = scalar_lea.vmem [#allocation6], 2560
    %v2813 = vld [vmem:[%s2812] sm:$0xff]
    %v2814 = vld [vmem:[%s2812 + $0x8] sm:$0xff]
    %v2815 = vld [vmem:[%s2812 + $0x10] sm:$0xff]
    %v2816 = vld [vmem:[%s2812 + $0x18] sm:$0xff]
    %v2817 = vld [vmem:[%s2812 + $0x20] sm:$0xff]
    %v2818 = vld [vmem:[%s2812 + $0x28] sm:$0xff]
    %v2819 = vld [vmem:[%s2812 + $0x30] sm:$0xff]
    %v2820 = vld [vmem:[%s2812 + $0x38] sm:$0xff]
    %v2821 = vld [vmem:[%s2812 + $0x40] sm:$0xff]
    %v2822 = vld [vmem:[%s2812 + $0x48] sm:$0xff]
    %v2823 = vld [vmem:[%s2812 + $0x50] sm:$0xff]
    %v2824 = vld [vmem:[%s2812 + $0x58] sm:$0xff]
    %v2825 = vld [vmem:[%s2812 + $0x60] sm:$0xff]
    %v2826 = vld [vmem:[%s2812 + $0x68] sm:$0xff]
    %v2827 = vld [vmem:[%s2812 + $0x70] sm:$0xff]
    %v2828 = vld [vmem:[%s2812 + $0x78] sm:$0xff]
    %v2829 = vld [vmem:[%s2812 + $0x80] sm:$0xff]
    %v2830 = vld [vmem:[%s2812 + $0x88] sm:$0xff]
    %v2831 = vld [vmem:[%s2812 + $0x90] sm:$0xff]
    %v2832 = vld [vmem:[%s2812 + $0x98] sm:$0xff]
    %v2833 = vld [vmem:[%s2812 + $0xa0] sm:$0xff]
    %v2834 = vld [vmem:[%s2812 + $0xa8] sm:$0xff]
    %v2835 = vld [vmem:[%s2812 + $0xb0] sm:$0xff]
    %v2836 = vld [vmem:[%s2812 + $0xb8] sm:$0xff]
    %v2837 = vld [vmem:[%s2812 + $0xc0] sm:$0xff]
    %v2838 = vld [vmem:[%s2812 + $0xc8] sm:$0xff]
    %v2839 = vld [vmem:[%s2812 + $0xd0] sm:$0xff]
    %v2840 = vld [vmem:[%s2812 + $0xd8] sm:$0xff]
    %v2841 = vld [vmem:[%s2812 + $0xe0] sm:$0xff]
    %v2842 = vld [vmem:[%s2812 + $0xe8] sm:$0xff]
    %v2843 = vld [vmem:[%s2812 + $0xf0] sm:$0xff]
    %v2844 = vld [vmem:[%s2812 + $0xf8] sm:$0xff]
    %v2845 = vld [vmem:[%s2812 + $0x100] sm:$0xff]
    %v2846 = vld [vmem:[%s2812 + $0x108] sm:$0xff]
    %v2847 = vld [vmem:[%s2812 + $0x110] sm:$0xff]
    %v2848 = vld [vmem:[%s2812 + $0x118] sm:$0xff]
    %v2849 = vld [vmem:[%s2812 + $0x120] sm:$0xff]
    %v2850 = vld [vmem:[%s2812 + $0x128] sm:$0xff]
    %v2851 = vld [vmem:[%s2812 + $0x130] sm:$0xff]
    %v2852 = vld [vmem:[%s2812 + $0x138] sm:$0xff]
    %v2853 = vld [vmem:[%s2812 + $0x140] sm:$0xff]
    %v2854 = vld [vmem:[%s2812 + $0x148] sm:$0xff]
    %v2855 = vld [vmem:[%s2812 + $0x150] sm:$0xff]
    %v2856 = vld [vmem:[%s2812 + $0x158] sm:$0xff]
    %v2857 = vld [vmem:[%s2812 + $0x160] sm:$0xff]
    %v2858 = vld [vmem:[%s2812 + $0x168] sm:$0xff]
    %v2859 = vld [vmem:[%s2812 + $0x170] sm:$0xff]
    %v2860 = vld [vmem:[%s2812 + $0x178] sm:$0xff]
    %v2861 = vld [vmem:[%s2812 + $0x180] sm:$0xff]
    %v2862 = vld [vmem:[%s2812 + $0x188] sm:$0xff]
    %v2863 = vld [vmem:[%s2812 + $0x190] sm:$0xff]
    %v2864 = vld [vmem:[%s2812 + $0x198] sm:$0xff]
    %v2865 = vld [vmem:[%s2812 + $0x1a0] sm:$0xff]
    %v2866 = vld [vmem:[%s2812 + $0x1a8] sm:$0xff]
    %v2867 = vld [vmem:[%s2812 + $0x1b0] sm:$0xff]
    %v2868 = vld [vmem:[%s2812 + $0x1b8] sm:$0xff]
    %v2869 = vld [vmem:[%s2812 + $0x1c0] sm:$0xff]
    %v2870 = vld [vmem:[%s2812 + $0x1c8] sm:$0xff]
    %v2871 = vld [vmem:[%s2812 + $0x1d0] sm:$0xff]
    %v2872 = vld [vmem:[%s2812 + $0x1d8] sm:$0xff]
    %v2873 = vld [vmem:[%s2812 + $0x1e0] sm:$0xff]
    %v2874 = vld [vmem:[%s2812 + $0x1e8] sm:$0xff]
    %v2875 = vld [vmem:[%s2812 + $0x1f0] sm:$0xff]
    %v2876 = vld [vmem:[%s2812 + $0x1f8] sm:$0xff]
    %s2877 = scalar_lea.vmem %s4, 640
    %v2878 = vld [vmem:[%s2877] sm:$0xff]
    %v2879 = vld [vmem:[%s2877 + $0x8] sm:$0xff]
    %v2880 = vld [vmem:[%s2877 + $0x10] sm:$0xff]
    %v2881 = vld [vmem:[%s2877 + $0x18] sm:$0xff]
    %v2882 = vld [vmem:[%s2877 + $0x20] sm:$0xff]
    %v2883 = vld [vmem:[%s2877 + $0x28] sm:$0xff]
    %v2884 = vld [vmem:[%s2877 + $0x30] sm:$0xff]
    %v2885 = vld [vmem:[%s2877 + $0x38] sm:$0xff]
    %v2886 = vld [vmem:[%s2877 + $0x40] sm:$0xff]
    %v2887 = vld [vmem:[%s2877 + $0x48] sm:$0xff]
    %v2888 = vld [vmem:[%s2877 + $0x50] sm:$0xff]
    %v2889 = vld [vmem:[%s2877 + $0x58] sm:$0xff]
    %v2890 = vld [vmem:[%s2877 + $0x60] sm:$0xff]
    %v2891 = vld [vmem:[%s2877 + $0x68] sm:$0xff]
    %v2892 = vld [vmem:[%s2877 + $0x70] sm:$0xff]
    %v2893 = vld [vmem:[%s2877 + $0x78] sm:$0xff]
    %2895 = vset.pattern.permute.xlu0 0
    %2896 = vperm.xlu0 %2895, %v2878
    %v2897 = vpop.permute.xlu0 %2896
    %2900 = vset.pattern.permute.xlu0 0
    %2901 = vperm.xlu0 %2900, %v2879
    %v2902 = vpop.permute.xlu0 %2901
    %2905 = vset.pattern.permute.xlu0 0
    %2906 = vperm.xlu0 %2905, %v2880
    %v2907 = vpop.permute.xlu0 %2906
    %2910 = vset.pattern.permute.xlu0 0
    %2911 = vperm.xlu0 %2910, %v2881
    %v2912 = vpop.permute.xlu0 %2911
    %2915 = vset.pattern.permute.xlu0 0
    %2916 = vperm.xlu0 %2915, %v2882
    %v2917 = vpop.permute.xlu0 %2916
    %2920 = vset.pattern.permute.xlu0 0
    %2921 = vperm.xlu0 %2920, %v2883
    %v2922 = vpop.permute.xlu0 %2921
    %2925 = vset.pattern.permute.xlu0 0
    %2926 = vperm.xlu0 %2925, %v2884
    %v2927 = vpop.permute.xlu0 %2926
    %2930 = vset.pattern.permute.xlu0 0
    %2931 = vperm.xlu0 %2930, %v2885
    %v2932 = vpop.permute.xlu0 %2931
    %2935 = vset.pattern.permute.xlu0 0
    %2936 = vperm.xlu0 %2935, %v2886
    %v2937 = vpop.permute.xlu0 %2936
    %2940 = vset.pattern.permute.xlu0 0
    %2941 = vperm.xlu0 %2940, %v2887
    %v2942 = vpop.permute.xlu0 %2941
    %2945 = vset.pattern.permute.xlu0 0
    %2946 = vperm.xlu0 %2945, %v2888
    %v2947 = vpop.permute.xlu0 %2946
    %2950 = vset.pattern.permute.xlu0 0
    %2951 = vperm.xlu0 %2950, %v2889
    %v2952 = vpop.permute.xlu0 %2951
    %2955 = vset.pattern.permute.xlu0 0
    %2956 = vperm.xlu0 %2955, %v2890
    %v2957 = vpop.permute.xlu0 %2956
    %2960 = vset.pattern.permute.xlu0 0
    %2961 = vperm.xlu0 %2960, %v2891
    %v2962 = vpop.permute.xlu0 %2961
    %2965 = vset.pattern.permute.xlu0 0
    %2966 = vperm.xlu0 %2965, %v2892
    %v2967 = vpop.permute.xlu0 %2966
    %2970 = vset.pattern.permute.xlu0 0
    %2971 = vperm.xlu0 %2970, %v2893
    %v2972 = vpop.permute.xlu0 %2971
    %2974 = vmatpush.msra.mxu0 %v591
    %2975 = vmatpush.msra.mxu0 %v590
    %2976 = vmatpush.msra.mxu0 %v589
    %2977 = vmatpush.msra.mxu0 %v588
    %2978 = vmatpush.msra.mxu0 %v587
    %2979 = vmatpush.msra.mxu0 %v586
    %2980 = vmatpush.msra.mxu0 %v585
    %2981 = vmatpush.msra.mxu0 %v584
    %2982 = vmatpush.msra.mxu0 %v583
    %2983 = vmatpush.msra.mxu0 %v582
    %2984 = vmatpush.msra.mxu0 %v581
    %2985 = vmatpush.msra.mxu0 %v580
    %2986 = vmatpush.msra.mxu0 %v579
    %2987 = vmatpush.msra.mxu0 %v578
    %2988 = vmatpush.msra.mxu0 %v577
    %2989 = vmatpush.msra.mxu0 %v576
    %2990 = vmatmul.f32.gmra.mxu0 %v2813
    %v2991 = vpop.f32.mrf.mxu0
    %v2992 = vadd.f32 %v2897, %v2991
    %2993 = vmatmul.f32.gmra.mxu0 %v2817
    %v2994 = vpop.f32.mrf.mxu0
    %v2995 = vadd.f32 %v2902, %v2994
    %2996 = vmatmul.f32.gmra.mxu0 %v2821
    %v2997 = vpop.f32.mrf.mxu0
    %v2998 = vadd.f32 %v2907, %v2997
    %2999 = vmatmul.f32.gmra.mxu0 %v2825
    %v3000 = vpop.f32.mrf.mxu0
    %v3001 = vadd.f32 %v2912, %v3000
    %3002 = vmatmul.f32.gmra.mxu0 %v2829
    %v3003 = vpop.f32.mrf.mxu0
    %v3004 = vadd.f32 %v2917, %v3003
    %3005 = vmatmul.f32.gmra.mxu0 %v2833
    %v3006 = vpop.f32.mrf.mxu0
    %v3007 = vadd.f32 %v2922, %v3006
    %3008 = vmatmul.f32.gmra.mxu0 %v2837
    %v3009 = vpop.f32.mrf.mxu0
    %v3010 = vadd.f32 %v2927, %v3009
    %3011 = vmatmul.f32.gmra.mxu0 %v2841
    %v3012 = vpop.f32.mrf.mxu0
    %v3013 = vadd.f32 %v2932, %v3012
    %3014 = vmatmul.f32.gmra.mxu0 %v2845
    %v3015 = vpop.f32.mrf.mxu0
    %v3016 = vadd.f32 %v2937, %v3015
    %3017 = vmatmul.f32.gmra.mxu0 %v2849
    %v3018 = vpop.f32.mrf.mxu0
    %v3019 = vadd.f32 %v2942, %v3018
    %3020 = vmatmul.f32.gmra.mxu0 %v2853
    %v3021 = vpop.f32.mrf.mxu0
    %v3022 = vadd.f32 %v2947, %v3021
    %3023 = vmatmul.f32.gmra.mxu0 %v2857
    %v3024 = vpop.f32.mrf.mxu0
    %v3025 = vadd.f32 %v2952, %v3024
    %3026 = vmatmul.f32.gmra.mxu0 %v2861
    %v3027 = vpop.f32.mrf.mxu0
    %v3028 = vadd.f32 %v2957, %v3027
    %3029 = vmatmul.f32.gmra.mxu0 %v2865
    %v3030 = vpop.f32.mrf.mxu0
    %v3031 = vadd.f32 %v2962, %v3030
    %3032 = vmatmul.f32.gmra.mxu0 %v2869
    %v3033 = vpop.f32.mrf.mxu0
    %v3034 = vadd.f32 %v2967, %v3033
    %3035 = vmatmul.f32.gmra.mxu0 %v2873
    %v3036 = vpop.f32.mrf.mxu0
    %v3037 = vadd.f32 %v2972, %v3036
    %3038 = vdwg.mxu0
    %3039 = vmatpush.msra.mxu0 %v607
    %3040 = vmatpush.msra.mxu0 %v606
    %3041 = vmatpush.msra.mxu0 %v605
    %3042 = vmatpush.msra.mxu0 %v604
    %3043 = vmatpush.msra.mxu0 %v603
    %3044 = vmatpush.msra.mxu0 %v602
    %3045 = vmatpush.msra.mxu0 %v601
    %3046 = vmatpush.msra.mxu0 %v600
    %3047 = vmatpush.msra.mxu0 %v599
    %3048 = vmatpush.msra.mxu0 %v598
    %3049 = vmatpush.msra.mxu0 %v597
    %3050 = vmatpush.msra.mxu0 %v596
    %3051 = vmatpush.msra.mxu0 %v595
    %3052 = vmatpush.msra.mxu0 %v594
    %3053 = vmatpush.msra.mxu0 %v593
    %3054 = vmatpush.msra.mxu0 %v592
    %3055 = vmatmul.f32.gmra.mxu0 %v2814
    %v3056 = vpop.f32.mrf.mxu0
    %v3057 = vadd.f32 %v2992, %v3056
    %3058 = vmatmul.f32.gmra.mxu0 %v2818
    %v3059 = vpop.f32.mrf.mxu0
    %v3060 = vadd.f32 %v2995, %v3059
    %3061 = vmatmul.f32.gmra.mxu0 %v2822
    %v3062 = vpop.f32.mrf.mxu0
    %v3063 = vadd.f32 %v2998, %v3062
    %3064 = vmatmul.f32.gmra.mxu0 %v2826
    %v3065 = vpop.f32.mrf.mxu0
    %v3066 = vadd.f32 %v3001, %v3065
    %3067 = vmatmul.f32.gmra.mxu0 %v2830
    %v3068 = vpop.f32.mrf.mxu0
    %v3069 = vadd.f32 %v3004, %v3068
    %3070 = vmatmul.f32.gmra.mxu0 %v2834
    %v3071 = vpop.f32.mrf.mxu0
    %v3072 = vadd.f32 %v3007, %v3071
    %3073 = vmatmul.f32.gmra.mxu0 %v2838
    %v3074 = vpop.f32.mrf.mxu0
    %v3075 = vadd.f32 %v3010, %v3074
    %3076 = vmatmul.f32.gmra.mxu0 %v2842
    %v3077 = vpop.f32.mrf.mxu0
    %v3078 = vadd.f32 %v3013, %v3077
    %3079 = vmatmul.f32.gmra.mxu0 %v2846
    %v3080 = vpop.f32.mrf.mxu0
    %v3081 = vadd.f32 %v3016, %v3080
    %3082 = vmatmul.f32.gmra.mxu0 %v2850
    %v3083 = vpop.f32.mrf.mxu0
    %v3084 = vadd.f32 %v3019, %v3083
    %3085 = vmatmul.f32.gmra.mxu0 %v2854
    %v3086 = vpop.f32.mrf.mxu0
    %v3087 = vadd.f32 %v3022, %v3086
    %3088 = vmatmul.f32.gmra.mxu0 %v2858
    %v3089 = vpop.f32.mrf.mxu0
    %v3090 = vadd.f32 %v3025, %v3089
    %3091 = vmatmul.f32.gmra.mxu0 %v2862
    %v3092 = vpop.f32.mrf.mxu0
    %v3093 = vadd.f32 %v3028, %v3092
    %3094 = vmatmul.f32.gmra.mxu0 %v2866
    %v3095 = vpop.f32.mrf.mxu0
    %v3096 = vadd.f32 %v3031, %v3095
    %3097 = vmatmul.f32.gmra.mxu0 %v2870
    %v3098 = vpop.f32.mrf.mxu0
    %v3099 = vadd.f32 %v3034, %v3098
    %3100 = vmatmul.f32.gmra.mxu0 %v2874
    %v3101 = vpop.f32.mrf.mxu0
    %v3102 = vadd.f32 %v3037, %v3101
    %3103 = vdwg.mxu0
    %3104 = vmatpush.msra.mxu0 %v623
    %3105 = vmatpush.msra.mxu0 %v622
    %3106 = vmatpush.msra.mxu0 %v621
    %3107 = vmatpush.msra.mxu0 %v620
    %3108 = vmatpush.msra.mxu0 %v619
    %3109 = vmatpush.msra.mxu0 %v618
    %3110 = vmatpush.msra.mxu0 %v617
    %3111 = vmatpush.msra.mxu0 %v616
    %3112 = vmatpush.msra.mxu0 %v615
    %3113 = vmatpush.msra.mxu0 %v614
    %3114 = vmatpush.msra.mxu0 %v613
    %3115 = vmatpush.msra.mxu0 %v612
    %3116 = vmatpush.msra.mxu0 %v611
    %3117 = vmatpush.msra.mxu0 %v610
    %3118 = vmatpush.msra.mxu0 %v609
    %3119 = vmatpush.msra.mxu0 %v608
    %3120 = vmatmul.f32.gmra.mxu0 %v2815
    %v3121 = vpop.f32.mrf.mxu0
    %v3122 = vadd.f32 %v3057, %v3121
    %3123 = vmatmul.f32.gmra.mxu0 %v2819
    %v3124 = vpop.f32.mrf.mxu0
    %v3125 = vadd.f32 %v3060, %v3124
    %3126 = vmatmul.f32.gmra.mxu0 %v2823
    %v3127 = vpop.f32.mrf.mxu0
    %v3128 = vadd.f32 %v3063, %v3127
    %3129 = vmatmul.f32.gmra.mxu0 %v2827
    %v3130 = vpop.f32.mrf.mxu0
    %v3131 = vadd.f32 %v3066, %v3130
    %3132 = vmatmul.f32.gmra.mxu0 %v2831
    %v3133 = vpop.f32.mrf.mxu0
    %v3134 = vadd.f32 %v3069, %v3133
    %3135 = vmatmul.f32.gmra.mxu0 %v2835
    %v3136 = vpop.f32.mrf.mxu0
    %v3137 = vadd.f32 %v3072, %v3136
    %3138 = vmatmul.f32.gmra.mxu0 %v2839
    %v3139 = vpop.f32.mrf.mxu0
    %v3140 = vadd.f32 %v3075, %v3139
    %3141 = vmatmul.f32.gmra.mxu0 %v2843
    %v3142 = vpop.f32.mrf.mxu0
    %v3143 = vadd.f32 %v3078, %v3142
    %3144 = vmatmul.f32.gmra.mxu0 %v2847
    %v3145 = vpop.f32.mrf.mxu0
    %v3146 = vadd.f32 %v3081, %v3145
    %3147 = vmatmul.f32.gmra.mxu0 %v2851
    %v3148 = vpop.f32.mrf.mxu0
    %v3149 = vadd.f32 %v3084, %v3148
    %3150 = vmatmul.f32.gmra.mxu0 %v2855
    %v3151 = vpop.f32.mrf.mxu0
    %v3152 = vadd.f32 %v3087, %v3151
    %3153 = vmatmul.f32.gmra.mxu0 %v2859
    %v3154 = vpop.f32.mrf.mxu0
    %v3155 = vadd.f32 %v3090, %v3154
    %3156 = vmatmul.f32.gmra.mxu0 %v2863
    %v3157 = vpop.f32.mrf.mxu0
    %v3158 = vadd.f32 %v3093, %v3157
    %3159 = vmatmul.f32.gmra.mxu0 %v2867
    %v3160 = vpop.f32.mrf.mxu0
    %v3161 = vadd.f32 %v3096, %v3160
    %3162 = vmatmul.f32.gmra.mxu0 %v2871
    %v3163 = vpop.f32.mrf.mxu0
    %v3164 = vadd.f32 %v3099, %v3163
    %3165 = vmatmul.f32.gmra.mxu0 %v2875
    %v3166 = vpop.f32.mrf.mxu0
    %v3167 = vadd.f32 %v3102, %v3166
    %3168 = vdwg.mxu0
    %3169 = vmatpush.msra.mxu0 %v639
    %3170 = vmatpush.msra.mxu0 %v638
    %3171 = vmatpush.msra.mxu0 %v637
    %3172 = vmatpush.msra.mxu0 %v636
    %3173 = vmatpush.msra.mxu0 %v635
    %3174 = vmatpush.msra.mxu0 %v634
    %3175 = vmatpush.msra.mxu0 %v633
    %3176 = vmatpush.msra.mxu0 %v632
    %3177 = vmatpush.msra.mxu0 %v631
    %3178 = vmatpush.msra.mxu0 %v630
    %3179 = vmatpush.msra.mxu0 %v629
    %3180 = vmatpush.msra.mxu0 %v628
    %3181 = vmatpush.msra.mxu0 %v627
    %3182 = vmatpush.msra.mxu0 %v626
    %3183 = vmatpush.msra.mxu0 %v625
    %3184 = vmatpush.msra.mxu0 %v624
    %3185 = vmatmul.f32.gmra.mxu0 %v2816
    %v3186 = vpop.f32.mrf.mxu0
    %v3187 = vadd.f32 %v3122, %v3186
    %3188 = vmatmul.f32.gmra.mxu0 %v2820
    %v3189 = vpop.f32.mrf.mxu0
    %v3190 = vadd.f32 %v3125, %v3189
    %3191 = vmatmul.f32.gmra.mxu0 %v2824
    %v3192 = vpop.f32.mrf.mxu0
    %v3193 = vadd.f32 %v3128, %v3192
    %3194 = vmatmul.f32.gmra.mxu0 %v2828
    %v3195 = vpop.f32.mrf.mxu0
    %v3196 = vadd.f32 %v3131, %v3195
    %3197 = vmatmul.f32.gmra.mxu0 %v2832
    %v3198 = vpop.f32.mrf.mxu0
    %v3199 = vadd.f32 %v3134, %v3198
    %3200 = vmatmul.f32.gmra.mxu0 %v2836
    %v3201 = vpop.f32.mrf.mxu0
    %v3202 = vadd.f32 %v3137, %v3201
    %3203 = vmatmul.f32.gmra.mxu0 %v2840
    %v3204 = vpop.f32.mrf.mxu0
    %v3205 = vadd.f32 %v3140, %v3204
    %3206 = vmatmul.f32.gmra.mxu0 %v2844
    %v3207 = vpop.f32.mrf.mxu0
    %v3208 = vadd.f32 %v3143, %v3207
    %3209 = vmatmul.f32.gmra.mxu0 %v2848
    %v3210 = vpop.f32.mrf.mxu0
    %v3211 = vadd.f32 %v3146, %v3210
    %3212 = vmatmul.f32.gmra.mxu0 %v2852
    %v3213 = vpop.f32.mrf.mxu0
    %v3214 = vadd.f32 %v3149, %v3213
    %3215 = vmatmul.f32.gmra.mxu0 %v2856
    %v3216 = vpop.f32.mrf.mxu0
    %v3217 = vadd.f32 %v3152, %v3216
    %3218 = vmatmul.f32.gmra.mxu0 %v2860
    %v3219 = vpop.f32.mrf.mxu0
    %v3220 = vadd.f32 %v3155, %v3219
    %3221 = vmatmul.f32.gmra.mxu0 %v2864
    %v3222 = vpop.f32.mrf.mxu0
    %v3223 = vadd.f32 %v3158, %v3222
    %3224 = vmatmul.f32.gmra.mxu0 %v2868
    %v3225 = vpop.f32.mrf.mxu0
    %v3226 = vadd.f32 %v3161, %v3225
    %3227 = vmatmul.f32.gmra.mxu0 %v2872
    %v3228 = vpop.f32.mrf.mxu0
    %v3229 = vadd.f32 %v3164, %v3228
    %3230 = vmatmul.f32.gmra.mxu0 %v2876
    %v3231 = vpop.f32.mrf.mxu0
    %v3232 = vadd.f32 %v3167, %v3231
    %3233 = vdwg.mxu0
    %v3234 = vmax.f32 %v2796, %v3187
    %v3235 = vmax.f32 %v2797, %v3190
    %v3236 = vmax.f32 %v2798, %v3193
    %v3237 = vmax.f32 %v2799, %v3196
    %v3238 = vmax.f32 %v2800, %v3199
    %v3239 = vmax.f32 %v2801, %v3202
    %v3240 = vmax.f32 %v2802, %v3205
    %v3241 = vmax.f32 %v2803, %v3208
    %v3242 = vmax.f32 %v2804, %v3211
    %v3243 = vmax.f32 %v2805, %v3214
    %v3244 = vmax.f32 %v2806, %v3217
    %v3245 = vmax.f32 %v2807, %v3220
    %v3246 = vmax.f32 %v2808, %v3223
    %v3247 = vmax.f32 %v2809, %v3226
    %v3248 = vmax.f32 %v2810, %v3229
    %v3249 = vmax.f32 %v2811, %v3232
    %s3250 = scalar_lea.vmem [#allocation6], 3072
    %v3251 = vld [vmem:[%s3250] sm:$0xff]
    %v3252 = vld [vmem:[%s3250 + $0x8] sm:$0xff]
    %v3253 = vld [vmem:[%s3250 + $0x10] sm:$0xff]
    %v3254 = vld [vmem:[%s3250 + $0x18] sm:$0xff]
    %v3255 = vld [vmem:[%s3250 + $0x20] sm:$0xff]
    %v3256 = vld [vmem:[%s3250 + $0x28] sm:$0xff]
    %v3257 = vld [vmem:[%s3250 + $0x30] sm:$0xff]
    %v3258 = vld [vmem:[%s3250 + $0x38] sm:$0xff]
    %v3259 = vld [vmem:[%s3250 + $0x40] sm:$0xff]
    %v3260 = vld [vmem:[%s3250 + $0x48] sm:$0xff]
    %v3261 = vld [vmem:[%s3250 + $0x50] sm:$0xff]
    %v3262 = vld [vmem:[%s3250 + $0x58] sm:$0xff]
    %v3263 = vld [vmem:[%s3250 + $0x60] sm:$0xff]
    %v3264 = vld [vmem:[%s3250 + $0x68] sm:$0xff]
    %v3265 = vld [vmem:[%s3250 + $0x70] sm:$0xff]
    %v3266 = vld [vmem:[%s3250 + $0x78] sm:$0xff]
    %v3267 = vld [vmem:[%s3250 + $0x80] sm:$0xff]
    %v3268 = vld [vmem:[%s3250 + $0x88] sm:$0xff]
    %v3269 = vld [vmem:[%s3250 + $0x90] sm:$0xff]
    %v3270 = vld [vmem:[%s3250 + $0x98] sm:$0xff]
    %v3271 = vld [vmem:[%s3250 + $0xa0] sm:$0xff]
    %v3272 = vld [vmem:[%s3250 + $0xa8] sm:$0xff]
    %v3273 = vld [vmem:[%s3250 + $0xb0] sm:$0xff]
    %v3274 = vld [vmem:[%s3250 + $0xb8] sm:$0xff]
    %v3275 = vld [vmem:[%s3250 + $0xc0] sm:$0xff]
    %v3276 = vld [vmem:[%s3250 + $0xc8] sm:$0xff]
    %v3277 = vld [vmem:[%s3250 + $0xd0] sm:$0xff]
    %v3278 = vld [vmem:[%s3250 + $0xd8] sm:$0xff]
    %v3279 = vld [vmem:[%s3250 + $0xe0] sm:$0xff]
    %v3280 = vld [vmem:[%s3250 + $0xe8] sm:$0xff]
    %v3281 = vld [vmem:[%s3250 + $0xf0] sm:$0xff]
    %v3282 = vld [vmem:[%s3250 + $0xf8] sm:$0xff]
    %v3283 = vld [vmem:[%s3250 + $0x100] sm:$0xff]
    %v3284 = vld [vmem:[%s3250 + $0x108] sm:$0xff]
    %v3285 = vld [vmem:[%s3250 + $0x110] sm:$0xff]
    %v3286 = vld [vmem:[%s3250 + $0x118] sm:$0xff]
    %v3287 = vld [vmem:[%s3250 + $0x120] sm:$0xff]
    %v3288 = vld [vmem:[%s3250 + $0x128] sm:$0xff]
    %v3289 = vld [vmem:[%s3250 + $0x130] sm:$0xff]
    %v3290 = vld [vmem:[%s3250 + $0x138] sm:$0xff]
    %v3291 = vld [vmem:[%s3250 + $0x140] sm:$0xff]
    %v3292 = vld [vmem:[%s3250 + $0x148] sm:$0xff]
    %v3293 = vld [vmem:[%s3250 + $0x150] sm:$0xff]
    %v3294 = vld [vmem:[%s3250 + $0x158] sm:$0xff]
    %v3295 = vld [vmem:[%s3250 + $0x160] sm:$0xff]
    %v3296 = vld [vmem:[%s3250 + $0x168] sm:$0xff]
    %v3297 = vld [vmem:[%s3250 + $0x170] sm:$0xff]
    %v3298 = vld [vmem:[%s3250 + $0x178] sm:$0xff]
    %v3299 = vld [vmem:[%s3250 + $0x180] sm:$0xff]
    %v3300 = vld [vmem:[%s3250 + $0x188] sm:$0xff]
    %v3301 = vld [vmem:[%s3250 + $0x190] sm:$0xff]
    %v3302 = vld [vmem:[%s3250 + $0x198] sm:$0xff]
    %v3303 = vld [vmem:[%s3250 + $0x1a0] sm:$0xff]
    %v3304 = vld [vmem:[%s3250 + $0x1a8] sm:$0xff]
    %v3305 = vld [vmem:[%s3250 + $0x1b0] sm:$0xff]
    %v3306 = vld [vmem:[%s3250 + $0x1b8] sm:$0xff]
    %v3307 = vld [vmem:[%s3250 + $0x1c0] sm:$0xff]
    %v3308 = vld [vmem:[%s3250 + $0x1c8] sm:$0xff]
    %v3309 = vld [vmem:[%s3250 + $0x1d0] sm:$0xff]
    %v3310 = vld [vmem:[%s3250 + $0x1d8] sm:$0xff]
    %v3311 = vld [vmem:[%s3250 + $0x1e0] sm:$0xff]
    %v3312 = vld [vmem:[%s3250 + $0x1e8] sm:$0xff]
    %v3313 = vld [vmem:[%s3250 + $0x1f0] sm:$0xff]
    %v3314 = vld [vmem:[%s3250 + $0x1f8] sm:$0xff]
    %s3315 = scalar_lea.vmem %s4, 768
    %v3316 = vld [vmem:[%s3315] sm:$0xff]
    %v3317 = vld [vmem:[%s3315 + $0x8] sm:$0xff]
    %v3318 = vld [vmem:[%s3315 + $0x10] sm:$0xff]
    %v3319 = vld [vmem:[%s3315 + $0x18] sm:$0xff]
    %v3320 = vld [vmem:[%s3315 + $0x20] sm:$0xff]
    %v3321 = vld [vmem:[%s3315 + $0x28] sm:$0xff]
    %v3322 = vld [vmem:[%s3315 + $0x30] sm:$0xff]
    %v3323 = vld [vmem:[%s3315 + $0x38] sm:$0xff]
    %v3324 = vld [vmem:[%s3315 + $0x40] sm:$0xff]
    %v3325 = vld [vmem:[%s3315 + $0x48] sm:$0xff]
    %v3326 = vld [vmem:[%s3315 + $0x50] sm:$0xff]
    %v3327 = vld [vmem:[%s3315 + $0x58] sm:$0xff]
    %v3328 = vld [vmem:[%s3315 + $0x60] sm:$0xff]
    %v3329 = vld [vmem:[%s3315 + $0x68] sm:$0xff]
    %v3330 = vld [vmem:[%s3315 + $0x70] sm:$0xff]
    %v3331 = vld [vmem:[%s3315 + $0x78] sm:$0xff]
    %3333 = vset.pattern.permute.xlu0 0
    %3334 = vperm.xlu0 %3333, %v3316
    %v3335 = vpop.permute.xlu0 %3334
    %3338 = vset.pattern.permute.xlu0 0
    %3339 = vperm.xlu0 %3338, %v3317
    %v3340 = vpop.permute.xlu0 %3339
    %3343 = vset.pattern.permute.xlu0 0
    %3344 = vperm.xlu0 %3343, %v3318
    %v3345 = vpop.permute.xlu0 %3344
    %3348 = vset.pattern.permute.xlu0 0
    %3349 = vperm.xlu0 %3348, %v3319
    %v3350 = vpop.permute.xlu0 %3349
    %3353 = vset.pattern.permute.xlu0 0
    %3354 = vperm.xlu0 %3353, %v3320
    %v3355 = vpop.permute.xlu0 %3354
    %3358 = vset.pattern.permute.xlu0 0
    %3359 = vperm.xlu0 %3358, %v3321
    %v3360 = vpop.permute.xlu0 %3359
    %3363 = vset.pattern.permute.xlu0 0
    %3364 = vperm.xlu0 %3363, %v3322
    %v3365 = vpop.permute.xlu0 %3364
    %3368 = vset.pattern.permute.xlu0 0
    %3369 = vperm.xlu0 %3368, %v3323
    %v3370 = vpop.permute.xlu0 %3369
    %3373 = vset.pattern.permute.xlu0 0
    %3374 = vperm.xlu0 %3373, %v3324
    %v3375 = vpop.permute.xlu0 %3374
    %3378 = vset.pattern.permute.xlu0 0
    %3379 = vperm.xlu0 %3378, %v3325
    %v3380 = vpop.permute.xlu0 %3379
    %3383 = vset.pattern.permute.xlu0 0
    %3384 = vperm.xlu0 %3383, %v3326
    %v3385 = vpop.permute.xlu0 %3384
    %3388 = vset.pattern.permute.xlu0 0
    %3389 = vperm.xlu0 %3388, %v3327
    %v3390 = vpop.permute.xlu0 %3389
    %3393 = vset.pattern.permute.xlu0 0
    %3394 = vperm.xlu0 %3393, %v3328
    %v3395 = vpop.permute.xlu0 %3394
    %3398 = vset.pattern.permute.xlu0 0
    %3399 = vperm.xlu0 %3398, %v3329
    %v3400 = vpop.permute.xlu0 %3399
    %3403 = vset.pattern.permute.xlu0 0
    %3404 = vperm.xlu0 %3403, %v3330
    %v3405 = vpop.permute.xlu0 %3404
    %3408 = vset.pattern.permute.xlu0 0
    %3409 = vperm.xlu0 %3408, %v3331
    %v3410 = vpop.permute.xlu0 %3409
    %3412 = vmatpush.msra.mxu0 %v591
    %3413 = vmatpush.msra.mxu0 %v590
    %3414 = vmatpush.msra.mxu0 %v589
    %3415 = vmatpush.msra.mxu0 %v588
    %3416 = vmatpush.msra.mxu0 %v587
    %3417 = vmatpush.msra.mxu0 %v586
    %3418 = vmatpush.msra.mxu0 %v585
    %3419 = vmatpush.msra.mxu0 %v584
    %3420 = vmatpush.msra.mxu0 %v583
    %3421 = vmatpush.msra.mxu0 %v582
    %3422 = vmatpush.msra.mxu0 %v581
    %3423 = vmatpush.msra.mxu0 %v580
    %3424 = vmatpush.msra.mxu0 %v579
    %3425 = vmatpush.msra.mxu0 %v578
    %3426 = vmatpush.msra.mxu0 %v577
    %3427 = vmatpush.msra.mxu0 %v576
    %3428 = vmatmul.f32.gmra.mxu0 %v3251
    %v3429 = vpop.f32.mrf.mxu0
    %v3430 = vadd.f32 %v3335, %v3429
    %3431 = vmatmul.f32.gmra.mxu0 %v3255
    %v3432 = vpop.f32.mrf.mxu0
    %v3433 = vadd.f32 %v3340, %v3432
    %3434 = vmatmul.f32.gmra.mxu0 %v3259
    %v3435 = vpop.f32.mrf.mxu0
    %v3436 = vadd.f32 %v3345, %v3435
    %3437 = vmatmul.f32.gmra.mxu0 %v3263
    %v3438 = vpop.f32.mrf.mxu0
    %v3439 = vadd.f32 %v3350, %v3438
    %3440 = vmatmul.f32.gmra.mxu0 %v3267
    %v3441 = vpop.f32.mrf.mxu0
    %v3442 = vadd.f32 %v3355, %v3441
    %3443 = vmatmul.f32.gmra.mxu0 %v3271
    %v3444 = vpop.f32.mrf.mxu0
    %v3445 = vadd.f32 %v3360, %v3444
    %3446 = vmatmul.f32.gmra.mxu0 %v3275
    %v3447 = vpop.f32.mrf.mxu0
    %v3448 = vadd.f32 %v3365, %v3447
    %3449 = vmatmul.f32.gmra.mxu0 %v3279
    %v3450 = vpop.f32.mrf.mxu0
    %v3451 = vadd.f32 %v3370, %v3450
    %3452 = vmatmul.f32.gmra.mxu0 %v3283
    %v3453 = vpop.f32.mrf.mxu0
    %v3454 = vadd.f32 %v3375, %v3453
    %3455 = vmatmul.f32.gmra.mxu0 %v3287
    %v3456 = vpop.f32.mrf.mxu0
    %v3457 = vadd.f32 %v3380, %v3456
    %3458 = vmatmul.f32.gmra.mxu0 %v3291
    %v3459 = vpop.f32.mrf.mxu0
    %v3460 = vadd.f32 %v3385, %v3459
    %3461 = vmatmul.f32.gmra.mxu0 %v3295
    %v3462 = vpop.f32.mrf.mxu0
    %v3463 = vadd.f32 %v3390, %v3462
    %3464 = vmatmul.f32.gmra.mxu0 %v3299
    %v3465 = vpop.f32.mrf.mxu0
    %v3466 = vadd.f32 %v3395, %v3465
    %3467 = vmatmul.f32.gmra.mxu0 %v3303
    %v3468 = vpop.f32.mrf.mxu0
    %v3469 = vadd.f32 %v3400, %v3468
    %3470 = vmatmul.f32.gmra.mxu0 %v3307
    %v3471 = vpop.f32.mrf.mxu0
    %v3472 = vadd.f32 %v3405, %v3471
    %3473 = vmatmul.f32.gmra.mxu0 %v3311
    %v3474 = vpop.f32.mrf.mxu0
    %v3475 = vadd.f32 %v3410, %v3474
    %3476 = vdwg.mxu0
    %3477 = vmatpush.msra.mxu0 %v607
    %3478 = vmatpush.msra.mxu0 %v606
    %3479 = vmatpush.msra.mxu0 %v605
    %3480 = vmatpush.msra.mxu0 %v604
    %3481 = vmatpush.msra.mxu0 %v603
    %3482 = vmatpush.msra.mxu0 %v602
    %3483 = vmatpush.msra.mxu0 %v601
    %3484 = vmatpush.msra.mxu0 %v600
    %3485 = vmatpush.msra.mxu0 %v599
    %3486 = vmatpush.msra.mxu0 %v598
    %3487 = vmatpush.msra.mxu0 %v597
    %3488 = vmatpush.msra.mxu0 %v596
    %3489 = vmatpush.msra.mxu0 %v595
    %3490 = vmatpush.msra.mxu0 %v594
    %3491 = vmatpush.msra.mxu0 %v593
    %3492 = vmatpush.msra.mxu0 %v592
    %3493 = vmatmul.f32.gmra.mxu0 %v3252
    %v3494 = vpop.f32.mrf.mxu0
    %v3495 = vadd.f32 %v3430, %v3494
    %3496 = vmatmul.f32.gmra.mxu0 %v3256
    %v3497 = vpop.f32.mrf.mxu0
    %v3498 = vadd.f32 %v3433, %v3497
    %3499 = vmatmul.f32.gmra.mxu0 %v3260
    %v3500 = vpop.f32.mrf.mxu0
    %v3501 = vadd.f32 %v3436, %v3500
    %3502 = vmatmul.f32.gmra.mxu0 %v3264
    %v3503 = vpop.f32.mrf.mxu0
    %v3504 = vadd.f32 %v3439, %v3503
    %3505 = vmatmul.f32.gmra.mxu0 %v3268
    %v3506 = vpop.f32.mrf.mxu0
    %v3507 = vadd.f32 %v3442, %v3506
    %3508 = vmatmul.f32.gmra.mxu0 %v3272
    %v3509 = vpop.f32.mrf.mxu0
    %v3510 = vadd.f32 %v3445, %v3509
    %3511 = vmatmul.f32.gmra.mxu0 %v3276
    %v3512 = vpop.f32.mrf.mxu0
    %v3513 = vadd.f32 %v3448, %v3512
    %3514 = vmatmul.f32.gmra.mxu0 %v3280
    %v3515 = vpop.f32.mrf.mxu0
    %v3516 = vadd.f32 %v3451, %v3515
    %3517 = vmatmul.f32.gmra.mxu0 %v3284
    %v3518 = vpop.f32.mrf.mxu0
    %v3519 = vadd.f32 %v3454, %v3518
    %3520 = vmatmul.f32.gmra.mxu0 %v3288
    %v3521 = vpop.f32.mrf.mxu0
    %v3522 = vadd.f32 %v3457, %v3521
    %3523 = vmatmul.f32.gmra.mxu0 %v3292
    %v3524 = vpop.f32.mrf.mxu0
    %v3525 = vadd.f32 %v3460, %v3524
    %3526 = vmatmul.f32.gmra.mxu0 %v3296
    %v3527 = vpop.f32.mrf.mxu0
    %v3528 = vadd.f32 %v3463, %v3527
    %3529 = vmatmul.f32.gmra.mxu0 %v3300
    %v3530 = vpop.f32.mrf.mxu0
    %v3531 = vadd.f32 %v3466, %v3530
    %3532 = vmatmul.f32.gmra.mxu0 %v3304
    %v3533 = vpop.f32.mrf.mxu0
    %v3534 = vadd.f32 %v3469, %v3533
    %3535 = vmatmul.f32.gmra.mxu0 %v3308
    %v3536 = vpop.f32.mrf.mxu0
    %v3537 = vadd.f32 %v3472, %v3536
    %3538 = vmatmul.f32.gmra.mxu0 %v3312
    %v3539 = vpop.f32.mrf.mxu0
    %v3540 = vadd.f32 %v3475, %v3539
    %3541 = vdwg.mxu0
    %3542 = vmatpush.msra.mxu0 %v623
    %3543 = vmatpush.msra.mxu0 %v622
    %3544 = vmatpush.msra.mxu0 %v621
    %3545 = vmatpush.msra.mxu0 %v620
    %3546 = vmatpush.msra.mxu0 %v619
    %3547 = vmatpush.msra.mxu0 %v618
    %3548 = vmatpush.msra.mxu0 %v617
    %3549 = vmatpush.msra.mxu0 %v616
    %3550 = vmatpush.msra.mxu0 %v615
    %3551 = vmatpush.msra.mxu0 %v614
    %3552 = vmatpush.msra.mxu0 %v613
    %3553 = vmatpush.msra.mxu0 %v612
    %3554 = vmatpush.msra.mxu0 %v611
    %3555 = vmatpush.msra.mxu0 %v610
    %3556 = vmatpush.msra.mxu0 %v609
    %3557 = vmatpush.msra.mxu0 %v608
    %3558 = vmatmul.f32.gmra.mxu0 %v3253
    %v3559 = vpop.f32.mrf.mxu0
    %v3560 = vadd.f32 %v3495, %v3559
    %3561 = vmatmul.f32.gmra.mxu0 %v3257
    %v3562 = vpop.f32.mrf.mxu0
    %v3563 = vadd.f32 %v3498, %v3562
    %3564 = vmatmul.f32.gmra.mxu0 %v3261
    %v3565 = vpop.f32.mrf.mxu0
    %v3566 = vadd.f32 %v3501, %v3565
    %3567 = vmatmul.f32.gmra.mxu0 %v3265
    %v3568 = vpop.f32.mrf.mxu0
    %v3569 = vadd.f32 %v3504, %v3568
    %3570 = vmatmul.f32.gmra.mxu0 %v3269
    %v3571 = vpop.f32.mrf.mxu0
    %v3572 = vadd.f32 %v3507, %v3571
    %3573 = vmatmul.f32.gmra.mxu0 %v3273
    %v3574 = vpop.f32.mrf.mxu0
    %v3575 = vadd.f32 %v3510, %v3574
    %3576 = vmatmul.f32.gmra.mxu0 %v3277
    %v3577 = vpop.f32.mrf.mxu0
    %v3578 = vadd.f32 %v3513, %v3577
    %3579 = vmatmul.f32.gmra.mxu0 %v3281
    %v3580 = vpop.f32.mrf.mxu0
    %v3581 = vadd.f32 %v3516, %v3580
    %3582 = vmatmul.f32.gmra.mxu0 %v3285
    %v3583 = vpop.f32.mrf.mxu0
    %v3584 = vadd.f32 %v3519, %v3583
    %3585 = vmatmul.f32.gmra.mxu0 %v3289
    %v3586 = vpop.f32.mrf.mxu0
    %v3587 = vadd.f32 %v3522, %v3586
    %3588 = vmatmul.f32.gmra.mxu0 %v3293
    %v3589 = vpop.f32.mrf.mxu0
    %v3590 = vadd.f32 %v3525, %v3589
    %3591 = vmatmul.f32.gmra.mxu0 %v3297
    %v3592 = vpop.f32.mrf.mxu0
    %v3593 = vadd.f32 %v3528, %v3592
    %3594 = vmatmul.f32.gmra.mxu0 %v3301
    %v3595 = vpop.f32.mrf.mxu0
    %v3596 = vadd.f32 %v3531, %v3595
    %3597 = vmatmul.f32.gmra.mxu0 %v3305
    %v3598 = vpop.f32.mrf.mxu0
    %v3599 = vadd.f32 %v3534, %v3598
    %3600 = vmatmul.f32.gmra.mxu0 %v3309
    %v3601 = vpop.f32.mrf.mxu0
    %v3602 = vadd.f32 %v3537, %v3601
    %3603 = vmatmul.f32.gmra.mxu0 %v3313
    %v3604 = vpop.f32.mrf.mxu0
    %v3605 = vadd.f32 %v3540, %v3604
    %3606 = vdwg.mxu0
    %3607 = vmatpush.msra.mxu0 %v639
    %3608 = vmatpush.msra.mxu0 %v638
    %3609 = vmatpush.msra.mxu0 %v637
    %3610 = vmatpush.msra.mxu0 %v636
    %3611 = vmatpush.msra.mxu0 %v635
    %3612 = vmatpush.msra.mxu0 %v634
    %3613 = vmatpush.msra.mxu0 %v633
    %3614 = vmatpush.msra.mxu0 %v632
    %3615 = vmatpush.msra.mxu0 %v631
    %3616 = vmatpush.msra.mxu0 %v630
    %3617 = vmatpush.msra.mxu0 %v629
    %3618 = vmatpush.msra.mxu0 %v628
    %3619 = vmatpush.msra.mxu0 %v627
    %3620 = vmatpush.msra.mxu0 %v626
    %3621 = vmatpush.msra.mxu0 %v625
    %3622 = vmatpush.msra.mxu0 %v624
    %3623 = vmatmul.f32.gmra.mxu0 %v3254
    %v3624 = vpop.f32.mrf.mxu0
    %v3625 = vadd.f32 %v3560, %v3624
    %3626 = vmatmul.f32.gmra.mxu0 %v3258
    %v3627 = vpop.f32.mrf.mxu0
    %v3628 = vadd.f32 %v3563, %v3627
    %3629 = vmatmul.f32.gmra.mxu0 %v3262
    %v3630 = vpop.f32.mrf.mxu0
    %v3631 = vadd.f32 %v3566, %v3630
    %3632 = vmatmul.f32.gmra.mxu0 %v3266
    %v3633 = vpop.f32.mrf.mxu0
    %v3634 = vadd.f32 %v3569, %v3633
    %3635 = vmatmul.f32.gmra.mxu0 %v3270
    %v3636 = vpop.f32.mrf.mxu0
    %v3637 = vadd.f32 %v3572, %v3636
    %3638 = vmatmul.f32.gmra.mxu0 %v3274
    %v3639 = vpop.f32.mrf.mxu0
    %v3640 = vadd.f32 %v3575, %v3639
    %3641 = vmatmul.f32.gmra.mxu0 %v3278
    %v3642 = vpop.f32.mrf.mxu0
    %v3643 = vadd.f32 %v3578, %v3642
    %3644 = vmatmul.f32.gmra.mxu0 %v3282
    %v3645 = vpop.f32.mrf.mxu0
    %v3646 = vadd.f32 %v3581, %v3645
    %3647 = vmatmul.f32.gmra.mxu0 %v3286
    %v3648 = vpop.f32.mrf.mxu0
    %v3649 = vadd.f32 %v3584, %v3648
    %3650 = vmatmul.f32.gmra.mxu0 %v3290
    %v3651 = vpop.f32.mrf.mxu0
    %v3652 = vadd.f32 %v3587, %v3651
    %3653 = vmatmul.f32.gmra.mxu0 %v3294
    %v3654 = vpop.f32.mrf.mxu0
    %v3655 = vadd.f32 %v3590, %v3654
    %3656 = vmatmul.f32.gmra.mxu0 %v3298
    %v3657 = vpop.f32.mrf.mxu0
    %v3658 = vadd.f32 %v3593, %v3657
    %3659 = vmatmul.f32.gmra.mxu0 %v3302
    %v3660 = vpop.f32.mrf.mxu0
    %v3661 = vadd.f32 %v3596, %v3660
    %3662 = vmatmul.f32.gmra.mxu0 %v3306
    %v3663 = vpop.f32.mrf.mxu0
    %v3664 = vadd.f32 %v3599, %v3663
    %3665 = vmatmul.f32.gmra.mxu0 %v3310
    %v3666 = vpop.f32.mrf.mxu0
    %v3667 = vadd.f32 %v3602, %v3666
    %3668 = vmatmul.f32.gmra.mxu0 %v3314
    %v3669 = vpop.f32.mrf.mxu0
    %v3670 = vadd.f32 %v3605, %v3669
    %3671 = vdwg.mxu0
    %v3672 = vmax.f32 %v3234, %v3625
    %v3673 = vmax.f32 %v3235, %v3628
    %v3674 = vmax.f32 %v3236, %v3631
    %v3675 = vmax.f32 %v3237, %v3634
    %v3676 = vmax.f32 %v3238, %v3637
    %v3677 = vmax.f32 %v3239, %v3640
    %v3678 = vmax.f32 %v3240, %v3643
    %v3679 = vmax.f32 %v3241, %v3646
    %v3680 = vmax.f32 %v3242, %v3649
    %v3681 = vmax.f32 %v3243, %v3652
    %v3682 = vmax.f32 %v3244, %v3655
    %v3683 = vmax.f32 %v3245, %v3658
    %v3684 = vmax.f32 %v3246, %v3661
    %v3685 = vmax.f32 %v3247, %v3664
    %v3686 = vmax.f32 %v3248, %v3667
    %v3687 = vmax.f32 %v3249, %v3670
    %s3688 = scalar_lea.vmem [#allocation6], 3584
    %v3689 = vld [vmem:[%s3688] sm:$0xff]
    %v3690 = vld [vmem:[%s3688 + $0x8] sm:$0xff]
    %v3691 = vld [vmem:[%s3688 + $0x10] sm:$0xff]
    %v3692 = vld [vmem:[%s3688 + $0x18] sm:$0xff]
    %v3693 = vld [vmem:[%s3688 + $0x20] sm:$0xff]
    %v3694 = vld [vmem:[%s3688 + $0x28] sm:$0xff]
    %v3695 = vld [vmem:[%s3688 + $0x30] sm:$0xff]
    %v3696 = vld [vmem:[%s3688 + $0x38] sm:$0xff]
    %v3697 = vld [vmem:[%s3688 + $0x40] sm:$0xff]
    %v3698 = vld [vmem:[%s3688 + $0x48] sm:$0xff]
    %v3699 = vld [vmem:[%s3688 + $0x50] sm:$0xff]
    %v3700 = vld [vmem:[%s3688 + $0x58] sm:$0xff]
    %v3701 = vld [vmem:[%s3688 + $0x60] sm:$0xff]
    %v3702 = vld [vmem:[%s3688 + $0x68] sm:$0xff]
    %v3703 = vld [vmem:[%s3688 + $0x70] sm:$0xff]
    %v3704 = vld [vmem:[%s3688 + $0x78] sm:$0xff]
    %v3705 = vld [vmem:[%s3688 + $0x80] sm:$0xff]
    %v3706 = vld [vmem:[%s3688 + $0x88] sm:$0xff]
    %v3707 = vld [vmem:[%s3688 + $0x90] sm:$0xff]
    %v3708 = vld [vmem:[%s3688 + $0x98] sm:$0xff]
    %v3709 = vld [vmem:[%s3688 + $0xa0] sm:$0xff]
    %v3710 = vld [vmem:[%s3688 + $0xa8] sm:$0xff]
    %v3711 = vld [vmem:[%s3688 + $0xb0] sm:$0xff]
    %v3712 = vld [vmem:[%s3688 + $0xb8] sm:$0xff]
    %v3713 = vld [vmem:[%s3688 + $0xc0] sm:$0xff]
    %v3714 = vld [vmem:[%s3688 + $0xc8] sm:$0xff]
    %v3715 = vld [vmem:[%s3688 + $0xd0] sm:$0xff]
    %v3716 = vld [vmem:[%s3688 + $0xd8] sm:$0xff]
    %v3717 = vld [vmem:[%s3688 + $0xe0] sm:$0xff]
    %v3718 = vld [vmem:[%s3688 + $0xe8] sm:$0xff]
    %v3719 = vld [vmem:[%s3688 + $0xf0] sm:$0xff]
    %v3720 = vld [vmem:[%s3688 + $0xf8] sm:$0xff]
    %v3721 = vld [vmem:[%s3688 + $0x100] sm:$0xff]
    %v3722 = vld [vmem:[%s3688 + $0x108] sm:$0xff]
    %v3723 = vld [vmem:[%s3688 + $0x110] sm:$0xff]
    %v3724 = vld [vmem:[%s3688 + $0x118] sm:$0xff]
    %v3725 = vld [vmem:[%s3688 + $0x120] sm:$0xff]
    %v3726 = vld [vmem:[%s3688 + $0x128] sm:$0xff]
    %v3727 = vld [vmem:[%s3688 + $0x130] sm:$0xff]
    %v3728 = vld [vmem:[%s3688 + $0x138] sm:$0xff]
    %v3729 = vld [vmem:[%s3688 + $0x140] sm:$0xff]
    %v3730 = vld [vmem:[%s3688 + $0x148] sm:$0xff]
    %v3731 = vld [vmem:[%s3688 + $0x150] sm:$0xff]
    %v3732 = vld [vmem:[%s3688 + $0x158] sm:$0xff]
    %v3733 = vld [vmem:[%s3688 + $0x160] sm:$0xff]
    %v3734 = vld [vmem:[%s3688 + $0x168] sm:$0xff]
    %v3735 = vld [vmem:[%s3688 + $0x170] sm:$0xff]
    %v3736 = vld [vmem:[%s3688 + $0x178] sm:$0xff]
    %v3737 = vld [vmem:[%s3688 + $0x180] sm:$0xff]
    %v3738 = vld [vmem:[%s3688 + $0x188] sm:$0xff]
    %v3739 = vld [vmem:[%s3688 + $0x190] sm:$0xff]
    %v3740 = vld [vmem:[%s3688 + $0x198] sm:$0xff]
    %v3741 = vld [vmem:[%s3688 + $0x1a0] sm:$0xff]
    %v3742 = vld [vmem:[%s3688 + $0x1a8] sm:$0xff]
    %v3743 = vld [vmem:[%s3688 + $0x1b0] sm:$0xff]
    %v3744 = vld [vmem:[%s3688 + $0x1b8] sm:$0xff]
    %v3745 = vld [vmem:[%s3688 + $0x1c0] sm:$0xff]
    %v3746 = vld [vmem:[%s3688 + $0x1c8] sm:$0xff]
    %v3747 = vld [vmem:[%s3688 + $0x1d0] sm:$0xff]
    %v3748 = vld [vmem:[%s3688 + $0x1d8] sm:$0xff]
    %v3749 = vld [vmem:[%s3688 + $0x1e0] sm:$0xff]
    %v3750 = vld [vmem:[%s3688 + $0x1e8] sm:$0xff]
    %v3751 = vld [vmem:[%s3688 + $0x1f0] sm:$0xff]
    %v3752 = vld [vmem:[%s3688 + $0x1f8] sm:$0xff]
    %s3753 = scalar_lea.vmem %s4, 896
    %v3754 = vld [vmem:[%s3753] sm:$0xff]
    %v3755 = vld [vmem:[%s3753 + $0x8] sm:$0xff]
    %v3756 = vld [vmem:[%s3753 + $0x10] sm:$0xff]
    %v3757 = vld [vmem:[%s3753 + $0x18] sm:$0xff]
    %v3758 = vld [vmem:[%s3753 + $0x20] sm:$0xff]
    %v3759 = vld [vmem:[%s3753 + $0x28] sm:$0xff]
    %v3760 = vld [vmem:[%s3753 + $0x30] sm:$0xff]
    %v3761 = vld [vmem:[%s3753 + $0x38] sm:$0xff]
    %v3762 = vld [vmem:[%s3753 + $0x40] sm:$0xff]
    %v3763 = vld [vmem:[%s3753 + $0x48] sm:$0xff]
    %v3764 = vld [vmem:[%s3753 + $0x50] sm:$0xff]
    %v3765 = vld [vmem:[%s3753 + $0x58] sm:$0xff]
    %v3766 = vld [vmem:[%s3753 + $0x60] sm:$0xff]
    %v3767 = vld [vmem:[%s3753 + $0x68] sm:$0xff]
    %v3768 = vld [vmem:[%s3753 + $0x70] sm:$0xff]
    %v3769 = vld [vmem:[%s3753 + $0x78] sm:$0xff]
    %3771 = vset.pattern.permute.xlu0 0
    %3772 = vperm.xlu0 %3771, %v3754
    %v3773 = vpop.permute.xlu0 %3772
    %3776 = vset.pattern.permute.xlu0 0
    %3777 = vperm.xlu0 %3776, %v3755
    %v3778 = vpop.permute.xlu0 %3777
    %3781 = vset.pattern.permute.xlu0 0
    %3782 = vperm.xlu0 %3781, %v3756
    %v3783 = vpop.permute.xlu0 %3782
    %3786 = vset.pattern.permute.xlu0 0
    %3787 = vperm.xlu0 %3786, %v3757
    %v3788 = vpop.permute.xlu0 %3787
    %3791 = vset.pattern.permute.xlu0 0
    %3792 = vperm.xlu0 %3791, %v3758
    %v3793 = vpop.permute.xlu0 %3792
    %3796 = vset.pattern.permute.xlu0 0
    %3797 = vperm.xlu0 %3796, %v3759
    %v3798 = vpop.permute.xlu0 %3797
    %3801 = vset.pattern.permute.xlu0 0
    %3802 = vperm.xlu0 %3801, %v3760
    %v3803 = vpop.permute.xlu0 %3802
    %3806 = vset.pattern.permute.xlu0 0
    %3807 = vperm.xlu0 %3806, %v3761
    %v3808 = vpop.permute.xlu0 %3807
    %3811 = vset.pattern.permute.xlu0 0
    %3812 = vperm.xlu0 %3811, %v3762
    %v3813 = vpop.permute.xlu0 %3812
    %3816 = vset.pattern.permute.xlu0 0
    %3817 = vperm.xlu0 %3816, %v3763
    %v3818 = vpop.permute.xlu0 %3817
    %3821 = vset.pattern.permute.xlu0 0
    %3822 = vperm.xlu0 %3821, %v3764
    %v3823 = vpop.permute.xlu0 %3822
    %3826 = vset.pattern.permute.xlu0 0
    %3827 = vperm.xlu0 %3826, %v3765
    %v3828 = vpop.permute.xlu0 %3827
    %3831 = vset.pattern.permute.xlu0 0
    %3832 = vperm.xlu0 %3831, %v3766
    %v3833 = vpop.permute.xlu0 %3832
    %3836 = vset.pattern.permute.xlu0 0
    %3837 = vperm.xlu0 %3836, %v3767
    %v3838 = vpop.permute.xlu0 %3837
    %3841 = vset.pattern.permute.xlu0 0
    %3842 = vperm.xlu0 %3841, %v3768
    %v3843 = vpop.permute.xlu0 %3842
    %3846 = vset.pattern.permute.xlu0 0
    %3847 = vperm.xlu0 %3846, %v3769
    %v3848 = vpop.permute.xlu0 %3847
    %3850 = vmatpush.msra.mxu0 %v591
    %3851 = vmatpush.msra.mxu0 %v590
    %3852 = vmatpush.msra.mxu0 %v589
    %3853 = vmatpush.msra.mxu0 %v588
    %3854 = vmatpush.msra.mxu0 %v587
    %3855 = vmatpush.msra.mxu0 %v586
    %3856 = vmatpush.msra.mxu0 %v585
    %3857 = vmatpush.msra.mxu0 %v584
    %3858 = vmatpush.msra.mxu0 %v583
    %3859 = vmatpush.msra.mxu0 %v582
    %3860 = vmatpush.msra.mxu0 %v581
    %3861 = vmatpush.msra.mxu0 %v580
    %3862 = vmatpush.msra.mxu0 %v579
    %3863 = vmatpush.msra.mxu0 %v578
    %3864 = vmatpush.msra.mxu0 %v577
    %3865 = vmatpush.msra.mxu0 %v576
    %3866 = vmatmul.f32.gmra.mxu0 %v3689
    %v3867 = vpop.f32.mrf.mxu0
    %v3868 = vadd.f32 %v3773, %v3867
    %3869 = vmatmul.f32.gmra.mxu0 %v3693
    %v3870 = vpop.f32.mrf.mxu0
    %v3871 = vadd.f32 %v3778, %v3870
    %3872 = vmatmul.f32.gmra.mxu0 %v3697
    %v3873 = vpop.f32.mrf.mxu0
    %v3874 = vadd.f32 %v3783, %v3873
    %3875 = vmatmul.f32.gmra.mxu0 %v3701
    %v3876 = vpop.f32.mrf.mxu0
    %v3877 = vadd.f32 %v3788, %v3876
    %3878 = vmatmul.f32.gmra.mxu0 %v3705
    %v3879 = vpop.f32.mrf.mxu0
    %v3880 = vadd.f32 %v3793, %v3879
    %3881 = vmatmul.f32.gmra.mxu0 %v3709
    %v3882 = vpop.f32.mrf.mxu0
    %v3883 = vadd.f32 %v3798, %v3882
    %3884 = vmatmul.f32.gmra.mxu0 %v3713
    %v3885 = vpop.f32.mrf.mxu0
    %v3886 = vadd.f32 %v3803, %v3885
    %3887 = vmatmul.f32.gmra.mxu0 %v3717
    %v3888 = vpop.f32.mrf.mxu0
    %v3889 = vadd.f32 %v3808, %v3888
    %3890 = vmatmul.f32.gmra.mxu0 %v3721
    %v3891 = vpop.f32.mrf.mxu0
    %v3892 = vadd.f32 %v3813, %v3891
    %3893 = vmatmul.f32.gmra.mxu0 %v3725
    %v3894 = vpop.f32.mrf.mxu0
    %v3895 = vadd.f32 %v3818, %v3894
    %3896 = vmatmul.f32.gmra.mxu0 %v3729
    %v3897 = vpop.f32.mrf.mxu0
    %v3898 = vadd.f32 %v3823, %v3897
    %3899 = vmatmul.f32.gmra.mxu0 %v3733
    %v3900 = vpop.f32.mrf.mxu0
    %v3901 = vadd.f32 %v3828, %v3900
    %3902 = vmatmul.f32.gmra.mxu0 %v3737
    %v3903 = vpop.f32.mrf.mxu0
    %v3904 = vadd.f32 %v3833, %v3903
    %3905 = vmatmul.f32.gmra.mxu0 %v3741
    %v3906 = vpop.f32.mrf.mxu0
    %v3907 = vadd.f32 %v3838, %v3906
    %3908 = vmatmul.f32.gmra.mxu0 %v3745
    %v3909 = vpop.f32.mrf.mxu0
    %v3910 = vadd.f32 %v3843, %v3909
    %3911 = vmatmul.f32.gmra.mxu0 %v3749
    %v3912 = vpop.f32.mrf.mxu0
    %v3913 = vadd.f32 %v3848, %v3912
    %3914 = vdwg.mxu0
    %3915 = vmatpush.msra.mxu0 %v607
    %3916 = vmatpush.msra.mxu0 %v606
    %3917 = vmatpush.msra.mxu0 %v605
    %3918 = vmatpush.msra.mxu0 %v604
    %3919 = vmatpush.msra.mxu0 %v603
    %3920 = vmatpush.msra.mxu0 %v602
    %3921 = vmatpush.msra.mxu0 %v601
    %3922 = vmatpush.msra.mxu0 %v600
    %3923 = vmatpush.msra.mxu0 %v599
    %3924 = vmatpush.msra.mxu0 %v598
    %3925 = vmatpush.msra.mxu0 %v597
    %3926 = vmatpush.msra.mxu0 %v596
    %3927 = vmatpush.msra.mxu0 %v595
    %3928 = vmatpush.msra.mxu0 %v594
    %3929 = vmatpush.msra.mxu0 %v593
    %3930 = vmatpush.msra.mxu0 %v592
    %3931 = vmatmul.f32.gmra.mxu0 %v3690
    %v3932 = vpop.f32.mrf.mxu0
    %v3933 = vadd.f32 %v3868, %v3932
    %3934 = vmatmul.f32.gmra.mxu0 %v3694
    %v3935 = vpop.f32.mrf.mxu0
    %v3936 = vadd.f32 %v3871, %v3935
    %3937 = vmatmul.f32.gmra.mxu0 %v3698
    %v3938 = vpop.f32.mrf.mxu0
    %v3939 = vadd.f32 %v3874, %v3938
    %3940 = vmatmul.f32.gmra.mxu0 %v3702
    %v3941 = vpop.f32.mrf.mxu0
    %v3942 = vadd.f32 %v3877, %v3941
    %3943 = vmatmul.f32.gmra.mxu0 %v3706
    %v3944 = vpop.f32.mrf.mxu0
    %v3945 = vadd.f32 %v3880, %v3944
    %3946 = vmatmul.f32.gmra.mxu0 %v3710
    %v3947 = vpop.f32.mrf.mxu0
    %v3948 = vadd.f32 %v3883, %v3947
    %3949 = vmatmul.f32.gmra.mxu0 %v3714
    %v3950 = vpop.f32.mrf.mxu0
    %v3951 = vadd.f32 %v3886, %v3950
    %3952 = vmatmul.f32.gmra.mxu0 %v3718
    %v3953 = vpop.f32.mrf.mxu0
    %v3954 = vadd.f32 %v3889, %v3953
    %3955 = vmatmul.f32.gmra.mxu0 %v3722
    %v3956 = vpop.f32.mrf.mxu0
    %v3957 = vadd.f32 %v3892, %v3956
    %3958 = vmatmul.f32.gmra.mxu0 %v3726
    %v3959 = vpop.f32.mrf.mxu0
    %v3960 = vadd.f32 %v3895, %v3959
    %3961 = vmatmul.f32.gmra.mxu0 %v3730
    %v3962 = vpop.f32.mrf.mxu0
    %v3963 = vadd.f32 %v3898, %v3962
    %3964 = vmatmul.f32.gmra.mxu0 %v3734
    %v3965 = vpop.f32.mrf.mxu0
    %v3966 = vadd.f32 %v3901, %v3965
    %3967 = vmatmul.f32.gmra.mxu0 %v3738
    %v3968 = vpop.f32.mrf.mxu0
    %v3969 = vadd.f32 %v3904, %v3968
    %3970 = vmatmul.f32.gmra.mxu0 %v3742
    %v3971 = vpop.f32.mrf.mxu0
    %v3972 = vadd.f32 %v3907, %v3971
    %3973 = vmatmul.f32.gmra.mxu0 %v3746
    %v3974 = vpop.f32.mrf.mxu0
    %v3975 = vadd.f32 %v3910, %v3974
    %3976 = vmatmul.f32.gmra.mxu0 %v3750
    %v3977 = vpop.f32.mrf.mxu0
    %v3978 = vadd.f32 %v3913, %v3977
    %3979 = vdwg.mxu0
    %3980 = vmatpush.msra.mxu0 %v623
    %3981 = vmatpush.msra.mxu0 %v622
    %3982 = vmatpush.msra.mxu0 %v621
    %3983 = vmatpush.msra.mxu0 %v620
    %3984 = vmatpush.msra.mxu0 %v619
    %3985 = vmatpush.msra.mxu0 %v618
    %3986 = vmatpush.msra.mxu0 %v617
    %3987 = vmatpush.msra.mxu0 %v616
    %3988 = vmatpush.msra.mxu0 %v615
    %3989 = vmatpush.msra.mxu0 %v614
    %3990 = vmatpush.msra.mxu0 %v613
    %3991 = vmatpush.msra.mxu0 %v612
    %3992 = vmatpush.msra.mxu0 %v611
    %3993 = vmatpush.msra.mxu0 %v610
    %3994 = vmatpush.msra.mxu0 %v609
    %3995 = vmatpush.msra.mxu0 %v608
    %3996 = vmatmul.f32.gmra.mxu0 %v3691
    %v3997 = vpop.f32.mrf.mxu0
    %v3998 = vadd.f32 %v3933, %v3997
    %3999 = vmatmul.f32.gmra.mxu0 %v3695
    %v4000 = vpop.f32.mrf.mxu0
    %v4001 = vadd.f32 %v3936, %v4000
    %4002 = vmatmul.f32.gmra.mxu0 %v3699
    %v4003 = vpop.f32.mrf.mxu0
    %v4004 = vadd.f32 %v3939, %v4003
    %4005 = vmatmul.f32.gmra.mxu0 %v3703
    %v4006 = vpop.f32.mrf.mxu0
    %v4007 = vadd.f32 %v3942, %v4006
    %4008 = vmatmul.f32.gmra.mxu0 %v3707
    %v4009 = vpop.f32.mrf.mxu0
    %v4010 = vadd.f32 %v3945, %v4009
    %4011 = vmatmul.f32.gmra.mxu0 %v3711
    %v4012 = vpop.f32.mrf.mxu0
    %v4013 = vadd.f32 %v3948, %v4012
    %4014 = vmatmul.f32.gmra.mxu0 %v3715
    %v4015 = vpop.f32.mrf.mxu0
    %v4016 = vadd.f32 %v3951, %v4015
    %4017 = vmatmul.f32.gmra.mxu0 %v3719
    %v4018 = vpop.f32.mrf.mxu0
    %v4019 = vadd.f32 %v3954, %v4018
    %4020 = vmatmul.f32.gmra.mxu0 %v3723
    %v4021 = vpop.f32.mrf.mxu0
    %v4022 = vadd.f32 %v3957, %v4021
    %4023 = vmatmul.f32.gmra.mxu0 %v3727
    %v4024 = vpop.f32.mrf.mxu0
    %v4025 = vadd.f32 %v3960, %v4024
    %4026 = vmatmul.f32.gmra.mxu0 %v3731
    %v4027 = vpop.f32.mrf.mxu0
    %v4028 = vadd.f32 %v3963, %v4027
    %4029 = vmatmul.f32.gmra.mxu0 %v3735
    %v4030 = vpop.f32.mrf.mxu0
    %v4031 = vadd.f32 %v3966, %v4030
    %4032 = vmatmul.f32.gmra.mxu0 %v3739
    %v4033 = vpop.f32.mrf.mxu0
    %v4034 = vadd.f32 %v3969, %v4033
    %4035 = vmatmul.f32.gmra.mxu0 %v3743
    %v4036 = vpop.f32.mrf.mxu0
    %v4037 = vadd.f32 %v3972, %v4036
    %4038 = vmatmul.f32.gmra.mxu0 %v3747
    %v4039 = vpop.f32.mrf.mxu0
    %v4040 = vadd.f32 %v3975, %v4039
    %4041 = vmatmul.f32.gmra.mxu0 %v3751
    %v4042 = vpop.f32.mrf.mxu0
    %v4043 = vadd.f32 %v3978, %v4042
    %4044 = vdwg.mxu0
    %4045 = vmatpush.msra.mxu0 %v639
    %4046 = vmatpush.msra.mxu0 %v638
    %4047 = vmatpush.msra.mxu0 %v637
    %4048 = vmatpush.msra.mxu0 %v636
    %4049 = vmatpush.msra.mxu0 %v635
    %4050 = vmatpush.msra.mxu0 %v634
    %4051 = vmatpush.msra.mxu0 %v633
    %4052 = vmatpush.msra.mxu0 %v632
    %4053 = vmatpush.msra.mxu0 %v631
    %4054 = vmatpush.msra.mxu0 %v630
    %4055 = vmatpush.msra.mxu0 %v629
    %4056 = vmatpush.msra.mxu0 %v628
    %4057 = vmatpush.msra.mxu0 %v627
    %4058 = vmatpush.msra.mxu0 %v626
    %4059 = vmatpush.msra.mxu0 %v625
    %4060 = vmatpush.msra.mxu0 %v624
    %4061 = vmatmul.f32.gmra.mxu0 %v3692
    %v4062 = vpop.f32.mrf.mxu0
    %v4063 = vadd.f32 %v3998, %v4062
    %4064 = vmatmul.f32.gmra.mxu0 %v3696
    %v4065 = vpop.f32.mrf.mxu0
    %v4066 = vadd.f32 %v4001, %v4065
    %4067 = vmatmul.f32.gmra.mxu0 %v3700
    %v4068 = vpop.f32.mrf.mxu0
    %v4069 = vadd.f32 %v4004, %v4068
    %4070 = vmatmul.f32.gmra.mxu0 %v3704
    %v4071 = vpop.f32.mrf.mxu0
    %v4072 = vadd.f32 %v4007, %v4071
    %4073 = vmatmul.f32.gmra.mxu0 %v3708
    %v4074 = vpop.f32.mrf.mxu0
    %v4075 = vadd.f32 %v4010, %v4074
    %4076 = vmatmul.f32.gmra.mxu0 %v3712
    %v4077 = vpop.f32.mrf.mxu0
    %v4078 = vadd.f32 %v4013, %v4077
    %4079 = vmatmul.f32.gmra.mxu0 %v3716
    %v4080 = vpop.f32.mrf.mxu0
    %v4081 = vadd.f32 %v4016, %v4080
    %4082 = vmatmul.f32.gmra.mxu0 %v3720
    %v4083 = vpop.f32.mrf.mxu0
    %v4084 = vadd.f32 %v4019, %v4083
    %4085 = vmatmul.f32.gmra.mxu0 %v3724
    %v4086 = vpop.f32.mrf.mxu0
    %v4087 = vadd.f32 %v4022, %v4086
    %4088 = vmatmul.f32.gmra.mxu0 %v3728
    %v4089 = vpop.f32.mrf.mxu0
    %v4090 = vadd.f32 %v4025, %v4089
    %4091 = vmatmul.f32.gmra.mxu0 %v3732
    %v4092 = vpop.f32.mrf.mxu0
    %v4093 = vadd.f32 %v4028, %v4092
    %4094 = vmatmul.f32.gmra.mxu0 %v3736
    %v4095 = vpop.f32.mrf.mxu0
    %v4096 = vadd.f32 %v4031, %v4095
    %4097 = vmatmul.f32.gmra.mxu0 %v3740
    %v4098 = vpop.f32.mrf.mxu0
    %v4099 = vadd.f32 %v4034, %v4098
    %4100 = vmatmul.f32.gmra.mxu0 %v3744
    %v4101 = vpop.f32.mrf.mxu0
    %v4102 = vadd.f32 %v4037, %v4101
    %4103 = vmatmul.f32.gmra.mxu0 %v3748
    %v4104 = vpop.f32.mrf.mxu0
    %v4105 = vadd.f32 %v4040, %v4104
    %4106 = vmatmul.f32.gmra.mxu0 %v3752
    %v4107 = vpop.f32.mrf.mxu0
    %v4108 = vadd.f32 %v4043, %v4107
    %4109 = vdwg.mxu0
    %v4110 = vmax.f32 %v3672, %v4063
    %v4111 = vmax.f32 %v3673, %v4066
    %v4112 = vmax.f32 %v3674, %v4069
    %v4113 = vmax.f32 %v3675, %v4072
    %v4114 = vmax.f32 %v3676, %v4075
    %v4115 = vmax.f32 %v3677, %v4078
    %v4116 = vmax.f32 %v3678, %v4081
    %v4117 = vmax.f32 %v3679, %v4084
    %v4118 = vmax.f32 %v3680, %v4087
    %v4119 = vmax.f32 %v3681, %v4090
    %v4120 = vmax.f32 %v3682, %v4093
    %v4121 = vmax.f32 %v3683, %v4096
    %v4122 = vmax.f32 %v3684, %v4099
    %v4123 = vmax.f32 %v3685, %v4102
    %v4124 = vmax.f32 %v3686, %v4105
    %v4125 = vmax.f32 %v3687, %v4108
    %s4126 = scalar_lea.vmem [#allocation6], 4096
    %v4127 = vld [vmem:[%s4126] sm:$0xff]
    %v4128 = vld [vmem:[%s4126 + $0x8] sm:$0xff]
    %v4129 = vld [vmem:[%s4126 + $0x10] sm:$0xff]
    %v4130 = vld [vmem:[%s4126 + $0x18] sm:$0xff]
    %v4131 = vld [vmem:[%s4126 + $0x20] sm:$0xff]
    %v4132 = vld [vmem:[%s4126 + $0x28] sm:$0xff]
    %v4133 = vld [vmem:[%s4126 + $0x30] sm:$0xff]
    %v4134 = vld [vmem:[%s4126 + $0x38] sm:$0xff]
    %v4135 = vld [vmem:[%s4126 + $0x40] sm:$0xff]
    %v4136 = vld [vmem:[%s4126 + $0x48] sm:$0xff]
    %v4137 = vld [vmem:[%s4126 + $0x50] sm:$0xff]
    %v4138 = vld [vmem:[%s4126 + $0x58] sm:$0xff]
    %v4139 = vld [vmem:[%s4126 + $0x60] sm:$0xff]
    %v4140 = vld [vmem:[%s4126 + $0x68] sm:$0xff]
    %v4141 = vld [vmem:[%s4126 + $0x70] sm:$0xff]
    %v4142 = vld [vmem:[%s4126 + $0x78] sm:$0xff]
    %v4143 = vld [vmem:[%s4126 + $0x80] sm:$0xff]
    %v4144 = vld [vmem:[%s4126 + $0x88] sm:$0xff]
    %v4145 = vld [vmem:[%s4126 + $0x90] sm:$0xff]
    %v4146 = vld [vmem:[%s4126 + $0x98] sm:$0xff]
    %v4147 = vld [vmem:[%s4126 + $0xa0] sm:$0xff]
    %v4148 = vld [vmem:[%s4126 + $0xa8] sm:$0xff]
    %v4149 = vld [vmem:[%s4126 + $0xb0] sm:$0xff]
    %v4150 = vld [vmem:[%s4126 + $0xb8] sm:$0xff]
    %v4151 = vld [vmem:[%s4126 + $0xc0] sm:$0xff]
    %v4152 = vld [vmem:[%s4126 + $0xc8] sm:$0xff]
    %v4153 = vld [vmem:[%s4126 + $0xd0] sm:$0xff]
    %v4154 = vld [vmem:[%s4126 + $0xd8] sm:$0xff]
    %v4155 = vld [vmem:[%s4126 + $0xe0] sm:$0xff]
    %v4156 = vld [vmem:[%s4126 + $0xe8] sm:$0xff]
    %v4157 = vld [vmem:[%s4126 + $0xf0] sm:$0xff]
    %v4158 = vld [vmem:[%s4126 + $0xf8] sm:$0xff]
    %v4159 = vld [vmem:[%s4126 + $0x100] sm:$0xff]
    %v4160 = vld [vmem:[%s4126 + $0x108] sm:$0xff]
    %v4161 = vld [vmem:[%s4126 + $0x110] sm:$0xff]
    %v4162 = vld [vmem:[%s4126 + $0x118] sm:$0xff]
    %v4163 = vld [vmem:[%s4126 + $0x120] sm:$0xff]
    %v4164 = vld [vmem:[%s4126 + $0x128] sm:$0xff]
    %v4165 = vld [vmem:[%s4126 + $0x130] sm:$0xff]
    %v4166 = vld [vmem:[%s4126 + $0x138] sm:$0xff]
    %v4167 = vld [vmem:[%s4126 + $0x140] sm:$0xff]
    %v4168 = vld [vmem:[%s4126 + $0x148] sm:$0xff]
    %v4169 = vld [vmem:[%s4126 + $0x150] sm:$0xff]
    %v4170 = vld [vmem:[%s4126 + $0x158] sm:$0xff]
    %v4171 = vld [vmem:[%s4126 + $0x160] sm:$0xff]
    %v4172 = vld [vmem:[%s4126 + $0x168] sm:$0xff]
    %v4173 = vld [vmem:[%s4126 + $0x170] sm:$0xff]
    %v4174 = vld [vmem:[%s4126 + $0x178] sm:$0xff]
    %v4175 = vld [vmem:[%s4126 + $0x180] sm:$0xff]
    %v4176 = vld [vmem:[%s4126 + $0x188] sm:$0xff]
    %v4177 = vld [vmem:[%s4126 + $0x190] sm:$0xff]
    %v4178 = vld [vmem:[%s4126 + $0x198] sm:$0xff]
    %v4179 = vld [vmem:[%s4126 + $0x1a0] sm:$0xff]
    %v4180 = vld [vmem:[%s4126 + $0x1a8] sm:$0xff]
    %v4181 = vld [vmem:[%s4126 + $0x1b0] sm:$0xff]
    %v4182 = vld [vmem:[%s4126 + $0x1b8] sm:$0xff]
    %v4183 = vld [vmem:[%s4126 + $0x1c0] sm:$0xff]
    %v4184 = vld [vmem:[%s4126 + $0x1c8] sm:$0xff]
    %v4185 = vld [vmem:[%s4126 + $0x1d0] sm:$0xff]
    %v4186 = vld [vmem:[%s4126 + $0x1d8] sm:$0xff]
    %v4187 = vld [vmem:[%s4126 + $0x1e0] sm:$0xff]
    %v4188 = vld [vmem:[%s4126 + $0x1e8] sm:$0xff]
    %v4189 = vld [vmem:[%s4126 + $0x1f0] sm:$0xff]
    %v4190 = vld [vmem:[%s4126 + $0x1f8] sm:$0xff]
    %s4191 = scalar_lea.vmem %s4, 1024
    %v4192 = vld [vmem:[%s4191] sm:$0xff]
    %v4193 = vld [vmem:[%s4191 + $0x8] sm:$0xff]
    %v4194 = vld [vmem:[%s4191 + $0x10] sm:$0xff]
    %v4195 = vld [vmem:[%s4191 + $0x18] sm:$0xff]
    %v4196 = vld [vmem:[%s4191 + $0x20] sm:$0xff]
    %v4197 = vld [vmem:[%s4191 + $0x28] sm:$0xff]
    %v4198 = vld [vmem:[%s4191 + $0x30] sm:$0xff]
    %v4199 = vld [vmem:[%s4191 + $0x38] sm:$0xff]
    %v4200 = vld [vmem:[%s4191 + $0x40] sm:$0xff]
    %v4201 = vld [vmem:[%s4191 + $0x48] sm:$0xff]
    %v4202 = vld [vmem:[%s4191 + $0x50] sm:$0xff]
    %v4203 = vld [vmem:[%s4191 + $0x58] sm:$0xff]
    %v4204 = vld [vmem:[%s4191 + $0x60] sm:$0xff]
    %v4205 = vld [vmem:[%s4191 + $0x68] sm:$0xff]
    %v4206 = vld [vmem:[%s4191 + $0x70] sm:$0xff]
    %v4207 = vld [vmem:[%s4191 + $0x78] sm:$0xff]
    %4209 = vset.pattern.permute.xlu0 0
    %4210 = vperm.xlu0 %4209, %v4192
    %v4211 = vpop.permute.xlu0 %4210
    %4214 = vset.pattern.permute.xlu0 0
    %4215 = vperm.xlu0 %4214, %v4193
    %v4216 = vpop.permute.xlu0 %4215
    %4219 = vset.pattern.permute.xlu0 0
    %4220 = vperm.xlu0 %4219, %v4194
    %v4221 = vpop.permute.xlu0 %4220
    %4224 = vset.pattern.permute.xlu0 0
    %4225 = vperm.xlu0 %4224, %v4195
    %v4226 = vpop.permute.xlu0 %4225
    %4229 = vset.pattern.permute.xlu0 0
    %4230 = vperm.xlu0 %4229, %v4196
    %v4231 = vpop.permute.xlu0 %4230
    %4234 = vset.pattern.permute.xlu0 0
    %4235 = vperm.xlu0 %4234, %v4197
    %v4236 = vpop.permute.xlu0 %4235
    %4239 = vset.pattern.permute.xlu0 0
    %4240 = vperm.xlu0 %4239, %v4198
    %v4241 = vpop.permute.xlu0 %4240
    %4244 = vset.pattern.permute.xlu0 0
    %4245 = vperm.xlu0 %4244, %v4199
    %v4246 = vpop.permute.xlu0 %4245
    %4249 = vset.pattern.permute.xlu0 0
    %4250 = vperm.xlu0 %4249, %v4200
    %v4251 = vpop.permute.xlu0 %4250
    %4254 = vset.pattern.permute.xlu0 0
    %4255 = vperm.xlu0 %4254, %v4201
    %v4256 = vpop.permute.xlu0 %4255
    %4259 = vset.pattern.permute.xlu0 0
    %4260 = vperm.xlu0 %4259, %v4202
    %v4261 = vpop.permute.xlu0 %4260
    %4264 = vset.pattern.permute.xlu0 0
    %4265 = vperm.xlu0 %4264, %v4203
    %v4266 = vpop.permute.xlu0 %4265
    %4269 = vset.pattern.permute.xlu0 0
    %4270 = vperm.xlu0 %4269, %v4204
    %v4271 = vpop.permute.xlu0 %4270
    %4274 = vset.pattern.permute.xlu0 0
    %4275 = vperm.xlu0 %4274, %v4205
    %v4276 = vpop.permute.xlu0 %4275
    %4279 = vset.pattern.permute.xlu0 0
    %4280 = vperm.xlu0 %4279, %v4206
    %v4281 = vpop.permute.xlu0 %4280
    %4284 = vset.pattern.permute.xlu0 0
    %4285 = vperm.xlu0 %4284, %v4207
    %v4286 = vpop.permute.xlu0 %4285
    %4288 = vmatpush.msra.mxu0 %v591
    %4289 = vmatpush.msra.mxu0 %v590
    %4290 = vmatpush.msra.mxu0 %v589
    %4291 = vmatpush.msra.mxu0 %v588
    %4292 = vmatpush.msra.mxu0 %v587
    %4293 = vmatpush.msra.mxu0 %v586
    %4294 = vmatpush.msra.mxu0 %v585
    %4295 = vmatpush.msra.mxu0 %v584
    %4296 = vmatpush.msra.mxu0 %v583
    %4297 = vmatpush.msra.mxu0 %v582
    %4298 = vmatpush.msra.mxu0 %v581
    %4299 = vmatpush.msra.mxu0 %v580
    %4300 = vmatpush.msra.mxu0 %v579
    %4301 = vmatpush.msra.mxu0 %v578
    %4302 = vmatpush.msra.mxu0 %v577
    %4303 = vmatpush.msra.mxu0 %v576
    %4304 = vmatmul.f32.gmra.mxu0 %v4127
    %v4305 = vpop.f32.mrf.mxu0
    %v4306 = vadd.f32 %v4211, %v4305
    %4307 = vmatmul.f32.gmra.mxu0 %v4131
    %v4308 = vpop.f32.mrf.mxu0
    %v4309 = vadd.f32 %v4216, %v4308
    %4310 = vmatmul.f32.gmra.mxu0 %v4135
    %v4311 = vpop.f32.mrf.mxu0
    %v4312 = vadd.f32 %v4221, %v4311
    %4313 = vmatmul.f32.gmra.mxu0 %v4139
    %v4314 = vpop.f32.mrf.mxu0
    %v4315 = vadd.f32 %v4226, %v4314
    %4316 = vmatmul.f32.gmra.mxu0 %v4143
    %v4317 = vpop.f32.mrf.mxu0
    %v4318 = vadd.f32 %v4231, %v4317
    %4319 = vmatmul.f32.gmra.mxu0 %v4147
    %v4320 = vpop.f32.mrf.mxu0
    %v4321 = vadd.f32 %v4236, %v4320
    %4322 = vmatmul.f32.gmra.mxu0 %v4151
    %v4323 = vpop.f32.mrf.mxu0
    %v4324 = vadd.f32 %v4241, %v4323
    %4325 = vmatmul.f32.gmra.mxu0 %v4155
    %v4326 = vpop.f32.mrf.mxu0
    %v4327 = vadd.f32 %v4246, %v4326
    %4328 = vmatmul.f32.gmra.mxu0 %v4159
    %v4329 = vpop.f32.mrf.mxu0
    %v4330 = vadd.f32 %v4251, %v4329
    %4331 = vmatmul.f32.gmra.mxu0 %v4163
    %v4332 = vpop.f32.mrf.mxu0
    %v4333 = vadd.f32 %v4256, %v4332
    %4334 = vmatmul.f32.gmra.mxu0 %v4167
    %v4335 = vpop.f32.mrf.mxu0
    %v4336 = vadd.f32 %v4261, %v4335
    %4337 = vmatmul.f32.gmra.mxu0 %v4171
    %v4338 = vpop.f32.mrf.mxu0
    %v4339 = vadd.f32 %v4266, %v4338
    %4340 = vmatmul.f32.gmra.mxu0 %v4175
    %v4341 = vpop.f32.mrf.mxu0
    %v4342 = vadd.f32 %v4271, %v4341
    %4343 = vmatmul.f32.gmra.mxu0 %v4179
    %v4344 = vpop.f32.mrf.mxu0
    %v4345 = vadd.f32 %v4276, %v4344
    %4346 = vmatmul.f32.gmra.mxu0 %v4183
    %v4347 = vpop.f32.mrf.mxu0
    %v4348 = vadd.f32 %v4281, %v4347
    %4349 = vmatmul.f32.gmra.mxu0 %v4187
    %v4350 = vpop.f32.mrf.mxu0
    %v4351 = vadd.f32 %v4286, %v4350
    %4352 = vdwg.mxu0
    %4353 = vmatpush.msra.mxu0 %v607
    %4354 = vmatpush.msra.mxu0 %v606
    %4355 = vmatpush.msra.mxu0 %v605
    %4356 = vmatpush.msra.mxu0 %v604
    %4357 = vmatpush.msra.mxu0 %v603
    %4358 = vmatpush.msra.mxu0 %v602
    %4359 = vmatpush.msra.mxu0 %v601
    %4360 = vmatpush.msra.mxu0 %v600
    %4361 = vmatpush.msra.mxu0 %v599
    %4362 = vmatpush.msra.mxu0 %v598
    %4363 = vmatpush.msra.mxu0 %v597
    %4364 = vmatpush.msra.mxu0 %v596
    %4365 = vmatpush.msra.mxu0 %v595
    %4366 = vmatpush.msra.mxu0 %v594
    %4367 = vmatpush.msra.mxu0 %v593
    %4368 = vmatpush.msra.mxu0 %v592
    %4369 = vmatmul.f32.gmra.mxu0 %v4128
    %v4370 = vpop.f32.mrf.mxu0
    %v4371 = vadd.f32 %v4306, %v4370
    %4372 = vmatmul.f32.gmra.mxu0 %v4132
    %v4373 = vpop.f32.mrf.mxu0
    %v4374 = vadd.f32 %v4309, %v4373
    %4375 = vmatmul.f32.gmra.mxu0 %v4136
    %v4376 = vpop.f32.mrf.mxu0
    %v4377 = vadd.f32 %v4312, %v4376
    %4378 = vmatmul.f32.gmra.mxu0 %v4140
    %v4379 = vpop.f32.mrf.mxu0
    %v4380 = vadd.f32 %v4315, %v4379
    %4381 = vmatmul.f32.gmra.mxu0 %v4144
    %v4382 = vpop.f32.mrf.mxu0
    %v4383 = vadd.f32 %v4318, %v4382
    %4384 = vmatmul.f32.gmra.mxu0 %v4148
    %v4385 = vpop.f32.mrf.mxu0
    %v4386 = vadd.f32 %v4321, %v4385
    %4387 = vmatmul.f32.gmra.mxu0 %v4152
    %v4388 = vpop.f32.mrf.mxu0
    %v4389 = vadd.f32 %v4324, %v4388
    %4390 = vmatmul.f32.gmra.mxu0 %v4156
    %v4391 = vpop.f32.mrf.mxu0
    %v4392 = vadd.f32 %v4327, %v4391
    %4393 = vmatmul.f32.gmra.mxu0 %v4160
    %v4394 = vpop.f32.mrf.mxu0
    %v4395 = vadd.f32 %v4330, %v4394
    %4396 = vmatmul.f32.gmra.mxu0 %v4164
    %v4397 = vpop.f32.mrf.mxu0
    %v4398 = vadd.f32 %v4333, %v4397
    %4399 = vmatmul.f32.gmra.mxu0 %v4168
    %v4400 = vpop.f32.mrf.mxu0
    %v4401 = vadd.f32 %v4336, %v4400
    %4402 = vmatmul.f32.gmra.mxu0 %v4172
    %v4403 = vpop.f32.mrf.mxu0
    %v4404 = vadd.f32 %v4339, %v4403
    %4405 = vmatmul.f32.gmra.mxu0 %v4176
    %v4406 = vpop.f32.mrf.mxu0
    %v4407 = vadd.f32 %v4342, %v4406
    %4408 = vmatmul.f32.gmra.mxu0 %v4180
    %v4409 = vpop.f32.mrf.mxu0
    %v4410 = vadd.f32 %v4345, %v4409
    %4411 = vmatmul.f32.gmra.mxu0 %v4184
    %v4412 = vpop.f32.mrf.mxu0
    %v4413 = vadd.f32 %v4348, %v4412
    %4414 = vmatmul.f32.gmra.mxu0 %v4188
    %v4415 = vpop.f32.mrf.mxu0
    %v4416 = vadd.f32 %v4351, %v4415
    %4417 = vdwg.mxu0
    %4418 = vmatpush.msra.mxu0 %v623
    %4419 = vmatpush.msra.mxu0 %v622
    %4420 = vmatpush.msra.mxu0 %v621
    %4421 = vmatpush.msra.mxu0 %v620
    %4422 = vmatpush.msra.mxu0 %v619
    %4423 = vmatpush.msra.mxu0 %v618
    %4424 = vmatpush.msra.mxu0 %v617
    %4425 = vmatpush.msra.mxu0 %v616
    %4426 = vmatpush.msra.mxu0 %v615
    %4427 = vmatpush.msra.mxu0 %v614
    %4428 = vmatpush.msra.mxu0 %v613
    %4429 = vmatpush.msra.mxu0 %v612
    %4430 = vmatpush.msra.mxu0 %v611
    %4431 = vmatpush.msra.mxu0 %v610
    %4432 = vmatpush.msra.mxu0 %v609
    %4433 = vmatpush.msra.mxu0 %v608
    %4434 = vmatmul.f32.gmra.mxu0 %v4129
    %v4435 = vpop.f32.mrf.mxu0
    %v4436 = vadd.f32 %v4371, %v4435
    %4437 = vmatmul.f32.gmra.mxu0 %v4133
    %v4438 = vpop.f32.mrf.mxu0
    %v4439 = vadd.f32 %v4374, %v4438
    %4440 = vmatmul.f32.gmra.mxu0 %v4137
    %v4441 = vpop.f32.mrf.mxu0
    %v4442 = vadd.f32 %v4377, %v4441
    %4443 = vmatmul.f32.gmra.mxu0 %v4141
    %v4444 = vpop.f32.mrf.mxu0
    %v4445 = vadd.f32 %v4380, %v4444
    %4446 = vmatmul.f32.gmra.mxu0 %v4145
    %v4447 = vpop.f32.mrf.mxu0
    %v4448 = vadd.f32 %v4383, %v4447
    %4449 = vmatmul.f32.gmra.mxu0 %v4149
    %v4450 = vpop.f32.mrf.mxu0
    %v4451 = vadd.f32 %v4386, %v4450
    %4452 = vmatmul.f32.gmra.mxu0 %v4153
    %v4453 = vpop.f32.mrf.mxu0
    %v4454 = vadd.f32 %v4389, %v4453
    %4455 = vmatmul.f32.gmra.mxu0 %v4157
    %v4456 = vpop.f32.mrf.mxu0
    %v4457 = vadd.f32 %v4392, %v4456
    %4458 = vmatmul.f32.gmra.mxu0 %v4161
    %v4459 = vpop.f32.mrf.mxu0
    %v4460 = vadd.f32 %v4395, %v4459
    %4461 = vmatmul.f32.gmra.mxu0 %v4165
    %v4462 = vpop.f32.mrf.mxu0
    %v4463 = vadd.f32 %v4398, %v4462
    %4464 = vmatmul.f32.gmra.mxu0 %v4169
    %v4465 = vpop.f32.mrf.mxu0
    %v4466 = vadd.f32 %v4401, %v4465
    %4467 = vmatmul.f32.gmra.mxu0 %v4173
    %v4468 = vpop.f32.mrf.mxu0
    %v4469 = vadd.f32 %v4404, %v4468
    %4470 = vmatmul.f32.gmra.mxu0 %v4177
    %v4471 = vpop.f32.mrf.mxu0
    %v4472 = vadd.f32 %v4407, %v4471
    %4473 = vmatmul.f32.gmra.mxu0 %v4181
    %v4474 = vpop.f32.mrf.mxu0
    %v4475 = vadd.f32 %v4410, %v4474
    %4476 = vmatmul.f32.gmra.mxu0 %v4185
    %v4477 = vpop.f32.mrf.mxu0
    %v4478 = vadd.f32 %v4413, %v4477
    %4479 = vmatmul.f32.gmra.mxu0 %v4189
    %v4480 = vpop.f32.mrf.mxu0
    %v4481 = vadd.f32 %v4416, %v4480
    %4482 = vdwg.mxu0
    %4483 = vmatpush.msra.mxu0 %v639
    %4484 = vmatpush.msra.mxu0 %v638
    %4485 = vmatpush.msra.mxu0 %v637
    %4486 = vmatpush.msra.mxu0 %v636
    %4487 = vmatpush.msra.mxu0 %v635
    %4488 = vmatpush.msra.mxu0 %v634
    %4489 = vmatpush.msra.mxu0 %v633
    %4490 = vmatpush.msra.mxu0 %v632
    %4491 = vmatpush.msra.mxu0 %v631
    %4492 = vmatpush.msra.mxu0 %v630
    %4493 = vmatpush.msra.mxu0 %v629
    %4494 = vmatpush.msra.mxu0 %v628
    %4495 = vmatpush.msra.mxu0 %v627
    %4496 = vmatpush.msra.mxu0 %v626
    %4497 = vmatpush.msra.mxu0 %v625
    %4498 = vmatpush.msra.mxu0 %v624
    %4499 = vmatmul.f32.gmra.mxu0 %v4130
    %v4500 = vpop.f32.mrf.mxu0
    %v4501 = vadd.f32 %v4436, %v4500
    %4502 = vmatmul.f32.gmra.mxu0 %v4134
    %v4503 = vpop.f32.mrf.mxu0
    %v4504 = vadd.f32 %v4439, %v4503
    %4505 = vmatmul.f32.gmra.mxu0 %v4138
    %v4506 = vpop.f32.mrf.mxu0
    %v4507 = vadd.f32 %v4442, %v4506
    %4508 = vmatmul.f32.gmra.mxu0 %v4142
    %v4509 = vpop.f32.mrf.mxu0
    %v4510 = vadd.f32 %v4445, %v4509
    %4511 = vmatmul.f32.gmra.mxu0 %v4146
    %v4512 = vpop.f32.mrf.mxu0
    %v4513 = vadd.f32 %v4448, %v4512
    %4514 = vmatmul.f32.gmra.mxu0 %v4150
    %v4515 = vpop.f32.mrf.mxu0
    %v4516 = vadd.f32 %v4451, %v4515
    %4517 = vmatmul.f32.gmra.mxu0 %v4154
    %v4518 = vpop.f32.mrf.mxu0
    %v4519 = vadd.f32 %v4454, %v4518
    %4520 = vmatmul.f32.gmra.mxu0 %v4158
    %v4521 = vpop.f32.mrf.mxu0
    %v4522 = vadd.f32 %v4457, %v4521
    %4523 = vmatmul.f32.gmra.mxu0 %v4162
    %v4524 = vpop.f32.mrf.mxu0
    %v4525 = vadd.f32 %v4460, %v4524
    %4526 = vmatmul.f32.gmra.mxu0 %v4166
    %v4527 = vpop.f32.mrf.mxu0
    %v4528 = vadd.f32 %v4463, %v4527
    %4529 = vmatmul.f32.gmra.mxu0 %v4170
    %v4530 = vpop.f32.mrf.mxu0
    %v4531 = vadd.f32 %v4466, %v4530
    %4532 = vmatmul.f32.gmra.mxu0 %v4174
    %v4533 = vpop.f32.mrf.mxu0
    %v4534 = vadd.f32 %v4469, %v4533
    %4535 = vmatmul.f32.gmra.mxu0 %v4178
    %v4536 = vpop.f32.mrf.mxu0
    %v4537 = vadd.f32 %v4472, %v4536
    %4538 = vmatmul.f32.gmra.mxu0 %v4182
    %v4539 = vpop.f32.mrf.mxu0
    %v4540 = vadd.f32 %v4475, %v4539
    %4541 = vmatmul.f32.gmra.mxu0 %v4186
    %v4542 = vpop.f32.mrf.mxu0
    %v4543 = vadd.f32 %v4478, %v4542
    %4544 = vmatmul.f32.gmra.mxu0 %v4190
    %v4545 = vpop.f32.mrf.mxu0
    %v4546 = vadd.f32 %v4481, %v4545
    %4547 = vdwg.mxu0
    %v4548 = vmax.f32 %v4110, %v4501
    %v4549 = vmax.f32 %v4111, %v4504
    %v4550 = vmax.f32 %v4112, %v4507
    %v4551 = vmax.f32 %v4113, %v4510
    %v4552 = vmax.f32 %v4114, %v4513
    %v4553 = vmax.f32 %v4115, %v4516
    %v4554 = vmax.f32 %v4116, %v4519
    %v4555 = vmax.f32 %v4117, %v4522
    %v4556 = vmax.f32 %v4118, %v4525
    %v4557 = vmax.f32 %v4119, %v4528
    %v4558 = vmax.f32 %v4120, %v4531
    %v4559 = vmax.f32 %v4121, %v4534
    %v4560 = vmax.f32 %v4122, %v4537
    %v4561 = vmax.f32 %v4123, %v4540
    %v4562 = vmax.f32 %v4124, %v4543
    %v4563 = vmax.f32 %v4125, %v4546
    %4564 = vst [vmem:[%s5] sm:$0xff] %v4548
    %4565 = vst [vmem:[%s5 + $0x8] sm:$0xff] %v4549
    %4566 = vst [vmem:[%s5 + $0x10] sm:$0xff] %v4550
    %4567 = vst [vmem:[%s5 + $0x18] sm:$0xff] %v4551
    %4568 = vst [vmem:[%s5 + $0x20] sm:$0xff] %v4552
    %4569 = vst [vmem:[%s5 + $0x28] sm:$0xff] %v4553
    %4570 = vst [vmem:[%s5 + $0x30] sm:$0xff] %v4554
    %4571 = vst [vmem:[%s5 + $0x38] sm:$0xff] %v4555
    %4572 = vst [vmem:[%s5 + $0x40] sm:$0xff] %v4556
    %4573 = vst [vmem:[%s5 + $0x48] sm:$0xff] %v4557
    %4574 = vst [vmem:[%s5 + $0x50] sm:$0xff] %v4558
    %4575 = vst [vmem:[%s5 + $0x58] sm:$0xff] %v4559
    %4576 = vst [vmem:[%s5 + $0x60] sm:$0xff] %v4560
    %4577 = vst [vmem:[%s5 + $0x68] sm:$0xff] %v4561
    %4578 = vst [vmem:[%s5 + $0x70] sm:$0xff] %v4562
    %4579 = vst [vmem:[%s5 + $0x78] sm:$0xff] %v4563
    // Predicated region
    $region34: #{forward.7} parent=1 // pred_check
      _
    $region35: #{forward.7} parent=1 // pred_check_branch
      %4581 = sbr.rel (0) target = $region37
    $region36: #{forward.7} parent=1 // pred_region
      _
    $region37: #{forward.7} parent=1 // pred_fallthru
      _
    // Predicated region
    $region38: #{forward.7} parent=1 // pred_check
      _
    $region39: #{forward.7} parent=1 // pred_check_branch
      %4583 = sbr.rel (0) target = $region41
    $region40: #{forward.7} parent=1 // pred_region
      _
    $region41: #{forward.7} parent=1 // pred_fallthru
      _
    %4584 = vsyncpa [#allocation3], 1
    %4585 = vsyncpa [#allocation5], 1

// kernel: forward.13
$region0: #{forward.13}
  #allocation0 [shape = 'u32[]', space=smem, size = 0x4, offset = 0x4, fixed_abs, tag = 'smem constant byte address 0x4 - core index']
  #allocation1 [shape = 'u32[72,128]{1,0:T(1,128)}', space=vmem, size = 0x9000, scoped, tag = 'internal scratch']
  %s0 = inlined_call_operand.vmem [shape: f32[2,128], index: 0, kind: input, shape index: {}]
  %s1 = inlined_call_operand.vmem [shape: f32[9,2,2], index: 1, kind: input, shape index: {}]
  %s2 = inlined_call_operand.vmem [shape: f32[128,128], index: 2, kind: input, shape index: {}]
  %s3 = inlined_call_operand.vmem [shape: bf16[128,128], index: 3, kind: input, shape index: {}]
  %s4 = inlined_call_operand.hbm [shape: f32[1,128], index: 4, kind: input, shape index: {}]
  %s5 = inlined_call_operand.vmem [shape: f32[9,1,128], index: 5, kind: input, shape index: {}]
  %s6 = inlined_call_operand.hbm [shape: f32[1,128], index: 6, kind: input, shape index: {}]
  %s7 = inlined_call_operand.vmem [shape: bf16[128,128], index: 7, kind: input, shape index: {}]
  %s8 = inlined_call_operand.hbm [shape: f32[1,128], index: 8, kind: input, shape index: {}]
  %s9 = inlined_call_operand.hbm [shape: f32[2,128], index: 9, kind: output, shape index: {}]
  %s10 = sld [smem:[#allocation0]]
  $region58: #{forward.13} parent=0
    _
  %s12 = ssub.s32 1, %s10
  %s13 = scalar_select 0, %s12, %s10
  $region1: #{forward.13} parent=0
    #allocation2 [shape = 'u8[512]{0}', space=vmem, size = 0x400, scoped, tag = 'input window, operand 4, single buffered']
    #allocation3 [shape = 's32[1]{0}', space=sflag, size = 0x4, scoped, tag = 'scoped memory for forward.13']
    #allocation4 [shape = 's32[1]{0}', space=sflag, size = 0x4, scoped, tag = 'scoped memory for forward.13']
    #allocation5 [shape = 'u8[512]{0}', space=vmem, size = 0x400, scoped, tag = 'input window, operand 6, single buffered']
    #allocation6 [shape = 's32[1]{0}', space=sflag, size = 0x4, scoped, tag = 'scoped memory for forward.13']
    #allocation7 [shape = 'u8[512]{0}', space=vmem, size = 0x400, scoped, tag = 'input window, operand 8, single buffered']
    #allocation8 [shape = 'u8[1024]{0}', space=vmem, size = 0x400, scoped, tag = 'output window, operand 0, single buffered']
    %14 = vsyncpa [#allocation3], 0
    %15 = vsyncpa [#allocation6], 0
    %16 = vsyncpa [#allocation4], 0
    // Predicated region
    $region2: #{forward.13} parent=1 // pred_check
      _
    $region3: #{forward.13} parent=1 // pred_check_branch
      %18 = sbr.rel (0) target = $region5
    $region4: #{forward.13} parent=1 // pred_region
      _
    $region5: #{forward.13} parent=1 // pred_fallthru
      _
    // Predicated region
    $region6: #{forward.13} parent=1 // pred_check
      _
    $region7: #{forward.13} parent=1 // pred_check_branch
      %20 = sbr.rel (0) target = $region9
    $region8: #{forward.13} parent=1 // pred_region
      _
    $region9: #{forward.13} parent=1 // pred_fallthru
      _
    // Predicated region
    $region10: #{forward.13} parent=1 // pred_check
      _
    $region11: #{forward.13} parent=1 // pred_check_branch
      %22 = sbr.rel (0) target = $region13
    $region12: #{forward.13} parent=1 // pred_region
      _
    $region13: #{forward.13} parent=1 // pred_fallthru
      _
    // Predicated region
    $region14: #{forward.13} parent=1 // pred_check
      _
    $region15: #{forward.13} parent=1 // pred_check_branch
      %24 = sbr.rel (0) target = $region17
    $region16: #{forward.13} parent=1 // pred_region
      _
    $region17: #{forward.13} parent=1 // pred_fallthru
      _
    // Predicated region
    $region18: #{forward.13} parent=1 // pred_check
      _
    $region19: #{forward.13} parent=1 // pred_check_branch
      %26 = sbr.rel (0) target = $region21
    $region20: #{forward.13} parent=1 // pred_region
      %28 = vsyncadd [#allocation3], 0
      %s30 = sshll.u32 %s4, 4
      %s31 = int_to_ptr.hbm [resolvable:$true] %s30
      %s32 = sshll.u32 [#allocation2], 4
      %s33 = int_to_ptr.vmem [resolvable:$true] %s32
      %35 = dma.hbm_to_vmem [thread:$0]  %s31, 16, %s33, [#allocation3]
    $region21: #{forward.13} parent=1 // pred_fallthru
      _
    // Predicated region
    $region22: #{forward.13} parent=1 // pred_check
      _
    $region23: #{forward.13} parent=1 // pred_check_branch
      %37 = sbr.rel (0) target = $region25
    $region24: #{forward.13} parent=1 // pred_region
      _
    $region25: #{forward.13} parent=1 // pred_fallthru
      _
    // Predicated region
    $region26: #{forward.13} parent=1 // pred_check
      _
    $region27: #{forward.13} parent=1 // pred_check_branch
      %39 = sbr.rel (0) target = $region29
    $region28: #{forward.13} parent=1 // pred_region
      %41 = vsyncadd [#allocation6], 0
      %s43 = sshll.u32 %s6, 4
      %s44 = int_to_ptr.hbm [resolvable:$true] %s43
      %s45 = sshll.u32 [#allocation5], 4
      %s46 = int_to_ptr.vmem [resolvable:$true] %s45
      %48 = dma.hbm_to_vmem [thread:$0]  %s44, 16, %s46, [#allocation6]
    $region29: #{forward.13} parent=1 // pred_fallthru
      _
    // Predicated region
    $region30: #{forward.13} parent=1 // pred_check
      _
    $region31: #{forward.13} parent=1 // pred_check_branch
      %50 = sbr.rel (0) target = $region33
    $region32: #{forward.13} parent=1 // pred_region
      _
    $region33: #{forward.13} parent=1 // pred_fallthru
      _
    // Predicated region
    $region34: #{forward.13} parent=1 // pred_check
      _
    $region35: #{forward.13} parent=1 // pred_check_branch
      %52 = sbr.rel (0) target = $region37
    $region36: #{forward.13} parent=1 // pred_region
      %54 = vsyncadd [#allocation6], 0
      %s56 = sshll.u32 %s8, 4
      %s57 = int_to_ptr.hbm [resolvable:$true] %s56
      %s58 = sshll.u32 [#allocation7], 4
      %s59 = int_to_ptr.vmem [resolvable:$true] %s58
      %61 = dma.hbm_to_vmem [thread:$0]  %s57, 16, %s59, [#allocation6]
    $region37: #{forward.13} parent=1 // pred_fallthru
      _
    // Predicated region
    $region38: #{forward.13} parent=1 // pred_check
      _
    $region39: #{forward.13} parent=1 // pred_check_branch
      %63 = sbr.rel (0) target = $region41
    $region40: #{forward.13} parent=1 // pred_region
      %65 = dma.done [#allocation3], 16
    $region41: #{forward.13} parent=1 // pred_fallthru
      _
    // Predicated region
    $region42: #{forward.13} parent=1 // pred_check
      _
    $region43: #{forward.13} parent=1 // pred_check_branch
      %67 = sbr.rel (0) target = $region45
    $region44: #{forward.13} parent=1 // pred_region
      %69 = dma.done [#allocation6], 16
    $region45: #{forward.13} parent=1 // pred_fallthru
      _
    // Predicated region
    $region46: #{forward.13} parent=1 // pred_check
      _
    $region47: #{forward.13} parent=1 // pred_check_branch
      %71 = sbr.rel (0) target = $region49
    $region48: #{forward.13} parent=1 // pred_region
      %73 = dma.done [#allocation6], 16
    $region49: #{forward.13} parent=1 // pred_fallthru
      _
    %v74 = vld [vmem:[%s0] sm:$0x3]
    %v75 = vpack.c.bf16 %v74, %v74
    %v76 = vld [vmem:[%s3] sm:$0xf]
    %v77 = vld [vmem:[%s3 + $0x4] sm:$0xf]
    %v78 = vld [vmem:[%s3 + $0x8] sm:$0xf]
    %v79 = vld [vmem:[%s3 + $0xc] sm:$0xf]
    %v80 = vld [vmem:[%s3 + $0x10] sm:$0xf]
    %v81 = vld [vmem:[%s3 + $0x14] sm:$0xf]
    %v82 = vld [vmem:[%s3 + $0x18] sm:$0xf]
    %v83 = vld [vmem:[%s3 + $0x1c] sm:$0xf]
    %v84 = vld [vmem:[%s3 + $0x20] sm:$0xf]
    %v85 = vld [vmem:[%s3 + $0x24] sm:$0xf]
    %v86 = vld [vmem:[%s3 + $0x28] sm:$0xf]
    %v87 = vld [vmem:[%s3 + $0x2c] sm:$0xf]
    %v88 = vld [vmem:[%s3 + $0x30] sm:$0xf]
    %v89 = vld [vmem:[%s3 + $0x34] sm:$0xf]
    %v90 = vld [vmem:[%s3 + $0x38] sm:$0xf]
    %v91 = vld [vmem:[%s3 + $0x3c] sm:$0xf]
    %v92 = vld [vmem:[#allocation2] sm:$0x1]
    %v94 = vperm.slane %v92, 0
    %v112 = vunpack.c.l.b16 %v76
    %v113 = vunpack.c.l.b16 %v77
    %v114 = vunpack.c.l.b16 %v78
    %v115 = vunpack.c.l.b16 %v79
    %v116 = vunpack.c.l.b16 %v80
    %v117 = vunpack.c.l.b16 %v81
    %v118 = vunpack.c.l.b16 %v82
    %v119 = vunpack.c.l.b16 %v83
    %v120 = vunpack.c.l.b16 %v84
    %v121 = vunpack.c.l.b16 %v85
    %v122 = vunpack.c.l.b16 %v86
    %v123 = vunpack.c.l.b16 %v87
    %v124 = vunpack.c.l.b16 %v88
    %v125 = vunpack.c.l.b16 %v89
    %v126 = vunpack.c.l.b16 %v90
    %v127 = vunpack.c.l.b16 %v91
    %v128 = vpack.c.b16 %v113, %v112
    %v129 = vpack.c.b16 %v115, %v114
    %v130 = vpack.c.b16 %v117, %v116
    %v131 = vpack.c.b16 %v119, %v118
    %v132 = vpack.c.b16 %v121, %v120
    %v133 = vpack.c.b16 %v123, %v122
    %v134 = vpack.c.b16 %v125, %v124
    %v135 = vpack.c.b16 %v127, %v126
    %144 = vmatpush.bf16.msra.mxu0 %v135
    %145 = vmatpush.bf16.msra.mxu0 %v134
    %146 = vmatpush.bf16.msra.mxu0 %v133
    %147 = vmatpush.bf16.msra.mxu0 %v132
    %148 = vmatpush.bf16.msra.mxu0 %v131
    %149 = vmatpush.bf16.msra.mxu0 %v130
    %150 = vmatpush.bf16.msra.mxu0 %v129
    %151 = vmatpush.bf16.msra.mxu0 %v128
    %152 = vmatmul.bf16.gmra.mxu0 %v75
    %v153 = vpop.f32.mrf.mxu0
    %v154 = vadd.f32 %v94, %v153
    %v155 = vpop.f32.mrf.mxu0
    %156 = vdwg.mxu0
    %v157 = vmax.f32 %v154, 0.0
    %v158 = vld [vmem:[%s1] sm:$0x3]
    %vm159 = vcmask 15360
    %v161 = vsel %vm159, %v158, 0
    %vm163 = vcmask 1041408
    %v165 = vsel %vm163, %v157, 0
    %167 = vmatpush.msra.mxu0 0.0
    %168 = vmatpush.msra.mxu0 0.0
    %169 = vmatpush.msra.mxu0 0.0
    %170 = vmatpush.msra.mxu0 0.0
    %171 = vmatpush.msra.mxu0 0.0
    %172 = vmatpush.msra.mxu0 0.0
    %173 = vmatpush.msra.mxu0 0.0
    %174 = vmatpush.msra.mxu0 0.0
    %175 = vmatpush.msra.mxu0 0.0
    %176 = vmatpush.msra.mxu0 0.0
    %177 = vmatpush.msra.mxu0 0.0
    %178 = vmatpush.msra.mxu0 0.0
    %179 = vmatpush.msra.mxu0 0.0
    %180 = vmatpush.msra.mxu0 0.0
    %181 = vmatpush.msra.mxu0 0.0
    %182 = vmatpush.msra.mxu0 %v165
    %183 = vmatmul.f32.gmra.mxu0 %v161
    %v184 = vpop.f32.mrf.mxu0
    %v185 = vadd.f32 0.0, %v184
    %186 = vdwg.mxu0
    %v187 = vld [vmem:[%s5] sm:$0x1]
    %v189 = vperm.slane %v187, 0
    %v191 = vmul.f32 %v185, %v189
    %s192 = scalar_lea.vmem %s1, 2
    %v193 = vld [vmem:[%s192] sm:$0x3]
    %v195 = vsel %vm159, %v193, 0
    %197 = vmatpush.msra.mxu0 0.0
    %198 = vmatpush.msra.mxu0 0.0
    %199 = vmatpush.msra.mxu0 0.0
    %200 = vmatpush.msra.mxu0 0.0
    %201 = vmatpush.msra.mxu0 0.0
    %202 = vmatpush.msra.mxu0 0.0
    %203 = vmatpush.msra.mxu0 0.0
    %204 = vmatpush.msra.mxu0 0.0
    %205 = vmatpush.msra.mxu0 0.0
    %206 = vmatpush.msra.mxu0 0.0
    %207 = vmatpush.msra.mxu0 0.0
    %208 = vmatpush.msra.mxu0 0.0
    %209 = vmatpush.msra.mxu0 0.0
    %210 = vmatpush.msra.mxu0 0.0
    %211 = vmatpush.msra.mxu0 0.0
    %212 = vmatpush.msra.mxu0 %v165
    %213 = vmatmul.f32.gmra.mxu0 %v195
    %v214 = vpop.f32.mrf.mxu0
    %v215 = vadd.f32 0.0, %v214
    %216 = vdwg.mxu0
    %s217 = scalar_lea.vmem %s5, 1
    %v218 = vld [vmem:[%s217] sm:$0x1]
    %v220 = vperm.slane %v218, 0
    %v222 = vmul.f32 %v215, %v220
    %v223 = vadd.f32 %v191, %v222
    %s224 = scalar_lea.vmem %s1, 4
    %v225 = vld [vmem:[%s224] sm:$0x3]
    %v227 = vsel %vm159, %v225, 0
    %229 = vmatpush.msra.mxu0 0.0
    %230 = vmatpush.msra.mxu0 0.0
    %231 = vmatpush.msra.mxu0 0.0
    %232 = vmatpush.msra.mxu0 0.0
    %233 = vmatpush.msra.mxu0 0.0
    %234 = vmatpush.msra.mxu0 0.0
    %235 = vmatpush.msra.mxu0 0.0
    %236 = vmatpush.msra.mxu0 0.0
    %237 = vmatpush.msra.mxu0 0.0
    %238 = vmatpush.msra.mxu0 0.0
    %239 = vmatpush.msra.mxu0 0.0
    %240 = vmatpush.msra.mxu0 0.0
    %241 = vmatpush.msra.mxu0 0.0
    %242 = vmatpush.msra.mxu0 0.0
    %243 = vmatpush.msra.mxu0 0.0
    %244 = vmatpush.msra.mxu0 %v165
    %245 = vmatmul.f32.gmra.mxu0 %v227
    %v246 = vpop.f32.mrf.mxu0
    %v247 = vadd.f32 0.0, %v246
    %248 = vdwg.mxu0
    %s249 = scalar_lea.vmem %s5, 2
    %v250 = vld [vmem:[%s249] sm:$0x1]
    %v252 = vperm.slane %v250, 0
    %v254 = vmul.f32 %v247, %v252
    %v255 = vadd.f32 %v223, %v254
    %s256 = scalar_lea.vmem %s1, 6
    %v257 = vld [vmem:[%s256] sm:$0x3]
    %v259 = vsel %vm159, %v257, 0
    %261 = vmatpush.msra.mxu0 0.0
    %262 = vmatpush.msra.mxu0 0.0
    %263 = vmatpush.msra.mxu0 0.0
    %264 = vmatpush.msra.mxu0 0.0
    %265 = vmatpush.msra.mxu0 0.0
    %266 = vmatpush.msra.mxu0 0.0
    %267 = vmatpush.msra.mxu0 0.0
    %268 = vmatpush.msra.mxu0 0.0
    %269 = vmatpush.msra.mxu0 0.0
    %270 = vmatpush.msra.mxu0 0.0
    %271 = vmatpush.msra.mxu0 0.0
    %272 = vmatpush.msra.mxu0 0.0
    %273 = vmatpush.msra.mxu0 0.0
    %274 = vmatpush.msra.mxu0 0.0
    %275 = vmatpush.msra.mxu0 0.0
    %276 = vmatpush.msra.mxu0 %v165
    %277 = vmatmul.f32.gmra.mxu0 %v259
    %v278 = vpop.f32.mrf.mxu0
    %v279 = vadd.f32 0.0, %v278
    %280 = vdwg.mxu0
    %s281 = scalar_lea.vmem %s5, 3
    %v282 = vld [vmem:[%s281] sm:$0x1]
    %v284 = vperm.slane %v282, 0
    %v286 = vmul.f32 %v279, %v284
    %v287 = vadd.f32 %v255, %v286
    %s288 = scalar_lea.vmem %s1, 8
    %v289 = vld [vmem:[%s288] sm:$0x3]
    %v291 = vsel %vm159, %v289, 0
    %293 = vmatpush.msra.mxu0 0.0
    %294 = vmatpush.msra.mxu0 0.0
    %295 = vmatpush.msra.mxu0 0.0
    %296 = vmatpush.msra.mxu0 0.0
    %297 = vmatpush.msra.mxu0 0.0
    %298 = vmatpush.msra.mxu0 0.0
    %299 = vmatpush.msra.mxu0 0.0
    %300 = vmatpush.msra.mxu0 0.0
    %301 = vmatpush.msra.mxu0 0.0
    %302 = vmatpush.msra.mxu0 0.0
    %303 = vmatpush.msra.mxu0 0.0
    %304 = vmatpush.msra.mxu0 0.0
    %305 = vmatpush.msra.mxu0 0.0
    %306 = vmatpush.msra.mxu0 0.0
    %307 = vmatpush.msra.mxu0 0.0
    %308 = vmatpush.msra.mxu0 %v165
    %309 = vmatmul.f32.gmra.mxu0 %v291
    %v310 = vpop.f32.mrf.mxu0
    %v311 = vadd.f32 0.0, %v310
    %312 = vdwg.mxu0
    %s313 = scalar_lea.vmem %s5, 4
    %v314 = vld [vmem:[%s313] sm:$0x1]
    %v316 = vperm.slane %v314, 0
    %v318 = vmul.f32 %v311, %v316
    %v319 = vadd.f32 %v287, %v318
    %s320 = scalar_lea.vmem %s1, 10
    %v321 = vld [vmem:[%s320] sm:$0x3]
    %v323 = vsel %vm159, %v321, 0
    %325 = vmatpush.msra.mxu0 0.0
    %326 = vmatpush.msra.mxu0 0.0
    %327 = vmatpush.msra.mxu0 0.0
    %328 = vmatpush.msra.mxu0 0.0
    %329 = vmatpush.msra.mxu0 0.0
    %330 = vmatpush.msra.mxu0 0.0
    %331 = vmatpush.msra.mxu0 0.0
    %332 = vmatpush.msra.mxu0 0.0
    %333 = vmatpush.msra.mxu0 0.0
    %334 = vmatpush.msra.mxu0 0.0
    %335 = vmatpush.msra.mxu0 0.0
    %336 = vmatpush.msra.mxu0 0.0
    %337 = vmatpush.msra.mxu0 0.0
    %338 = vmatpush.msra.mxu0 0.0
    %339 = vmatpush.msra.mxu0 0.0
    %340 = vmatpush.msra.mxu0 %v165
    %341 = vmatmul.f32.gmra.mxu0 %v323
    %v342 = vpop.f32.mrf.mxu0
    %v343 = vadd.f32 0.0, %v342
    %344 = vdwg.mxu0
    %s345 = scalar_lea.vmem %s5, 5
    %v346 = vld [vmem:[%s345] sm:$0x1]
    %v348 = vperm.slane %v346, 0
    %v350 = vmul.f32 %v343, %v348
    %v351 = vadd.f32 %v319, %v350
    %s352 = scalar_lea.vmem %s1, 12
    %v353 = vld [vmem:[%s352] sm:$0x3]
    %v355 = vsel %vm159, %v353, 0
    %357 = vmatpush.msra.mxu0 0.0
    %358 = vmatpush.msra.mxu0 0.0
    %359 = vmatpush.msra.mxu0 0.0
    %360 = vmatpush.msra.mxu0 0.0
    %361 = vmatpush.msra.mxu0 0.0
    %362 = vmatpush.msra.mxu0 0.0
    %363 = vmatpush.msra.mxu0 0.0
    %364 = vmatpush.msra.mxu0 0.0
    %365 = vmatpush.msra.mxu0 0.0
    %366 = vmatpush.msra.mxu0 0.0
    %367 = vmatpush.msra.mxu0 0.0
    %368 = vmatpush.msra.mxu0 0.0
    %369 = vmatpush.msra.mxu0 0.0
    %370 = vmatpush.msra.mxu0 0.0
    %371 = vmatpush.msra.mxu0 0.0
    %372 = vmatpush.msra.mxu0 %v165
    %373 = vmatmul.f32.gmra.mxu0 %v355
    %v374 = vpop.f32.mrf.mxu0
    %v375 = vadd.f32 0.0, %v374
    %376 = vdwg.mxu0
    %s377 = scalar_lea.vmem %s5, 6
    %v378 = vld [vmem:[%s377] sm:$0x1]
    %v380 = vperm.slane %v378, 0
    %v382 = vmul.f32 %v375, %v380
    %v383 = vadd.f32 %v351, %v382
    %s384 = scalar_lea.vmem %s1, 14
    %v385 = vld [vmem:[%s384] sm:$0x3]
    %v387 = vsel %vm159, %v385, 0
    %389 = vmatpush.msra.mxu0 0.0
    %390 = vmatpush.msra.mxu0 0.0
    %391 = vmatpush.msra.mxu0 0.0
    %392 = vmatpush.msra.mxu0 0.0
    %393 = vmatpush.msra.mxu0 0.0
    %394 = vmatpush.msra.mxu0 0.0
    %395 = vmatpush.msra.mxu0 0.0
    %396 = vmatpush.msra.mxu0 0.0
    %397 = vmatpush.msra.mxu0 0.0
    %398 = vmatpush.msra.mxu0 0.0
    %399 = vmatpush.msra.mxu0 0.0
    %400 = vmatpush.msra.mxu0 0.0
    %401 = vmatpush.msra.mxu0 0.0
    %402 = vmatpush.msra.mxu0 0.0
    %403 = vmatpush.msra.mxu0 0.0
    %404 = vmatpush.msra.mxu0 %v165
    %405 = vmatmul.f32.gmra.mxu0 %v387
    %v406 = vpop.f32.mrf.mxu0
    %v407 = vadd.f32 0.0, %v406
    %408 = vdwg.mxu0
    %s409 = scalar_lea.vmem %s5, 7
    %v410 = vld [vmem:[%s409] sm:$0x1]
    %v412 = vperm.slane %v410, 0
    %v414 = vmul.f32 %v407, %v412
    %v415 = vadd.f32 %v383, %v414
    %s416 = scalar_lea.vmem %s1, 16
    %v417 = vld [vmem:[%s416] sm:$0x3]
    %v419 = vsel %vm159, %v417, 0
    %421 = vmatpush.msra.mxu0 0.0
    %422 = vmatpush.msra.mxu0 0.0
    %423 = vmatpush.msra.mxu0 0.0
    %424 = vmatpush.msra.mxu0 0.0
    %425 = vmatpush.msra.mxu0 0.0
    %426 = vmatpush.msra.mxu0 0.0
    %427 = vmatpush.msra.mxu0 0.0
    %428 = vmatpush.msra.mxu0 0.0
    %429 = vmatpush.msra.mxu0 0.0
    %430 = vmatpush.msra.mxu0 0.0
    %431 = vmatpush.msra.mxu0 0.0
    %432 = vmatpush.msra.mxu0 0.0
    %433 = vmatpush.msra.mxu0 0.0
    %434 = vmatpush.msra.mxu0 0.0
    %435 = vmatpush.msra.mxu0 0.0
    %436 = vmatpush.msra.mxu0 %v165
    %437 = vmatmul.f32.gmra.mxu0 %v419
    %v438 = vpop.f32.mrf.mxu0
    %v439 = vadd.f32 0.0, %v438
    %440 = vdwg.mxu0
    %s441 = scalar_lea.vmem %s5, 8
    %v442 = vld [vmem:[%s441] sm:$0x1]
    %v444 = vperm.slane %v442, 0
    %v446 = vmul.f32 %v439, %v444
    %v447 = vadd.f32 %v415, %v446
    %v448 = vld [vmem:[#allocation5] sm:$0x1]
    %v450 = vperm.slane %v448, 0
    %v452 = vadd.f32 %v447, %v450
    %v453 = vpack.c.bf16 %v452, %v452
    %v454 = vld [vmem:[%s7] sm:$0xf]
    %v455 = vld [vmem:[%s7 + $0x4] sm:$0xf]
    %v456 = vld [vmem:[%s7 + $0x8] sm:$0xf]
    %v457 = vld [vmem:[%s7 + $0xc] sm:$0xf]
    %v458 = vld [vmem:[%s7 + $0x10] sm:$0xf]
    %v459 = vld [vmem:[%s7 + $0x14] sm:$0xf]
    %v460 = vld [vmem:[%s7 + $0x18] sm:$0xf]
    %v461 = vld [vmem:[%s7 + $0x1c] sm:$0xf]
    %v462 = vld [vmem:[%s7 + $0x20] sm:$0xf]
    %v463 = vld [vmem:[%s7 + $0x24] sm:$0xf]
    %v464 = vld [vmem:[%s7 + $0x28] sm:$0xf]
    %v465 = vld [vmem:[%s7 + $0x2c] sm:$0xf]
    %v466 = vld [vmem:[%s7 + $0x30] sm:$0xf]
    %v467 = vld [vmem:[%s7 + $0x34] sm:$0xf]
    %v468 = vld [vmem:[%s7 + $0x38] sm:$0xf]
    %v469 = vld [vmem:[%s7 + $0x3c] sm:$0xf]
    %v470 = vld [vmem:[#allocation7] sm:$0x1]
    %v472 = vperm.slane %v470, 0
    %v490 = vunpack.c.l.b16 %v454
    %v491 = vunpack.c.l.b16 %v455
    %v492 = vunpack.c.l.b16 %v456
    %v493 = vunpack.c.l.b16 %v457
    %v494 = vunpack.c.l.b16 %v458
    %v495 = vunpack.c.l.b16 %v459
    %v496 = vunpack.c.l.b16 %v460
    %v497 = vunpack.c.l.b16 %v461
    %v498 = vunpack.c.l.b16 %v462
    %v499 = vunpack.c.l.b16 %v463
    %v500 = vunpack.c.l.b16 %v464
    %v501 = vunpack.c.l.b16 %v465
    %v502 = vunpack.c.l.b16 %v466
    %v503 = vunpack.c.l.b16 %v467
    %v504 = vunpack.c.l.b16 %v468
    %v505 = vunpack.c.l.b16 %v469
    %v506 = vpack.c.b16 %v491, %v490
    %v507 = vpack.c.b16 %v493, %v492
    %v508 = vpack.c.b16 %v495, %v494
    %v509 = vpack.c.b16 %v497, %v496
    %v510 = vpack.c.b16 %v499, %v498
    %v511 = vpack.c.b16 %v501, %v500
    %v512 = vpack.c.b16 %v503, %v502
    %v513 = vpack.c.b16 %v505, %v504
    %522 = vmatpush.bf16.msra.mxu0 %v513
    %523 = vmatpush.bf16.msra.mxu0 %v512
    %524 = vmatpush.bf16.msra.mxu0 %v511
    %525 = vmatpush.bf16.msra.mxu0 %v510
    %526 = vmatpush.bf16.msra.mxu0 %v509
    %527 = vmatpush.bf16.msra.mxu0 %v508
    %528 = vmatpush.bf16.msra.mxu0 %v507
    %529 = vmatpush.bf16.msra.mxu0 %v506
    %530 = vmatmul.bf16.gmra.mxu0 %v453
    %v531 = vpop.f32.mrf.mxu0
    %v532 = vadd.f32 %v472, %v531
    %v533 = vpop.f32.mrf.mxu0
    %534 = vdwg.mxu0
    %v535 = vmax.f32 %v532, 0.0
    %v536 = vld [vmem:[%s2] sm:$0xff]
    %v537 = vld [vmem:[%s2 + $0x8] sm:$0xff]
    %v538 = vld [vmem:[%s2 + $0x10] sm:$0xff]
    %v539 = vld [vmem:[%s2 + $0x18] sm:$0xff]
    %v540 = vld [vmem:[%s2 + $0x20] sm:$0xff]
    %v541 = vld [vmem:[%s2 + $0x28] sm:$0xff]
    %v542 = vld [vmem:[%s2 + $0x30] sm:$0xff]
    %v543 = vld [vmem:[%s2 + $0x38] sm:$0xff]
    %v544 = vld [vmem:[%s2 + $0x40] sm:$0xff]
    %v545 = vld [vmem:[%s2 + $0x48] sm:$0xff]
    %v546 = vld [vmem:[%s2 + $0x50] sm:$0xff]
    %v547 = vld [vmem:[%s2 + $0x58] sm:$0xff]
    %v548 = vld [vmem:[%s2 + $0x60] sm:$0xff]
    %v549 = vld [vmem:[%s2 + $0x68] sm:$0xff]
    %v550 = vld [vmem:[%s2 + $0x70] sm:$0xff]
    %v551 = vld [vmem:[%s2 + $0x78] sm:$0xff]
    %552 = vmatpush.msra.mxu0 %v551
    %553 = vmatpush.msra.mxu0 %v550
    %554 = vmatpush.msra.mxu0 %v549
    %555 = vmatpush.msra.mxu0 %v548
    %556 = vmatpush.msra.mxu0 %v547
    %557 = vmatpush.msra.mxu0 %v546
    %558 = vmatpush.msra.mxu0 %v545
    %559 = vmatpush.msra.mxu0 %v544
    %560 = vmatpush.msra.mxu0 %v543
    %561 = vmatpush.msra.mxu0 %v542
    %562 = vmatpush.msra.mxu0 %v541
    %563 = vmatpush.msra.mxu0 %v540
    %564 = vmatpush.msra.mxu0 %v539
    %565 = vmatpush.msra.mxu0 %v538
    %566 = vmatpush.msra.mxu0 %v537
    %567 = vmatpush.msra.mxu0 %v536
    %568 = vmatmul.f32.gmra.mxu0 %v74
    %v569 = vpop.f32.mrf.mxu0
    %v570 = vadd.f32 %v535, %v569
    %571 = vdwg.mxu0
    %572 = vst [vmem:[#allocation8] sm:$0x3] %v570
    // Predicated region
    $region50: #{forward.13} parent=1 // pred_check
      _
    $region51: #{forward.13} parent=1 // pred_check_branch
      %574 = sbr.rel (0) target = $region53
    $region52: #{forward.13} parent=1 // pred_region
      %576 = vsyncadd [#allocation4], 0
      %s578 = sshll.u32 [#allocation8], 4
      %s579 = int_to_ptr.vmem [resolvable:$true] %s578
      %s580 = sshll.u32 %s9, 4
      %s581 = int_to_ptr.hbm [resolvable:$true] %s580
      %583 = dma.vmem_to_hbm [thread:$0]  %s579, 32, %s581, [#allocation4]
    $region53: #{forward.13} parent=1 // pred_fallthru
      _
    // Predicated region
    $region54: #{forward.13} parent=1 // pred_check
      _
    $region55: #{forward.13} parent=1 // pred_check_branch
      %585 = sbr.rel (0) target = $region57
    $region56: #{forward.13} parent=1 // pred_region
      %587 = dma.done [#allocation4], 32
    $region57: #{forward.13} parent=1 // pred_fallthru
      _
    %588 = vsyncpa [#allocation3], 1
    %589 = vsyncpa [#allocation6], 1
    %590 = vsyncpa [#allocation4], 1

</llo_original>
